<compile_context>
chip_gen: v6e
topology: v6e:2x2x1
jax: 0.10.0
libtpu: 0.0.40
codegen_flags: <defaults>
</compile_context>

<pallas_src>
import functools

import numpy as np
import jax
import jax.numpy as jnp
from jax.experimental import pallas as pl
from jax.experimental.pallas import tpu as pltpu


# ------------------------------ fused kernel -------------------------------- #

def _generator_kernel(x_ref, wfc_ref, bfc_ref, w1_ref, b1_ref, w2_ref, b2_ref,
                      w3_ref, b3_ref, o_ref, x1_ref, x2_ref, x3_ref, *, DIM, Bt):
    C1, C2, C3 = 4 * DIM, 2 * DIM, DIM
    cdt = x_ref.dtype  # bf16 compute dtype for matmul inputs

    # ---- zero the (vertical) halo rows.  Done every step so the kernel is
    # correct even when the parallel grid axis is sharded across TensorCores
    # (each core has its own scratch and may never execute program_id==0).
    # There is no lane halo: the banded weights skip out-of-range horizontal taps.
    x1_ref[:, 0:4, :] = jnp.zeros((Bt, 4, 4 * C1), cdt)
    x1_ref[:, 8:11, :] = jnp.zeros((Bt, 3, 4 * C1), cdt)
    x2_ref[:, 0:4, :] = jnp.zeros((Bt, 4, 7 * C2), cdt)
    x2_ref[:, 11:15, :] = jnp.zeros((Bt, 4, 7 * C2), cdt)
    x3_ref[:, 0:3, :] = jnp.zeros((Bt, 3, 11 * C3), cdt)
    x3_ref[:, 14:17, :] = jnp.zeros((Bt, 3, 11 * C3), cdt)

    # ---------------- FC + ReLU (columns pre-permuted to NHWC order) ----------
    h = jnp.dot(x_ref[...], wfc_ref[...], preferred_element_type=jnp.float32)
    h = jnp.maximum(h + bfc_ref[...], 0.0).astype(cdt)              # (Bt, 16*C1)

    # scatter the 4 spatial rows into the conv1 input (interior rows 4..7)
    for r in range(4):
        x1_ref[:, 4 + r:5 + r, :] = (
            h[:, r * 4 * C1:(r + 1) * 4 * C1].reshape(Bt, 1, 4 * C1))

    # ---- conv1: 5x5 deconv, cropped to 7x7 (crop folded as asymmetric 4/3 pad)
    acc = None
    for kh in range(5):
        lhs = x1_ref[:, kh:kh + 7, :].reshape(Bt * 7, 4 * C1)
        d = jnp.dot(lhs, w1_ref[kh], preferred_element_type=jnp.float32)
        acc = d if acc is None else acc + d
    a = jnp.maximum(acc + b1_ref[...], 0.0).astype(cdt)             # (Bt*7, 7*C2)
    x2_ref[:, 4:11, :] = a.reshape(Bt, 7, 7 * C2)

    # ---- conv2: 5x5 deconv, 7x7 -> 11x11 (pad 4) ------------------------------
    acc = None
    for kh in range(5):
        lhs = x2_ref[:, kh:kh + 11, :].reshape(Bt * 11, 7 * C2)
        d = jnp.dot(lhs, w2_ref[kh], preferred_element_type=jnp.float32)
        acc = d if acc is None else acc + d
    a = jnp.maximum(acc + b2_ref[...], 0.0).astype(cdt)             # (Bt*11, 11*C3)
    x3_ref[:, 3:14, :] = a.reshape(Bt, 11, 11 * C3)

    # ---- conv3: 8x8 stride-2 deconv via 4-phase decomposition (pad 3) ---------
    acc = None
    for kh in range(4):
        lhs = x3_ref[:, kh:kh + 14, :].reshape(Bt * 14, 11 * C3)
        d = jnp.dot(lhs, w3_ref[kh], preferred_element_type=jnp.float32)
        acc = d if acc is None else acc + d
    y = jax.nn.sigmoid(acc + b3_ref[...])                           # (Bt*14, 56) f32
    # output column index is p*28 + ox, so (Bt, 14, 56) row-major == (28, 28).
    o_ref[...] = y.reshape(Bt, 14, 56).astype(o_ref.dtype)


# --------------------------- weight preparation ------------------------------ #

def _banded_stride1(w_t, Wi, Wo, P_left):
    """ConvTranspose2d(K=5, stride=1) weight (Cin, Cout, 5, 5) -> (K, Wi*Cin, Wo*Cout)
    per-vertical-tap banded matrices over the UNPADDED input row (interior only):
    out-of-range horizontal taps are omitted (== multiplying zero padding)."""
    w = np.asarray(w_t, np.float32)
    Cin, Cout, K, _ = w.shape
    W = np.zeros((K, Wi * Cin, Wo * Cout), np.float32)
    for k in range(K):
        for b in range(Wo):
            for kw in range(K):
                c = b + kw - P_left
                if 0 <= c < Wi:
                    W[k, c * Cin:(c + 1) * Cin, b * Cout:(b + 1) * Cout] = \
                        w[:, :, K - 1 - k, K - 1 - kw]
    return W


def _banded_conv3(w3_t, DIM):
    """ConvTranspose2d(DIM, 1, 8, stride=2) weight -> (4, 11*DIM, 56).
    4-phase (sub-pixel) decomposition; output lane index = p*28 + 2*c + q so that
    (14, 56) row-major equals the (28, 28) image row-major order."""
    w = np.asarray(w3_t, np.float32)[:, 0]            # (C3, 8, 8)
    C3 = DIM
    W = np.zeros((4, 11 * C3, 56), np.float32)
    for k in range(4):
        for c in range(14):
            for kw in range(4):
                cc = c + kw - 3
                if not (0 <= cc < 11):
                    continue
                for p in range(2):
                    for q in range(2):
                        W[k, cc * C3:(cc + 1) * C3, p * 28 + 2 * c + q] = \
                            w[:, 6 - 2 * k + p, 6 - 2 * kw + q]
    return W


def prepare_params(params, DIM, dtype=jnp.bfloat16):
    """One-time conversion of PyTorch-layout params to kernel layout."""
    C1 = 4 * DIM
    wfc = (np.asarray(params["w_fc"], np.float32)
           .reshape(128, C1, 4, 4).transpose(0, 2, 3, 1).reshape(128, 16 * C1))
    bfc = (np.asarray(params["b_fc"], np.float32)
           .reshape(C1, 4, 4).transpose(1, 2, 0).reshape(1, -1))
    w1 = _banded_stride1(params["w1"], Wi=4, Wo=7, P_left=4)    # (5, 4*C1, 7*C2)
    w2 = _banded_stride1(params["w2"], Wi=7, Wo=11, P_left=4)   # (5, 7*C2, 11*C3)
    w3 = _banded_conv3(params["w3"], DIM)                       # (4, 11*C3, 56)
    return {
        "wfc": jnp.asarray(wfc, dtype),
        "bfc": jnp.asarray(bfc, jnp.float32),
        "w1": jnp.asarray(w1, dtype),
        "b1": jnp.asarray(np.tile(np.asarray(params["b1"]), 7).reshape(1, -1), jnp.float32),
        "w2": jnp.asarray(w2, dtype),
        "b2": jnp.asarray(np.tile(np.asarray(params["b2"]), 11).reshape(1, -1), jnp.float32),
        "w3": jnp.asarray(w3, dtype),
        "b3": jnp.asarray(np.tile(np.asarray(params["b3"]), 56).reshape(1, -1), jnp.float32),
    }


# ------------------------ helpers: specs / budgeting -------------------------- #

_BUFFERED_OK = None


def _buffered_supported():
    """Runtime probe: does this jax accept pipeline_mode=pl.Buffered(1)?"""
    global _BUFFERED_OK
    if _BUFFERED_OK is None:
        try:
            spec = pl.BlockSpec((8, 128), lambda i: (0, 0),
                                pipeline_mode=pl.Buffered(1))

            def _k(a_ref, o_ref):
                o_ref[...] = a_ref[...] + 1.0

            f = pl.pallas_call(
                _k, out_shape=jax.ShapeDtypeStruct((8, 128), jnp.float32),
                grid=(2,), in_specs=[spec],
                out_specs=pl.BlockSpec((8, 128), lambda i: (0, 0)))
            jax.block_until_ready(f(jnp.zeros((8, 128), jnp.float32)))
            _BUFFERED_OK = True
        except Exception:
            _BUFFERED_OK = False
    return _BUFFERED_OK


def _const_spec(shape):
    """BlockSpec for a grid-invariant operand (whole array, single-buffered)."""
    idx = lambda i: (0,) * len(shape)
    if _buffered_supported():
        return pl.BlockSpec(shape, idx, pipeline_mode=pl.Buffered(1))
    return pl.BlockSpec(shape, idx)


def _pick_block_batch(B):
    if B <= 8:
        return B                      # single block == full (tiny) batch
    for bt in (64, 32, 16, 8):        # prefer big tiles but keep >=2 grid steps
        if B > bt:
            return bt
    return 8


def _vmem_limit_bytes(prep, Bt, DIM):
    C1, C2, C3 = 4 * DIM, 2 * DIM, DIM
    w_bytes = sum(int(v.size) * v.dtype.itemsize for v in prep.values())
    scratch = 2 * Bt * (11 * 4 * C1 + 15 * 7 * C2 + 17 * 11 * C3)      # bf16 scratch
    io = 2 * (Bt * 128 * 2 + Bt * 14 * 56 * 4)                         # I/O blocks (2-buf)
    acts = 16 * Bt * (16 * C1 + 49 * C2 + 121 * C3 + 14 * 56)          # f32 temporaries
    need = 2 * w_bytes + scratch + io + acts + (8 << 20)
    return int(min(max(need, 32 << 20), 64 << 20))


# ------------------------------ full forward --------------------------------- #

def generator_forward(x, prep, DIM, block_batch=None):
    B = x.shape[0]
    Bt = block_batch if block_batch is not None else _pick_block_batch(B)
    Bp = ((B + Bt - 1) // Bt) * Bt
    xb = x.astype(jnp.bfloat16)
    if Bp != B:
        xb = jnp.concatenate([xb, jnp.zeros((Bp - B, xb.shape[1]), xb.dtype)], axis=0)

    C1, C2, C3 = 4 * DIM, 2 * DIM, DIM
    kernel = functools.partial(_generator_kernel, DIM=DIM, Bt=Bt)

    out = pl.pallas_call(
        kernel,
        out_shape=jax.ShapeDtypeStruct((Bp, 14, 56), jnp.float32),
        grid=(Bp // Bt,),
        in_specs=[
            pl.BlockSpec((Bt, 128), lambda i: (i, 0)),
            _const_spec(prep["wfc"].shape), _const_spec(prep["bfc"].shape),
            _const_spec(prep["w1"].shape), _const_spec(prep["b1"].shape),
            _const_spec(prep["w2"].shape), _const_spec(prep["b2"].shape),
            _const_spec(prep["w3"].shape), _const_spec(prep["b3"].shape),
        ],
        out_specs=pl.BlockSpec((Bt, 14, 56), lambda i: (i, 0, 0)),
        scratch_shapes=[
            pltpu.VMEM((Bt, 11, 4 * C1), jnp.bfloat16),    # conv1 input (rows 4..7 live)
            pltpu.VMEM((Bt, 15, 7 * C2), jnp.bfloat16),    # conv2 input (rows 4..10 live)
            pltpu.VMEM((Bt, 17, 11 * C3), jnp.bfloat16),   # conv3 input (rows 3..13 live)
        ],
        compiler_params=pltpu.CompilerParams(
            dimension_semantics=("parallel",),
            vmem_limit_bytes=_vmem_limit_bytes(prep, Bt, DIM)),
    )(xb, prep["wfc"], prep["bfc"], prep["w1"], prep["b1"],
      prep["w2"], prep["b2"], prep["w3"], prep["b3"])

    # (Bp, 14, 56) row-major == (Bp, 28, 28) row-major == torch .view(B, -1)
    return out.reshape(Bp, 28 * 28)[:B]


# --------------------------- pure-JAX reference ------------------------------ #

def _conv_transpose_ref(x_nchw, w_t, b, stride):
    Cin, Cout, K, _ = w_t.shape
    rhs = jnp.transpose(w_t, (1, 0, 2, 3))[:, :, ::-1, ::-1]   # (Cout, Cin, K, K)
    y = jax.lax.conv_general_dilated(
        x_nchw, rhs, window_strides=(1, 1),
        padding=[(K - 1, K - 1), (K - 1, K - 1)],
        lhs_dilation=(stride, stride),
        dimension_numbers=("NCHW", "OIHW", "NCHW"))
    return y + b.reshape(1, Cout, 1, 1)


def generator_reference(x, params, DIM):
    h = jnp.maximum(x @ params["w_fc"] + params["b_fc"], 0.0)
    h = h.reshape(-1, 4 * DIM, 4, 4)
    h = jnp.maximum(_conv_transpose_ref(h, params["w1"], params["b1"], 1), 0.0)
    h = h[:, :, :7, :7]
    h = jnp.maximum(_conv_transpose_ref(h, params["w2"], params["b2"], 1), 0.0)
    h = _conv_transpose_ref(h, params["w3"], params["b3"], 2)
    return jax.nn.sigmoid(h).reshape(x.shape[0], -1)


# ----------------------------------- init ------------------------------------ #

def init_params(key, DIM):
    ks = jax.random.split(key, 8)
    s = 0.05
    return {
        # nn.Linear(128, 4*4*4*DIM)   (stored as (in, out))
        "w_fc": jax.random.normal(ks[0], (128, 4 * 4 * 4 * DIM), jnp.float32) * s,
        "b_fc": jax.random.normal(ks[1], (4 * 4 * 4 * DIM,), jnp.float32) * s,
        # nn.ConvTranspose2d(4*DIM, 2*DIM, 5)  weight: (Cin, Cout, 5, 5)
        "w1": jax.random.normal(ks[2], (4 * DIM, 2 * DIM, 5, 5), jnp.float32) * s,
        "b1": jax.random.normal(ks[3], (2 * DIM,), jnp.float32) * s,
        # nn.ConvTranspose2d(2*DIM, DIM, 5)
        "w2": jax.random.normal(ks[4], (2 * DIM, DIM, 5, 5), jnp.float32) * s,
        "b2": jax.random.normal(ks[5], (DIM,), jnp.float32) * s,
        # nn.ConvTranspose2d(DIM, 1, 8, stride=2)
        "w3": jax.random.normal(ks[6], (DIM, 1, 8, 8), jnp.float32) * s,
        "b3": jax.random.normal(ks[7], (1,), jnp.float32) * s,
    }


if __name__ == "__main__":
    DIM = 16      # small DIM for testing (module default is 64); latent dim fixed at 128
    key = jax.random.PRNGKey(0)
    pkey, xkey, xkey2 = jax.random.split(key, 3)
    params = init_params(pkey, DIM)
    prep = prepare_params(params, DIM)            # one-time weight repack (bf16)

    # -- small batch: single grid step, block == full batch -------------------
    x = jax.random.normal(xkey, (2, 128), jnp.float32)
    out = jax.block_until_ready(generator_forward(x, prep, DIM))
    assert out.shape == (2, 28 * 28), out.shape
    assert bool(jnp.all(jnp.isfinite(out)))
    assert bool(jnp.all((out >= 0.0) & (out <= 1.0)))       # sigmoid range
    ref = generator_reference(x, params, DIM)               # f32 XLA reference
    err = float(jnp.max(jnp.abs(out - ref)))
    assert err < 5e-2, f"max |kernel - ref| = {err}"

    # -- larger batch: multi-step parallel grid + batch padding path ----------
    x2 = jax.random.normal(xkey2, (48, 128), jnp.float32)
    out2 = jax.block_until_ready(generator_forward(x2, prep, DIM))
    assert out2.shape == (48, 28 * 28), out2.shape
    ref2 = generator_reference(x2, params, DIM)
    err2 = float(jnp.max(jnp.abs(out2 - ref2)))
    assert err2 < 5e-2, f"max |kernel - ref| (batch 48) = {err2}"

    print("KERNEL_OK")
</pallas_src>

<mosaic_0001>
module attributes {stable_mosaic.version = 11 : i64} {
  func.func @_k(%arg0: i32, %arg1: memref<8x128xf32, #tpu.memory_space<vmem>>, %arg2: memref<8x128xf32, #tpu.memory_space<vmem>>) attributes {dimension_semantics = [#tpu.dimension_semantics<arbitrary>], iteration_bounds = array<i64: 2>, scalar_prefetch = 0 : i64, scratch_operands = 0 : i64, tpu.core_type = #tpu.core_type<tc>, window_params = [{pipeline_mode = #tpu.pipeline_mode<synchronous>, transform_indices = @transform_0, window_bounds = array<i64: 8, 128>}, {pipeline_mode = #tpu.pipeline_mode<synchronous>, transform_indices = @transform_1, window_bounds = array<i64: 8, 128>}]} {
    %c0 = arith.constant 0 : index
    %c0_0 = arith.constant 0 : index
    %0 = vector.load %arg1[%c0, %c0_0] : memref<8x128xf32, #tpu.memory_space<vmem>>, vector<8x128xf32>
    %cst = arith.constant 1.000000e+00 : f32
    %1 = vector.broadcast %cst : f32 to vector<8x128xf32>
    %2 = arith.addf %0, %1 : vector<8x128xf32>
    %c0_1 = arith.constant 0 : index
    %c0_2 = arith.constant 0 : index
    %3 = vector.load %arg2[%c0_1, %c0_2] : memref<8x128xf32, #tpu.memory_space<vmem>>, vector<8x128xf32>
    tpu.vector_store %arg2[%c0_1, %c0_2], %2 {strides = array<i32>} : memref<8x128xf32, #tpu.memory_space<vmem>>, vector<8x128xf32>,
    return
  }
  func.func @transform_0(%arg0: i32) -> (i32, i32) {
    %c0_i32 = arith.constant 0 : i32
    %c0_i32_0 = arith.constant 0 : i32
    %c0_i32_1 = arith.constant 0 : i32
    return %c0_i32, %c0_i32_0 : i32, i32
  }
  func.func @transform_1(%arg0: i32) -> (i32, i32) {
    %c0_i32 = arith.constant 0 : i32
    %c0_i32_0 = arith.constant 0 : i32
    %c0_i32_1 = arith.constant 0 : i32
    return %c0_i32, %c0_i32_0 : i32, i32
  }
}

module attributes {stable_mosaic.version = 11 : i64} {
  func.func @_generator_kernel(%arg0: i32, %arg1: memref<2x128xbf16, #tpu.memory_space<vmem>>, %arg2: memref<128x1024xbf16, #tpu.memory_space<vmem>>, %arg3: memref<1x1024xf32, #tpu.memory_space<vmem>>, %arg4: memref<5x256x224xbf16, #tpu.memory_space<vmem>>, %arg5: memref<1x224xf32, #tpu.memory_space<vmem>>, %arg6: memref<5x224x176xbf16, #tpu.memory_space<vmem>>, %arg7: memref<1x176xf32, #tpu.memory_space<vmem>>, %arg8: memref<4x176x56xbf16, #tpu.memory_space<vmem>>, %arg9: memref<1x56xf32, #tpu.memory_space<vmem>>, %arg10: memref<2x14x56xf32, #tpu.memory_space<vmem>>, %arg11: memref<2x11x256xbf16, #tpu.memory_space<vmem>>, %arg12: memref<2x15x224xbf16, #tpu.memory_space<vmem>>, %arg13: memref<2x17x176xbf16, #tpu.memory_space<vmem>>) attributes {dimension_semantics = [#tpu.dimension_semantics<parallel>], iteration_bounds = array<i64: 1>, scalar_prefetch = 0 : i64, scratch_operands = 3 : i64, tpu.core_type = #tpu.core_type<tc>, window_params = [{transform_indices = @transform_0, window_bounds = array<i64: 2, 128>}, {pipeline_mode = #tpu.pipeline_mode<synchronous>, transform_indices = @transform_1, window_bounds = array<i64: 128, 1024>}, {pipeline_mode = #tpu.pipeline_mode<synchronous>, transform_indices = @transform_2, window_bounds = array<i64: 1, 1024>}, {pipeline_mode = #tpu.pipeline_mode<synchronous>, transform_indices = @transform_3, window_bounds = array<i64: 5, 256, 224>}, {pipeline_mode = #tpu.pipeline_mode<synchronous>, transform_indices = @transform_4, window_bounds = array<i64: 1, 224>}, {pipeline_mode = #tpu.pipeline_mode<synchronous>, transform_indices = @transform_5, window_bounds = array<i64: 5, 224, 176>}, {pipeline_mode = #tpu.pipeline_mode<synchronous>, transform_indices = @transform_6, window_bounds = array<i64: 1, 176>}, {pipeline_mode = #tpu.pipeline_mode<synchronous>, transform_indices = @transform_7, window_bounds = array<i64: 4, 176, 56>}, {pipeline_mode = #tpu.pipeline_mode<synchronous>, transform_indices = @transform_8, window_bounds = array<i64: 1, 56>}, {transform_indices = @transform_9, window_bounds = array<i64: 2, 14, 56>}]} {
    %cst = arith.constant 0.000000e+00 : bf16
    %0 = vector.broadcast %cst : bf16 to vector<2x4x256xbf16>
    %c0 = arith.constant 0 : index
    %c0_0 = arith.constant 0 : index
    %c0_1 = arith.constant 0 : index
    %1 = vector.load %arg11[%c0, %c0_0, %c0_1] : memref<2x11x256xbf16, #tpu.memory_space<vmem>>, vector<2x4x256xbf16>
    tpu.vector_store %arg11[%c0, %c0_0, %c0_1], %0 {strides = array<i32>} : memref<2x11x256xbf16, #tpu.memory_space<vmem>>, vector<2x4x256xbf16>,
    %cst_2 = arith.constant 0.000000e+00 : bf16
    %2 = vector.broadcast %cst_2 : bf16 to vector<2x3x256xbf16>
    %c0_3 = arith.constant 0 : index
    %c8 = arith.constant 8 : index
    %c0_4 = arith.constant 0 : index
    %3 = vector.load %arg11[%c0_3, %c8, %c0_4] : memref<2x11x256xbf16, #tpu.memory_space<vmem>>, vector<2x3x256xbf16>
    tpu.vector_store %arg11[%c0_3, %c8, %c0_4], %2 {strides = array<i32>} : memref<2x11x256xbf16, #tpu.memory_space<vmem>>, vector<2x3x256xbf16>,
    %cst_5 = arith.constant 0.000000e+00 : bf16
    %4 = vector.broadcast %cst_5 : bf16 to vector<2x4x224xbf16>
    %c0_6 = arith.constant 0 : index
    %c0_7 = arith.constant 0 : index
    %c0_8 = arith.constant 0 : index
    %5 = vector.load %arg12[%c0_6, %c0_7, %c0_8] : memref<2x15x224xbf16, #tpu.memory_space<vmem>>, vector<2x4x224xbf16>
    tpu.vector_store %arg12[%c0_6, %c0_7, %c0_8], %4 {strides = array<i32>} : memref<2x15x224xbf16, #tpu.memory_space<vmem>>, vector<2x4x224xbf16>,
    %cst_9 = arith.constant 0.000000e+00 : bf16
    %6 = vector.broadcast %cst_9 : bf16 to vector<2x4x224xbf16>
    %c0_10 = arith.constant 0 : index
    %c11 = arith.constant 11 : index
    %c0_11 = arith.constant 0 : index
    %7 = vector.load %arg12[%c0_10, %c11, %c0_11] : memref<2x15x224xbf16, #tpu.memory_space<vmem>>, vector<2x4x224xbf16>
    tpu.vector_store %arg12[%c0_10, %c11, %c0_11], %6 {strides = array<i32>} : memref<2x15x224xbf16, #tpu.memory_space<vmem>>, vector<2x4x224xbf16>,
    %cst_12 = arith.constant 0.000000e+00 : bf16
    %8 = vector.broadcast %cst_12 : bf16 to vector<2x3x176xbf16>
    %c0_13 = arith.constant 0 : index
    %c0_14 = arith.constant 0 : index
    %c0_15 = arith.constant 0 : index
    %9 = vector.load %arg13[%c0_13, %c0_14, %c0_15] : memref<2x17x176xbf16, #tpu.memory_space<vmem>>, vector<2x3x176xbf16>
    tpu.vector_store %arg13[%c0_13, %c0_14, %c0_15], %8 {strides = array<i32>} : memref<2x17x176xbf16, #tpu.memory_space<vmem>>, vector<2x3x176xbf16>,
    %cst_16 = arith.constant 0.000000e+00 : bf16
    %10 = vector.broadcast %cst_16 : bf16 to vector<2x3x176xbf16>
    %c0_17 = arith.constant 0 : index
    %c14 = arith.constant 14 : index
    %c0_18 = arith.constant 0 : index
    %11 = vector.load %arg13[%c0_17, %c14, %c0_18] : memref<2x17x176xbf16, #tpu.memory_space<vmem>>, vector<2x3x176xbf16>
    tpu.vector_store %arg13[%c0_17, %c14, %c0_18], %10 {strides = array<i32>} : memref<2x17x176xbf16, #tpu.memory_space<vmem>>, vector<2x3x176xbf16>,
    %c0_19 = arith.constant 0 : index
    %c0_20 = arith.constant 0 : index
    %12 = vector.load %arg1[%c0_19, %c0_20] : memref<2x128xbf16, #tpu.memory_space<vmem>>, vector<2x128xbf16>
    %c0_21 = arith.constant 0 : index
    %c0_22 = arith.constant 0 : index
    %13 = vector.load %arg2[%c0_21, %c0_22] : memref<128x1024xbf16, #tpu.memory_space<vmem>>, vector<128x1024xbf16>
    %cst_23 = arith.constant dense<0.000000e+00> : vector<2x1024xf32>
    %14 = tpu.matmul %12, %13, %cst_23 {dimension_numbers = #tpu.dot_dimension_numbers<[1], [0], [0], [1], [0, 0, 1, 1], [], []>} : vector<2x128xbf16>, vector<128x1024xbf16>, vector<2x1024xf32> -> vector<2x1024xf32>
    %c0_24 = arith.constant 0 : index
    %c0_25 = arith.constant 0 : index
    %15 = vector.load %arg3[%c0_24, %c0_25] : memref<1x1024xf32, #tpu.memory_space<vmem>>, vector<1x1024xf32>
    %16 = vector.broadcast %15 : vector<1x1024xf32> to vector<2x1024xf32>
    %17 = arith.addf %14, %16 : vector<2x1024xf32>
    %cst_26 = arith.constant 0.000000e+00 : f32
    %18 = vector.broadcast %cst_26 : f32 to vector<2x1024xf32>
    %19 = arith.maximumf %17, %18 : vector<2x1024xf32>
    %20 = arith.truncf %19 : vector<2x1024xf32> to vector<2x1024xbf16>
    %21 = vector.extract_strided_slice %20 {offsets = [0, 0], sizes = [2, 256], strides = [1, 1]} : vector<2x1024xbf16> to vector<2x256xbf16>
    %22 = vector.shape_cast %21 : vector<2x256xbf16> to vector<2x1x256xbf16>
    %c0_27 = arith.constant 0 : index
    %c4 = arith.constant 4 : index
    %c0_28 = arith.constant 0 : index
    %23 = vector.load %arg11[%c0_27, %c4, %c0_28] : memref<2x11x256xbf16, #tpu.memory_space<vmem>>, vector<2x1x256xbf16>
    tpu.vector_store %arg11[%c0_27, %c4, %c0_28], %22 {strides = array<i32>} : memref<2x11x256xbf16, #tpu.memory_space<vmem>>, vector<2x1x256xbf16>,
    %24 = vector.extract_strided_slice %20 {offsets = [0, 256], sizes = [2, 256], strides = [1, 1]} : vector<2x1024xbf16> to vector<2x256xbf16>
    %25 = vector.shape_cast %24 : vector<2x256xbf16> to vector<2x1x256xbf16>
    %c0_29 = arith.constant 0 : index
    %c5 = arith.constant 5 : index
    %c0_30 = arith.constant 0 : index
    %26 = vector.load %arg11[%c0_29, %c5, %c0_30] : memref<2x11x256xbf16, #tpu.memory_space<vmem>>, vector<2x1x256xbf16>
    tpu.vector_store %arg11[%c0_29, %c5, %c0_30], %25 {strides = array<i32>} : memref<2x11x256xbf16, #tpu.memory_space<vmem>>, vector<2x1x256xbf16>,
    %27 = vector.extract_strided_slice %20 {offsets = [0, 512], sizes = [2, 256], strides = [1, 1]} : vector<2x1024xbf16> to vector<2x256xbf16>
    %28 = vector.shape_cast %27 : vector<2x256xbf16> to vector<2x1x256xbf16>
    %c0_31 = arith.constant 0 : index
    %c6 = arith.constant 6 : index
    %c0_32 = arith.constant 0 : index
    %29 = vector.load %arg11[%c0_31, %c6, %c0_32] : memref<2x11x256xbf16, #tpu.memory_space<vmem>>, vector<2x1x256xbf16>
    tpu.vector_store %arg11[%c0_31, %c6, %c0_32], %28 {strides = array<i32>} : memref<2x11x256xbf16, #tpu.memory_space<vmem>>, vector<2x1x256xbf16>,
    %30 = vector.extract_strided_slice %20 {offsets = [0, 768], sizes = [2, 256], strides = [1, 1]} : vector<2x1024xbf16> to vector<2x256xbf16>
    %31 = vector.shape_cast %30 : vector<2x256xbf16> to vector<2x1x256xbf16>
    %c0_33 = arith.constant 0 : index
    %c7 = arith.constant 7 : index
    %c0_34 = arith.constant 0 : index
    %32 = vector.load %arg11[%c0_33, %c7, %c0_34] : memref<2x11x256xbf16, #tpu.memory_space<vmem>>, vector<2x1x256xbf16>
    tpu.vector_store %arg11[%c0_33, %c7, %c0_34], %31 {strides = array<i32>} : memref<2x11x256xbf16, #tpu.memory_space<vmem>>, vector<2x1x256xbf16>,
    %c0_35 = arith.constant 0 : index
    %c0_36 = arith.constant 0 : index
    %c0_37 = arith.constant 0 : index
    %33 = vector.load %arg11[%c0_35, %c0_36, %c0_37] : memref<2x11x256xbf16, #tpu.memory_space<vmem>>, vector<2x7x256xbf16>
    %34 = vector.shape_cast %33 : vector<2x7x256xbf16> to vector<14x256xbf16>
    %c0_38 = arith.constant 0 : index
    %c0_39 = arith.constant 0 : index
    %c0_40 = arith.constant 0 : index
    %35 = vector.load %arg4[%c0_38, %c0_39, %c0_40] : memref<5x256x224xbf16, #tpu.memory_space<vmem>>, vector<1x256x224xbf16>
    %36 = vector.shape_cast %35 : vector<1x256x224xbf16> to vector<256x224xbf16>
    %cst_41 = arith.constant dense<0.000000e+00> : vector<14x224xf32>
    %37 = tpu.matmul %34, %36, %cst_41 {dimension_numbers = #tpu.dot_dimension_numbers<[1], [0], [0], [1], [0, 0, 1, 1], [], []>} : vector<14x256xbf16>, vector<256x224xbf16>, vector<14x224xf32> -> vector<14x224xf32>
    %c0_42 = arith.constant 0 : index
    %c1 = arith.constant 1 : index
    %c0_43 = arith.constant 0 : index
    %38 = vector.load %arg11[%c0_42, %c1, %c0_43] : memref<2x11x256xbf16, #tpu.memory_space<vmem>>, vector<2x7x256xbf16>
    %39 = vector.shape_cast %38 : vector<2x7x256xbf16> to vector<14x256xbf16>
    %c1_44 = arith.constant 1 : index
    %c0_45 = arith.constant 0 : index
    %c0_46 = arith.constant 0 : index
    %40 = vector.load %arg4[%c1_44, %c0_45, %c0_46] : memref<5x256x224xbf16, #tpu.memory_space<vmem>>, vector<1x256x224xbf16>
    %41 = vector.shape_cast %40 : vector<1x256x224xbf16> to vector<256x224xbf16>
    %cst_47 = arith.constant dense<0.000000e+00> : vector<14x224xf32>
    %42 = tpu.matmul %39, %41, %cst_47 {dimension_numbers = #tpu.dot_dimension_numbers<[1], [0], [0], [1], [0, 0, 1, 1], [], []>} : vector<14x256xbf16>, vector<256x224xbf16>, vector<14x224xf32> -> vector<14x224xf32>
    %43 = arith.addf %37, %42 : vector<14x224xf32>
    %c0_48 = arith.constant 0 : index
    %c2 = arith.constant 2 : index
    %c0_49 = arith.constant 0 : index
    %44 = vector.load %arg11[%c0_48, %c2, %c0_49] : memref<2x11x256xbf16, #tpu.memory_space<vmem>>, vector<2x7x256xbf16>
    %45 = vector.shape_cast %44 : vector<2x7x256xbf16> to vector<14x256xbf16>
    %c2_50 = arith.constant 2 : index
    %c0_51 = arith.constant 0 : index
    %c0_52 = arith.constant 0 : index
    %46 = vector.load %arg4[%c2_50, %c0_51, %c0_52] : memref<5x256x224xbf16, #tpu.memory_space<vmem>>, vector<1x256x224xbf16>
    %47 = vector.shape_cast %46 : vector<1x256x224xbf16> to vector<256x224xbf16>
    %cst_53 = arith.constant dense<0.000000e+00> : vector<14x224xf32>
    %48 = tpu.matmul %45, %47, %cst_53 {dimension_numbers = #tpu.dot_dimension_numbers<[1], [0], [0], [1], [0, 0, 1, 1], [], []>} : vector<14x256xbf16>, vector<256x224xbf16>, vector<14x224xf32> -> vector<14x224xf32>
    %49 = arith.addf %43, %48 : vector<14x224xf32>
    %c0_54 = arith.constant 0 : index
    %c3 = arith.constant 3 : index
    %c0_55 = arith.constant 0 : index
    %50 = vector.load %arg11[%c0_54, %c3, %c0_55] : memref<2x11x256xbf16, #tpu.memory_space<vmem>>, vector<2x7x256xbf16>
    %51 = vector.shape_cast %50 : vector<2x7x256xbf16> to vector<14x256xbf16>
    %c3_56 = arith.constant 3 : index
    %c0_57 = arith.constant 0 : index
    %c0_58 = arith.constant 0 : index
    %52 = vector.load %arg4[%c3_56, %c0_57, %c0_58] : memref<5x256x224xbf16, #tpu.memory_space<vmem>>, vector<1x256x224xbf16>
    %53 = vector.shape_cast %52 : vector<1x256x224xbf16> to vector<256x224xbf16>
    %cst_59 = arith.constant dense<0.000000e+00> : vector<14x224xf32>
    %54 = tpu.matmul %51, %53, %cst_59 {dimension_numbers = #tpu.dot_dimension_numbers<[1], [0], [0], [1], [0, 0, 1, 1], [], []>} : vector<14x256xbf16>, vector<256x224xbf16>, vector<14x224xf32> -> vector<14x224xf32>
    %55 = arith.addf %49, %54 : vector<14x224xf32>
    %c0_60 = arith.constant 0 : index
    %c4_61 = arith.constant 4 : index
    %c0_62 = arith.constant 0 : index
    %56 = vector.load %arg11[%c0_60, %c4_61, %c0_62] : memref<2x11x256xbf16, #tpu.memory_space<vmem>>, vector<2x7x256xbf16>
    %57 = vector.shape_cast %56 : vector<2x7x256xbf16> to vector<14x256xbf16>
    %c4_63 = arith.constant 4 : index
    %c0_64 = arith.constant 0 : index
    %c0_65 = arith.constant 0 : index
    %58 = vector.load %arg4[%c4_63, %c0_64, %c0_65] : memref<5x256x224xbf16, #tpu.memory_space<vmem>>, vector<1x256x224xbf16>
    %59 = vector.shape_cast %58 : vector<1x256x224xbf16> to vector<256x224xbf16>
    %cst_66 = arith.constant dense<0.000000e+00> : vector<14x224xf32>
    %60 = tpu.matmul %57, %59, %cst_66 {dimension_numbers = #tpu.dot_dimension_numbers<[1], [0], [0], [1], [0, 0, 1, 1], [], []>} : vector<14x256xbf16>, vector<256x224xbf16>, vector<14x224xf32> -> vector<14x224xf32>
    %61 = arith.addf %55, %60 : vector<14x224xf32>
    %c0_67 = arith.constant 0 : index
    %c0_68 = arith.constant 0 : index
    %62 = vector.load %arg5[%c0_67, %c0_68] : memref<1x224xf32, #tpu.memory_space<vmem>>, vector<1x224xf32>
    %63 = vector.broadcast %62 : vector<1x224xf32> to vector<14x224xf32>
    %64 = arith.addf %61, %63 : vector<14x224xf32>
    %cst_69 = arith.constant 0.000000e+00 : f32
    %65 = vector.broadcast %cst_69 : f32 to vector<14x224xf32>
    %66 = arith.maximumf %64, %65 : vector<14x224xf32>
    %67 = arith.truncf %66 : vector<14x224xf32> to vector<14x224xbf16>
    %68 = vector.shape_cast %67 : vector<14x224xbf16> to vector<2x7x224xbf16>
    %c0_70 = arith.constant 0 : index
    %c4_71 = arith.constant 4 : index
    %c0_72 = arith.constant 0 : index
    %69 = vector.load %arg12[%c0_70, %c4_71, %c0_72] : memref<2x15x224xbf16, #tpu.memory_space<vmem>>, vector<2x7x224xbf16>
    tpu.vector_store %arg12[%c0_70, %c4_71, %c0_72], %68 {strides = array<i32>} : memref<2x15x224xbf16, #tpu.memory_space<vmem>>, vector<2x7x224xbf16>,
    %c0_73 = arith.constant 0 : index
    %c0_74 = arith.constant 0 : index
    %c0_75 = arith.constant 0 : index
    %70 = vector.load %arg12[%c0_73, %c0_74, %c0_75] : memref<2x15x224xbf16, #tpu.memory_space<vmem>>, vector<2x11x224xbf16>
    %71 = vector.shape_cast %70 : vector<2x11x224xbf16> to vector<22x224xbf16>
    %c0_76 = arith.constant 0 : index
    %c0_77 = arith.constant 0 : index
    %c0_78 = arith.constant 0 : index
    %72 = vector.load %arg6[%c0_76, %c0_77, %c0_78] : memref<5x224x176xbf16, #tpu.memory_space<vmem>>, vector<1x224x176xbf16>
    %73 = vector.shape_cast %72 : vector<1x224x176xbf16> to vector<224x176xbf16>
    %cst_79 = arith.constant dense<0.000000e+00> : vector<22x176xf32>
    %74 = tpu.matmul %71, %73, %cst_79 {dimension_numbers = #tpu.dot_dimension_numbers<[1], [0], [0], [1], [0, 0, 1, 1], [], []>} : vector<22x224xbf16>, vector<224x176xbf16>, vector<22x176xf32> -> vector<22x176xf32>
    %c0_80 = arith.constant 0 : index
    %c1_81 = arith.constant 1 : index
    %c0_82 = arith.constant 0 : index
    %75 = vector.load %arg12[%c0_80, %c1_81, %c0_82] : memref<2x15x224xbf16, #tpu.memory_space<vmem>>, vector<2x11x224xbf16>
    %76 = vector.shape_cast %75 : vector<2x11x224xbf16> to vector<22x224xbf16>
    %c1_83 = arith.constant 1 : index
    %c0_84 = arith.constant 0 : index
    %c0_85 = arith.constant 0 : index
    %77 = vector.load %arg6[%c1_83, %c0_84, %c0_85] : memref<5x224x176xbf16, #tpu.memory_space<vmem>>, vector<1x224x176xbf16>
    %78 = vector.shape_cast %77 : vector<1x224x176xbf16> to vector<224x176xbf16>
    %cst_86 = arith.constant dense<0.000000e+00> : vector<22x176xf32>
    %79 = tpu.matmul %76, %78, %cst_86 {dimension_numbers = #tpu.dot_dimension_numbers<[1], [0], [0], [1], [0, 0, 1, 1], [], []>} : vector<22x224xbf16>, vector<224x176xbf16>, vector<22x176xf32> -> vector<22x176xf32>
    %80 = arith.addf %74, %79 : vector<22x176xf32>
    %c0_87 = arith.constant 0 : index
    %c2_88 = arith.constant 2 : index
    %c0_89 = arith.constant 0 : index
    %81 = vector.load %arg12[%c0_87, %c2_88, %c0_89] : memref<2x15x224xbf16, #tpu.memory_space<vmem>>, vector<2x11x224xbf16>
    %82 = vector.shape_cast %81 : vector<2x11x224xbf16> to vector<22x224xbf16>
    %c2_90 = arith.constant 2 : index
    %c0_91 = arith.constant 0 : index
    %c0_92 = arith.constant 0 : index
    %83 = vector.load %arg6[%c2_90, %c0_91, %c0_92] : memref<5x224x176xbf16, #tpu.memory_space<vmem>>, vector<1x224x176xbf16>
    %84 = vector.shape_cast %83 : vector<1x224x176xbf16> to vector<224x176xbf16>
    %cst_93 = arith.constant dense<0.000000e+00> : vector<22x176xf32>
    %85 = tpu.matmul %82, %84, %cst_93 {dimension_numbers = #tpu.dot_dimension_numbers<[1], [0], [0], [1], [0, 0, 1, 1], [], []>} : vector<22x224xbf16>, vector<224x176xbf16>, vector<22x176xf32> -> vector<22x176xf32>
    %86 = arith.addf %80, %85 : vector<22x176xf32>
    %c0_94 = arith.constant 0 : index
    %c3_95 = arith.constant 3 : index
    %c0_96 = arith.constant 0 : index
    %87 = vector.load %arg12[%c0_94, %c3_95, %c0_96] : memref<2x15x224xbf16, #tpu.memory_space<vmem>>, vector<2x11x224xbf16>
    %88 = vector.shape_cast %87 : vector<2x11x224xbf16> to vector<22x224xbf16>
    %c3_97 = arith.constant 3 : index
    %c0_98 = arith.constant 0 : index
    %c0_99 = arith.constant 0 : index
    %89 = vector.load %arg6[%c3_97, %c0_98, %c0_99] : memref<5x224x176xbf16, #tpu.memory_space<vmem>>, vector<1x224x176xbf16>
    %90 = vector.shape_cast %89 : vector<1x224x176xbf16> to vector<224x176xbf16>
    %cst_100 = arith.constant dense<0.000000e+00> : vector<22x176xf32>
    %91 = tpu.matmul %88, %90, %cst_100 {dimension_numbers = #tpu.dot_dimension_numbers<[1], [0], [0], [1], [0, 0, 1, 1], [], []>} : vector<22x224xbf16>, vector<224x176xbf16>, vector<22x176xf32> -> vector<22x176xf32>
    %92 = arith.addf %86, %91 : vector<22x176xf32>
    %c0_101 = arith.constant 0 : index
    %c4_102 = arith.constant 4 : index
    %c0_103 = arith.constant 0 : index
    %93 = vector.load %arg12[%c0_101, %c4_102, %c0_103] : memref<2x15x224xbf16, #tpu.memory_space<vmem>>, vector<2x11x224xbf16>
    %94 = vector.shape_cast %93 : vector<2x11x224xbf16> to vector<22x224xbf16>
    %c4_104 = arith.constant 4 : index
    %c0_105 = arith.constant 0 : index
    %c0_106 = arith.constant 0 : index
    %95 = vector.load %arg6[%c4_104, %c0_105, %c0_106] : memref<5x224x176xbf16, #tpu.memory_space<vmem>>, vector<1x224x176xbf16>
    %96 = vector.shape_cast %95 : vector<1x224x176xbf16> to vector<224x176xbf16>
    %cst_107 = arith.constant dense<0.000000e+00> : vector<22x176xf32>
    %97 = tpu.matmul %94, %96, %cst_107 {dimension_numbers = #tpu.dot_dimension_numbers<[1], [0], [0], [1], [0, 0, 1, 1], [], []>} : vector<22x224xbf16>, vector<224x176xbf16>, vector<22x176xf32> -> vector<22x176xf32>
    %98 = arith.addf %92, %97 : vector<22x176xf32>
    %c0_108 = arith.constant 0 : index
    %c0_109 = arith.constant 0 : index
    %99 = vector.load %arg7[%c0_108, %c0_109] : memref<1x176xf32, #tpu.memory_space<vmem>>, vector<1x176xf32>
    %100 = vector.broadcast %99 : vector<1x176xf32> to vector<22x176xf32>
    %101 = arith.addf %98, %100 : vector<22x176xf32>
    %cst_110 = arith.constant 0.000000e+00 : f32
    %102 = vector.broadcast %cst_110 : f32 to vector<22x176xf32>
    %103 = arith.maximumf %101, %102 : vector<22x176xf32>
    %104 = arith.truncf %103 : vector<22x176xf32> to vector<22x176xbf16>
    %105 = vector.shape_cast %104 : vector<22x176xbf16> to vector<2x11x176xbf16>
    %c0_111 = arith.constant 0 : index
    %c3_112 = arith.constant 3 : index
    %c0_113 = arith.constant 0 : index
    %106 = vector.load %arg13[%c0_111, %c3_112, %c0_113] : memref<2x17x176xbf16, #tpu.memory_space<vmem>>, vector<2x11x176xbf16>
    tpu.vector_store %arg13[%c0_111, %c3_112, %c0_113], %105 {strides = array<i32>} : memref<2x17x176xbf16, #tpu.memory_space<vmem>>, vector<2x11x176xbf16>,
    %c0_114 = arith.constant 0 : index
    %c0_115 = arith.constant 0 : index
    %c0_116 = arith.constant 0 : index
    %107 = vector.load %arg13[%c0_114, %c0_115, %c0_116] : memref<2x17x176xbf16, #tpu.memory_space<vmem>>, vector<2x14x176xbf16>
    %108 = vector.shape_cast %107 : vector<2x14x176xbf16> to vector<28x176xbf16>
    %c0_117 = arith.constant 0 : index
    %c0_118 = arith.constant 0 : index
    %c0_119 = arith.constant 0 : index
    %109 = vector.load %arg8[%c0_117, %c0_118, %c0_119] : memref<4x176x56xbf16, #tpu.memory_space<vmem>>, vector<1x176x56xbf16>
    %110 = vector.shape_cast %109 : vector<1x176x56xbf16> to vector<176x56xbf16>
    %cst_120 = arith.constant dense<0.000000e+00> : vector<28x56xf32>
    %111 = tpu.matmul %108, %110, %cst_120 {dimension_numbers = #tpu.dot_dimension_numbers<[1], [0], [0], [1], [0, 0, 1, 1], [], []>} : vector<28x176xbf16>, vector<176x56xbf16>, vector<28x56xf32> -> vector<28x56xf32>
    %c0_121 = arith.constant 0 : index
    %c1_122 = arith.constant 1 : index
    %c0_123 = arith.constant 0 : index
    %112 = vector.load %arg13[%c0_121, %c1_122, %c0_123] : memref<2x17x176xbf16, #tpu.memory_space<vmem>>, vector<2x14x176xbf16>
    %113 = vector.shape_cast %112 : vector<2x14x176xbf16> to vector<28x176xbf16>
    %c1_124 = arith.constant 1 : index
    %c0_125 = arith.constant 0 : index
    %c0_126 = arith.constant 0 : index
    %114 = vector.load %arg8[%c1_124, %c0_125, %c0_126] : memref<4x176x56xbf16, #tpu.memory_space<vmem>>, vector<1x176x56xbf16>
    %115 = vector.shape_cast %114 : vector<1x176x56xbf16> to vector<176x56xbf16>
    %cst_127 = arith.constant dense<0.000000e+00> : vector<28x56xf32>
    %116 = tpu.matmul %113, %115, %cst_127 {dimension_numbers = #tpu.dot_dimension_numbers<[1], [0], [0], [1], [0, 0, 1, 1], [], []>} : vector<28x176xbf16>, vector<176x56xbf16>, vector<28x56xf32> -> vector<28x56xf32>
    %117 = arith.addf %111, %116 : vector<28x56xf32>
    %c0_128 = arith.constant 0 : index
    %c2_129 = arith.constant 2 : index
    %c0_130 = arith.constant 0 : index
    %118 = vector.load %arg13[%c0_128, %c2_129, %c0_130] : memref<2x17x176xbf16, #tpu.memory_space<vmem>>, vector<2x14x176xbf16>
    %119 = vector.shape_cast %118 : vector<2x14x176xbf16> to vector<28x176xbf16>
    %c2_131 = arith.constant 2 : index
    %c0_132 = arith.constant 0 : index
    %c0_133 = arith.constant 0 : index
    %120 = vector.load %arg8[%c2_131, %c0_132, %c0_133] : memref<4x176x56xbf16, #tpu.memory_space<vmem>>, vector<1x176x56xbf16>
    %121 = vector.shape_cast %120 : vector<1x176x56xbf16> to vector<176x56xbf16>
    %cst_134 = arith.constant dense<0.000000e+00> : vector<28x56xf32>
    %122 = tpu.matmul %119, %121, %cst_134 {dimension_numbers = #tpu.dot_dimension_numbers<[1], [0], [0], [1], [0, 0, 1, 1], [], []>} : vector<28x176xbf16>, vector<176x56xbf16>, vector<28x56xf32> -> vector<28x56xf32>
    %123 = arith.addf %117, %122 : vector<28x56xf32>
    %c0_135 = arith.constant 0 : index
    %c3_136 = arith.constant 3 : index
    %c0_137 = arith.constant 0 : index
    %124 = vector.load %arg13[%c0_135, %c3_136, %c0_137] : memref<2x17x176xbf16, #tpu.memory_space<vmem>>, vector<2x14x176xbf16>
    %125 = vector.shape_cast %124 : vector<2x14x176xbf16> to vector<28x176xbf16>
    %c3_138 = arith.constant 3 : index
    %c0_139 = arith.constant 0 : index
    %c0_140 = arith.constant 0 : index
    %126 = vector.load %arg8[%c3_138, %c0_139, %c0_140] : memref<4x176x56xbf16, #tpu.memory_space<vmem>>, vector<1x176x56xbf16>
    %127 = vector.shape_cast %126 : vector<1x176x56xbf16> to vector<176x56xbf16>
    %cst_141 = arith.constant dense<0.000000e+00> : vector<28x56xf32>
    %128 = tpu.matmul %125, %127, %cst_141 {dimension_numbers = #tpu.dot_dimension_numbers<[1], [0], [0], [1], [0, 0, 1, 1], [], []>} : vector<28x176xbf16>, vector<176x56xbf16>, vector<28x56xf32> -> vector<28x56xf32>
    %129 = arith.addf %123, %128 : vector<28x56xf32>
    %c0_142 = arith.constant 0 : index
    %c0_143 = arith.constant 0 : index
    %130 = vector.load %arg9[%c0_142, %c0_143] : memref<1x56xf32, #tpu.memory_space<vmem>>, vector<1x56xf32>
    %131 = vector.broadcast %130 : vector<1x56xf32> to vector<28x56xf32>
    %132 = arith.addf %129, %131 : vector<28x56xf32>
    %133 = arith.negf %132 : vector<28x56xf32>
    %134 = math.exp %133 : vector<28x56xf32>
    %cst_144 = arith.constant 1.000000e+00 : f32
    %135 = vector.broadcast %cst_144 : f32 to vector<28x56xf32>
    %136 = arith.addf %135, %134 : vector<28x56xf32>
    %137 = arith.divf %135, %136 : vector<28x56xf32>
    %138 = vector.shape_cast %137 : vector<28x56xf32> to vector<2x14x56xf32>
    %c0_145 = arith.constant 0 : index
    %c0_146 = arith.constant 0 : index
    %c0_147 = arith.constant 0 : index
    %139 = vector.load %arg10[%c0_145, %c0_146, %c0_147] : memref<2x14x56xf32, #tpu.memory_space<vmem>>, vector<2x14x56xf32>
    tpu.vector_store %arg10[%c0_145, %c0_146, %c0_147], %138 {strides = array<i32>} : memref<2x14x56xf32, #tpu.memory_space<vmem>>, vector<2x14x56xf32>,
    return
  }
  func.func @transform_0(%arg0: i32) -> (i32, i32) {
    %c0_i32 = arith.constant 0 : i32
    %c0_i32_0 = arith.constant 0 : i32
    return %arg0, %c0_i32 : i32, i32
  }
  func.func @transform_1(%arg0: i32) -> (i32, i32) {
    %c0_i32 = arith.constant 0 : i32
    %c0_i32_0 = arith.constant 0 : i32
    %c0_i32_1 = arith.constant 0 : i32
    return %c0_i32, %c0_i32_0 : i32, i32
  }
  func.func @transform_2(%arg0: i32) -> (i32, i32) {
    %c0_i32 = arith.constant 0 : i32
    %c0_i32_0 = arith.constant 0 : i32
    %c0_i32_1 = arith.constant 0 : i32
    return %c0_i32, %c0_i32_0 : i32, i32
  }
  func.func @transform_3(%arg0: i32) -> (i32, i32, i32) {
    %c0_i32 = arith.constant 0 : i32
    %c0_i32_0 = arith.constant 0 : i32
    %c0_i32_1 = arith.constant 0 : i32
    %c0_i32_2 = arith.constant 0 : i32
    return %c0_i32, %c0_i32_0, %c0_i32_1 : i32, i32, i32
  }
  func.func @transform_4(%arg0: i32) -> (i32, i32) {
    %c0_i32 = arith.constant 0 : i32
    %c0_i32_0 = arith.constant 0 : i32
    %c0_i32_1 = arith.constant 0 : i32
    return %c0_i32, %c0_i32_0 : i32, i32
  }
  func.func @transform_5(%arg0: i32) -> (i32, i32, i32) {
    %c0_i32 = arith.constant 0 : i32
    %c0_i32_0 = arith.constant 0 : i32
    %c0_i32_1 = arith.constant 0 : i32
    %c0_i32_2 = arith.constant 0 : i32
    return %c0_i32, %c0_i32_0, %c0_i32_1 : i32, i32, i32
  }
  func.func @transform_6(%arg0: i32) -> (i32, i32) {
    %c0_i32 = arith.constant 0 : i32
    %c0_i32_0 = arith.constant 0 : i32
    %c0_i32_1 = arith.constant 0 : i32
    return %c0_i32, %c0_i32_0 : i32, i32
  }
  func.func @transform_7(%arg0: i32) -> (i32, i32, i32) {
    %c0_i32 = arith.constant 0 : i32
    %c0_i32_0 = arith.constant 0 : i32
    %c0_i32_1 = arith.constant 0 : i32
    %c0_i32_2 = arith.constant 0 : i32
    return %c0_i32, %c0_i32_0, %c0_i32_1 : i32, i32, i32
  }
  func.func @transform_8(%arg0: i32) -> (i32, i32) {
    %c0_i32 = arith.constant 0 : i32
    %c0_i32_0 = arith.constant 0 : i32
    %c0_i32_1 = arith.constant 0 : i32
    return %c0_i32, %c0_i32_0 : i32, i32
  }
  func.func @transform_9(%arg0: i32) -> (i32, i32, i32) {
    %c0_i32 = arith.constant 0 : i32
    %c0_i32_0 = arith.constant 0 : i32
    %c0_i32_1 = arith.constant 0 : i32
    return %arg0, %c0_i32, %c0_i32_0 : i32, i32, i32
  }
}

</mosaic_0001>

<llo_original>
// kernel: tpu_custom_call.1
$region0: #{tpu_custom_call.1}
  #allocation0 [shape = 'u32[]', space=smem, size = 0x4, offset = 0x4, fixed_abs, tag = 'smem constant byte address 0x4 - core index']
  #allocation1 [shape = 'u32[144,128]{1,0:T(1,128)}', space=vmem, size = 0x12000, scoped, tag = 'internal scratch']
  %s0 = inlined_call_operand.hbm [shape: f32[8,128], index: 0, kind: input, shape index: {}]
  %s1 = inlined_call_operand.hbm [shape: f32[8,128], index: 1, kind: output, shape index: {}]
  %s2 = sld [smem:[#allocation0]]
  $region41: #{tpu_custom_call.1} parent=0
    _
  %s4 = ssub.s32 1, %s2
  %s5 = scalar_select 0, %s4, %s2
  $region1: #{tpu_custom_call.1} parent=0
    #allocation2 [shape = 'u8[4096]{0}', space=vmem, size = 0x1000, scoped, tag = 'input window, operand 0, single buffered']
    #allocation3 [shape = 's32[2]{0}', space=sflag, size = 0x8, scoped, tag = 'scoped memory for tpu_custom_call.1']
    #allocation4 [shape = 's32[2]{0}', space=sflag, size = 0x8, scoped, tag = 'scoped memory for tpu_custom_call.1']
    #allocation5 [shape = 'u8[4096]{0}', space=vmem, size = 0x1000, scoped, tag = 'output window, operand 0, single buffered']
    %6 = vsyncpa [#allocation3], 0
    %7 = vsyncpa [#allocation4], 0
    loop: start=0, step=1, limit=4
    $region2: #{tpu_custom_call.1} parent=1 // loop_pre_header
      _
    $region3: #{tpu_custom_call.1} parent=1 // loop_header
      %s9 = sphi 0, %s13
      %p10 = scmp.ge.s32.totalorder %s9, 4
      %s17 = sphi 0, %s17
      %s19 = sphi 0, %s17
      %s20 = sphi 0, %s19
      %s34 = sphi 0, %s20
      %s38 = sphi 0, %s38
      %s40 = sphi 0, %s38
      %s41 = sphi 0, %s40
      %s55 = sphi 0, %s41
    $region4: #{tpu_custom_call.1} parent=1 // loop_header_branch
      %12 = sbr.rel (%p10) target = $region8
    $region5: #{tpu_custom_call.1} parent=1 // loop_body
      %s14 = ssub.s32 %s9, 1
      %s15 = ssub.s32 %s9, 2
      %s16 = sadd.s32 %s9, 1
      %s18 = sadd.s32 %s17, 1
      %p21 = scmp.eq.s32.totalorder %s9, 1
      %p22 = scmp.ne.s32.totalorder %s17, %s19
      %p23 = scmp.eq.s32.totalorder %s9, 0
      %p24 = por %p22, %p23
      %p25 = scmp.ne.s32.totalorder %s17, %s19
      %p26 = scmp.eq.s32.totalorder %s14, 1
      %p27 = por %p25, %p26
      %p28 = scmp.ne.s32.totalorder %s19, %s20
      %p29 = scmp.eq.s32.totalorder %s14, 0
      %p30 = por %p28, %p29
      %p31 = scmp.ne.s32.totalorder %s19, %s20
      %p32 = scmp.eq.s32.totalorder %s15, 1
      %p33 = por %p31, %p32
      %p35 = scmp.ne.s32.totalorder %s20, %s34
      %p36 = scmp.eq.s32.totalorder %s15, 0
      %p37 = por %p35, %p36
      %s39 = sadd.s32 %s38, 1
      %p42 = scmp.eq.s32.totalorder %s9, 1
      %p43 = scmp.ne.s32.totalorder %s38, %s40
      %p44 = scmp.eq.s32.totalorder %s9, 0
      %p45 = por %p43, %p44
      %p46 = scmp.ne.s32.totalorder %s38, %s40
      %p47 = scmp.eq.s32.totalorder %s14, 1
      %p48 = por %p46, %p47
      %p49 = scmp.ne.s32.totalorder %s40, %s41
      %p50 = scmp.eq.s32.totalorder %s14, 0
      %p51 = por %p49, %p50
      %p52 = scmp.ne.s32.totalorder %s40, %s41
      %p53 = scmp.eq.s32.totalorder %s15, 1
      %p54 = por %p52, %p53
      %p56 = scmp.ne.s32.totalorder %s41, %s55
      %p57 = scmp.eq.s32.totalorder %s15, 0
      %p58 = por %p56, %p57
      %p59 = scmp.le.s32.totalorder 1, %s9
      %p60 = scmp.lt.s32.totalorder %s9, 3
      %p61 = pnand %p59, %p60
      %p62 = pneg %p61
      // Predicated region
      $region9: #{tpu_custom_call.1} parent=5 // pred_check
        _
      $region10: #{tpu_custom_call.1} parent=5 // pred_check_branch
        %64 = sbr.rel (%p61) target = $region12
      $region11: #{tpu_custom_call.1} parent=5 // pred_region
        %s65 = ssub.s32 %s9, 1
        // Predicated region
        $region13: #{tpu_custom_call.1} parent=11 // pred_check
          %p66 = pneg %p30
        $region14: #{tpu_custom_call.1} parent=11 // pred_check_branch
          %68 = sbr.rel (%p66) target = $region16
        $region15: #{tpu_custom_call.1} parent=11 // pred_region
          %s70 = ssub.s32 128, 128
          %71 = vsyncadd [#allocation3], %s70
          %s73 = sshll.u32 [#allocation2], 4
          %s74 = int_to_ptr.vmem [resolvable:$true] %s73
          %76 = dma.hbm_to_vmem [thread:$0]  %s0, 128, %s74, [#allocation3]
        $region16: #{tpu_custom_call.1} parent=11 // pred_fallthru
          _
      $region12: #{tpu_custom_call.1} parent=5 // pred_fallthru
        _
      %p77 = scmp.lt.s32.totalorder %s9, 2
      // Predicated region
      $region17: #{tpu_custom_call.1} parent=5 // pred_check
        %p78 = pneg %p77
      $region18: #{tpu_custom_call.1} parent=5 // pred_check_branch
        %80 = sbr.rel (%p78) target = $region20
      $region19: #{tpu_custom_call.1} parent=5 // pred_region
        _
      $region20: #{tpu_custom_call.1} parent=5 // pred_fallthru
        _
      %p81 = scmp.le.s32.totalorder 1, %s9
      %p82 = scmp.lt.s32.totalorder %s9, 3
      %p83 = pnand %p81, %p82
      %p84 = pneg %p83
      // Predicated region
      $region21: #{tpu_custom_call.1} parent=5 // pred_check
        _
      $region22: #{tpu_custom_call.1} parent=5 // pred_check_branch
        %86 = sbr.rel (%p83) target = $region24
      $region23: #{tpu_custom_call.1} parent=5 // pred_region
        %s87 = ssub.s32 %s9, 1
        // Predicated region
        $region25: #{tpu_custom_call.1} parent=23 // pred_check
          %p88 = pneg %p30
        $region26: #{tpu_custom_call.1} parent=23 // pred_check_branch
          %90 = sbr.rel (%p88) target = $region28
        $region27: #{tpu_custom_call.1} parent=23 // pred_region
          %91 = dma.done [#allocation3], 128
        $region28: #{tpu_custom_call.1} parent=23 // pred_fallthru
          _
        %p92 = pneg %p30
        %p93 = pneg %p27
        %p94 = pneg %p51
        %p95 = pneg %p48
        %v96 = vld [vmem:[#allocation2] sm:$0xff]
        %v97 = vadd.f32 %v96, 1.0
        %98 = vst [vmem:[#allocation5] sm:$0xff] %v97
        // Predicated region
        $region29: #{tpu_custom_call.1} parent=23 // pred_check
          %p99 = pneg %p48
        $region30: #{tpu_custom_call.1} parent=23 // pred_check_branch
          %101 = sbr.rel (%p99) target = $region32
        $region31: #{tpu_custom_call.1} parent=23 // pred_region
          %s103 = ssub.s32 128, 128
          %104 = vsyncadd [#allocation4], %s103
          %s106 = sshll.u32 [#allocation5], 4
          %s107 = int_to_ptr.vmem [resolvable:$true] %s106
          %109 = dma.vmem_to_hbm [thread:$0]  %s107, 128, %s1, [#allocation4]
        $region32: #{tpu_custom_call.1} parent=23 // pred_fallthru
          _
        // Predicated region
        $region33: #{tpu_custom_call.1} parent=23 // pred_check
          %p110 = pneg %p48
        $region34: #{tpu_custom_call.1} parent=23 // pred_check_branch
          %112 = sbr.rel (%p110) target = $region36
        $region35: #{tpu_custom_call.1} parent=23 // pred_region
          %113 = dma.done [#allocation4], 128
        $region36: #{tpu_custom_call.1} parent=23 // pred_fallthru
          _
      $region24: #{tpu_custom_call.1} parent=5 // pred_fallthru
        _
      %p114 = scmp.le.s32.totalorder 2, %s9
      // Predicated region
      $region37: #{tpu_custom_call.1} parent=5 // pred_check
        %p115 = pneg %p114
      $region38: #{tpu_custom_call.1} parent=5 // pred_check_branch
        %117 = sbr.rel (%p115) target = $region40
      $region39: #{tpu_custom_call.1} parent=5 // pred_region
        %s118 = ssub.s32 %s9, 2
      $region40: #{tpu_custom_call.1} parent=5 // pred_fallthru
        _
    $region6: #{tpu_custom_call.1} parent=1 // loop_footer
      %s13 = sadd.s32 1, %s9
    $region7: #{tpu_custom_call.1} parent=1 // loop_footer_branch
      %8 = sbr.rel target = $region3
    $region8: #{tpu_custom_call.1} parent=1 // loop_exit
      _
    %119 = vsyncpa [#allocation3], 1
    %s120 = scalar_lea.sflag [#allocation3], 1
    %121 = vsyncpa %s120, 1
    %122 = vsyncpa [#allocation4], 1
    %s123 = scalar_lea.sflag [#allocation4], 1
    %124 = vsyncpa %s123, 1

// kernel: tpu_custom_call.1
$region0: #{tpu_custom_call.1}
  #allocation0 [shape = 'u32[]', space=smem, size = 0x4, offset = 0x4, fixed_abs, tag = 'smem constant byte address 0x4 - core index']
  #allocation1 [shape = 'u32[144,128]{1,0:T(1,128)}', space=vmem, size = 0x12000, scoped, tag = 'internal scratch']
  #allocation2 [shape = 'bf16[2,11,256]{2,1,0:T(8,128)(2,1)}', space=vmem, size = 0x4000, scoped, tag = 'scratch operand']
  #allocation3 [shape = 'bf16[2,15,224]{2,1,0:T(8,128)(2,1)}', space=vmem, size = 0x4000, scoped, tag = 'scratch operand']
  #allocation4 [shape = 'bf16[2,17,176]{2,1,0:T(8,128)(2,1)}', space=vmem, size = 0x6000, scoped, tag = 'scratch operand']
  %s0 = inlined_call_operand.vmem [shape: bf16[2,128], index: 0, kind: input, shape index: {}]
  %s1 = inlined_call_operand.vmem [shape: bf16[128,1024], index: 1, kind: input, shape index: {}]
  %s2 = inlined_call_operand.vmem [shape: f32[1,1024], index: 2, kind: input, shape index: {}]
  %s3 = inlined_call_operand.vmem [shape: bf16[5,256,224], index: 3, kind: input, shape index: {}]
  %s4 = inlined_call_operand.vmem [shape: f32[1,224], index: 4, kind: input, shape index: {}]
  %s5 = inlined_call_operand.vmem [shape: bf16[5,224,176], index: 5, kind: input, shape index: {}]
  %s6 = inlined_call_operand.vmem [shape: f32[1,176], index: 6, kind: input, shape index: {}]
  %s7 = inlined_call_operand.vmem [shape: bf16[4,176,56], index: 7, kind: input, shape index: {}]
  %s8 = inlined_call_operand.vmem [shape: f32[1,56], index: 8, kind: input, shape index: {}]
  %s9 = inlined_call_operand.vmem [shape: f32[2,14,56], index: 9, kind: output, shape index: {}]
  %s10 = sld [smem:[#allocation0]]
  $region46: #{tpu_custom_call.1} parent=0
    _
  %s12 = ssub.s32 1, %s10
  %s13 = scalar_select 0, %s12, %s10
  // Predicated region
  $region2: #{tpu_custom_call.1} parent=0 // pred_check
    _
  $region3: #{tpu_custom_call.1} parent=0 // pred_check_branch
    %15 = sbr.rel (0) target = $region5
  $region4: #{tpu_custom_call.1} parent=0 // pred_region
    _
  $region5: #{tpu_custom_call.1} parent=0 // pred_fallthru
    _
  // Predicated region
  $region6: #{tpu_custom_call.1} parent=0 // pred_check
    _
  $region7: #{tpu_custom_call.1} parent=0 // pred_check_branch
    %17 = sbr.rel (0) target = $region9
  $region8: #{tpu_custom_call.1} parent=0 // pred_region
    _
  $region9: #{tpu_custom_call.1} parent=0 // pred_fallthru
    _
  // Predicated region
  $region10: #{tpu_custom_call.1} parent=0 // pred_check
    _
  $region11: #{tpu_custom_call.1} parent=0 // pred_check_branch
    %19 = sbr.rel (0) target = $region13
  $region12: #{tpu_custom_call.1} parent=0 // pred_region
    _
  $region13: #{tpu_custom_call.1} parent=0 // pred_fallthru
    _
  // Predicated region
  $region14: #{tpu_custom_call.1} parent=0 // pred_check
    _
  $region15: #{tpu_custom_call.1} parent=0 // pred_check_branch
    %21 = sbr.rel (0) target = $region17
  $region16: #{tpu_custom_call.1} parent=0 // pred_region
    _
  $region17: #{tpu_custom_call.1} parent=0 // pred_fallthru
    _
  // Predicated region
  $region18: #{tpu_custom_call.1} parent=0 // pred_check
    _
  $region19: #{tpu_custom_call.1} parent=0 // pred_check_branch
    %23 = sbr.rel (0) target = $region21
  $region20: #{tpu_custom_call.1} parent=0 // pred_region
    _
  $region21: #{tpu_custom_call.1} parent=0 // pred_fallthru
    _
  // Predicated region
  $region22: #{tpu_custom_call.1} parent=0 // pred_check
    _
  $region23: #{tpu_custom_call.1} parent=0 // pred_check_branch
    %25 = sbr.rel (0) target = $region25
  $region24: #{tpu_custom_call.1} parent=0 // pred_region
    _
  $region25: #{tpu_custom_call.1} parent=0 // pred_fallthru
    _
  // Predicated region
  $region26: #{tpu_custom_call.1} parent=0 // pred_check
    _
  $region27: #{tpu_custom_call.1} parent=0 // pred_check_branch
    %27 = sbr.rel (0) target = $region29
  $region28: #{tpu_custom_call.1} parent=0 // pred_region
    _
  $region29: #{tpu_custom_call.1} parent=0 // pred_fallthru
    _
  // Predicated region
  $region30: #{tpu_custom_call.1} parent=0 // pred_check
    _
  $region31: #{tpu_custom_call.1} parent=0 // pred_check_branch
    %29 = sbr.rel (0) target = $region33
  $region32: #{tpu_custom_call.1} parent=0 // pred_region
    _
  $region33: #{tpu_custom_call.1} parent=0 // pred_fallthru
    _
  // Predicated region
  $region34: #{tpu_custom_call.1} parent=0 // pred_check
    _
  $region35: #{tpu_custom_call.1} parent=0 // pred_check_branch
    %31 = sbr.rel (0) target = $region37
  $region36: #{tpu_custom_call.1} parent=0 // pred_region
    _
  $region37: #{tpu_custom_call.1} parent=0 // pred_fallthru
    _
  %33 = vst [vmem:[#allocation2] sm:$0x33] 0
  %34 = vst [vmem:[#allocation2 + $0x10] sm:$0x33] 0
  %vm35 = vcmask 1041408
  %vm36 = vsmask.f32 1280
  %vm37 = vmand %vm35, %vm36
  %vm38 = vcmask 1045508
  %vm39 = vsmask.f32 5376
  %vm40 = vmand %vm38, %vm39
  %vm41 = vmor %vm40, %vm37
  %v42 = vld [vmem:[#allocation2 + $0x8] sm:$0x33]
  %v43 = vsel %vm41, 0, %v42
  %44 = vst [vmem:[#allocation2 + $0x8] sm:$0x33] %v43
  %v45 = vld [vmem:[#allocation2 + $0x18] sm:$0x33]
  %v46 = vsel %vm41, 0, %v45
  %47 = vst [vmem:[#allocation2 + $0x18] sm:$0x33] %v46
  %vm48 = vcmask 1041408
  %vm49 = vcmask 783364
  %vm50 = vmor %vm49, %vm48
  %51 = vst.msk [vmem:[#allocation3] sm:$0x33] %vm50, 0
  %52 = vst.msk [vmem:[#allocation3 + $0x10] sm:$0x33] %vm50, 0
  %vm53 = vcmask 1043457
  %vm54 = vsmask.f32 3334
  %vm55 = vmand %vm53, %vm54
  %vm56 = vcmask 785413
  %vm57 = vsmask.f32 7446
  %vm58 = vmand %vm56, %vm57
  %vm59 = vmor %vm58, %vm55
  %v60 = vld [vmem:[#allocation3 + $0x8] sm:$0xee]
  %v61 = vsel %vm59, 0, %v60
  %62 = vst [vmem:[#allocation3 + $0x8] sm:$0xee] %v61
  %v63 = vld [vmem:[#allocation3 + $0x18] sm:$0xee]
  %v64 = vsel %vm59, 0, %v63
  %65 = vst [vmem:[#allocation3 + $0x18] sm:$0xee] %v64
  %vm66 = vcmask 390148
  %vm67 = vmand %vm66, %vm39
  %vm68 = vmor %vm67, %vm37
  %v69 = vld [vmem:[#allocation4] sm:$0x33]
  %v70 = vsel %vm68, 0, %v69
  %71 = vst [vmem:[#allocation4] sm:$0x33] %v70
  %v72 = vld [vmem:[#allocation4 + $0x18] sm:$0x33]
  %v73 = vsel %vm68, 0, %v72
  %74 = vst [vmem:[#allocation4 + $0x18] sm:$0x33] %v73
  %vm75 = vcmask 1043459
  %vm76 = vcmask 392199
  %vm77 = vmor %vm76, %vm75
  %78 = vst.msk [vmem:[#allocation4 + $0x8] sm:$0x88] %vm77, 0
  %vm79 = vcmask 1040384
  %vm80 = vsmask.f32 256
  %vm81 = vmand %vm79, %vm80
  %vm82 = vcmask 389124
  %vm83 = vsmask.f32 4352
  %vm84 = vmand %vm82, %vm83
  %vm85 = vmor %vm84, %vm81
  %v86 = vld [vmem:[#allocation4 + $0x10] sm:$0x11]
  %v87 = vsel %vm85, 0, %v86
  %88 = vst [vmem:[#allocation4 + $0x10] sm:$0x11] %v87
  %89 = vst.msk [vmem:[#allocation4 + $0x20] sm:$0x88] %vm77, 0
  %v90 = vld [vmem:[#allocation4 + $0x28] sm:$0x11]
  %v91 = vsel %vm85, 0, %v90
  %92 = vst [vmem:[#allocation4 + $0x28] sm:$0x11] %v91
  %v93 = vld [vmem:[%s0] sm:$0x1]
  %v94 = vld [vmem:[%s1] sm:$0xff]
  %v95 = vld [vmem:[%s1 + $0x8] sm:$0xff]
  %v96 = vld [vmem:[%s1 + $0x10] sm:$0xff]
  %v97 = vld [vmem:[%s1 + $0x18] sm:$0xff]
  %v98 = vld [vmem:[%s1 + $0x20] sm:$0xff]
  %v99 = vld [vmem:[%s1 + $0x28] sm:$0xff]
  %v100 = vld [vmem:[%s1 + $0x30] sm:$0xff]
  %v101 = vld [vmem:[%s1 + $0x38] sm:$0xff]
  %v102 = vld [vmem:[%s1 + $0x40] sm:$0xff]
  %v103 = vld [vmem:[%s1 + $0x48] sm:$0xff]
  %v104 = vld [vmem:[%s1 + $0x50] sm:$0xff]
  %v105 = vld [vmem:[%s1 + $0x58] sm:$0xff]
  %v106 = vld [vmem:[%s1 + $0x60] sm:$0xff]
  %v107 = vld [vmem:[%s1 + $0x68] sm:$0xff]
  %v108 = vld [vmem:[%s1 + $0x70] sm:$0xff]
  %v109 = vld [vmem:[%s1 + $0x78] sm:$0xff]
  %v110 = vld [vmem:[%s1 + $0x80] sm:$0xff]
  %v111 = vld [vmem:[%s1 + $0x88] sm:$0xff]
  %v112 = vld [vmem:[%s1 + $0x90] sm:$0xff]
  %v113 = vld [vmem:[%s1 + $0x98] sm:$0xff]
  %v114 = vld [vmem:[%s1 + $0xa0] sm:$0xff]
  %v115 = vld [vmem:[%s1 + $0xa8] sm:$0xff]
  %v116 = vld [vmem:[%s1 + $0xb0] sm:$0xff]
  %v117 = vld [vmem:[%s1 + $0xb8] sm:$0xff]
  %v118 = vld [vmem:[%s1 + $0xc0] sm:$0xff]
  %v119 = vld [vmem:[%s1 + $0xc8] sm:$0xff]
  %v120 = vld [vmem:[%s1 + $0xd0] sm:$0xff]
  %v121 = vld [vmem:[%s1 + $0xd8] sm:$0xff]
  %v122 = vld [vmem:[%s1 + $0xe0] sm:$0xff]
  %v123 = vld [vmem:[%s1 + $0xe8] sm:$0xff]
  %v124 = vld [vmem:[%s1 + $0xf0] sm:$0xff]
  %v125 = vld [vmem:[%s1 + $0xf8] sm:$0xff]
  %v126 = vld [vmem:[%s1 + $0x100] sm:$0xff]
  %v127 = vld [vmem:[%s1 + $0x108] sm:$0xff]
  %v128 = vld [vmem:[%s1 + $0x110] sm:$0xff]
  %v129 = vld [vmem:[%s1 + $0x118] sm:$0xff]
  %v130 = vld [vmem:[%s1 + $0x120] sm:$0xff]
  %v131 = vld [vmem:[%s1 + $0x128] sm:$0xff]
  %v132 = vld [vmem:[%s1 + $0x130] sm:$0xff]
  %v133 = vld [vmem:[%s1 + $0x138] sm:$0xff]
  %v134 = vld [vmem:[%s1 + $0x140] sm:$0xff]
  %v135 = vld [vmem:[%s1 + $0x148] sm:$0xff]
  %v136 = vld [vmem:[%s1 + $0x150] sm:$0xff]
  %v137 = vld [vmem:[%s1 + $0x158] sm:$0xff]
  %v138 = vld [vmem:[%s1 + $0x160] sm:$0xff]
  %v139 = vld [vmem:[%s1 + $0x168] sm:$0xff]
  %v140 = vld [vmem:[%s1 + $0x170] sm:$0xff]
  %v141 = vld [vmem:[%s1 + $0x178] sm:$0xff]
  %v142 = vld [vmem:[%s1 + $0x180] sm:$0xff]
  %v143 = vld [vmem:[%s1 + $0x188] sm:$0xff]
  %v144 = vld [vmem:[%s1 + $0x190] sm:$0xff]
  %v145 = vld [vmem:[%s1 + $0x198] sm:$0xff]
  %v146 = vld [vmem:[%s1 + $0x1a0] sm:$0xff]
  %v147 = vld [vmem:[%s1 + $0x1a8] sm:$0xff]
  %v148 = vld [vmem:[%s1 + $0x1b0] sm:$0xff]
  %v149 = vld [vmem:[%s1 + $0x1b8] sm:$0xff]
  %v150 = vld [vmem:[%s1 + $0x1c0] sm:$0xff]
  %v151 = vld [vmem:[%s1 + $0x1c8] sm:$0xff]
  %v152 = vld [vmem:[%s1 + $0x1d0] sm:$0xff]
  %v153 = vld [vmem:[%s1 + $0x1d8] sm:$0xff]
  %v154 = vld [vmem:[%s1 + $0x1e0] sm:$0xff]
  %v155 = vld [vmem:[%s1 + $0x1e8] sm:$0xff]
  %v156 = vld [vmem:[%s1 + $0x1f0] sm:$0xff]
  %v157 = vld [vmem:[%s1 + $0x1f8] sm:$0xff]
  %v158 = vld [vmem:[%s2] sm:$0xff]
  %v160 = vlaneseq
  %v161 = vshrl.u32 %v160, 7
  %v162 = vsub.s32 0, %v161
  %v163 = vrot.slane %v158, %v162
  %v164 = vlaneseq
  %v165 = vshrl.u32 %v164, 7
  %v166 = vsub.s32 1, %v165
  %v167 = vrot.slane %v158, %v166
  %v168 = vlaneseq
  %v169 = vshrl.u32 %v168, 7
  %v170 = vsub.s32 2, %v169
  %v171 = vrot.slane %v158, %v170
  %v172 = vlaneseq
  %v173 = vshrl.u32 %v172, 7
  %v174 = vsub.s32 3, %v173
  %v175 = vrot.slane %v158, %v174
  %v176 = vlaneseq
  %v177 = vshrl.u32 %v176, 7
  %v178 = vsub.s32 4, %v177
  %v179 = vrot.slane %v158, %v178
  %v180 = vlaneseq
  %v181 = vshrl.u32 %v180, 7
  %v182 = vsub.s32 5, %v181
  %v183 = vrot.slane %v158, %v182
  %v184 = vlaneseq
  %v185 = vshrl.u32 %v184, 7
  %v186 = vsub.s32 6, %v185
  %v187 = vrot.slane %v158, %v186
  %v188 = vlaneseq
  %v189 = vshrl.u32 %v188, 7
  %v190 = vsub.s32 7, %v189
  %v191 = vrot.slane %v158, %v190
  %v264 = vunpack.c.l.b16 %v94
  %v265 = vunpack.c.h.b16 %v94
  %v266 = vunpack.c.l.b16 %v95
  %v267 = vunpack.c.h.b16 %v95
  %v268 = vunpack.c.l.b16 %v96
  %v269 = vunpack.c.h.b16 %v96
  %v270 = vunpack.c.l.b16 %v97
  %v271 = vunpack.c.h.b16 %v97
  %v272 = vunpack.c.l.b16 %v98
  %v273 = vunpack.c.h.b16 %v98
  %v274 = vunpack.c.l.b16 %v99
  %v275 = vunpack.c.h.b16 %v99
  %v276 = vunpack.c.l.b16 %v100
  %v277 = vunpack.c.h.b16 %v100
  %v278 = vunpack.c.l.b16 %v101
  %v279 = vunpack.c.h.b16 %v101
  %v280 = vunpack.c.l.b16 %v102
  %v281 = vunpack.c.h.b16 %v102
  %v282 = vunpack.c.l.b16 %v103
  %v283 = vunpack.c.h.b16 %v103
  %v284 = vunpack.c.l.b16 %v104
  %v285 = vunpack.c.h.b16 %v104
  %v286 = vunpack.c.l.b16 %v105
  %v287 = vunpack.c.h.b16 %v105
  %v288 = vunpack.c.l.b16 %v106
  %v289 = vunpack.c.h.b16 %v106
  %v290 = vunpack.c.l.b16 %v107
  %v291 = vunpack.c.h.b16 %v107
  %v292 = vunpack.c.l.b16 %v108
  %v293 = vunpack.c.h.b16 %v108
  %v294 = vunpack.c.l.b16 %v109
  %v295 = vunpack.c.h.b16 %v109
  %v296 = vunpack.c.l.b16 %v110
  %v297 = vunpack.c.h.b16 %v110
  %v298 = vunpack.c.l.b16 %v111
  %v299 = vunpack.c.h.b16 %v111
  %v300 = vunpack.c.l.b16 %v112
  %v301 = vunpack.c.h.b16 %v112
  %v302 = vunpack.c.l.b16 %v113
  %v303 = vunpack.c.h.b16 %v113
  %v304 = vunpack.c.l.b16 %v114
  %v305 = vunpack.c.h.b16 %v114
  %v306 = vunpack.c.l.b16 %v115
  %v307 = vunpack.c.h.b16 %v115
  %v308 = vunpack.c.l.b16 %v116
  %v309 = vunpack.c.h.b16 %v116
  %v310 = vunpack.c.l.b16 %v117
  %v311 = vunpack.c.h.b16 %v117
  %v312 = vunpack.c.l.b16 %v118
  %v313 = vunpack.c.h.b16 %v118
  %v314 = vunpack.c.l.b16 %v119
  %v315 = vunpack.c.h.b16 %v119
  %v316 = vunpack.c.l.b16 %v120
  %v317 = vunpack.c.h.b16 %v120
  %v318 = vunpack.c.l.b16 %v121
  %v319 = vunpack.c.h.b16 %v121
  %v320 = vunpack.c.l.b16 %v122
  %v321 = vunpack.c.h.b16 %v122
  %v322 = vunpack.c.l.b16 %v123
  %v323 = vunpack.c.h.b16 %v123
  %v324 = vunpack.c.l.b16 %v124
  %v325 = vunpack.c.h.b16 %v124
  %v326 = vunpack.c.l.b16 %v125
  %v327 = vunpack.c.h.b16 %v125
  %v328 = vunpack.c.l.b16 %v126
  %v329 = vunpack.c.h.b16 %v126
  %v330 = vunpack.c.l.b16 %v127
  %v331 = vunpack.c.h.b16 %v127
  %v332 = vunpack.c.l.b16 %v128
  %v333 = vunpack.c.h.b16 %v128
  %v334 = vunpack.c.l.b16 %v129
  %v335 = vunpack.c.h.b16 %v129
  %v336 = vunpack.c.l.b16 %v130
  %v337 = vunpack.c.h.b16 %v130
  %v338 = vunpack.c.l.b16 %v131
  %v339 = vunpack.c.h.b16 %v131
  %v340 = vunpack.c.l.b16 %v132
  %v341 = vunpack.c.h.b16 %v132
  %v342 = vunpack.c.l.b16 %v133
  %v343 = vunpack.c.h.b16 %v133
  %v344 = vunpack.c.l.b16 %v134
  %v345 = vunpack.c.h.b16 %v134
  %v346 = vunpack.c.l.b16 %v135
  %v347 = vunpack.c.h.b16 %v135
  %v348 = vunpack.c.l.b16 %v136
  %v349 = vunpack.c.h.b16 %v136
  %v350 = vunpack.c.l.b16 %v137
  %v351 = vunpack.c.h.b16 %v137
  %v352 = vunpack.c.l.b16 %v138
  %v353 = vunpack.c.h.b16 %v138
  %v354 = vunpack.c.l.b16 %v139
  %v355 = vunpack.c.h.b16 %v139
  %v356 = vunpack.c.l.b16 %v140
  %v357 = vunpack.c.h.b16 %v140
  %v358 = vunpack.c.l.b16 %v141
  %v359 = vunpack.c.h.b16 %v141
  %v360 = vunpack.c.l.b16 %v142
  %v361 = vunpack.c.h.b16 %v142
  %v362 = vunpack.c.l.b16 %v143
  %v363 = vunpack.c.h.b16 %v143
  %v364 = vunpack.c.l.b16 %v144
  %v365 = vunpack.c.h.b16 %v144
  %v366 = vunpack.c.l.b16 %v145
  %v367 = vunpack.c.h.b16 %v145
  %v368 = vunpack.c.l.b16 %v146
  %v369 = vunpack.c.h.b16 %v146
  %v370 = vunpack.c.l.b16 %v147
  %v371 = vunpack.c.h.b16 %v147
  %v372 = vunpack.c.l.b16 %v148
  %v373 = vunpack.c.h.b16 %v148
  %v374 = vunpack.c.l.b16 %v149
  %v375 = vunpack.c.h.b16 %v149
  %v376 = vunpack.c.l.b16 %v150
  %v377 = vunpack.c.h.b16 %v150
  %v378 = vunpack.c.l.b16 %v151
  %v379 = vunpack.c.h.b16 %v151
  %v380 = vunpack.c.l.b16 %v152
  %v381 = vunpack.c.h.b16 %v152
  %v382 = vunpack.c.l.b16 %v153
  %v383 = vunpack.c.h.b16 %v153
  %v384 = vunpack.c.l.b16 %v154
  %v385 = vunpack.c.h.b16 %v154
  %v386 = vunpack.c.l.b16 %v155
  %v387 = vunpack.c.h.b16 %v155
  %v388 = vunpack.c.l.b16 %v156
  %v389 = vunpack.c.h.b16 %v156
  %v390 = vunpack.c.l.b16 %v157
  %v391 = vunpack.c.h.b16 %v157
  %v392 = vpack.c.b16 %v272, %v264
  %v393 = vpack.c.b16 %v273, %v265
  %v394 = vpack.c.b16 %v274, %v266
  %v395 = vpack.c.b16 %v275, %v267
  %v396 = vpack.c.b16 %v276, %v268
  %v397 = vpack.c.b16 %v277, %v269
  %v398 = vpack.c.b16 %v278, %v270
  %v399 = vpack.c.b16 %v279, %v271
  %v400 = vpack.c.b16 %v288, %v280
  %v401 = vpack.c.b16 %v289, %v281
  %v402 = vpack.c.b16 %v290, %v282
  %v403 = vpack.c.b16 %v291, %v283
  %v404 = vpack.c.b16 %v292, %v284
  %v405 = vpack.c.b16 %v293, %v285
  %v406 = vpack.c.b16 %v294, %v286
  %v407 = vpack.c.b16 %v295, %v287
  %v408 = vpack.c.b16 %v304, %v296
  %v409 = vpack.c.b16 %v305, %v297
  %v410 = vpack.c.b16 %v306, %v298
  %v411 = vpack.c.b16 %v307, %v299
  %v412 = vpack.c.b16 %v308, %v300
  %v413 = vpack.c.b16 %v309, %v301
  %v414 = vpack.c.b16 %v310, %v302
  %v415 = vpack.c.b16 %v311, %v303
  %v416 = vpack.c.b16 %v320, %v312
  %v417 = vpack.c.b16 %v321, %v313
  %v418 = vpack.c.b16 %v322, %v314
  %v419 = vpack.c.b16 %v323, %v315
  %v420 = vpack.c.b16 %v324, %v316
  %v421 = vpack.c.b16 %v325, %v317
  %v422 = vpack.c.b16 %v326, %v318
  %v423 = vpack.c.b16 %v327, %v319
  %v424 = vpack.c.b16 %v336, %v328
  %v425 = vpack.c.b16 %v337, %v329
  %v426 = vpack.c.b16 %v338, %v330
  %v427 = vpack.c.b16 %v339, %v331
  %v428 = vpack.c.b16 %v340, %v332
  %v429 = vpack.c.b16 %v341, %v333
  %v430 = vpack.c.b16 %v342, %v334
  %v431 = vpack.c.b16 %v343, %v335
  %v432 = vpack.c.b16 %v352, %v344
  %v433 = vpack.c.b16 %v353, %v345
  %v434 = vpack.c.b16 %v354, %v346
  %v435 = vpack.c.b16 %v355, %v347
  %v436 = vpack.c.b16 %v356, %v348
  %v437 = vpack.c.b16 %v357, %v349
  %v438 = vpack.c.b16 %v358, %v350
  %v439 = vpack.c.b16 %v359, %v351
  %v440 = vpack.c.b16 %v368, %v360
  %v441 = vpack.c.b16 %v369, %v361
  %v442 = vpack.c.b16 %v370, %v362
  %v443 = vpack.c.b16 %v371, %v363
  %v444 = vpack.c.b16 %v372, %v364
  %v445 = vpack.c.b16 %v373, %v365
  %v446 = vpack.c.b16 %v374, %v366
  %v447 = vpack.c.b16 %v375, %v367
  %v448 = vpack.c.b16 %v384, %v376
  %v449 = vpack.c.b16 %v385, %v377
  %v450 = vpack.c.b16 %v386, %v378
  %v451 = vpack.c.b16 %v387, %v379
  %v452 = vpack.c.b16 %v388, %v380
  %v453 = vpack.c.b16 %v389, %v381
  %v454 = vpack.c.b16 %v390, %v382
  %v455 = vpack.c.b16 %v391, %v383
  %520 = vmatprep.subr.bf16.mxu0 %v449
  %521 = vmatpush1.bf16.msra.mxu0 %v448
  %522 = vmatprep.subr.bf16.mxu0 %v441
  %523 = vmatpush1.bf16.msra.mxu0 %v440
  %524 = vmatprep.subr.bf16.mxu0 %v433
  %525 = vmatpush1.bf16.msra.mxu0 %v432
  %526 = vmatprep.subr.bf16.mxu0 %v425
  %527 = vmatpush1.bf16.msra.mxu0 %v424
  %528 = vmatprep.subr.bf16.mxu0 %v417
  %529 = vmatpush1.bf16.msra.mxu0 %v416
  %530 = vmatprep.subr.bf16.mxu0 %v409
  %531 = vmatpush1.bf16.msra.mxu0 %v408
  %532 = vmatprep.subr.bf16.mxu0 %v401
  %533 = vmatpush1.bf16.msra.mxu0 %v400
  %534 = vmatprep.subr.bf16.mxu0 %v393
  %535 = vmatpush1.bf16.msra.mxu0 %v392
  %536 = vmatprep.subr.bf16.mxu0 0
  %537 = vmatpush2.bf16.msra.mxu0 0
  %538 = vmatprep.subr.bf16.mxu0 0
  %539 = vmatpush2.bf16.msra.mxu0 0
  %540 = vmatprep.subr.bf16.mxu0 0
  %541 = vmatpush2.bf16.msra.mxu0 0
  %542 = vmatprep.subr.bf16.mxu0 0
  %543 = vmatpush2.bf16.msra.mxu0 0
  %544 = vmatprep.subr.bf16.mxu0 0
  %545 = vmatpush2.bf16.msra.mxu0 0
  %546 = vmatprep.subr.bf16.mxu0 0
  %547 = vmatpush2.bf16.msra.mxu0 0
  %548 = vmatprep.subr.bf16.mxu0 0
  %549 = vmatpush2.bf16.msra.mxu0 0
  %550 = vmatprep.subr.bf16.mxu0 0
  %551 = vmatpush2.bf16.msra.mxu0 0
  %552 = vmatprep.mubr.bf16.mxu0 0
  %553 = vmatmul.mubr.bf16.gmra.mxu0 %v93
  %v554 = vpop.f32.mrf.mxu0
  %v555 = vadd.f32 %v163, %v554
  %v556 = vpop.f32.mrf.mxu0
  %v557 = vadd.f32 %v167, %v556
  %v558 = vpop.f32.mrf.mxu0
  %v559 = vpop.f32.mrf.mxu0
  %560 = vdwg.mxu0
  %561 = vmatprep.subr.bf16.mxu0 %v451
  %562 = vmatpush1.bf16.msra.mxu0 %v450
  %563 = vmatprep.subr.bf16.mxu0 %v443
  %564 = vmatpush1.bf16.msra.mxu0 %v442
  %565 = vmatprep.subr.bf16.mxu0 %v435
  %566 = vmatpush1.bf16.msra.mxu0 %v434
  %567 = vmatprep.subr.bf16.mxu0 %v427
  %568 = vmatpush1.bf16.msra.mxu0 %v426
  %569 = vmatprep.subr.bf16.mxu0 %v419
  %570 = vmatpush1.bf16.msra.mxu0 %v418
  %571 = vmatprep.subr.bf16.mxu0 %v411
  %572 = vmatpush1.bf16.msra.mxu0 %v410
  %573 = vmatprep.subr.bf16.mxu0 %v403
  %574 = vmatpush1.bf16.msra.mxu0 %v402
  %575 = vmatprep.subr.bf16.mxu0 %v395
  %576 = vmatpush1.bf16.msra.mxu0 %v394
  %577 = vmatprep.subr.bf16.mxu0 0
  %578 = vmatpush2.bf16.msra.mxu0 0
  %579 = vmatprep.subr.bf16.mxu0 0
  %580 = vmatpush2.bf16.msra.mxu0 0
  %581 = vmatprep.subr.bf16.mxu0 0
  %582 = vmatpush2.bf16.msra.mxu0 0
  %583 = vmatprep.subr.bf16.mxu0 0
  %584 = vmatpush2.bf16.msra.mxu0 0
  %585 = vmatprep.subr.bf16.mxu0 0
  %586 = vmatpush2.bf16.msra.mxu0 0
  %587 = vmatprep.subr.bf16.mxu0 0
  %588 = vmatpush2.bf16.msra.mxu0 0
  %589 = vmatprep.subr.bf16.mxu0 0
  %590 = vmatpush2.bf16.msra.mxu0 0
  %591 = vmatprep.subr.bf16.mxu0 0
  %592 = vmatpush2.bf16.msra.mxu0 0
  %593 = vmatprep.mubr.bf16.mxu0 0
  %594 = vmatmul.mubr.bf16.gmra.mxu0 %v93
  %v595 = vpop.f32.mrf.mxu0
  %v596 = vadd.f32 %v171, %v595
  %v597 = vpop.f32.mrf.mxu0
  %v598 = vadd.f32 %v175, %v597
  %v599 = vpop.f32.mrf.mxu0
  %v600 = vpop.f32.mrf.mxu0
  %601 = vdwg.mxu0
  %602 = vmatprep.subr.bf16.mxu0 %v453
  %603 = vmatpush1.bf16.msra.mxu0 %v452
  %604 = vmatprep.subr.bf16.mxu0 %v445
  %605 = vmatpush1.bf16.msra.mxu0 %v444
  %606 = vmatprep.subr.bf16.mxu0 %v437
  %607 = vmatpush1.bf16.msra.mxu0 %v436
  %608 = vmatprep.subr.bf16.mxu0 %v429
  %609 = vmatpush1.bf16.msra.mxu0 %v428
  %610 = vmatprep.subr.bf16.mxu0 %v421
  %611 = vmatpush1.bf16.msra.mxu0 %v420
  %612 = vmatprep.subr.bf16.mxu0 %v413
  %613 = vmatpush1.bf16.msra.mxu0 %v412
  %614 = vmatprep.subr.bf16.mxu0 %v405
  %615 = vmatpush1.bf16.msra.mxu0 %v404
  %616 = vmatprep.subr.bf16.mxu0 %v397
  %617 = vmatpush1.bf16.msra.mxu0 %v396
  %618 = vmatprep.subr.bf16.mxu0 0
  %619 = vmatpush2.bf16.msra.mxu0 0
  %620 = vmatprep.subr.bf16.mxu0 0
  %621 = vmatpush2.bf16.msra.mxu0 0
  %622 = vmatprep.subr.bf16.mxu0 0
  %623 = vmatpush2.bf16.msra.mxu0 0
  %624 = vmatprep.subr.bf16.mxu0 0
  %625 = vmatpush2.bf16.msra.mxu0 0
  %626 = vmatprep.subr.bf16.mxu0 0
  %627 = vmatpush2.bf16.msra.mxu0 0
  %628 = vmatprep.subr.bf16.mxu0 0
  %629 = vmatpush2.bf16.msra.mxu0 0
  %630 = vmatprep.subr.bf16.mxu0 0
  %631 = vmatpush2.bf16.msra.mxu0 0
  %632 = vmatprep.subr.bf16.mxu0 0
  %633 = vmatpush2.bf16.msra.mxu0 0
  %634 = vmatprep.mubr.bf16.mxu0 0
  %635 = vmatmul.mubr.bf16.gmra.mxu0 %v93
  %v636 = vpop.f32.mrf.mxu0
  %v637 = vadd.f32 %v179, %v636
  %v638 = vpop.f32.mrf.mxu0
  %v639 = vadd.f32 %v183, %v638
  %v640 = vpop.f32.mrf.mxu0
  %v641 = vpop.f32.mrf.mxu0
  %642 = vdwg.mxu0
  %643 = vmatprep.subr.bf16.mxu0 %v455
  %644 = vmatpush1.bf16.msra.mxu0 %v454
  %645 = vmatprep.subr.bf16.mxu0 %v447
  %646 = vmatpush1.bf16.msra.mxu0 %v446
  %647 = vmatprep.subr.bf16.mxu0 %v439
  %648 = vmatpush1.bf16.msra.mxu0 %v438
  %649 = vmatprep.subr.bf16.mxu0 %v431
  %650 = vmatpush1.bf16.msra.mxu0 %v430
  %651 = vmatprep.subr.bf16.mxu0 %v423
  %652 = vmatpush1.bf16.msra.mxu0 %v422
  %653 = vmatprep.subr.bf16.mxu0 %v415
  %654 = vmatpush1.bf16.msra.mxu0 %v414
  %655 = vmatprep.subr.bf16.mxu0 %v407
  %656 = vmatpush1.bf16.msra.mxu0 %v406
  %657 = vmatprep.subr.bf16.mxu0 %v399
  %658 = vmatpush1.bf16.msra.mxu0 %v398
  %659 = vmatprep.subr.bf16.mxu0 0
  %660 = vmatpush2.bf16.msra.mxu0 0
  %661 = vmatprep.subr.bf16.mxu0 0
  %662 = vmatpush2.bf16.msra.mxu0 0
  %663 = vmatprep.subr.bf16.mxu0 0
  %664 = vmatpush2.bf16.msra.mxu0 0
  %665 = vmatprep.subr.bf16.mxu0 0
  %666 = vmatpush2.bf16.msra.mxu0 0
  %667 = vmatprep.subr.bf16.mxu0 0
  %668 = vmatpush2.bf16.msra.mxu0 0
  %669 = vmatprep.subr.bf16.mxu0 0
  %670 = vmatpush2.bf16.msra.mxu0 0
  %671 = vmatprep.subr.bf16.mxu0 0
  %672 = vmatpush2.bf16.msra.mxu0 0
  %673 = vmatprep.subr.bf16.mxu0 0
  %674 = vmatpush2.bf16.msra.mxu0 0
  %675 = vmatprep.mubr.bf16.mxu0 0
  %676 = vmatmul.mubr.bf16.gmra.mxu0 %v93
  %v677 = vpop.f32.mrf.mxu0
  %v678 = vadd.f32 %v187, %v677
  %v679 = vpop.f32.mrf.mxu0
  %v680 = vadd.f32 %v191, %v679
  %v681 = vpop.f32.mrf.mxu0
  %v682 = vpop.f32.mrf.mxu0
  %683 = vdwg.mxu0
  %v684 = vmax.f32 %v555, 0.0
  %v685 = vmax.f32 %v557, 0.0
  %v686 = vmax.f32 %v596, 0.0
  %v687 = vmax.f32 %v598, 0.0
  %v688 = vmax.f32 %v637, 0.0
  %v689 = vmax.f32 %v639, 0.0
  %v690 = vmax.f32 %v678, 0.0
  %v691 = vmax.f32 %v680, 0.0
  %v692 = vpack.c.bf16 %v684, %v684
  %v693 = vpack.c.bf16 %v685, %v685
  %v694 = vpack.c.bf16 %v686, %v686
  %v695 = vpack.c.bf16 %v687, %v687
  %v696 = vpack.c.bf16 %v688, %v688
  %v697 = vpack.c.bf16 %v689, %v689
  %v698 = vpack.c.bf16 %v690, %v690
  %v699 = vpack.c.bf16 %v691, %v691
  %v702 = vcombine.low %v692, %v693
  %v704 = vunpack.c.l.s4 1966171168
  %v705 = vunpack.c.0.s8 %v704
  %v706 = vlaneseq
  %v707 = vshrl.u32 %v706, 7
  %v708 = vsub.s32 %v705, %v707
  %v709 = vrot.slane %v702, %v708
  %v711 = vunpack.c.l.s4 1966171168
  %v712 = vunpack.c.0.s8 %v711
  %v713 = vlaneseq
  %v714 = vshrl.u32 %v713, 7
  %v715 = vsub.s32 %v712, %v714
  %v716 = vrot.slane %v709, %v715
  %v717 = vunpack.i.l.s16 %v716
  %v718 = vunpack.i.h.s16 %v716
  %v719 = vpack.i.b16 %v717, %v717
  %v720 = vpack.i.b16 %v718, %v718
  %v722 = vunpack.c.l.s4 286326784
  %v723 = vunpack.c.0.s8 %v722
  %v724 = vlaneseq
  %v725 = vshrl.u32 %v724, 7
  %v726 = vsub.s32 %v723, %v725
  %v727 = vrot.slane %v719, %v726
  %v729 = vunpack.c.l.s4 286326784
  %v730 = vunpack.c.0.s8 %v729
  %v731 = vlaneseq
  %v732 = vshrl.u32 %v731, 7
  %v733 = vsub.s32 %v730, %v732
  %v734 = vrot.slane %v720, %v733
  %vm737 = vcmask 1042434
  %vm738 = vsmask.f32 2304
  %vm739 = vmand %vm737, %vm738
  %vm740 = vcmask 1046534
  %vm741 = vsmask.f32 6400
  %vm742 = vmand %vm740, %vm741
  %vm743 = vmor %vm742, %vm739
  %v744 = vld [vmem:[#allocation2] sm:$0x44]
  %v745 = vsel %vm743, %v727, %v744
  %746 = vst [vmem:[#allocation2] sm:$0x44] %v745
  %v747 = vld [vmem:[#allocation2 + $0x10] sm:$0x44]
  %v748 = vsel %vm743, %v734, %v747
  %749 = vst [vmem:[#allocation2 + $0x10] sm:$0x44] %v748
  %v752 = vcombine.low %v694, %v695
  %v754 = vunpack.c.l.s4 1966171168
  %v755 = vunpack.c.0.s8 %v754
  %v756 = vlaneseq
  %v757 = vshrl.u32 %v756, 7
  %v758 = vsub.s32 %v755, %v757
  %v759 = vrot.slane %v752, %v758
  %v761 = vunpack.c.l.s4 1966171168
  %v762 = vunpack.c.0.s8 %v761
  %v763 = vlaneseq
  %v764 = vshrl.u32 %v763, 7
  %v765 = vsub.s32 %v762, %v764
  %v766 = vrot.slane %v759, %v765
  %v767 = vunpack.i.l.s16 %v766
  %v768 = vunpack.i.h.s16 %v766
  %v769 = vpack.i.b16 %v767, %v767
  %v770 = vpack.i.b16 %v768, %v768
  %v772 = vunpack.c.l.s4 286326784
  %v773 = vunpack.c.0.s8 %v772
  %v774 = vlaneseq
  %v775 = vshrl.u32 %v774, 7
  %v776 = vsub.s32 %v773, %v775
  %v777 = vrot.slane %v769, %v776
  %v779 = vunpack.c.l.s4 286326784
  %v780 = vunpack.c.0.s8 %v779
  %v781 = vlaneseq
  %v782 = vshrl.u32 %v781, 7
  %v783 = vsub.s32 %v780, %v782
  %v784 = vrot.slane %v770, %v783
  %vm787 = vsmask.f32 7946
  %vm788 = vmand %vm737, %vm787
  %vm789 = vsmask.f32 7962
  %vm790 = vmand %vm740, %vm789
  %vm791 = vmor %vm790, %vm788
  %v792 = vld [vmem:[#allocation2] sm:$0x44]
  %v793 = vsel %vm791, %v777, %v792
  %794 = vst [vmem:[#allocation2] sm:$0x44] %v793
  %v795 = vld [vmem:[#allocation2 + $0x10] sm:$0x44]
  %v796 = vsel %vm791, %v784, %v795
  %797 = vst [vmem:[#allocation2 + $0x10] sm:$0x44] %v796
  %v800 = vcombine.low %v696, %v697
  %v802 = vunpack.c.l.s4 1966171168
  %v803 = vunpack.c.0.s8 %v802
  %v804 = vlaneseq
  %v805 = vshrl.u32 %v804, 7
  %v806 = vsub.s32 %v803, %v805
  %v807 = vrot.slane %v800, %v806
  %v809 = vunpack.c.l.s4 1966171168
  %v810 = vunpack.c.0.s8 %v809
  %v811 = vlaneseq
  %v812 = vshrl.u32 %v811, 7
  %v813 = vsub.s32 %v810, %v812
  %v814 = vrot.slane %v807, %v813
  %v815 = vunpack.i.l.s16 %v814
  %v816 = vunpack.i.h.s16 %v814
  %v817 = vpack.i.b16 %v815, %v815
  %v818 = vpack.i.b16 %v816, %v816
  %v820 = vunpack.c.l.s4 286326784
  %v821 = vunpack.c.0.s8 %v820
  %v822 = vlaneseq
  %v823 = vshrl.u32 %v822, 7
  %v824 = vsub.s32 %v821, %v823
  %v825 = vrot.slane %v817, %v824
  %v827 = vunpack.c.l.s4 286326784
  %v828 = vunpack.c.0.s8 %v827
  %v829 = vlaneseq
  %v830 = vshrl.u32 %v829, 7
  %v831 = vsub.s32 %v828, %v830
  %v832 = vrot.slane %v818, %v831
  %vm835 = vcmask 1043459
  %vm836 = vsmask.f32 3328
  %vm837 = vmand %vm835, %vm836
  %vm838 = vcmask 1047559
  %vm839 = vsmask.f32 7424
  %vm840 = vmand %vm838, %vm839
  %vm841 = vmor %vm840, %vm837
  %v842 = vld [vmem:[#allocation2] sm:$0x88]
  %v843 = vsel %vm841, %v825, %v842
  %844 = vst [vmem:[#allocation2] sm:$0x88] %v843
  %v845 = vld [vmem:[#allocation2 + $0x10] sm:$0x88]
  %v846 = vsel %vm841, %v832, %v845
  %847 = vst [vmem:[#allocation2 + $0x10] sm:$0x88] %v846
  %v850 = vcombine.low %v698, %v699
  %v852 = vunpack.c.l.s4 1966171168
  %v853 = vunpack.c.0.s8 %v852
  %v854 = vlaneseq
  %v855 = vshrl.u32 %v854, 7
  %v856 = vsub.s32 %v853, %v855
  %v857 = vrot.slane %v850, %v856
  %v859 = vunpack.c.l.s4 1966171168
  %v860 = vunpack.c.0.s8 %v859
  %v861 = vlaneseq
  %v862 = vshrl.u32 %v861, 7
  %v863 = vsub.s32 %v860, %v862
  %v864 = vrot.slane %v857, %v863
  %v865 = vunpack.i.l.s16 %v864
  %v866 = vunpack.i.h.s16 %v864
  %v867 = vpack.i.b16 %v865, %v865
  %v868 = vpack.i.b16 %v866, %v866
  %v870 = vunpack.c.l.s4 286326784
  %v871 = vunpack.c.0.s8 %v870
  %v872 = vlaneseq
  %v873 = vshrl.u32 %v872, 7
  %v874 = vsub.s32 %v871, %v873
  %v875 = vrot.slane %v867, %v874
  %v877 = vunpack.c.l.s4 286326784
  %v878 = vunpack.c.0.s8 %v877
  %v879 = vlaneseq
  %v880 = vshrl.u32 %v879, 7
  %v881 = vsub.s32 %v878, %v880
  %v882 = vrot.slane %v868, %v881
  %vm885 = vsmask.f32 7950
  %vm886 = vmand %vm835, %vm885
  %vm887 = vsmask.f32 7966
  %vm888 = vmand %vm838, %vm887
  %vm889 = vmor %vm888, %vm886
  %v890 = vld [vmem:[#allocation2] sm:$0x88]
  %v891 = vsel %vm889, %v875, %v890
  %892 = vst [vmem:[#allocation2] sm:$0x88] %v891
  %v893 = vld [vmem:[#allocation2 + $0x10] sm:$0x88]
  %v894 = vsel %vm889, %v882, %v893
  %895 = vst [vmem:[#allocation2 + $0x10] sm:$0x88] %v894
  %v896 = vld [vmem:[#allocation2] sm:$0xff]
  %v897 = vld [vmem:[#allocation2 + $0x10] sm:$0xff]
  %v901 = vunpack.c.l.s4 1966171168
  %v902 = vunpack.c.0.s8 %v901
  %v903 = vlaneseq
  %v904 = vshrl.u32 %v903, 7
  %v905 = vsub.s32 %v902, %v904
  %v906 = vrot.slane %v896, %v905
  %v907 = vcombine.high %v906, %v906
  %v909 = vunpack.c.l.s4 1966171168
  %v910 = vunpack.c.0.s8 %v909
  %v911 = vlaneseq
  %v912 = vshrl.u32 %v911, 7
  %v913 = vsub.s32 %v910, %v912
  %v914 = vrot.slane %v906, %v913
  %v916 = vunpack.c.l.s4 1966171168
  %v917 = vunpack.c.0.s8 %v916
  %v918 = vlaneseq
  %v919 = vshrl.u32 %v918, 7
  %v920 = vsub.s32 %v917, %v919
  %v921 = vrot.slane %v907, %v920
  %v922 = vcombine.high %v914, %v914
  %v923 = vcombine.high %v921, %v921
  %v925 = vunpack.c.l.s4 1966171168
  %v926 = vunpack.c.0.s8 %v925
  %v927 = vlaneseq
  %v928 = vshrl.u32 %v927, 7
  %v929 = vsub.s32 %v926, %v928
  %v930 = vrot.slane %v897, %v929
  %v931 = vcombine.high %v930, %v930
  %v933 = vunpack.c.l.s4 1966171168
  %v934 = vunpack.c.0.s8 %v933
  %v935 = vlaneseq
  %v936 = vshrl.u32 %v935, 7
  %v937 = vsub.s32 %v934, %v936
  %v938 = vrot.slane %v930, %v937
  %v940 = vunpack.c.l.s4 1966171168
  %v941 = vunpack.c.0.s8 %v940
  %v942 = vlaneseq
  %v943 = vshrl.u32 %v942, 7
  %v944 = vsub.s32 %v941, %v943
  %v945 = vrot.slane %v931, %v944
  %v946 = vcombine.high %v938, %v938
  %v947 = vcombine.high %v945, %v945
  %v948 = vunpack.i.l.s16 %v914
  %v949 = vunpack.i.h.s16 %v914
  %v950 = vunpack.i.l.s16 %v921
  %v951 = vunpack.i.h.s16 %v921
  %v952 = vunpack.i.l.s16 %v922
  %v953 = vunpack.i.h.s16 %v922
  %v954 = vunpack.i.l.s16 %v923
  %v955 = vunpack.i.l.s16 %v938
  %v956 = vunpack.i.h.s16 %v938
  %v957 = vunpack.i.l.s16 %v945
  %v958 = vunpack.i.h.s16 %v945
  %v959 = vunpack.i.l.s16 %v946
  %v960 = vunpack.i.h.s16 %v946
  %v961 = vunpack.i.l.s16 %v947
  %v962 = vld [vmem:[%s3] sm:$0xff]
  %v963 = vld [vmem:[%s3 + $0x8] sm:$0xff]
  %v964 = vld [vmem:[%s3 + $0x10] sm:$0xff]
  %v965 = vld [vmem:[%s3 + $0x18] sm:$0xff]
  %v966 = vld [vmem:[%s3 + $0x20] sm:$0xff]
  %v967 = vld [vmem:[%s3 + $0x28] sm:$0xff]
  %v968 = vld [vmem:[%s3 + $0x30] sm:$0xff]
  %v969 = vld [vmem:[%s3 + $0x38] sm:$0xff]
  %v970 = vld [vmem:[%s3 + $0x40] sm:$0xff]
  %v971 = vld [vmem:[%s3 + $0x48] sm:$0xff]
  %v972 = vld [vmem:[%s3 + $0x50] sm:$0xff]
  %v973 = vld [vmem:[%s3 + $0x58] sm:$0xff]
  %v974 = vld [vmem:[%s3 + $0x60] sm:$0xff]
  %v975 = vld [vmem:[%s3 + $0x68] sm:$0xff]
  %v976 = vld [vmem:[%s3 + $0x70] sm:$0xff]
  %v977 = vld [vmem:[%s3 + $0x78] sm:$0xff]
  %v978 = vld [vmem:[%s3 + $0x80] sm:$0xff]
  %v979 = vld [vmem:[%s3 + $0x88] sm:$0xff]
  %v980 = vld [vmem:[%s3 + $0x90] sm:$0xff]
  %v981 = vld [vmem:[%s3 + $0x98] sm:$0xff]
  %v982 = vld [vmem:[%s3 + $0xa0] sm:$0xff]
  %v983 = vld [vmem:[%s3 + $0xa8] sm:$0xff]
  %v984 = vld [vmem:[%s3 + $0xb0] sm:$0xff]
  %v985 = vld [vmem:[%s3 + $0xb8] sm:$0xff]
  %v986 = vld [vmem:[%s3 + $0xc0] sm:$0xff]
  %v987 = vld [vmem:[%s3 + $0xc8] sm:$0xff]
  %v988 = vld [vmem:[%s3 + $0xd0] sm:$0xff]
  %v989 = vld [vmem:[%s3 + $0xd8] sm:$0xff]
  %v990 = vld [vmem:[%s3 + $0xe0] sm:$0xff]
  %v991 = vld [vmem:[%s3 + $0xe8] sm:$0xff]
  %v992 = vld [vmem:[%s3 + $0xf0] sm:$0xff]
  %v993 = vld [vmem:[%s3 + $0xf8] sm:$0xff]
  %v994 = vunpack.i.h.s16 %v923
  %v995 = vunpack.i.h.s16 %v947
  %s996 = scalar_lea.vmem %s3, 256
  %v997 = vld [vmem:[%s996] sm:$0xff]
  %v998 = vld [vmem:[%s996 + $0x8] sm:$0xff]
  %v999 = vld [vmem:[%s996 + $0x10] sm:$0xff]
  %v1000 = vld [vmem:[%s996 + $0x18] sm:$0xff]
  %v1001 = vld [vmem:[%s996 + $0x20] sm:$0xff]
  %v1002 = vld [vmem:[%s996 + $0x28] sm:$0xff]
  %v1003 = vld [vmem:[%s996 + $0x30] sm:$0xff]
  %v1004 = vld [vmem:[%s996 + $0x38] sm:$0xff]
  %v1005 = vld [vmem:[%s996 + $0x40] sm:$0xff]
  %v1006 = vld [vmem:[%s996 + $0x48] sm:$0xff]
  %v1007 = vld [vmem:[%s996 + $0x50] sm:$0xff]
  %v1008 = vld [vmem:[%s996 + $0x58] sm:$0xff]
  %v1009 = vld [vmem:[%s996 + $0x60] sm:$0xff]
  %v1010 = vld [vmem:[%s996 + $0x68] sm:$0xff]
  %v1011 = vld [vmem:[%s996 + $0x70] sm:$0xff]
  %v1012 = vld [vmem:[%s996 + $0x78] sm:$0xff]
  %v1013 = vld [vmem:[%s996 + $0x80] sm:$0xff]
  %v1014 = vld [vmem:[%s996 + $0x88] sm:$0xff]
  %v1015 = vld [vmem:[%s996 + $0x90] sm:$0xff]
  %v1016 = vld [vmem:[%s996 + $0x98] sm:$0xff]
  %v1017 = vld [vmem:[%s996 + $0xa0] sm:$0xff]
  %v1018 = vld [vmem:[%s996 + $0xa8] sm:$0xff]
  %v1019 = vld [vmem:[%s996 + $0xb0] sm:$0xff]
  %v1020 = vld [vmem:[%s996 + $0xb8] sm:$0xff]
  %v1021 = vld [vmem:[%s996 + $0xc0] sm:$0xff]
  %v1022 = vld [vmem:[%s996 + $0xc8] sm:$0xff]
  %v1023 = vld [vmem:[%s996 + $0xd0] sm:$0xff]
  %v1024 = vld [vmem:[%s996 + $0xd8] sm:$0xff]
  %v1025 = vld [vmem:[%s996 + $0xe0] sm:$0xff]
  %v1026 = vld [vmem:[%s996 + $0xe8] sm:$0xff]
  %v1027 = vld [vmem:[%s996 + $0xf0] sm:$0xff]
  %v1028 = vld [vmem:[%s996 + $0xf8] sm:$0xff]
  %v1029 = vpack.i.b16 %v950, %v949
  %v1030 = vpack.i.b16 %v952, %v951
  %v1031 = vpack.i.b16 %v954, %v953
  %v1032 = vpack.i.b16 %v956, %v994
  %v1033 = vpack.i.b16 %v958, %v957
  %v1034 = vpack.i.b16 %v960, %v959
  %v1035 = vpack.i.b16 %v995, %v961
  %v1036 = vcombine.low %v1029, %v1030
  %v1037 = vcombine.low %v1031, %v1032
  %v1038 = vcombine.low %v1033, %v1034
  %v1040 = vunpack.c.l.s4 1966171168
  %v1041 = vunpack.c.0.s8 %v1040
  %v1042 = vlaneseq
  %v1043 = vshrl.u32 %v1042, 7
  %v1044 = vsub.s32 %v1041, %v1043
  %v1045 = vrot.slane %v1036, %v1044
  %v1047 = vunpack.c.l.s4 1966171168
  %v1048 = vunpack.c.0.s8 %v1047
  %v1049 = vlaneseq
  %v1050 = vshrl.u32 %v1049, 7
  %v1051 = vsub.s32 %v1048, %v1050
  %v1052 = vrot.slane %v1037, %v1051
  %v1054 = vunpack.c.l.s4 1966171168
  %v1055 = vunpack.c.0.s8 %v1054
  %v1056 = vlaneseq
  %v1057 = vshrl.u32 %v1056, 7
  %v1058 = vsub.s32 %v1055, %v1057
  %v1059 = vrot.slane %v1038, %v1058
  %v1061 = vunpack.c.l.s4 1966171168
  %v1062 = vunpack.c.0.s8 %v1061
  %v1063 = vlaneseq
  %v1064 = vshrl.u32 %v1063, 7
  %v1065 = vsub.s32 %v1062, %v1064
  %v1066 = vrot.slane %v1035, %v1065
  %v1067 = vcombine.low %v1045, %v1052
  %v1068 = vcombine.high %v1045, %v1052
  %v1069 = vcombine.low %v1059, %v1066
  %v1070 = vcombine.high %v1059, %v1066
  %v1072 = vunpack.c.l.s4 1966171168
  %v1073 = vunpack.c.0.s8 %v1072
  %v1074 = vlaneseq
  %v1075 = vshrl.u32 %v1074, 7
  %v1076 = vsub.s32 %v1073, %v1075
  %v1077 = vrot.slane %v1067, %v1076
  %v1079 = vunpack.c.l.s4 1966171168
  %v1080 = vunpack.c.0.s8 %v1079
  %v1081 = vlaneseq
  %v1082 = vshrl.u32 %v1081, 7
  %v1083 = vsub.s32 %v1080, %v1082
  %v1084 = vrot.slane %v1068, %v1083
  %v1086 = vunpack.c.l.s4 1966171168
  %v1087 = vunpack.c.0.s8 %v1086
  %v1088 = vlaneseq
  %v1089 = vshrl.u32 %v1088, 7
  %v1090 = vsub.s32 %v1087, %v1089
  %v1091 = vrot.slane %v1069, %v1090
  %v1093 = vunpack.c.l.s4 1966171168
  %v1094 = vunpack.c.0.s8 %v1093
  %v1095 = vlaneseq
  %v1096 = vshrl.u32 %v1095, 7
  %v1097 = vsub.s32 %v1094, %v1096
  %v1098 = vrot.slane %v1070, %v1097
  %v1099 = vcombine.low %v1077, %v1091
  %v1100 = vcombine.low %v1084, %v1098
  %v1135 = vunpack.c.l.b16 %v997
  %v1136 = vunpack.c.h.b16 %v997
  %v1137 = vunpack.c.l.b16 %v998
  %v1138 = vunpack.c.h.b16 %v998
  %v1139 = vunpack.c.l.b16 %v999
  %v1140 = vunpack.c.h.b16 %v999
  %v1141 = vunpack.c.l.b16 %v1000
  %v1142 = vunpack.c.h.b16 %v1000
  %v1143 = vunpack.c.l.b16 %v1001
  %v1144 = vunpack.c.h.b16 %v1001
  %v1145 = vunpack.c.l.b16 %v1002
  %v1146 = vunpack.c.h.b16 %v1002
  %v1147 = vunpack.c.l.b16 %v1003
  %v1148 = vunpack.c.h.b16 %v1003
  %v1149 = vunpack.c.l.b16 %v1004
  %v1150 = vunpack.c.h.b16 %v1004
  %v1151 = vunpack.c.l.b16 %v1005
  %v1152 = vunpack.c.h.b16 %v1005
  %v1153 = vunpack.c.l.b16 %v1006
  %v1154 = vunpack.c.h.b16 %v1006
  %v1155 = vunpack.c.l.b16 %v1007
  %v1156 = vunpack.c.h.b16 %v1007
  %v1157 = vunpack.c.l.b16 %v1008
  %v1158 = vunpack.c.h.b16 %v1008
  %v1159 = vunpack.c.l.b16 %v1009
  %v1160 = vunpack.c.h.b16 %v1009
  %v1161 = vunpack.c.l.b16 %v1010
  %v1162 = vunpack.c.h.b16 %v1010
  %v1163 = vunpack.c.l.b16 %v1011
  %v1164 = vunpack.c.h.b16 %v1011
  %v1165 = vunpack.c.l.b16 %v1012
  %v1166 = vunpack.c.h.b16 %v1012
  %v1167 = vunpack.c.l.b16 %v1013
  %v1168 = vunpack.c.h.b16 %v1013
  %v1169 = vunpack.c.l.b16 %v1014
  %v1170 = vunpack.c.h.b16 %v1014
  %v1171 = vunpack.c.l.b16 %v1015
  %v1172 = vunpack.c.h.b16 %v1015
  %v1173 = vunpack.c.l.b16 %v1016
  %v1174 = vunpack.c.h.b16 %v1016
  %v1175 = vunpack.c.l.b16 %v1017
  %v1176 = vunpack.c.h.b16 %v1017
  %v1177 = vunpack.c.l.b16 %v1018
  %v1178 = vunpack.c.h.b16 %v1018
  %v1179 = vunpack.c.l.b16 %v1019
  %v1180 = vunpack.c.h.b16 %v1019
  %v1181 = vunpack.c.l.b16 %v1020
  %v1182 = vunpack.c.h.b16 %v1020
  %v1183 = vunpack.c.l.b16 %v1021
  %v1184 = vunpack.c.h.b16 %v1021
  %v1185 = vunpack.c.l.b16 %v1022
  %v1186 = vunpack.c.h.b16 %v1022
  %v1187 = vunpack.c.l.b16 %v1023
  %v1188 = vunpack.c.h.b16 %v1023
  %v1189 = vunpack.c.l.b16 %v1024
  %v1190 = vunpack.c.h.b16 %v1024
  %v1191 = vunpack.c.l.b16 %v1025
  %v1192 = vunpack.c.h.b16 %v1025
  %v1193 = vunpack.c.l.b16 %v1026
  %v1194 = vunpack.c.h.b16 %v1026
  %v1195 = vunpack.c.l.b16 %v1027
  %v1196 = vunpack.c.h.b16 %v1027
  %v1197 = vunpack.c.l.b16 %v1028
  %v1198 = vunpack.c.h.b16 %v1028
  %v1199 = vpack.c.b16 %v1137, %v1135
  %v1200 = vpack.c.b16 %v1138, %v1136
  %v1201 = vpack.c.b16 %v1141, %v1139
  %v1202 = vpack.c.b16 %v1142, %v1140
  %v1203 = vpack.c.b16 %v1145, %v1143
  %v1204 = vpack.c.b16 %v1146, %v1144
  %v1205 = vpack.c.b16 %v1149, %v1147
  %v1206 = vpack.c.b16 %v1150, %v1148
  %v1207 = vpack.c.b16 %v1153, %v1151
  %v1208 = vpack.c.b16 %v1154, %v1152
  %v1209 = vpack.c.b16 %v1157, %v1155
  %v1210 = vpack.c.b16 %v1158, %v1156
  %v1211 = vpack.c.b16 %v1161, %v1159
  %v1212 = vpack.c.b16 %v1162, %v1160
  %v1213 = vpack.c.b16 %v1165, %v1163
  %v1214 = vpack.c.b16 %v1166, %v1164
  %v1215 = vpack.c.b16 %v1169, %v1167
  %v1216 = vpack.c.b16 %v1170, %v1168
  %v1217 = vpack.c.b16 %v1173, %v1171
  %v1218 = vpack.c.b16 %v1174, %v1172
  %v1219 = vpack.c.b16 %v1177, %v1175
  %v1220 = vpack.c.b16 %v1178, %v1176
  %v1221 = vpack.c.b16 %v1181, %v1179
  %v1222 = vpack.c.b16 %v1182, %v1180
  %v1223 = vpack.c.b16 %v1185, %v1183
  %v1224 = vpack.c.b16 %v1186, %v1184
  %v1225 = vpack.c.b16 %v1189, %v1187
  %v1226 = vpack.c.b16 %v1190, %v1188
  %v1227 = vpack.c.b16 %v1193, %v1191
  %v1228 = vpack.c.b16 %v1194, %v1192
  %v1229 = vpack.c.b16 %v1197, %v1195
  %v1230 = vpack.c.b16 %v1198, %v1196
  %1263 = vmatprep.subr.bf16.mxu0 %v1214
  %1264 = vmatpush1.bf16.msra.mxu0 %v1213
  %1265 = vmatprep.subr.bf16.mxu0 %v1212
  %1266 = vmatpush1.bf16.msra.mxu0 %v1211
  %1267 = vmatprep.subr.bf16.mxu0 %v1210
  %1268 = vmatpush1.bf16.msra.mxu0 %v1209
  %1269 = vmatprep.subr.bf16.mxu0 %v1208
  %1270 = vmatpush1.bf16.msra.mxu0 %v1207
  %1271 = vmatprep.subr.bf16.mxu0 %v1206
  %1272 = vmatpush1.bf16.msra.mxu0 %v1205
  %1273 = vmatprep.subr.bf16.mxu0 %v1204
  %1274 = vmatpush1.bf16.msra.mxu0 %v1203
  %1275 = vmatprep.subr.bf16.mxu0 %v1202
  %1276 = vmatpush1.bf16.msra.mxu0 %v1201
  %1277 = vmatprep.subr.bf16.mxu0 %v1200
  %1278 = vmatpush1.bf16.msra.mxu0 %v1199
  %1279 = vmatprep.subr.bf16.mxu0 %v1230
  %1280 = vmatpush2.bf16.msra.mxu0 %v1229
  %1281 = vmatprep.subr.bf16.mxu0 %v1228
  %1282 = vmatpush2.bf16.msra.mxu0 %v1227
  %1283 = vmatprep.subr.bf16.mxu0 %v1226
  %1284 = vmatpush2.bf16.msra.mxu0 %v1225
  %1285 = vmatprep.subr.bf16.mxu0 %v1224
  %1286 = vmatpush2.bf16.msra.mxu0 %v1223
  %1287 = vmatprep.subr.bf16.mxu0 %v1222
  %1288 = vmatpush2.bf16.msra.mxu0 %v1221
  %1289 = vmatprep.subr.bf16.mxu0 %v1220
  %1290 = vmatpush2.bf16.msra.mxu0 %v1219
  %1291 = vmatprep.subr.bf16.mxu0 %v1218
  %1292 = vmatpush2.bf16.msra.mxu0 %v1217
  %1293 = vmatprep.subr.bf16.mxu0 %v1216
  %1294 = vmatpush2.bf16.msra.mxu0 %v1215
  %1295 = vmatprep.mubr.bf16.mxu0 %v1100
  %1296 = vmatmul.mubr.bf16.gmra.mxu0 %v1099
  %v1297 = vpop.f32.mrf.mxu0
  %v1298 = vadd.f32 0.0, %v1297
  %v1299 = vpop.f32.mrf.mxu0
  %v1300 = vadd.f32 0.0, %v1299
  %v1301 = vpop.f32.mrf.mxu0
  %v1302 = vadd.f32 0.0, %v1301
  %v1303 = vpop.f32.mrf.mxu0
  %v1304 = vadd.f32 0.0, %v1303
  %1305 = vdwg.mxu0
  %v1306 = vpack.i.b16 %v949, %v948
  %v1307 = vpack.i.b16 %v951, %v950
  %v1308 = vpack.i.b16 %v953, %v952
  %v1309 = vpack.i.b16 %v955, %v954
  %v1310 = vpack.i.b16 %v957, %v956
  %v1311 = vpack.i.b16 %v959, %v958
  %v1312 = vpack.i.b16 %v961, %v960
  %v1313 = vcombine.low %v1306, %v1307
  %v1314 = vcombine.low %v1308, %v1309
  %v1315 = vcombine.low %v1310, %v1311
  %v1317 = vunpack.c.l.s4 1966171168
  %v1318 = vunpack.c.0.s8 %v1317
  %v1319 = vlaneseq
  %v1320 = vshrl.u32 %v1319, 7
  %v1321 = vsub.s32 %v1318, %v1320
  %v1322 = vrot.slane %v1313, %v1321
  %v1324 = vunpack.c.l.s4 1966171168
  %v1325 = vunpack.c.0.s8 %v1324
  %v1326 = vlaneseq
  %v1327 = vshrl.u32 %v1326, 7
  %v1328 = vsub.s32 %v1325, %v1327
  %v1329 = vrot.slane %v1314, %v1328
  %v1331 = vunpack.c.l.s4 1966171168
  %v1332 = vunpack.c.0.s8 %v1331
  %v1333 = vlaneseq
  %v1334 = vshrl.u32 %v1333, 7
  %v1335 = vsub.s32 %v1332, %v1334
  %v1336 = vrot.slane %v1315, %v1335
  %v1338 = vunpack.c.l.s4 1966171168
  %v1339 = vunpack.c.0.s8 %v1338
  %v1340 = vlaneseq
  %v1341 = vshrl.u32 %v1340, 7
  %v1342 = vsub.s32 %v1339, %v1341
  %v1343 = vrot.slane %v1312, %v1342
  %v1344 = vcombine.low %v1322, %v1329
  %v1345 = vcombine.high %v1322, %v1329
  %v1346 = vcombine.low %v1336, %v1343
  %v1347 = vcombine.high %v1336, %v1343
  %v1349 = vunpack.c.l.s4 1966171168
  %v1350 = vunpack.c.0.s8 %v1349
  %v1351 = vlaneseq
  %v1352 = vshrl.u32 %v1351, 7
  %v1353 = vsub.s32 %v1350, %v1352
  %v1354 = vrot.slane %v1344, %v1353
  %v1356 = vunpack.c.l.s4 1966171168
  %v1357 = vunpack.c.0.s8 %v1356
  %v1358 = vlaneseq
  %v1359 = vshrl.u32 %v1358, 7
  %v1360 = vsub.s32 %v1357, %v1359
  %v1361 = vrot.slane %v1345, %v1360
  %v1363 = vunpack.c.l.s4 1966171168
  %v1364 = vunpack.c.0.s8 %v1363
  %v1365 = vlaneseq
  %v1366 = vshrl.u32 %v1365, 7
  %v1367 = vsub.s32 %v1364, %v1366
  %v1368 = vrot.slane %v1346, %v1367
  %v1370 = vunpack.c.l.s4 1966171168
  %v1371 = vunpack.c.0.s8 %v1370
  %v1372 = vlaneseq
  %v1373 = vshrl.u32 %v1372, 7
  %v1374 = vsub.s32 %v1371, %v1373
  %v1375 = vrot.slane %v1347, %v1374
  %v1376 = vcombine.low %v1354, %v1368
  %v1377 = vcombine.low %v1361, %v1375
  %v1412 = vunpack.c.l.b16 %v962
  %v1413 = vunpack.c.h.b16 %v962
  %v1414 = vunpack.c.l.b16 %v963
  %v1415 = vunpack.c.h.b16 %v963
  %v1416 = vunpack.c.l.b16 %v964
  %v1417 = vunpack.c.h.b16 %v964
  %v1418 = vunpack.c.l.b16 %v965
  %v1419 = vunpack.c.h.b16 %v965
  %v1420 = vunpack.c.l.b16 %v966
  %v1421 = vunpack.c.h.b16 %v966
  %v1422 = vunpack.c.l.b16 %v967
  %v1423 = vunpack.c.h.b16 %v967
  %v1424 = vunpack.c.l.b16 %v968
  %v1425 = vunpack.c.h.b16 %v968
  %v1426 = vunpack.c.l.b16 %v969
  %v1427 = vunpack.c.h.b16 %v969
  %v1428 = vunpack.c.l.b16 %v970
  %v1429 = vunpack.c.h.b16 %v970
  %v1430 = vunpack.c.l.b16 %v971
  %v1431 = vunpack.c.h.b16 %v971
  %v1432 = vunpack.c.l.b16 %v972
  %v1433 = vunpack.c.h.b16 %v972
  %v1434 = vunpack.c.l.b16 %v973
  %v1435 = vunpack.c.h.b16 %v973
  %v1436 = vunpack.c.l.b16 %v974
  %v1437 = vunpack.c.h.b16 %v974
  %v1438 = vunpack.c.l.b16 %v975
  %v1439 = vunpack.c.h.b16 %v975
  %v1440 = vunpack.c.l.b16 %v976
  %v1441 = vunpack.c.h.b16 %v976
  %v1442 = vunpack.c.l.b16 %v977
  %v1443 = vunpack.c.h.b16 %v977
  %v1444 = vunpack.c.l.b16 %v978
  %v1445 = vunpack.c.h.b16 %v978
  %v1446 = vunpack.c.l.b16 %v979
  %v1447 = vunpack.c.h.b16 %v979
  %v1448 = vunpack.c.l.b16 %v980
  %v1449 = vunpack.c.h.b16 %v980
  %v1450 = vunpack.c.l.b16 %v981
  %v1451 = vunpack.c.h.b16 %v981
  %v1452 = vunpack.c.l.b16 %v982
  %v1453 = vunpack.c.h.b16 %v982
  %v1454 = vunpack.c.l.b16 %v983
  %v1455 = vunpack.c.h.b16 %v983
  %v1456 = vunpack.c.l.b16 %v984
  %v1457 = vunpack.c.h.b16 %v984
  %v1458 = vunpack.c.l.b16 %v985
  %v1459 = vunpack.c.h.b16 %v985
  %v1460 = vunpack.c.l.b16 %v986
  %v1461 = vunpack.c.h.b16 %v986
  %v1462 = vunpack.c.l.b16 %v987
  %v1463 = vunpack.c.h.b16 %v987
  %v1464 = vunpack.c.l.b16 %v988
  %v1465 = vunpack.c.h.b16 %v988
  %v1466 = vunpack.c.l.b16 %v989
  %v1467 = vunpack.c.h.b16 %v989
  %v1468 = vunpack.c.l.b16 %v990
  %v1469 = vunpack.c.h.b16 %v990
  %v1470 = vunpack.c.l.b16 %v991
  %v1471 = vunpack.c.h.b16 %v991
  %v1472 = vunpack.c.l.b16 %v992
  %v1473 = vunpack.c.h.b16 %v992
  %v1474 = vunpack.c.l.b16 %v993
  %v1475 = vunpack.c.h.b16 %v993
  %v1476 = vpack.c.b16 %v1414, %v1412
  %v1477 = vpack.c.b16 %v1415, %v1413
  %v1478 = vpack.c.b16 %v1418, %v1416
  %v1479 = vpack.c.b16 %v1419, %v1417
  %v1480 = vpack.c.b16 %v1422, %v1420
  %v1481 = vpack.c.b16 %v1423, %v1421
  %v1482 = vpack.c.b16 %v1426, %v1424
  %v1483 = vpack.c.b16 %v1427, %v1425
  %v1484 = vpack.c.b16 %v1430, %v1428
  %v1485 = vpack.c.b16 %v1431, %v1429
  %v1486 = vpack.c.b16 %v1434, %v1432
  %v1487 = vpack.c.b16 %v1435, %v1433
  %v1488 = vpack.c.b16 %v1438, %v1436
  %v1489 = vpack.c.b16 %v1439, %v1437
  %v1490 = vpack.c.b16 %v1442, %v1440
  %v1491 = vpack.c.b16 %v1443, %v1441
  %v1492 = vpack.c.b16 %v1446, %v1444
  %v1493 = vpack.c.b16 %v1447, %v1445
  %v1494 = vpack.c.b16 %v1450, %v1448
  %v1495 = vpack.c.b16 %v1451, %v1449
  %v1496 = vpack.c.b16 %v1454, %v1452
  %v1497 = vpack.c.b16 %v1455, %v1453
  %v1498 = vpack.c.b16 %v1458, %v1456
  %v1499 = vpack.c.b16 %v1459, %v1457
  %v1500 = vpack.c.b16 %v1462, %v1460
  %v1501 = vpack.c.b16 %v1463, %v1461
  %v1502 = vpack.c.b16 %v1466, %v1464
  %v1503 = vpack.c.b16 %v1467, %v1465
  %v1504 = vpack.c.b16 %v1470, %v1468
  %v1505 = vpack.c.b16 %v1471, %v1469
  %v1506 = vpack.c.b16 %v1474, %v1472
  %v1507 = vpack.c.b16 %v1475, %v1473
  %1540 = vmatprep.subr.bf16.mxu0 %v1491
  %1541 = vmatpush1.bf16.msra.mxu0 %v1490
  %1542 = vmatprep.subr.bf16.mxu0 %v1489
  %1543 = vmatpush1.bf16.msra.mxu0 %v1488
  %1544 = vmatprep.subr.bf16.mxu0 %v1487
  %1545 = vmatpush1.bf16.msra.mxu0 %v1486
  %1546 = vmatprep.subr.bf16.mxu0 %v1485
  %1547 = vmatpush1.bf16.msra.mxu0 %v1484
  %1548 = vmatprep.subr.bf16.mxu0 %v1483
  %1549 = vmatpush1.bf16.msra.mxu0 %v1482
  %1550 = vmatprep.subr.bf16.mxu0 %v1481
  %1551 = vmatpush1.bf16.msra.mxu0 %v1480
  %1552 = vmatprep.subr.bf16.mxu0 %v1479
  %1553 = vmatpush1.bf16.msra.mxu0 %v1478
  %1554 = vmatprep.subr.bf16.mxu0 %v1477
  %1555 = vmatpush1.bf16.msra.mxu0 %v1476
  %1556 = vmatprep.subr.bf16.mxu0 %v1507
  %1557 = vmatpush2.bf16.msra.mxu0 %v1506
  %1558 = vmatprep.subr.bf16.mxu0 %v1505
  %1559 = vmatpush2.bf16.msra.mxu0 %v1504
  %1560 = vmatprep.subr.bf16.mxu0 %v1503
  %1561 = vmatpush2.bf16.msra.mxu0 %v1502
  %1562 = vmatprep.subr.bf16.mxu0 %v1501
  %1563 = vmatpush2.bf16.msra.mxu0 %v1500
  %1564 = vmatprep.subr.bf16.mxu0 %v1499
  %1565 = vmatpush2.bf16.msra.mxu0 %v1498
  %1566 = vmatprep.subr.bf16.mxu0 %v1497
  %1567 = vmatpush2.bf16.msra.mxu0 %v1496
  %1568 = vmatprep.subr.bf16.mxu0 %v1495
  %1569 = vmatpush2.bf16.msra.mxu0 %v1494
  %1570 = vmatprep.subr.bf16.mxu0 %v1493
  %1571 = vmatpush2.bf16.msra.mxu0 %v1492
  %1572 = vmatprep.mubr.bf16.mxu0 %v1377
  %1573 = vmatmul.mubr.bf16.gmra.mxu0 %v1376
  %v1574 = vpop.f32.mrf.mxu0
  %v1575 = vadd.f32 %v1298, %v1574
  %v1576 = vpop.f32.mrf.mxu0
  %v1577 = vadd.f32 %v1300, %v1576
  %v1578 = vpop.f32.mrf.mxu0
  %v1579 = vadd.f32 %v1302, %v1578
  %v1580 = vpop.f32.mrf.mxu0
  %v1581 = vadd.f32 %v1304, %v1580
  %1582 = vdwg.mxu0
  %v1583 = vld [vmem:[#allocation2] sm:$0xee]
  %v1584 = vld [vmem:[#allocation2 + $0x8] sm:$0x11]
  %v1585 = vld [vmem:[#allocation2 + $0x10] sm:$0xee]
  %v1586 = vld [vmem:[#allocation2 + $0x18] sm:$0x11]
  %v1592 = vunpack.c.l.s4 1966171168
  %v1593 = vunpack.c.0.s8 %v1592
  %v1594 = vlaneseq
  %v1595 = vshrl.u32 %v1594, 7
  %v1596 = vsub.s32 %v1593, %v1595
  %v1597 = vrot.slane %v1583, %v1596
  %v1598 = vcombine.high %v1597, %v1597
  %v1600 = vunpack.c.l.s4 1966171168
  %v1601 = vunpack.c.0.s8 %v1600
  %v1602 = vlaneseq
  %v1603 = vshrl.u32 %v1602, 7
  %v1604 = vsub.s32 %v1601, %v1603
  %v1605 = vrot.slane %v1597, %v1604
  %v1607 = vunpack.c.l.s4 1966171168
  %v1608 = vunpack.c.0.s8 %v1607
  %v1609 = vlaneseq
  %v1610 = vshrl.u32 %v1609, 7
  %v1611 = vsub.s32 %v1608, %v1610
  %v1612 = vrot.slane %v1598, %v1611
  %v1613 = vcombine.high %v1605, %v1605
  %v1614 = vcombine.high %v1612, %v1612
  %v1616 = vunpack.c.l.s4 1966171168
  %v1617 = vunpack.c.0.s8 %v1616
  %v1618 = vlaneseq
  %v1619 = vshrl.u32 %v1618, 7
  %v1620 = vsub.s32 %v1617, %v1619
  %v1621 = vrot.slane %v1584, %v1620
  %v1623 = vunpack.c.l.s4 1966171168
  %v1624 = vunpack.c.0.s8 %v1623
  %v1625 = vlaneseq
  %v1626 = vshrl.u32 %v1625, 7
  %v1627 = vsub.s32 %v1624, %v1626
  %v1628 = vrot.slane %v1621, %v1627
  %v1630 = vunpack.c.l.s4 1966171168
  %v1631 = vunpack.c.0.s8 %v1630
  %v1632 = vlaneseq
  %v1633 = vshrl.u32 %v1632, 7
  %v1634 = vsub.s32 %v1631, %v1633
  %v1635 = vrot.slane %v1585, %v1634
  %v1636 = vcombine.high %v1635, %v1635
  %v1638 = vunpack.c.l.s4 1966171168
  %v1639 = vunpack.c.0.s8 %v1638
  %v1640 = vlaneseq
  %v1641 = vshrl.u32 %v1640, 7
  %v1642 = vsub.s32 %v1639, %v1641
  %v1643 = vrot.slane %v1635, %v1642
  %v1645 = vunpack.c.l.s4 1966171168
  %v1646 = vunpack.c.0.s8 %v1645
  %v1647 = vlaneseq
  %v1648 = vshrl.u32 %v1647, 7
  %v1649 = vsub.s32 %v1646, %v1648
  %v1650 = vrot.slane %v1636, %v1649
  %v1651 = vcombine.high %v1643, %v1643
  %v1652 = vcombine.high %v1650, %v1650
  %v1654 = vunpack.c.l.s4 1966171168
  %v1655 = vunpack.c.0.s8 %v1654
  %v1656 = vlaneseq
  %v1657 = vshrl.u32 %v1656, 7
  %v1658 = vsub.s32 %v1655, %v1657
  %v1659 = vrot.slane %v1586, %v1658
  %v1661 = vunpack.c.l.s4 1966171168
  %v1662 = vunpack.c.0.s8 %v1661
  %v1663 = vlaneseq
  %v1664 = vshrl.u32 %v1663, 7
  %v1665 = vsub.s32 %v1662, %v1664
  %v1666 = vrot.slane %v1659, %v1665
  %v1667 = vunpack.i.l.s16 %v1612
  %v1668 = vunpack.i.h.s16 %v1612
  %v1669 = vunpack.i.l.s16 %v1613
  %v1670 = vunpack.i.h.s16 %v1613
  %v1671 = vunpack.i.l.s16 %v1614
  %v1672 = vunpack.i.h.s16 %v1614
  %v1673 = vunpack.i.l.s16 %v1628
  %v1674 = vunpack.i.l.s16 %v1650
  %v1675 = vunpack.i.h.s16 %v1650
  %v1676 = vunpack.i.l.s16 %v1651
  %v1677 = vunpack.i.h.s16 %v1651
  %v1678 = vunpack.i.l.s16 %v1652
  %v1679 = vunpack.i.h.s16 %v1652
  %v1680 = vunpack.i.l.s16 %v1666
  %s1681 = scalar_lea.vmem %s3, 512
  %v1682 = vld [vmem:[%s1681] sm:$0xff]
  %v1683 = vld [vmem:[%s1681 + $0x8] sm:$0xff]
  %v1684 = vld [vmem:[%s1681 + $0x10] sm:$0xff]
  %v1685 = vld [vmem:[%s1681 + $0x18] sm:$0xff]
  %v1686 = vld [vmem:[%s1681 + $0x20] sm:$0xff]
  %v1687 = vld [vmem:[%s1681 + $0x28] sm:$0xff]
  %v1688 = vld [vmem:[%s1681 + $0x30] sm:$0xff]
  %v1689 = vld [vmem:[%s1681 + $0x38] sm:$0xff]
  %v1690 = vld [vmem:[%s1681 + $0x40] sm:$0xff]
  %v1691 = vld [vmem:[%s1681 + $0x48] sm:$0xff]
  %v1692 = vld [vmem:[%s1681 + $0x50] sm:$0xff]
  %v1693 = vld [vmem:[%s1681 + $0x58] sm:$0xff]
  %v1694 = vld [vmem:[%s1681 + $0x60] sm:$0xff]
  %v1695 = vld [vmem:[%s1681 + $0x68] sm:$0xff]
  %v1696 = vld [vmem:[%s1681 + $0x70] sm:$0xff]
  %v1697 = vld [vmem:[%s1681 + $0x78] sm:$0xff]
  %v1698 = vld [vmem:[%s1681 + $0x80] sm:$0xff]
  %v1699 = vld [vmem:[%s1681 + $0x88] sm:$0xff]
  %v1700 = vld [vmem:[%s1681 + $0x90] sm:$0xff]
  %v1701 = vld [vmem:[%s1681 + $0x98] sm:$0xff]
  %v1702 = vld [vmem:[%s1681 + $0xa0] sm:$0xff]
  %v1703 = vld [vmem:[%s1681 + $0xa8] sm:$0xff]
  %v1704 = vld [vmem:[%s1681 + $0xb0] sm:$0xff]
  %v1705 = vld [vmem:[%s1681 + $0xb8] sm:$0xff]
  %v1706 = vld [vmem:[%s1681 + $0xc0] sm:$0xff]
  %v1707 = vld [vmem:[%s1681 + $0xc8] sm:$0xff]
  %v1708 = vld [vmem:[%s1681 + $0xd0] sm:$0xff]
  %v1709 = vld [vmem:[%s1681 + $0xd8] sm:$0xff]
  %v1710 = vld [vmem:[%s1681 + $0xe0] sm:$0xff]
  %v1711 = vld [vmem:[%s1681 + $0xe8] sm:$0xff]
  %v1712 = vld [vmem:[%s1681 + $0xf0] sm:$0xff]
  %v1713 = vld [vmem:[%s1681 + $0xf8] sm:$0xff]
  %v1714 = vpack.i.b16 %v1668, %v1667
  %v1715 = vpack.i.b16 %v1670, %v1669
  %v1716 = vpack.i.b16 %v1672, %v1671
  %v1717 = vpack.i.b16 %v1674, %v1673
  %v1718 = vpack.i.b16 %v1676, %v1675
  %v1719 = vpack.i.b16 %v1678, %v1677
  %v1720 = vpack.i.b16 %v1680, %v1679
  %v1721 = vcombine.low %v1714, %v1715
  %v1722 = vcombine.low %v1716, %v1717
  %v1723 = vcombine.low %v1718, %v1719
  %v1725 = vunpack.c.l.s4 1966171168
  %v1726 = vunpack.c.0.s8 %v1725
  %v1727 = vlaneseq
  %v1728 = vshrl.u32 %v1727, 7
  %v1729 = vsub.s32 %v1726, %v1728
  %v1730 = vrot.slane %v1721, %v1729
  %v1732 = vunpack.c.l.s4 1966171168
  %v1733 = vunpack.c.0.s8 %v1732
  %v1734 = vlaneseq
  %v1735 = vshrl.u32 %v1734, 7
  %v1736 = vsub.s32 %v1733, %v1735
  %v1737 = vrot.slane %v1722, %v1736
  %v1739 = vunpack.c.l.s4 1966171168
  %v1740 = vunpack.c.0.s8 %v1739
  %v1741 = vlaneseq
  %v1742 = vshrl.u32 %v1741, 7
  %v1743 = vsub.s32 %v1740, %v1742
  %v1744 = vrot.slane %v1723, %v1743
  %v1746 = vunpack.c.l.s4 1966171168
  %v1747 = vunpack.c.0.s8 %v1746
  %v1748 = vlaneseq
  %v1749 = vshrl.u32 %v1748, 7
  %v1750 = vsub.s32 %v1747, %v1749
  %v1751 = vrot.slane %v1720, %v1750
  %v1752 = vcombine.low %v1730, %v1737
  %v1753 = vcombine.high %v1730, %v1737
  %v1754 = vcombine.low %v1744, %v1751
  %v1755 = vcombine.high %v1744, %v1751
  %v1757 = vunpack.c.l.s4 1966171168
  %v1758 = vunpack.c.0.s8 %v1757
  %v1759 = vlaneseq
  %v1760 = vshrl.u32 %v1759, 7
  %v1761 = vsub.s32 %v1758, %v1760
  %v1762 = vrot.slane %v1752, %v1761
  %v1764 = vunpack.c.l.s4 1966171168
  %v1765 = vunpack.c.0.s8 %v1764
  %v1766 = vlaneseq
  %v1767 = vshrl.u32 %v1766, 7
  %v1768 = vsub.s32 %v1765, %v1767
  %v1769 = vrot.slane %v1753, %v1768
  %v1771 = vunpack.c.l.s4 1966171168
  %v1772 = vunpack.c.0.s8 %v1771
  %v1773 = vlaneseq
  %v1774 = vshrl.u32 %v1773, 7
  %v1775 = vsub.s32 %v1772, %v1774
  %v1776 = vrot.slane %v1754, %v1775
  %v1778 = vunpack.c.l.s4 1966171168
  %v1779 = vunpack.c.0.s8 %v1778
  %v1780 = vlaneseq
  %v1781 = vshrl.u32 %v1780, 7
  %v1782 = vsub.s32 %v1779, %v1781
  %v1783 = vrot.slane %v1755, %v1782
  %v1784 = vcombine.low %v1762, %v1776
  %v1785 = vcombine.low %v1769, %v1783
  %v1820 = vunpack.c.l.b16 %v1682
  %v1821 = vunpack.c.h.b16 %v1682
  %v1822 = vunpack.c.l.b16 %v1683
  %v1823 = vunpack.c.h.b16 %v1683
  %v1824 = vunpack.c.l.b16 %v1684
  %v1825 = vunpack.c.h.b16 %v1684
  %v1826 = vunpack.c.l.b16 %v1685
  %v1827 = vunpack.c.h.b16 %v1685
  %v1828 = vunpack.c.l.b16 %v1686
  %v1829 = vunpack.c.h.b16 %v1686
  %v1830 = vunpack.c.l.b16 %v1687
  %v1831 = vunpack.c.h.b16 %v1687
  %v1832 = vunpack.c.l.b16 %v1688
  %v1833 = vunpack.c.h.b16 %v1688
  %v1834 = vunpack.c.l.b16 %v1689
  %v1835 = vunpack.c.h.b16 %v1689
  %v1836 = vunpack.c.l.b16 %v1690
  %v1837 = vunpack.c.h.b16 %v1690
  %v1838 = vunpack.c.l.b16 %v1691
  %v1839 = vunpack.c.h.b16 %v1691
  %v1840 = vunpack.c.l.b16 %v1692
  %v1841 = vunpack.c.h.b16 %v1692
  %v1842 = vunpack.c.l.b16 %v1693
  %v1843 = vunpack.c.h.b16 %v1693
  %v1844 = vunpack.c.l.b16 %v1694
  %v1845 = vunpack.c.h.b16 %v1694
  %v1846 = vunpack.c.l.b16 %v1695
  %v1847 = vunpack.c.h.b16 %v1695
  %v1848 = vunpack.c.l.b16 %v1696
  %v1849 = vunpack.c.h.b16 %v1696
  %v1850 = vunpack.c.l.b16 %v1697
  %v1851 = vunpack.c.h.b16 %v1697
  %v1852 = vunpack.c.l.b16 %v1698
  %v1853 = vunpack.c.h.b16 %v1698
  %v1854 = vunpack.c.l.b16 %v1699
  %v1855 = vunpack.c.h.b16 %v1699
  %v1856 = vunpack.c.l.b16 %v1700
  %v1857 = vunpack.c.h.b16 %v1700
  %v1858 = vunpack.c.l.b16 %v1701
  %v1859 = vunpack.c.h.b16 %v1701
  %v1860 = vunpack.c.l.b16 %v1702
  %v1861 = vunpack.c.h.b16 %v1702
  %v1862 = vunpack.c.l.b16 %v1703
  %v1863 = vunpack.c.h.b16 %v1703
  %v1864 = vunpack.c.l.b16 %v1704
  %v1865 = vunpack.c.h.b16 %v1704
  %v1866 = vunpack.c.l.b16 %v1705
  %v1867 = vunpack.c.h.b16 %v1705
  %v1868 = vunpack.c.l.b16 %v1706
  %v1869 = vunpack.c.h.b16 %v1706
  %v1870 = vunpack.c.l.b16 %v1707
  %v1871 = vunpack.c.h.b16 %v1707
  %v1872 = vunpack.c.l.b16 %v1708
  %v1873 = vunpack.c.h.b16 %v1708
  %v1874 = vunpack.c.l.b16 %v1709
  %v1875 = vunpack.c.h.b16 %v1709
  %v1876 = vunpack.c.l.b16 %v1710
  %v1877 = vunpack.c.h.b16 %v1710
  %v1878 = vunpack.c.l.b16 %v1711
  %v1879 = vunpack.c.h.b16 %v1711
  %v1880 = vunpack.c.l.b16 %v1712
  %v1881 = vunpack.c.h.b16 %v1712
  %v1882 = vunpack.c.l.b16 %v1713
  %v1883 = vunpack.c.h.b16 %v1713
  %v1884 = vpack.c.b16 %v1822, %v1820
  %v1885 = vpack.c.b16 %v1823, %v1821
  %v1886 = vpack.c.b16 %v1826, %v1824
  %v1887 = vpack.c.b16 %v1827, %v1825
  %v1888 = vpack.c.b16 %v1830, %v1828
  %v1889 = vpack.c.b16 %v1831, %v1829
  %v1890 = vpack.c.b16 %v1834, %v1832
  %v1891 = vpack.c.b16 %v1835, %v1833
  %v1892 = vpack.c.b16 %v1838, %v1836
  %v1893 = vpack.c.b16 %v1839, %v1837
  %v1894 = vpack.c.b16 %v1842, %v1840
  %v1895 = vpack.c.b16 %v1843, %v1841
  %v1896 = vpack.c.b16 %v1846, %v1844
  %v1897 = vpack.c.b16 %v1847, %v1845
  %v1898 = vpack.c.b16 %v1850, %v1848
  %v1899 = vpack.c.b16 %v1851, %v1849
  %v1900 = vpack.c.b16 %v1854, %v1852
  %v1901 = vpack.c.b16 %v1855, %v1853
  %v1902 = vpack.c.b16 %v1858, %v1856
  %v1903 = vpack.c.b16 %v1859, %v1857
  %v1904 = vpack.c.b16 %v1862, %v1860
  %v1905 = vpack.c.b16 %v1863, %v1861
  %v1906 = vpack.c.b16 %v1866, %v1864
  %v1907 = vpack.c.b16 %v1867, %v1865
  %v1908 = vpack.c.b16 %v1870, %v1868
  %v1909 = vpack.c.b16 %v1871, %v1869
  %v1910 = vpack.c.b16 %v1874, %v1872
  %v1911 = vpack.c.b16 %v1875, %v1873
  %v1912 = vpack.c.b16 %v1878, %v1876
  %v1913 = vpack.c.b16 %v1879, %v1877
  %v1914 = vpack.c.b16 %v1882, %v1880
  %v1915 = vpack.c.b16 %v1883, %v1881
  %1948 = vmatprep.subr.bf16.mxu0 %v1899
  %1949 = vmatpush1.bf16.msra.mxu0 %v1898
  %1950 = vmatprep.subr.bf16.mxu0 %v1897
  %1951 = vmatpush1.bf16.msra.mxu0 %v1896
  %1952 = vmatprep.subr.bf16.mxu0 %v1895
  %1953 = vmatpush1.bf16.msra.mxu0 %v1894
  %1954 = vmatprep.subr.bf16.mxu0 %v1893
  %1955 = vmatpush1.bf16.msra.mxu0 %v1892
  %1956 = vmatprep.subr.bf16.mxu0 %v1891
  %1957 = vmatpush1.bf16.msra.mxu0 %v1890
  %1958 = vmatprep.subr.bf16.mxu0 %v1889
  %1959 = vmatpush1.bf16.msra.mxu0 %v1888
  %1960 = vmatprep.subr.bf16.mxu0 %v1887
  %1961 = vmatpush1.bf16.msra.mxu0 %v1886
  %1962 = vmatprep.subr.bf16.mxu0 %v1885
  %1963 = vmatpush1.bf16.msra.mxu0 %v1884
  %1964 = vmatprep.subr.bf16.mxu0 %v1915
  %1965 = vmatpush2.bf16.msra.mxu0 %v1914
  %1966 = vmatprep.subr.bf16.mxu0 %v1913
  %1967 = vmatpush2.bf16.msra.mxu0 %v1912
  %1968 = vmatprep.subr.bf16.mxu0 %v1911
  %1969 = vmatpush2.bf16.msra.mxu0 %v1910
  %1970 = vmatprep.subr.bf16.mxu0 %v1909
  %1971 = vmatpush2.bf16.msra.mxu0 %v1908
  %1972 = vmatprep.subr.bf16.mxu0 %v1907
  %1973 = vmatpush2.bf16.msra.mxu0 %v1906
  %1974 = vmatprep.subr.bf16.mxu0 %v1905
  %1975 = vmatpush2.bf16.msra.mxu0 %v1904
  %1976 = vmatprep.subr.bf16.mxu0 %v1903
  %1977 = vmatpush2.bf16.msra.mxu0 %v1902
  %1978 = vmatprep.subr.bf16.mxu0 %v1901
  %1979 = vmatpush2.bf16.msra.mxu0 %v1900
  %1980 = vmatprep.mubr.bf16.mxu0 %v1785
  %1981 = vmatmul.mubr.bf16.gmra.mxu0 %v1784
  %v1982 = vpop.f32.mrf.mxu0
  %v1983 = vadd.f32 0.0, %v1982
  %v1984 = vpop.f32.mrf.mxu0
  %v1985 = vadd.f32 0.0, %v1984
  %v1986 = vpop.f32.mrf.mxu0
  %v1987 = vadd.f32 0.0, %v1986
  %v1988 = vpop.f32.mrf.mxu0
  %v1989 = vadd.f32 0.0, %v1988
  %1990 = vdwg.mxu0
  %v1991 = vadd.f32 %v1575, %v1983
  %v1992 = vadd.f32 %v1577, %v1985
  %v1993 = vadd.f32 %v1579, %v1987
  %v1994 = vadd.f32 %v1581, %v1989
  %v1995 = vld [vmem:[#allocation2] sm:$0xee]
  %v1996 = vld [vmem:[#allocation2 + $0x8] sm:$0x11]
  %v1997 = vld [vmem:[#allocation2 + $0x10] sm:$0xee]
  %v1998 = vld [vmem:[#allocation2 + $0x18] sm:$0x11]
  %v2004 = vunpack.c.l.s4 1966171168
  %v2005 = vunpack.c.0.s8 %v2004
  %v2006 = vlaneseq
  %v2007 = vshrl.u32 %v2006, 7
  %v2008 = vsub.s32 %v2005, %v2007
  %v2009 = vrot.slane %v1995, %v2008
  %v2010 = vcombine.high %v2009, %v2009
  %v2012 = vunpack.c.l.s4 1966171168
  %v2013 = vunpack.c.0.s8 %v2012
  %v2014 = vlaneseq
  %v2015 = vshrl.u32 %v2014, 7
  %v2016 = vsub.s32 %v2013, %v2015
  %v2017 = vrot.slane %v2009, %v2016
  %v2019 = vunpack.c.l.s4 1966171168
  %v2020 = vunpack.c.0.s8 %v2019
  %v2021 = vlaneseq
  %v2022 = vshrl.u32 %v2021, 7
  %v2023 = vsub.s32 %v2020, %v2022
  %v2024 = vrot.slane %v2010, %v2023
  %v2025 = vcombine.high %v2017, %v2017
  %v2026 = vcombine.high %v2024, %v2024
  %v2028 = vunpack.c.l.s4 1966171168
  %v2029 = vunpack.c.0.s8 %v2028
  %v2030 = vlaneseq
  %v2031 = vshrl.u32 %v2030, 7
  %v2032 = vsub.s32 %v2029, %v2031
  %v2033 = vrot.slane %v1996, %v2032
  %v2035 = vunpack.c.l.s4 1966171168
  %v2036 = vunpack.c.0.s8 %v2035
  %v2037 = vlaneseq
  %v2038 = vshrl.u32 %v2037, 7
  %v2039 = vsub.s32 %v2036, %v2038
  %v2040 = vrot.slane %v2033, %v2039
  %v2042 = vunpack.c.l.s4 1966171168
  %v2043 = vunpack.c.0.s8 %v2042
  %v2044 = vlaneseq
  %v2045 = vshrl.u32 %v2044, 7
  %v2046 = vsub.s32 %v2043, %v2045
  %v2047 = vrot.slane %v1997, %v2046
  %v2048 = vcombine.high %v2047, %v2047
  %v2050 = vunpack.c.l.s4 1966171168
  %v2051 = vunpack.c.0.s8 %v2050
  %v2052 = vlaneseq
  %v2053 = vshrl.u32 %v2052, 7
  %v2054 = vsub.s32 %v2051, %v2053
  %v2055 = vrot.slane %v2047, %v2054
  %v2057 = vunpack.c.l.s4 1966171168
  %v2058 = vunpack.c.0.s8 %v2057
  %v2059 = vlaneseq
  %v2060 = vshrl.u32 %v2059, 7
  %v2061 = vsub.s32 %v2058, %v2060
  %v2062 = vrot.slane %v2048, %v2061
  %v2063 = vcombine.high %v2055, %v2055
  %v2064 = vcombine.high %v2062, %v2062
  %v2066 = vunpack.c.l.s4 1966171168
  %v2067 = vunpack.c.0.s8 %v2066
  %v2068 = vlaneseq
  %v2069 = vshrl.u32 %v2068, 7
  %v2070 = vsub.s32 %v2067, %v2069
  %v2071 = vrot.slane %v1998, %v2070
  %v2073 = vunpack.c.l.s4 1966171168
  %v2074 = vunpack.c.0.s8 %v2073
  %v2075 = vlaneseq
  %v2076 = vshrl.u32 %v2075, 7
  %v2077 = vsub.s32 %v2074, %v2076
  %v2078 = vrot.slane %v2071, %v2077
  %v2079 = vunpack.i.h.s16 %v2024
  %v2080 = vunpack.i.l.s16 %v2025
  %v2081 = vunpack.i.h.s16 %v2025
  %v2082 = vunpack.i.l.s16 %v2026
  %v2083 = vunpack.i.h.s16 %v2026
  %v2084 = vunpack.i.l.s16 %v2040
  %v2085 = vunpack.i.h.s16 %v2040
  %v2086 = vunpack.i.h.s16 %v2062
  %v2087 = vunpack.i.l.s16 %v2063
  %v2088 = vunpack.i.h.s16 %v2063
  %v2089 = vunpack.i.l.s16 %v2064
  %v2090 = vunpack.i.h.s16 %v2064
  %v2091 = vunpack.i.l.s16 %v2078
  %v2092 = vunpack.i.h.s16 %v2078
  %s2093 = scalar_lea.vmem %s3, 768
  %v2094 = vld [vmem:[%s2093] sm:$0xff]
  %v2095 = vld [vmem:[%s2093 + $0x8] sm:$0xff]
  %v2096 = vld [vmem:[%s2093 + $0x10] sm:$0xff]
  %v2097 = vld [vmem:[%s2093 + $0x18] sm:$0xff]
  %v2098 = vld [vmem:[%s2093 + $0x20] sm:$0xff]
  %v2099 = vld [vmem:[%s2093 + $0x28] sm:$0xff]
  %v2100 = vld [vmem:[%s2093 + $0x30] sm:$0xff]
  %v2101 = vld [vmem:[%s2093 + $0x38] sm:$0xff]
  %v2102 = vld [vmem:[%s2093 + $0x40] sm:$0xff]
  %v2103 = vld [vmem:[%s2093 + $0x48] sm:$0xff]
  %v2104 = vld [vmem:[%s2093 + $0x50] sm:$0xff]
  %v2105 = vld [vmem:[%s2093 + $0x58] sm:$0xff]
  %v2106 = vld [vmem:[%s2093 + $0x60] sm:$0xff]
  %v2107 = vld [vmem:[%s2093 + $0x68] sm:$0xff]
  %v2108 = vld [vmem:[%s2093 + $0x70] sm:$0xff]
  %v2109 = vld [vmem:[%s2093 + $0x78] sm:$0xff]
  %v2110 = vld [vmem:[%s2093 + $0x80] sm:$0xff]
  %v2111 = vld [vmem:[%s2093 + $0x88] sm:$0xff]
  %v2112 = vld [vmem:[%s2093 + $0x90] sm:$0xff]
  %v2113 = vld [vmem:[%s2093 + $0x98] sm:$0xff]
  %v2114 = vld [vmem:[%s2093 + $0xa0] sm:$0xff]
  %v2115 = vld [vmem:[%s2093 + $0xa8] sm:$0xff]
  %v2116 = vld [vmem:[%s2093 + $0xb0] sm:$0xff]
  %v2117 = vld [vmem:[%s2093 + $0xb8] sm:$0xff]
  %v2118 = vld [vmem:[%s2093 + $0xc0] sm:$0xff]
  %v2119 = vld [vmem:[%s2093 + $0xc8] sm:$0xff]
  %v2120 = vld [vmem:[%s2093 + $0xd0] sm:$0xff]
  %v2121 = vld [vmem:[%s2093 + $0xd8] sm:$0xff]
  %v2122 = vld [vmem:[%s2093 + $0xe0] sm:$0xff]
  %v2123 = vld [vmem:[%s2093 + $0xe8] sm:$0xff]
  %v2124 = vld [vmem:[%s2093 + $0xf0] sm:$0xff]
  %v2125 = vld [vmem:[%s2093 + $0xf8] sm:$0xff]
  %v2126 = vpack.i.b16 %v2080, %v2079
  %v2127 = vpack.i.b16 %v2082, %v2081
  %v2128 = vpack.i.b16 %v2084, %v2083
  %v2129 = vpack.i.b16 %v2086, %v2085
  %v2130 = vpack.i.b16 %v2088, %v2087
  %v2131 = vpack.i.b16 %v2090, %v2089
  %v2132 = vpack.i.b16 %v2092, %v2091
  %v2133 = vcombine.low %v2126, %v2127
  %v2134 = vcombine.low %v2128, %v2129
  %v2135 = vcombine.low %v2130, %v2131
  %v2137 = vunpack.c.l.s4 1966171168
  %v2138 = vunpack.c.0.s8 %v2137
  %v2139 = vlaneseq
  %v2140 = vshrl.u32 %v2139, 7
  %v2141 = vsub.s32 %v2138, %v2140
  %v2142 = vrot.slane %v2133, %v2141
  %v2144 = vunpack.c.l.s4 1966171168
  %v2145 = vunpack.c.0.s8 %v2144
  %v2146 = vlaneseq
  %v2147 = vshrl.u32 %v2146, 7
  %v2148 = vsub.s32 %v2145, %v2147
  %v2149 = vrot.slane %v2134, %v2148
  %v2151 = vunpack.c.l.s4 1966171168
  %v2152 = vunpack.c.0.s8 %v2151
  %v2153 = vlaneseq
  %v2154 = vshrl.u32 %v2153, 7
  %v2155 = vsub.s32 %v2152, %v2154
  %v2156 = vrot.slane %v2135, %v2155
  %v2158 = vunpack.c.l.s4 1966171168
  %v2159 = vunpack.c.0.s8 %v2158
  %v2160 = vlaneseq
  %v2161 = vshrl.u32 %v2160, 7
  %v2162 = vsub.s32 %v2159, %v2161
  %v2163 = vrot.slane %v2132, %v2162
  %v2164 = vcombine.low %v2142, %v2149
  %v2165 = vcombine.high %v2142, %v2149
  %v2166 = vcombine.low %v2156, %v2163
  %v2167 = vcombine.high %v2156, %v2163
  %v2169 = vunpack.c.l.s4 1966171168
  %v2170 = vunpack.c.0.s8 %v2169
  %v2171 = vlaneseq
  %v2172 = vshrl.u32 %v2171, 7
  %v2173 = vsub.s32 %v2170, %v2172
  %v2174 = vrot.slane %v2164, %v2173
  %v2176 = vunpack.c.l.s4 1966171168
  %v2177 = vunpack.c.0.s8 %v2176
  %v2178 = vlaneseq
  %v2179 = vshrl.u32 %v2178, 7
  %v2180 = vsub.s32 %v2177, %v2179
  %v2181 = vrot.slane %v2165, %v2180
  %v2183 = vunpack.c.l.s4 1966171168
  %v2184 = vunpack.c.0.s8 %v2183
  %v2185 = vlaneseq
  %v2186 = vshrl.u32 %v2185, 7
  %v2187 = vsub.s32 %v2184, %v2186
  %v2188 = vrot.slane %v2166, %v2187
  %v2190 = vunpack.c.l.s4 1966171168
  %v2191 = vunpack.c.0.s8 %v2190
  %v2192 = vlaneseq
  %v2193 = vshrl.u32 %v2192, 7
  %v2194 = vsub.s32 %v2191, %v2193
  %v2195 = vrot.slane %v2167, %v2194
  %v2196 = vcombine.low %v2174, %v2188
  %v2197 = vcombine.low %v2181, %v2195
  %v2232 = vunpack.c.l.b16 %v2094
  %v2233 = vunpack.c.h.b16 %v2094
  %v2234 = vunpack.c.l.b16 %v2095
  %v2235 = vunpack.c.h.b16 %v2095
  %v2236 = vunpack.c.l.b16 %v2096
  %v2237 = vunpack.c.h.b16 %v2096
  %v2238 = vunpack.c.l.b16 %v2097
  %v2239 = vunpack.c.h.b16 %v2097
  %v2240 = vunpack.c.l.b16 %v2098
  %v2241 = vunpack.c.h.b16 %v2098
  %v2242 = vunpack.c.l.b16 %v2099
  %v2243 = vunpack.c.h.b16 %v2099
  %v2244 = vunpack.c.l.b16 %v2100
  %v2245 = vunpack.c.h.b16 %v2100
  %v2246 = vunpack.c.l.b16 %v2101
  %v2247 = vunpack.c.h.b16 %v2101
  %v2248 = vunpack.c.l.b16 %v2102
  %v2249 = vunpack.c.h.b16 %v2102
  %v2250 = vunpack.c.l.b16 %v2103
  %v2251 = vunpack.c.h.b16 %v2103
  %v2252 = vunpack.c.l.b16 %v2104
  %v2253 = vunpack.c.h.b16 %v2104
  %v2254 = vunpack.c.l.b16 %v2105
  %v2255 = vunpack.c.h.b16 %v2105
  %v2256 = vunpack.c.l.b16 %v2106
  %v2257 = vunpack.c.h.b16 %v2106
  %v2258 = vunpack.c.l.b16 %v2107
  %v2259 = vunpack.c.h.b16 %v2107
  %v2260 = vunpack.c.l.b16 %v2108
  %v2261 = vunpack.c.h.b16 %v2108
  %v2262 = vunpack.c.l.b16 %v2109
  %v2263 = vunpack.c.h.b16 %v2109
  %v2264 = vunpack.c.l.b16 %v2110
  %v2265 = vunpack.c.h.b16 %v2110
  %v2266 = vunpack.c.l.b16 %v2111
  %v2267 = vunpack.c.h.b16 %v2111
  %v2268 = vunpack.c.l.b16 %v2112
  %v2269 = vunpack.c.h.b16 %v2112
  %v2270 = vunpack.c.l.b16 %v2113
  %v2271 = vunpack.c.h.b16 %v2113
  %v2272 = vunpack.c.l.b16 %v2114
  %v2273 = vunpack.c.h.b16 %v2114
  %v2274 = vunpack.c.l.b16 %v2115
  %v2275 = vunpack.c.h.b16 %v2115
  %v2276 = vunpack.c.l.b16 %v2116
  %v2277 = vunpack.c.h.b16 %v2116
  %v2278 = vunpack.c.l.b16 %v2117
  %v2279 = vunpack.c.h.b16 %v2117
  %v2280 = vunpack.c.l.b16 %v2118
  %v2281 = vunpack.c.h.b16 %v2118
  %v2282 = vunpack.c.l.b16 %v2119
  %v2283 = vunpack.c.h.b16 %v2119
  %v2284 = vunpack.c.l.b16 %v2120
  %v2285 = vunpack.c.h.b16 %v2120
  %v2286 = vunpack.c.l.b16 %v2121
  %v2287 = vunpack.c.h.b16 %v2121
  %v2288 = vunpack.c.l.b16 %v2122
  %v2289 = vunpack.c.h.b16 %v2122
  %v2290 = vunpack.c.l.b16 %v2123
  %v2291 = vunpack.c.h.b16 %v2123
  %v2292 = vunpack.c.l.b16 %v2124
  %v2293 = vunpack.c.h.b16 %v2124
  %v2294 = vunpack.c.l.b16 %v2125
  %v2295 = vunpack.c.h.b16 %v2125
  %v2296 = vpack.c.b16 %v2234, %v2232
  %v2297 = vpack.c.b16 %v2235, %v2233
  %v2298 = vpack.c.b16 %v2238, %v2236
  %v2299 = vpack.c.b16 %v2239, %v2237
  %v2300 = vpack.c.b16 %v2242, %v2240
  %v2301 = vpack.c.b16 %v2243, %v2241
  %v2302 = vpack.c.b16 %v2246, %v2244
  %v2303 = vpack.c.b16 %v2247, %v2245
  %v2304 = vpack.c.b16 %v2250, %v2248
  %v2305 = vpack.c.b16 %v2251, %v2249
  %v2306 = vpack.c.b16 %v2254, %v2252
  %v2307 = vpack.c.b16 %v2255, %v2253
  %v2308 = vpack.c.b16 %v2258, %v2256
  %v2309 = vpack.c.b16 %v2259, %v2257
  %v2310 = vpack.c.b16 %v2262, %v2260
  %v2311 = vpack.c.b16 %v2263, %v2261
  %v2312 = vpack.c.b16 %v2266, %v2264
  %v2313 = vpack.c.b16 %v2267, %v2265
  %v2314 = vpack.c.b16 %v2270, %v2268
  %v2315 = vpack.c.b16 %v2271, %v2269
  %v2316 = vpack.c.b16 %v2274, %v2272
  %v2317 = vpack.c.b16 %v2275, %v2273
  %v2318 = vpack.c.b16 %v2278, %v2276
  %v2319 = vpack.c.b16 %v2279, %v2277
  %v2320 = vpack.c.b16 %v2282, %v2280
  %v2321 = vpack.c.b16 %v2283, %v2281
  %v2322 = vpack.c.b16 %v2286, %v2284
  %v2323 = vpack.c.b16 %v2287, %v2285
  %v2324 = vpack.c.b16 %v2290, %v2288
  %v2325 = vpack.c.b16 %v2291, %v2289
  %v2326 = vpack.c.b16 %v2294, %v2292
  %v2327 = vpack.c.b16 %v2295, %v2293
  %2360 = vmatprep.subr.bf16.mxu0 %v2311
  %2361 = vmatpush1.bf16.msra.mxu0 %v2310
  %2362 = vmatprep.subr.bf16.mxu0 %v2309
  %2363 = vmatpush1.bf16.msra.mxu0 %v2308
  %2364 = vmatprep.subr.bf16.mxu0 %v2307
  %2365 = vmatpush1.bf16.msra.mxu0 %v2306
  %2366 = vmatprep.subr.bf16.mxu0 %v2305
  %2367 = vmatpush1.bf16.msra.mxu0 %v2304
  %2368 = vmatprep.subr.bf16.mxu0 %v2303
  %2369 = vmatpush1.bf16.msra.mxu0 %v2302
  %2370 = vmatprep.subr.bf16.mxu0 %v2301
  %2371 = vmatpush1.bf16.msra.mxu0 %v2300
  %2372 = vmatprep.subr.bf16.mxu0 %v2299
  %2373 = vmatpush1.bf16.msra.mxu0 %v2298
  %2374 = vmatprep.subr.bf16.mxu0 %v2297
  %2375 = vmatpush1.bf16.msra.mxu0 %v2296
  %2376 = vmatprep.subr.bf16.mxu0 %v2327
  %2377 = vmatpush2.bf16.msra.mxu0 %v2326
  %2378 = vmatprep.subr.bf16.mxu0 %v2325
  %2379 = vmatpush2.bf16.msra.mxu0 %v2324
  %2380 = vmatprep.subr.bf16.mxu0 %v2323
  %2381 = vmatpush2.bf16.msra.mxu0 %v2322
  %2382 = vmatprep.subr.bf16.mxu0 %v2321
  %2383 = vmatpush2.bf16.msra.mxu0 %v2320
  %2384 = vmatprep.subr.bf16.mxu0 %v2319
  %2385 = vmatpush2.bf16.msra.mxu0 %v2318
  %2386 = vmatprep.subr.bf16.mxu0 %v2317
  %2387 = vmatpush2.bf16.msra.mxu0 %v2316
  %2388 = vmatprep.subr.bf16.mxu0 %v2315
  %2389 = vmatpush2.bf16.msra.mxu0 %v2314
  %2390 = vmatprep.subr.bf16.mxu0 %v2313
  %2391 = vmatpush2.bf16.msra.mxu0 %v2312
  %2392 = vmatprep.mubr.bf16.mxu0 %v2197
  %2393 = vmatmul.mubr.bf16.gmra.mxu0 %v2196
  %v2394 = vpop.f32.mrf.mxu0
  %v2395 = vadd.f32 0.0, %v2394
  %v2396 = vpop.f32.mrf.mxu0
  %v2397 = vadd.f32 0.0, %v2396
  %v2398 = vpop.f32.mrf.mxu0
  %v2399 = vadd.f32 0.0, %v2398
  %v2400 = vpop.f32.mrf.mxu0
  %v2401 = vadd.f32 0.0, %v2400
  %2402 = vdwg.mxu0
  %v2403 = vadd.f32 %v1991, %v2395
  %v2404 = vadd.f32 %v1992, %v2397
  %v2405 = vadd.f32 %v1993, %v2399
  %v2406 = vadd.f32 %v1994, %v2401
  %v2407 = vld [vmem:[#allocation2] sm:$0xcc]
  %v2408 = vld [vmem:[#allocation2 + $0x8] sm:$0x33]
  %v2409 = vld [vmem:[#allocation2 + $0x10] sm:$0xcc]
  %v2410 = vld [vmem:[#allocation2 + $0x18] sm:$0x33]
  %v2416 = vunpack.c.l.s4 1966171168
  %v2417 = vunpack.c.0.s8 %v2416
  %v2418 = vlaneseq
  %v2419 = vshrl.u32 %v2418, 7
  %v2420 = vsub.s32 %v2417, %v2419
  %v2421 = vrot.slane %v2407, %v2420
  %v2422 = vcombine.high %v2421, %v2421
  %v2424 = vunpack.c.l.s4 1966171168
  %v2425 = vunpack.c.0.s8 %v2424
  %v2426 = vlaneseq
  %v2427 = vshrl.u32 %v2426, 7
  %v2428 = vsub.s32 %v2425, %v2427
  %v2429 = vrot.slane %v2421, %v2428
  %v2431 = vunpack.c.l.s4 1966171168
  %v2432 = vunpack.c.0.s8 %v2431
  %v2433 = vlaneseq
  %v2434 = vshrl.u32 %v2433, 7
  %v2435 = vsub.s32 %v2432, %v2434
  %v2436 = vrot.slane %v2422, %v2435
  %v2437 = vcombine.high %v2429, %v2429
  %v2438 = vcombine.high %v2436, %v2436
  %v2440 = vunpack.c.l.s4 1966171168
  %v2441 = vunpack.c.0.s8 %v2440
  %v2442 = vlaneseq
  %v2443 = vshrl.u32 %v2442, 7
  %v2444 = vsub.s32 %v2441, %v2443
  %v2445 = vrot.slane %v2408, %v2444
  %v2446 = vcombine.high %v2445, %v2445
  %v2448 = vunpack.c.l.s4 1966171168
  %v2449 = vunpack.c.0.s8 %v2448
  %v2450 = vlaneseq
  %v2451 = vshrl.u32 %v2450, 7
  %v2452 = vsub.s32 %v2449, %v2451
  %v2453 = vrot.slane %v2445, %v2452
  %v2455 = vunpack.c.l.s4 1966171168
  %v2456 = vunpack.c.0.s8 %v2455
  %v2457 = vlaneseq
  %v2458 = vshrl.u32 %v2457, 7
  %v2459 = vsub.s32 %v2456, %v2458
  %v2460 = vrot.slane %v2446, %v2459
  %v2462 = vunpack.c.l.s4 1966171168
  %v2463 = vunpack.c.0.s8 %v2462
  %v2464 = vlaneseq
  %v2465 = vshrl.u32 %v2464, 7
  %v2466 = vsub.s32 %v2463, %v2465
  %v2467 = vrot.slane %v2409, %v2466
  %v2468 = vcombine.high %v2467, %v2467
  %v2470 = vunpack.c.l.s4 1966171168
  %v2471 = vunpack.c.0.s8 %v2470
  %v2472 = vlaneseq
  %v2473 = vshrl.u32 %v2472, 7
  %v2474 = vsub.s32 %v2471, %v2473
  %v2475 = vrot.slane %v2467, %v2474
  %v2477 = vunpack.c.l.s4 1966171168
  %v2478 = vunpack.c.0.s8 %v2477
  %v2479 = vlaneseq
  %v2480 = vshrl.u32 %v2479, 7
  %v2481 = vsub.s32 %v2478, %v2480
  %v2482 = vrot.slane %v2468, %v2481
  %v2483 = vcombine.high %v2475, %v2475
  %v2484 = vcombine.high %v2482, %v2482
  %v2486 = vunpack.c.l.s4 1966171168
  %v2487 = vunpack.c.0.s8 %v2486
  %v2488 = vlaneseq
  %v2489 = vshrl.u32 %v2488, 7
  %v2490 = vsub.s32 %v2487, %v2489
  %v2491 = vrot.slane %v2410, %v2490
  %v2492 = vcombine.high %v2491, %v2491
  %v2494 = vunpack.c.l.s4 1966171168
  %v2495 = vunpack.c.0.s8 %v2494
  %v2496 = vlaneseq
  %v2497 = vshrl.u32 %v2496, 7
  %v2498 = vsub.s32 %v2495, %v2497
  %v2499 = vrot.slane %v2491, %v2498
  %v2501 = vunpack.c.l.s4 1966171168
  %v2502 = vunpack.c.0.s8 %v2501
  %v2503 = vlaneseq
  %v2504 = vshrl.u32 %v2503, 7
  %v2505 = vsub.s32 %v2502, %v2504
  %v2506 = vrot.slane %v2492, %v2505
  %v2507 = vunpack.i.l.s16 %v2437
  %v2508 = vunpack.i.h.s16 %v2437
  %v2509 = vunpack.i.l.s16 %v2438
  %v2510 = vunpack.i.h.s16 %v2438
  %v2511 = vunpack.i.l.s16 %v2453
  %v2512 = vunpack.i.h.s16 %v2453
  %v2513 = vunpack.i.l.s16 %v2460
  %v2514 = vunpack.i.l.s16 %v2483
  %v2515 = vunpack.i.h.s16 %v2483
  %v2516 = vunpack.i.l.s16 %v2484
  %v2517 = vunpack.i.h.s16 %v2484
  %v2518 = vunpack.i.l.s16 %v2499
  %v2519 = vunpack.i.h.s16 %v2499
  %v2520 = vunpack.i.l.s16 %v2506
  %s2521 = scalar_lea.vmem %s3, 1024
  %v2522 = vld [vmem:[%s2521] sm:$0xff]
  %v2523 = vld [vmem:[%s2521 + $0x8] sm:$0xff]
  %v2524 = vld [vmem:[%s2521 + $0x10] sm:$0xff]
  %v2525 = vld [vmem:[%s2521 + $0x18] sm:$0xff]
  %v2526 = vld [vmem:[%s2521 + $0x20] sm:$0xff]
  %v2527 = vld [vmem:[%s2521 + $0x28] sm:$0xff]
  %v2528 = vld [vmem:[%s2521 + $0x30] sm:$0xff]
  %v2529 = vld [vmem:[%s2521 + $0x38] sm:$0xff]
  %v2530 = vld [vmem:[%s2521 + $0x40] sm:$0xff]
  %v2531 = vld [vmem:[%s2521 + $0x48] sm:$0xff]
  %v2532 = vld [vmem:[%s2521 + $0x50] sm:$0xff]
  %v2533 = vld [vmem:[%s2521 + $0x58] sm:$0xff]
  %v2534 = vld [vmem:[%s2521 + $0x60] sm:$0xff]
  %v2535 = vld [vmem:[%s2521 + $0x68] sm:$0xff]
  %v2536 = vld [vmem:[%s2521 + $0x70] sm:$0xff]
  %v2537 = vld [vmem:[%s2521 + $0x78] sm:$0xff]
  %v2538 = vld [vmem:[%s2521 + $0x80] sm:$0xff]
  %v2539 = vld [vmem:[%s2521 + $0x88] sm:$0xff]
  %v2540 = vld [vmem:[%s2521 + $0x90] sm:$0xff]
  %v2541 = vld [vmem:[%s2521 + $0x98] sm:$0xff]
  %v2542 = vld [vmem:[%s2521 + $0xa0] sm:$0xff]
  %v2543 = vld [vmem:[%s2521 + $0xa8] sm:$0xff]
  %v2544 = vld [vmem:[%s2521 + $0xb0] sm:$0xff]
  %v2545 = vld [vmem:[%s2521 + $0xb8] sm:$0xff]
  %v2546 = vld [vmem:[%s2521 + $0xc0] sm:$0xff]
  %v2547 = vld [vmem:[%s2521 + $0xc8] sm:$0xff]
  %v2548 = vld [vmem:[%s2521 + $0xd0] sm:$0xff]
  %v2549 = vld [vmem:[%s2521 + $0xd8] sm:$0xff]
  %v2550 = vld [vmem:[%s2521 + $0xe0] sm:$0xff]
  %v2551 = vld [vmem:[%s2521 + $0xe8] sm:$0xff]
  %v2552 = vld [vmem:[%s2521 + $0xf0] sm:$0xff]
  %v2553 = vld [vmem:[%s2521 + $0xf8] sm:$0xff]
  %v2554 = vpack.i.b16 %v2508, %v2507
  %v2555 = vpack.i.b16 %v2510, %v2509
  %v2556 = vpack.i.b16 %v2512, %v2511
  %v2557 = vpack.i.b16 %v2514, %v2513
  %v2558 = vpack.i.b16 %v2516, %v2515
  %v2559 = vpack.i.b16 %v2518, %v2517
  %v2560 = vpack.i.b16 %v2520, %v2519
  %v2561 = vcombine.low %v2554, %v2555
  %v2562 = vcombine.low %v2556, %v2557
  %v2563 = vcombine.low %v2558, %v2559
  %v2565 = vunpack.c.l.s4 1966171168
  %v2566 = vunpack.c.0.s8 %v2565
  %v2567 = vlaneseq
  %v2568 = vshrl.u32 %v2567, 7
  %v2569 = vsub.s32 %v2566, %v2568
  %v2570 = vrot.slane %v2561, %v2569
  %v2572 = vunpack.c.l.s4 1966171168
  %v2573 = vunpack.c.0.s8 %v2572
  %v2574 = vlaneseq
  %v2575 = vshrl.u32 %v2574, 7
  %v2576 = vsub.s32 %v2573, %v2575
  %v2577 = vrot.slane %v2562, %v2576
  %v2579 = vunpack.c.l.s4 1966171168
  %v2580 = vunpack.c.0.s8 %v2579
  %v2581 = vlaneseq
  %v2582 = vshrl.u32 %v2581, 7
  %v2583 = vsub.s32 %v2580, %v2582
  %v2584 = vrot.slane %v2563, %v2583
  %v2586 = vunpack.c.l.s4 1966171168
  %v2587 = vunpack.c.0.s8 %v2586
  %v2588 = vlaneseq
  %v2589 = vshrl.u32 %v2588, 7
  %v2590 = vsub.s32 %v2587, %v2589
  %v2591 = vrot.slane %v2560, %v2590
  %v2592 = vcombine.low %v2570, %v2577
  %v2593 = vcombine.high %v2570, %v2577
  %v2594 = vcombine.low %v2584, %v2591
  %v2595 = vcombine.high %v2584, %v2591
  %v2597 = vunpack.c.l.s4 1966171168
  %v2598 = vunpack.c.0.s8 %v2597
  %v2599 = vlaneseq
  %v2600 = vshrl.u32 %v2599, 7
  %v2601 = vsub.s32 %v2598, %v2600
  %v2602 = vrot.slane %v2592, %v2601
  %v2604 = vunpack.c.l.s4 1966171168
  %v2605 = vunpack.c.0.s8 %v2604
  %v2606 = vlaneseq
  %v2607 = vshrl.u32 %v2606, 7
  %v2608 = vsub.s32 %v2605, %v2607
  %v2609 = vrot.slane %v2593, %v2608
  %v2611 = vunpack.c.l.s4 1966171168
  %v2612 = vunpack.c.0.s8 %v2611
  %v2613 = vlaneseq
  %v2614 = vshrl.u32 %v2613, 7
  %v2615 = vsub.s32 %v2612, %v2614
  %v2616 = vrot.slane %v2594, %v2615
  %v2618 = vunpack.c.l.s4 1966171168
  %v2619 = vunpack.c.0.s8 %v2618
  %v2620 = vlaneseq
  %v2621 = vshrl.u32 %v2620, 7
  %v2622 = vsub.s32 %v2619, %v2621
  %v2623 = vrot.slane %v2595, %v2622
  %v2624 = vcombine.low %v2602, %v2616
  %v2625 = vcombine.low %v2609, %v2623
  %v2660 = vunpack.c.l.b16 %v2522
  %v2661 = vunpack.c.h.b16 %v2522
  %v2662 = vunpack.c.l.b16 %v2523
  %v2663 = vunpack.c.h.b16 %v2523
  %v2664 = vunpack.c.l.b16 %v2524
  %v2665 = vunpack.c.h.b16 %v2524
  %v2666 = vunpack.c.l.b16 %v2525
  %v2667 = vunpack.c.h.b16 %v2525
  %v2668 = vunpack.c.l.b16 %v2526
  %v2669 = vunpack.c.h.b16 %v2526
  %v2670 = vunpack.c.l.b16 %v2527
  %v2671 = vunpack.c.h.b16 %v2527
  %v2672 = vunpack.c.l.b16 %v2528
  %v2673 = vunpack.c.h.b16 %v2528
  %v2674 = vunpack.c.l.b16 %v2529
  %v2675 = vunpack.c.h.b16 %v2529
  %v2676 = vunpack.c.l.b16 %v2530
  %v2677 = vunpack.c.h.b16 %v2530
  %v2678 = vunpack.c.l.b16 %v2531
  %v2679 = vunpack.c.h.b16 %v2531
  %v2680 = vunpack.c.l.b16 %v2532
  %v2681 = vunpack.c.h.b16 %v2532
  %v2682 = vunpack.c.l.b16 %v2533
  %v2683 = vunpack.c.h.b16 %v2533
  %v2684 = vunpack.c.l.b16 %v2534
  %v2685 = vunpack.c.h.b16 %v2534
  %v2686 = vunpack.c.l.b16 %v2535
  %v2687 = vunpack.c.h.b16 %v2535
  %v2688 = vunpack.c.l.b16 %v2536
  %v2689 = vunpack.c.h.b16 %v2536
  %v2690 = vunpack.c.l.b16 %v2537
  %v2691 = vunpack.c.h.b16 %v2537
  %v2692 = vunpack.c.l.b16 %v2538
  %v2693 = vunpack.c.h.b16 %v2538
  %v2694 = vunpack.c.l.b16 %v2539
  %v2695 = vunpack.c.h.b16 %v2539
  %v2696 = vunpack.c.l.b16 %v2540
  %v2697 = vunpack.c.h.b16 %v2540
  %v2698 = vunpack.c.l.b16 %v2541
  %v2699 = vunpack.c.h.b16 %v2541
  %v2700 = vunpack.c.l.b16 %v2542
  %v2701 = vunpack.c.h.b16 %v2542
  %v2702 = vunpack.c.l.b16 %v2543
  %v2703 = vunpack.c.h.b16 %v2543
  %v2704 = vunpack.c.l.b16 %v2544
  %v2705 = vunpack.c.h.b16 %v2544
  %v2706 = vunpack.c.l.b16 %v2545
  %v2707 = vunpack.c.h.b16 %v2545
  %v2708 = vunpack.c.l.b16 %v2546
  %v2709 = vunpack.c.h.b16 %v2546
  %v2710 = vunpack.c.l.b16 %v2547
  %v2711 = vunpack.c.h.b16 %v2547
  %v2712 = vunpack.c.l.b16 %v2548
  %v2713 = vunpack.c.h.b16 %v2548
  %v2714 = vunpack.c.l.b16 %v2549
  %v2715 = vunpack.c.h.b16 %v2549
  %v2716 = vunpack.c.l.b16 %v2550
  %v2717 = vunpack.c.h.b16 %v2550
  %v2718 = vunpack.c.l.b16 %v2551
  %v2719 = vunpack.c.h.b16 %v2551
  %v2720 = vunpack.c.l.b16 %v2552
  %v2721 = vunpack.c.h.b16 %v2552
  %v2722 = vunpack.c.l.b16 %v2553
  %v2723 = vunpack.c.h.b16 %v2553
  %v2724 = vpack.c.b16 %v2662, %v2660
  %v2725 = vpack.c.b16 %v2663, %v2661
  %v2726 = vpack.c.b16 %v2666, %v2664
  %v2727 = vpack.c.b16 %v2667, %v2665
  %v2728 = vpack.c.b16 %v2670, %v2668
  %v2729 = vpack.c.b16 %v2671, %v2669
  %v2730 = vpack.c.b16 %v2674, %v2672
  %v2731 = vpack.c.b16 %v2675, %v2673
  %v2732 = vpack.c.b16 %v2678, %v2676
  %v2733 = vpack.c.b16 %v2679, %v2677
  %v2734 = vpack.c.b16 %v2682, %v2680
  %v2735 = vpack.c.b16 %v2683, %v2681
  %v2736 = vpack.c.b16 %v2686, %v2684
  %v2737 = vpack.c.b16 %v2687, %v2685
  %v2738 = vpack.c.b16 %v2690, %v2688
  %v2739 = vpack.c.b16 %v2691, %v2689
  %v2740 = vpack.c.b16 %v2694, %v2692
  %v2741 = vpack.c.b16 %v2695, %v2693
  %v2742 = vpack.c.b16 %v2698, %v2696
  %v2743 = vpack.c.b16 %v2699, %v2697
  %v2744 = vpack.c.b16 %v2702, %v2700
  %v2745 = vpack.c.b16 %v2703, %v2701
  %v2746 = vpack.c.b16 %v2706, %v2704
  %v2747 = vpack.c.b16 %v2707, %v2705
  %v2748 = vpack.c.b16 %v2710, %v2708
  %v2749 = vpack.c.b16 %v2711, %v2709
  %v2750 = vpack.c.b16 %v2714, %v2712
  %v2751 = vpack.c.b16 %v2715, %v2713
  %v2752 = vpack.c.b16 %v2718, %v2716
  %v2753 = vpack.c.b16 %v2719, %v2717
  %v2754 = vpack.c.b16 %v2722, %v2720
  %v2755 = vpack.c.b16 %v2723, %v2721
  %2788 = vmatprep.subr.bf16.mxu0 %v2739
  %2789 = vmatpush1.bf16.msra.mxu0 %v2738
  %2790 = vmatprep.subr.bf16.mxu0 %v2737
  %2791 = vmatpush1.bf16.msra.mxu0 %v2736
  %2792 = vmatprep.subr.bf16.mxu0 %v2735
  %2793 = vmatpush1.bf16.msra.mxu0 %v2734
  %2794 = vmatprep.subr.bf16.mxu0 %v2733
  %2795 = vmatpush1.bf16.msra.mxu0 %v2732
  %2796 = vmatprep.subr.bf16.mxu0 %v2731
  %2797 = vmatpush1.bf16.msra.mxu0 %v2730
  %2798 = vmatprep.subr.bf16.mxu0 %v2729
  %2799 = vmatpush1.bf16.msra.mxu0 %v2728
  %2800 = vmatprep.subr.bf16.mxu0 %v2727
  %2801 = vmatpush1.bf16.msra.mxu0 %v2726
  %2802 = vmatprep.subr.bf16.mxu0 %v2725
  %2803 = vmatpush1.bf16.msra.mxu0 %v2724
  %2804 = vmatprep.subr.bf16.mxu0 %v2755
  %2805 = vmatpush2.bf16.msra.mxu0 %v2754
  %2806 = vmatprep.subr.bf16.mxu0 %v2753
  %2807 = vmatpush2.bf16.msra.mxu0 %v2752
  %2808 = vmatprep.subr.bf16.mxu0 %v2751
  %2809 = vmatpush2.bf16.msra.mxu0 %v2750
  %2810 = vmatprep.subr.bf16.mxu0 %v2749
  %2811 = vmatpush2.bf16.msra.mxu0 %v2748
  %2812 = vmatprep.subr.bf16.mxu0 %v2747
  %2813 = vmatpush2.bf16.msra.mxu0 %v2746
  %2814 = vmatprep.subr.bf16.mxu0 %v2745
  %2815 = vmatpush2.bf16.msra.mxu0 %v2744
  %2816 = vmatprep.subr.bf16.mxu0 %v2743
  %2817 = vmatpush2.bf16.msra.mxu0 %v2742
  %2818 = vmatprep.subr.bf16.mxu0 %v2741
  %2819 = vmatpush2.bf16.msra.mxu0 %v2740
  %2820 = vmatprep.mubr.bf16.mxu0 %v2625
  %2821 = vmatmul.mubr.bf16.gmra.mxu0 %v2624
  %v2822 = vpop.f32.mrf.mxu0
  %v2823 = vadd.f32 0.0, %v2822
  %v2824 = vpop.f32.mrf.mxu0
  %v2825 = vadd.f32 0.0, %v2824
  %v2826 = vpop.f32.mrf.mxu0
  %v2827 = vadd.f32 0.0, %v2826
  %v2828 = vpop.f32.mrf.mxu0
  %v2829 = vadd.f32 0.0, %v2828
  %2830 = vdwg.mxu0
  %v2831 = vadd.f32 %v2403, %v2823
  %v2832 = vadd.f32 %v2404, %v2825
  %v2833 = vadd.f32 %v2405, %v2827
  %v2834 = vadd.f32 %v2406, %v2829
  %v2835 = vld [vmem:[%s4] sm:$0x3]
  %v2837 = vlaneseq
  %v2838 = vshrl.u32 %v2837, 7
  %v2839 = vsub.s32 0, %v2838
  %v2840 = vrot.slane %v2835, %v2839
  %v2841 = vlaneseq
  %v2842 = vshrl.u32 %v2841, 7
  %v2843 = vsub.s32 1, %v2842
  %v2844 = vrot.slane %v2835, %v2843
  %v2847 = vadd.f32 %v2831, %v2840
  %v2848 = vadd.f32 %v2832, %v2844
  %v2849 = vadd.f32 %v2833, %v2840
  %v2850 = vadd.f32 %v2834, %v2844
  %v2851 = vmax.f32 %v2847, 0.0
  %v2852 = vmax.f32 %v2848, 0.0
  %v2853 = vmax.f32 %v2849, 0.0
  %v2854 = vmax.f32 %v2850, 0.0
  %v2855 = vpack.c.bf16 %v2853, %v2851
  %v2856 = vpack.c.bf16 %v2854, %v2852
  %v2859 = vcombine.low %v2855, %v2856
  %v2860 = vcombine.high %v2855, %v2856
  %v2862 = vunpack.c.l.s4 1966171168
  %v2863 = vunpack.c.0.s8 %v2862
  %v2864 = vlaneseq
  %v2865 = vshrl.u32 %v2864, 7
  %v2866 = vsub.s32 %v2863, %v2865
  %v2867 = vrot.slane %v2859, %v2866
  %v2869 = vunpack.c.l.s4 1966171168
  %v2870 = vunpack.c.0.s8 %v2869
  %v2871 = vlaneseq
  %v2872 = vshrl.u32 %v2871, 7
  %v2873 = vsub.s32 %v2870, %v2872
  %v2874 = vrot.slane %v2860, %v2873
  %v2875 = vcombine.high %v2867, %v2867
  %v2876 = vcombine.high %v2874, %v2874
  %v2878 = vunpack.c.l.s4 1966171168
  %v2879 = vunpack.c.0.s8 %v2878
  %v2880 = vlaneseq
  %v2881 = vshrl.u32 %v2880, 7
  %v2882 = vsub.s32 %v2879, %v2881
  %v2883 = vrot.slane %v2867, %v2882
  %v2885 = vunpack.c.l.s4 1966171168
  %v2886 = vunpack.c.0.s8 %v2885
  %v2887 = vlaneseq
  %v2888 = vshrl.u32 %v2887, 7
  %v2889 = vsub.s32 %v2886, %v2888
  %v2890 = vrot.slane %v2874, %v2889
  %v2892 = vunpack.c.l.s4 1966171168
  %v2893 = vunpack.c.0.s8 %v2892
  %v2894 = vlaneseq
  %v2895 = vshrl.u32 %v2894, 7
  %v2896 = vsub.s32 %v2893, %v2895
  %v2897 = vrot.slane %v2875, %v2896
  %v2899 = vunpack.c.l.s4 1966171168
  %v2900 = vunpack.c.0.s8 %v2899
  %v2901 = vlaneseq
  %v2902 = vshrl.u32 %v2901, 7
  %v2903 = vsub.s32 %v2900, %v2902
  %v2904 = vrot.slane %v2876, %v2903
  %v2905 = vcombine.high %v2883, %v2883
  %v2906 = vcombine.high %v2890, %v2890
  %v2907 = vcombine.high %v2897, %v2897
  %v2908 = vunpack.i.l.s16 %v2883
  %v2909 = vunpack.i.h.s16 %v2883
  %v2910 = vunpack.i.l.s16 %v2897
  %v2911 = vunpack.i.h.s16 %v2897
  %v2912 = vunpack.i.l.s16 %v2905
  %v2913 = vunpack.i.h.s16 %v2905
  %v2914 = vunpack.i.l.s16 %v2907
  %v2915 = vunpack.i.h.s16 %v2907
  %v2916 = vunpack.i.l.s16 %v2890
  %v2917 = vunpack.i.h.s16 %v2890
  %v2918 = vunpack.i.l.s16 %v2904
  %v2919 = vunpack.i.h.s16 %v2904
  %v2920 = vunpack.i.l.s16 %v2906
  %v2921 = vunpack.i.h.s16 %v2906
  %v2922 = vpack.i.b16 %v2909, %v2908
  %v2923 = vpack.i.b16 %v2911, %v2910
  %v2924 = vpack.i.b16 %v2913, %v2912
  %v2926 = vpack.i.b16 %v2916, %v2915
  %v2927 = vpack.i.b16 %v2918, %v2917
  %v2928 = vpack.i.b16 %v2920, %v2919
  %v2930 = vcombine.low %v2922, %v2922
  %v2931 = vcombine.low %v2923, %v2923
  %v2933 = vunpack.c.l.s4 1935823168
  %v2934 = vunpack.c.0.s8 %v2933
  %v2935 = vlaneseq
  %v2936 = vshrl.u32 %v2935, 7
  %v2937 = vsub.s32 %v2934, %v2936
  %v2938 = vrot.slane %v2930, %v2937
  %v2940 = vunpack.c.l.s4 1935823168
  %v2941 = vunpack.c.0.s8 %v2940
  %v2942 = vlaneseq
  %v2943 = vshrl.u32 %v2942, 7
  %v2944 = vsub.s32 %v2941, %v2943
  %v2945 = vrot.slane %v2931, %v2944
  %v2946 = vcombine.low %v2938, %v2945
  %v2948 = vunpack.c.l.s4 1935823168
  %v2949 = vunpack.c.0.s8 %v2948
  %v2950 = vlaneseq
  %v2951 = vshrl.u32 %v2950, 7
  %v2952 = vsub.s32 %v2949, %v2951
  %v2953 = vrot.slane %v2946, %v2952
  %v2955 = vunpack.c.l.s4 1935823168
  %v2956 = vunpack.c.0.s8 %v2955
  %v2957 = vlaneseq
  %v2958 = vshrl.u32 %v2957, 7
  %v2959 = vsub.s32 %v2956, %v2958
  %v2960 = vrot.slane %v2924, %v2959
  %v2962 = vunpack.c.l.s4 1935823168
  %v2963 = vunpack.c.0.s8 %v2962
  %v2964 = vlaneseq
  %v2965 = vshrl.u32 %v2964, 7
  %v2966 = vsub.s32 %v2963, %v2965
  %v2967 = vrot.slane %v2914, %v2966
  %v2968 = vcombine.low %v2960, %v2967
  %v2970 = vunpack.c.l.s4 1935823168
  %v2971 = vunpack.c.0.s8 %v2970
  %v2972 = vlaneseq
  %v2973 = vshrl.u32 %v2972, 7
  %v2974 = vsub.s32 %v2971, %v2973
  %v2975 = vrot.slane %v2968, %v2974
  %v2976 = vcombine.low %v2926, %v2926
  %v2977 = vcombine.low %v2927, %v2927
  %v2979 = vunpack.c.l.s4 1935823168
  %v2980 = vunpack.c.0.s8 %v2979
  %v2981 = vlaneseq
  %v2982 = vshrl.u32 %v2981, 7
  %v2983 = vsub.s32 %v2980, %v2982
  %v2984 = vrot.slane %v2976, %v2983
  %v2986 = vunpack.c.l.s4 1935823168
  %v2987 = vunpack.c.0.s8 %v2986
  %v2988 = vlaneseq
  %v2989 = vshrl.u32 %v2988, 7
  %v2990 = vsub.s32 %v2987, %v2989
  %v2991 = vrot.slane %v2977, %v2990
  %v2992 = vcombine.low %v2984, %v2991
  %v2994 = vunpack.c.l.s4 1935823168
  %v2995 = vunpack.c.0.s8 %v2994
  %v2996 = vlaneseq
  %v2997 = vshrl.u32 %v2996, 7
  %v2998 = vsub.s32 %v2995, %v2997
  %v2999 = vrot.slane %v2992, %v2998
  %v3001 = vunpack.c.l.s4 1935823168
  %v3002 = vunpack.c.0.s8 %v3001
  %v3003 = vlaneseq
  %v3004 = vshrl.u32 %v3003, 7
  %v3005 = vsub.s32 %v3002, %v3004
  %v3006 = vrot.slane %v2928, %v3005
  %v3008 = vunpack.c.l.s4 1935823168
  %v3009 = vunpack.c.0.s8 %v3008
  %v3010 = vlaneseq
  %v3011 = vshrl.u32 %v3010, 7
  %v3012 = vsub.s32 %v3009, %v3011
  %v3013 = vrot.slane %v2921, %v3012
  %v3014 = vcombine.low %v3006, %v3013
  %v3016 = vunpack.c.l.s4 1935823168
  %v3017 = vunpack.c.0.s8 %v3016
  %v3018 = vlaneseq
  %v3019 = vshrl.u32 %v3018, 7
  %v3020 = vsub.s32 %v3017, %v3019
  %v3021 = vrot.slane %v3014, %v3020
  %vm3026 = vcmask 1043458
  %vm3027 = vcmask 785414
  %vm3028 = vmor %vm3027, %vm3026
  %3029 = vst.msk [vmem:[#allocation3] sm:$0xcc] %vm3028, %v2953
  %vm3030 = vcmask 783364
  %vm3031 = vmand %vm3030, %vm39
  %vm3032 = vmor %vm3031, %vm37
  %v3033 = vld [vmem:[#allocation3 + $0x8] sm:$0x33]
  %v3034 = vsel %vm3032, %v2975, %v3033
  %3035 = vst [vmem:[#allocation3 + $0x8] sm:$0x33] %v3034
  %3036 = vst.msk [vmem:[#allocation3 + $0x10] sm:$0xcc] %vm3028, %v2999
  %v3037 = vld [vmem:[#allocation3 + $0x18] sm:$0x33]
  %v3038 = vsel %vm3032, %v3021, %v3037
  %3039 = vst [vmem:[#allocation3 + $0x18] sm:$0x33] %v3038
  %v3040 = vld [vmem:[#allocation3] sm:$0xff]
  %v3041 = vld [vmem:[#allocation3 + $0x8] sm:$0x33]
  %v3042 = vld [vmem:[#allocation3 + $0x10] sm:$0xff]
  %v3043 = vld [vmem:[#allocation3 + $0x18] sm:$0x33]
  %v3049 = vunpack.c.l.s4 1966171168
  %v3050 = vunpack.c.0.s8 %v3049
  %v3051 = vlaneseq
  %v3052 = vshrl.u32 %v3051, 7
  %v3053 = vsub.s32 %v3050, %v3052
  %v3054 = vrot.slane %v3040, %v3053
  %v3055 = vcombine.high %v3054, %v3054
  %v3057 = vunpack.c.l.s4 1966171168
  %v3058 = vunpack.c.0.s8 %v3057
  %v3059 = vlaneseq
  %v3060 = vshrl.u32 %v3059, 7
  %v3061 = vsub.s32 %v3058, %v3060
  %v3062 = vrot.slane %v3054, %v3061
  %v3064 = vunpack.c.l.s4 1966171168
  %v3065 = vunpack.c.0.s8 %v3064
  %v3066 = vlaneseq
  %v3067 = vshrl.u32 %v3066, 7
  %v3068 = vsub.s32 %v3065, %v3067
  %v3069 = vrot.slane %v3055, %v3068
  %v3070 = vcombine.high %v3062, %v3062
  %v3071 = vcombine.high %v3069, %v3069
  %v3073 = vunpack.c.l.s4 1966171168
  %v3074 = vunpack.c.0.s8 %v3073
  %v3075 = vlaneseq
  %v3076 = vshrl.u32 %v3075, 7
  %v3077 = vsub.s32 %v3074, %v3076
  %v3078 = vrot.slane %v3041, %v3077
  %v3079 = vcombine.high %v3078, %v3078
  %v3081 = vunpack.c.l.s4 1966171168
  %v3082 = vunpack.c.0.s8 %v3081
  %v3083 = vlaneseq
  %v3084 = vshrl.u32 %v3083, 7
  %v3085 = vsub.s32 %v3082, %v3084
  %v3086 = vrot.slane %v3078, %v3085
  %v3088 = vunpack.c.l.s4 1966171168
  %v3089 = vunpack.c.0.s8 %v3088
  %v3090 = vlaneseq
  %v3091 = vshrl.u32 %v3090, 7
  %v3092 = vsub.s32 %v3089, %v3091
  %v3093 = vrot.slane %v3079, %v3092
  %v3095 = vunpack.c.l.s4 1966171168
  %v3096 = vunpack.c.0.s8 %v3095
  %v3097 = vlaneseq
  %v3098 = vshrl.u32 %v3097, 7
  %v3099 = vsub.s32 %v3096, %v3098
  %v3100 = vrot.slane %v3042, %v3099
  %v3101 = vcombine.high %v3100, %v3100
  %v3103 = vunpack.c.l.s4 1966171168
  %v3104 = vunpack.c.0.s8 %v3103
  %v3105 = vlaneseq
  %v3106 = vshrl.u32 %v3105, 7
  %v3107 = vsub.s32 %v3104, %v3106
  %v3108 = vrot.slane %v3100, %v3107
  %v3110 = vunpack.c.l.s4 1966171168
  %v3111 = vunpack.c.0.s8 %v3110
  %v3112 = vlaneseq
  %v3113 = vshrl.u32 %v3112, 7
  %v3114 = vsub.s32 %v3111, %v3113
  %v3115 = vrot.slane %v3101, %v3114
  %v3116 = vcombine.high %v3108, %v3108
  %v3117 = vcombine.high %v3115, %v3115
  %v3119 = vunpack.c.l.s4 1966171168
  %v3120 = vunpack.c.0.s8 %v3119
  %v3121 = vlaneseq
  %v3122 = vshrl.u32 %v3121, 7
  %v3123 = vsub.s32 %v3120, %v3122
  %v3124 = vrot.slane %v3043, %v3123
  %v3125 = vcombine.high %v3124, %v3124
  %v3127 = vunpack.c.l.s4 1966171168
  %v3128 = vunpack.c.0.s8 %v3127
  %v3129 = vlaneseq
  %v3130 = vshrl.u32 %v3129, 7
  %v3131 = vsub.s32 %v3128, %v3130
  %v3132 = vrot.slane %v3124, %v3131
  %v3134 = vunpack.c.l.s4 1966171168
  %v3135 = vunpack.c.0.s8 %v3134
  %v3136 = vlaneseq
  %v3137 = vshrl.u32 %v3136, 7
  %v3138 = vsub.s32 %v3135, %v3137
  %v3139 = vrot.slane %v3125, %v3138
  %v3140 = vunpack.i.l.s16 %v3062
  %v3141 = vunpack.i.h.s16 %v3062
  %v3142 = vunpack.i.l.s16 %v3069
  %v3143 = vunpack.i.h.s16 %v3069
  %v3144 = vunpack.i.l.s16 %v3070
  %v3145 = vunpack.i.h.s16 %v3070
  %v3146 = vunpack.i.l.s16 %v3071
  %v3147 = vunpack.i.h.s16 %v3071
  %v3148 = vunpack.i.l.s16 %v3086
  %v3149 = vunpack.i.h.s16 %v3086
  %v3150 = vunpack.i.l.s16 %v3093
  %v3151 = vunpack.i.l.s16 %v3108
  %v3152 = vunpack.i.h.s16 %v3108
  %v3153 = vunpack.i.l.s16 %v3115
  %v3154 = vunpack.i.h.s16 %v3115
  %v3155 = vunpack.i.l.s16 %v3116
  %v3156 = vunpack.i.h.s16 %v3116
  %v3157 = vunpack.i.l.s16 %v3117
  %v3158 = vunpack.i.h.s16 %v3117
  %v3159 = vunpack.i.l.s16 %v3132
  %v3160 = vunpack.i.h.s16 %v3132
  %v3161 = vunpack.i.l.s16 %v3139
  %v3162 = vld [vmem:[%s5] sm:$0xff]
  %v3163 = vld [vmem:[%s5 + $0x8] sm:$0xff]
  %v3164 = vld [vmem:[%s5 + $0x10] sm:$0xff]
  %v3165 = vld [vmem:[%s5 + $0x18] sm:$0xff]
  %v3166 = vld [vmem:[%s5 + $0x20] sm:$0xff]
  %v3167 = vld [vmem:[%s5 + $0x28] sm:$0xff]
  %v3168 = vld [vmem:[%s5 + $0x30] sm:$0xff]
  %v3169 = vld [vmem:[%s5 + $0x38] sm:$0xff]
  %v3170 = vld [vmem:[%s5 + $0x40] sm:$0xff]
  %v3171 = vld [vmem:[%s5 + $0x48] sm:$0xff]
  %v3172 = vld [vmem:[%s5 + $0x50] sm:$0xff]
  %v3173 = vld [vmem:[%s5 + $0x58] sm:$0xff]
  %v3174 = vld [vmem:[%s5 + $0x60] sm:$0xff]
  %v3175 = vld [vmem:[%s5 + $0x68] sm:$0xff]
  %v3176 = vld [vmem:[%s5 + $0x70] sm:$0xff]
  %v3177 = vld [vmem:[%s5 + $0x78] sm:$0xff]
  %v3178 = vld [vmem:[%s5 + $0x80] sm:$0xff]
  %v3179 = vld [vmem:[%s5 + $0x88] sm:$0xff]
  %v3180 = vld [vmem:[%s5 + $0x90] sm:$0xff]
  %v3181 = vld [vmem:[%s5 + $0x98] sm:$0xff]
  %v3182 = vld [vmem:[%s5 + $0xa0] sm:$0xff]
  %v3183 = vld [vmem:[%s5 + $0xa8] sm:$0xff]
  %v3184 = vld [vmem:[%s5 + $0xb0] sm:$0xff]
  %v3185 = vld [vmem:[%s5 + $0xb8] sm:$0xff]
  %v3186 = vld [vmem:[%s5 + $0xc0] sm:$0xff]
  %v3187 = vld [vmem:[%s5 + $0xc8] sm:$0xff]
  %v3188 = vld [vmem:[%s5 + $0xd0] sm:$0xff]
  %v3189 = vld [vmem:[%s5 + $0xd8] sm:$0xff]
  %v3190 = vunpack.i.h.s16 %v3093
  %v3191 = vunpack.i.h.s16 %v3139
  %s3192 = scalar_lea.vmem %s5, 224
  %v3193 = vld [vmem:[%s3192] sm:$0xff]
  %v3194 = vld [vmem:[%s3192 + $0x8] sm:$0xff]
  %v3195 = vld [vmem:[%s3192 + $0x10] sm:$0xff]
  %v3196 = vld [vmem:[%s3192 + $0x18] sm:$0xff]
  %v3197 = vld [vmem:[%s3192 + $0x20] sm:$0xff]
  %v3198 = vld [vmem:[%s3192 + $0x28] sm:$0xff]
  %v3199 = vld [vmem:[%s3192 + $0x30] sm:$0xff]
  %v3200 = vld [vmem:[%s3192 + $0x38] sm:$0xff]
  %v3201 = vld [vmem:[%s3192 + $0x40] sm:$0xff]
  %v3202 = vld [vmem:[%s3192 + $0x48] sm:$0xff]
  %v3203 = vld [vmem:[%s3192 + $0x50] sm:$0xff]
  %v3204 = vld [vmem:[%s3192 + $0x58] sm:$0xff]
  %v3205 = vld [vmem:[%s3192 + $0x60] sm:$0xff]
  %v3206 = vld [vmem:[%s3192 + $0x68] sm:$0xff]
  %v3207 = vld [vmem:[%s3192 + $0x70] sm:$0xff]
  %v3208 = vld [vmem:[%s3192 + $0x78] sm:$0xff]
  %v3209 = vld [vmem:[%s3192 + $0x80] sm:$0xff]
  %v3210 = vld [vmem:[%s3192 + $0x88] sm:$0xff]
  %v3211 = vld [vmem:[%s3192 + $0x90] sm:$0xff]
  %v3212 = vld [vmem:[%s3192 + $0x98] sm:$0xff]
  %v3213 = vld [vmem:[%s3192 + $0xa0] sm:$0xff]
  %v3214 = vld [vmem:[%s3192 + $0xa8] sm:$0xff]
  %v3215 = vld [vmem:[%s3192 + $0xb0] sm:$0xff]
  %v3216 = vld [vmem:[%s3192 + $0xb8] sm:$0xff]
  %v3217 = vld [vmem:[%s3192 + $0xc0] sm:$0xff]
  %v3218 = vld [vmem:[%s3192 + $0xc8] sm:$0xff]
  %v3219 = vld [vmem:[%s3192 + $0xd0] sm:$0xff]
  %v3220 = vld [vmem:[%s3192 + $0xd8] sm:$0xff]
  %v3221 = vpack.i.b16 %v3142, %v3141
  %v3222 = vpack.i.b16 %v3144, %v3143
  %v3223 = vpack.i.b16 %v3146, %v3145
  %v3224 = vpack.i.b16 %v3148, %v3147
  %v3225 = vpack.i.b16 %v3150, %v3149
  %v3226 = vpack.i.b16 %v3152, %v3190
  %v3227 = vpack.i.b16 %v3154, %v3153
  %v3228 = vpack.i.b16 %v3156, %v3155
  %v3229 = vpack.i.b16 %v3158, %v3157
  %v3230 = vpack.i.b16 %v3160, %v3159
  %v3231 = vpack.i.b16 %v3191, %v3161
  %v3232 = vcombine.low %v3221, %v3222
  %v3233 = vcombine.low %v3223, %v3224
  %v3234 = vcombine.low %v3225, %v3226
  %v3235 = vcombine.low %v3227, %v3228
  %v3237 = vunpack.c.l.s4 1966171168
  %v3238 = vunpack.c.0.s8 %v3237
  %v3239 = vlaneseq
  %v3240 = vshrl.u32 %v3239, 7
  %v3241 = vsub.s32 %v3238, %v3240
  %v3242 = vrot.slane %v3232, %v3241
  %v3244 = vunpack.c.l.s4 1966171168
  %v3245 = vunpack.c.0.s8 %v3244
  %v3246 = vlaneseq
  %v3247 = vshrl.u32 %v3246, 7
  %v3248 = vsub.s32 %v3245, %v3247
  %v3249 = vrot.slane %v3233, %v3248
  %v3251 = vunpack.c.l.s4 1966171168
  %v3252 = vunpack.c.0.s8 %v3251
  %v3253 = vlaneseq
  %v3254 = vshrl.u32 %v3253, 7
  %v3255 = vsub.s32 %v3252, %v3254
  %v3256 = vrot.slane %v3234, %v3255
  %v3258 = vunpack.c.l.s4 1966171168
  %v3259 = vunpack.c.0.s8 %v3258
  %v3260 = vlaneseq
  %v3261 = vshrl.u32 %v3260, 7
  %v3262 = vsub.s32 %v3259, %v3261
  %v3263 = vrot.slane %v3235, %v3262
  %v3264 = vcombine.low %v3242, %v3249
  %v3265 = vcombine.high %v3242, %v3249
  %v3266 = vcombine.low %v3256, %v3263
  %v3267 = vcombine.high %v3256, %v3263
  %v3269 = vunpack.c.l.s4 1966171168
  %v3270 = vunpack.c.0.s8 %v3269
  %v3271 = vlaneseq
  %v3272 = vshrl.u32 %v3271, 7
  %v3273 = vsub.s32 %v3270, %v3272
  %v3274 = vrot.slane %v3264, %v3273
  %v3276 = vunpack.c.l.s4 1966171168
  %v3277 = vunpack.c.0.s8 %v3276
  %v3278 = vlaneseq
  %v3279 = vshrl.u32 %v3278, 7
  %v3280 = vsub.s32 %v3277, %v3279
  %v3281 = vrot.slane %v3265, %v3280
  %v3283 = vunpack.c.l.s4 1966171168
  %v3284 = vunpack.c.0.s8 %v3283
  %v3285 = vlaneseq
  %v3286 = vshrl.u32 %v3285, 7
  %v3287 = vsub.s32 %v3284, %v3286
  %v3288 = vrot.slane %v3266, %v3287
  %v3290 = vunpack.c.l.s4 1966171168
  %v3291 = vunpack.c.0.s8 %v3290
  %v3292 = vlaneseq
  %v3293 = vshrl.u32 %v3292, 7
  %v3294 = vsub.s32 %v3291, %v3293
  %v3295 = vrot.slane %v3267, %v3294
  %v3296 = vcombine.low %v3274, %v3288
  %v3297 = vcombine.low %v3281, %v3295
  %v3298 = vcombine.low %v3229, %v3230
  %v3300 = vunpack.c.l.s4 1966171168
  %v3301 = vunpack.c.0.s8 %v3300
  %v3302 = vlaneseq
  %v3303 = vshrl.u32 %v3302, 7
  %v3304 = vsub.s32 %v3301, %v3303
  %v3305 = vrot.slane %v3298, %v3304
  %v3307 = vunpack.c.l.s4 1966171168
  %v3308 = vunpack.c.0.s8 %v3307
  %v3309 = vlaneseq
  %v3310 = vshrl.u32 %v3309, 7
  %v3311 = vsub.s32 %v3308, %v3310
  %v3312 = vrot.slane %v3231, %v3311
  %v3313 = vcombine.low %v3305, %v3312
  %v3314 = vcombine.high %v3305, %v3312
  %v3316 = vunpack.c.l.s4 1966171168
  %v3317 = vunpack.c.0.s8 %v3316
  %v3318 = vlaneseq
  %v3319 = vshrl.u32 %v3318, 7
  %v3320 = vsub.s32 %v3317, %v3319
  %v3321 = vrot.slane %v3313, %v3320
  %v3323 = vunpack.c.l.s4 1966171168
  %v3324 = vunpack.c.0.s8 %v3323
  %v3325 = vlaneseq
  %v3326 = vshrl.u32 %v3325, 7
  %v3327 = vsub.s32 %v3324, %v3326
  %v3328 = vrot.slane %v3314, %v3327
  %v3359 = vunpack.c.l.b16 %v3193
  %v3360 = vunpack.c.h.b16 %v3193
  %v3361 = vunpack.c.l.b16 %v3194
  %v3362 = vunpack.c.h.b16 %v3194
  %v3363 = vunpack.c.l.b16 %v3195
  %v3364 = vunpack.c.h.b16 %v3195
  %v3365 = vunpack.c.l.b16 %v3196
  %v3366 = vunpack.c.h.b16 %v3196
  %v3367 = vunpack.c.l.b16 %v3197
  %v3368 = vunpack.c.h.b16 %v3197
  %v3369 = vunpack.c.l.b16 %v3198
  %v3370 = vunpack.c.h.b16 %v3198
  %v3371 = vunpack.c.l.b16 %v3199
  %v3372 = vunpack.c.h.b16 %v3199
  %v3373 = vunpack.c.l.b16 %v3200
  %v3374 = vunpack.c.h.b16 %v3200
  %v3375 = vunpack.c.l.b16 %v3201
  %v3376 = vunpack.c.h.b16 %v3201
  %v3377 = vunpack.c.l.b16 %v3202
  %v3378 = vunpack.c.h.b16 %v3202
  %v3379 = vunpack.c.l.b16 %v3203
  %v3380 = vunpack.c.h.b16 %v3203
  %v3381 = vunpack.c.l.b16 %v3204
  %v3382 = vunpack.c.h.b16 %v3204
  %v3383 = vunpack.c.l.b16 %v3205
  %v3384 = vunpack.c.h.b16 %v3205
  %v3385 = vunpack.c.l.b16 %v3206
  %v3386 = vunpack.c.h.b16 %v3206
  %v3387 = vunpack.c.l.b16 %v3207
  %v3388 = vunpack.c.h.b16 %v3207
  %v3389 = vunpack.c.l.b16 %v3208
  %v3390 = vunpack.c.h.b16 %v3208
  %v3391 = vunpack.c.l.b16 %v3209
  %v3392 = vunpack.c.h.b16 %v3209
  %v3393 = vunpack.c.l.b16 %v3210
  %v3394 = vunpack.c.h.b16 %v3210
  %v3395 = vunpack.c.l.b16 %v3211
  %v3396 = vunpack.c.h.b16 %v3211
  %v3397 = vunpack.c.l.b16 %v3212
  %v3398 = vunpack.c.h.b16 %v3212
  %v3399 = vunpack.c.l.b16 %v3213
  %v3400 = vunpack.c.h.b16 %v3213
  %v3401 = vunpack.c.l.b16 %v3214
  %v3402 = vunpack.c.h.b16 %v3214
  %v3403 = vunpack.c.l.b16 %v3215
  %v3404 = vunpack.c.h.b16 %v3215
  %v3405 = vunpack.c.l.b16 %v3216
  %v3406 = vunpack.c.h.b16 %v3216
  %v3407 = vunpack.c.l.b16 %v3217
  %v3408 = vunpack.c.h.b16 %v3217
  %v3409 = vunpack.c.l.b16 %v3218
  %v3410 = vunpack.c.h.b16 %v3218
  %v3411 = vunpack.c.l.b16 %v3219
  %v3412 = vunpack.c.h.b16 %v3219
  %v3413 = vunpack.c.l.b16 %v3220
  %v3414 = vunpack.c.h.b16 %v3220
  %v3415 = vpack.c.b16 %v3361, %v3359
  %v3416 = vpack.c.b16 %v3362, %v3360
  %v3417 = vpack.c.b16 %v3365, %v3363
  %v3418 = vpack.c.b16 %v3366, %v3364
  %v3419 = vpack.c.b16 %v3369, %v3367
  %v3420 = vpack.c.b16 %v3370, %v3368
  %v3421 = vpack.c.b16 %v3373, %v3371
  %v3422 = vpack.c.b16 %v3374, %v3372
  %v3423 = vpack.c.b16 %v3377, %v3375
  %v3424 = vpack.c.b16 %v3378, %v3376
  %v3425 = vpack.c.b16 %v3381, %v3379
  %v3426 = vpack.c.b16 %v3382, %v3380
  %v3427 = vpack.c.b16 %v3385, %v3383
  %v3428 = vpack.c.b16 %v3386, %v3384
  %v3429 = vpack.c.b16 %v3389, %v3387
  %v3430 = vpack.c.b16 %v3390, %v3388
  %v3431 = vpack.c.b16 %v3393, %v3391
  %v3432 = vpack.c.b16 %v3394, %v3392
  %v3433 = vpack.c.b16 %v3397, %v3395
  %v3434 = vpack.c.b16 %v3398, %v3396
  %v3435 = vpack.c.b16 %v3401, %v3399
  %v3436 = vpack.c.b16 %v3402, %v3400
  %v3437 = vpack.c.b16 %v3405, %v3403
  %v3438 = vpack.c.b16 %v3406, %v3404
  %v3439 = vpack.c.b16 %v3409, %v3407
  %v3440 = vpack.c.b16 %v3410, %v3408
  %v3441 = vpack.c.b16 %v3413, %v3411
  %v3442 = vpack.c.b16 %v3414, %v3412
  %vm3471 = vcmask 785408
  %v3473 = vsel %vm3471, %v3297, 0
  %v3476 = vsel %vm3471, %v3328, 0
  %3478 = vmatprep.subr.bf16.mxu0 %v3430
  %3479 = vmatpush1.bf16.msra.mxu0 %v3429
  %3480 = vmatprep.subr.bf16.mxu0 %v3428
  %3481 = vmatpush1.bf16.msra.mxu0 %v3427
  %3482 = vmatprep.subr.bf16.mxu0 %v3426
  %3483 = vmatpush1.bf16.msra.mxu0 %v3425
  %3484 = vmatprep.subr.bf16.mxu0 %v3424
  %3485 = vmatpush1.bf16.msra.mxu0 %v3423
  %3486 = vmatprep.subr.bf16.mxu0 %v3422
  %3487 = vmatpush1.bf16.msra.mxu0 %v3421
  %3488 = vmatprep.subr.bf16.mxu0 %v3420
  %3489 = vmatpush1.bf16.msra.mxu0 %v3419
  %3490 = vmatprep.subr.bf16.mxu0 %v3418
  %3491 = vmatpush1.bf16.msra.mxu0 %v3417
  %3492 = vmatprep.subr.bf16.mxu0 %v3416
  %3493 = vmatpush1.bf16.msra.mxu0 %v3415
  %3494 = vmatprep.subr.bf16.mxu0 0
  %3495 = vmatpush2.bf16.msra.mxu0 0
  %3496 = vmatprep.subr.bf16.mxu0 0
  %3497 = vmatpush2.bf16.msra.mxu0 0
  %3498 = vmatprep.subr.bf16.mxu0 %v3442
  %3499 = vmatpush2.bf16.msra.mxu0 %v3441
  %3500 = vmatprep.subr.bf16.mxu0 %v3440
  %3501 = vmatpush2.bf16.msra.mxu0 %v3439
  %3502 = vmatprep.subr.bf16.mxu0 %v3438
  %3503 = vmatpush2.bf16.msra.mxu0 %v3437
  %3504 = vmatprep.subr.bf16.mxu0 %v3436
  %3505 = vmatpush2.bf16.msra.mxu0 %v3435
  %3506 = vmatprep.subr.bf16.mxu0 %v3434
  %3507 = vmatpush2.bf16.msra.mxu0 %v3433
  %3508 = vmatprep.subr.bf16.mxu0 %v3432
  %3509 = vmatpush2.bf16.msra.mxu0 %v3431
  %3510 = vmatprep.mubr.bf16.mxu0 %v3473
  %3511 = vmatmul.mubr.bf16.gmra.mxu0 %v3296
  %v3512 = vpop.f32.mrf.mxu0
  %v3513 = vadd.f32 0.0, %v3512
  %v3514 = vpop.f32.mrf.mxu0
  %v3515 = vadd.f32 0.0, %v3514
  %v3516 = vpop.f32.mrf.mxu0
  %v3517 = vadd.f32 0.0, %v3516
  %v3518 = vpop.f32.mrf.mxu0
  %v3519 = vadd.f32 0.0, %v3518
  %3520 = vmatprep.mubr.bf16.mxu0 %v3476
  %3521 = vmatmul.mubr.bf16.gmra.mxu0 %v3321
  %v3522 = vpop.f32.mrf.mxu0
  %v3523 = vadd.f32 0.0, %v3522
  %v3524 = vpop.f32.mrf.mxu0
  %v3525 = vadd.f32 0.0, %v3524
  %v3526 = vpop.f32.mrf.mxu0
  %v3527 = vpop.f32.mrf.mxu0
  %3528 = vdwg.mxu0
  %v3529 = vpack.i.b16 %v3141, %v3140
  %v3530 = vpack.i.b16 %v3143, %v3142
  %v3531 = vpack.i.b16 %v3145, %v3144
  %v3532 = vpack.i.b16 %v3147, %v3146
  %v3533 = vpack.i.b16 %v3149, %v3148
  %v3534 = vpack.i.b16 %v3151, %v3150
  %v3535 = vpack.i.b16 %v3153, %v3152
  %v3536 = vpack.i.b16 %v3155, %v3154
  %v3537 = vpack.i.b16 %v3157, %v3156
  %v3538 = vpack.i.b16 %v3159, %v3158
  %v3539 = vpack.i.b16 %v3161, %v3160
  %v3540 = vcombine.low %v3529, %v3530
  %v3541 = vcombine.low %v3531, %v3532
  %v3542 = vcombine.low %v3533, %v3534
  %v3543 = vcombine.low %v3535, %v3536
  %v3545 = vunpack.c.l.s4 1966171168
  %v3546 = vunpack.c.0.s8 %v3545
  %v3547 = vlaneseq
  %v3548 = vshrl.u32 %v3547, 7
  %v3549 = vsub.s32 %v3546, %v3548
  %v3550 = vrot.slane %v3540, %v3549
  %v3552 = vunpack.c.l.s4 1966171168
  %v3553 = vunpack.c.0.s8 %v3552
  %v3554 = vlaneseq
  %v3555 = vshrl.u32 %v3554, 7
  %v3556 = vsub.s32 %v3553, %v3555
  %v3557 = vrot.slane %v3541, %v3556
  %v3559 = vunpack.c.l.s4 1966171168
  %v3560 = vunpack.c.0.s8 %v3559
  %v3561 = vlaneseq
  %v3562 = vshrl.u32 %v3561, 7
  %v3563 = vsub.s32 %v3560, %v3562
  %v3564 = vrot.slane %v3542, %v3563
  %v3566 = vunpack.c.l.s4 1966171168
  %v3567 = vunpack.c.0.s8 %v3566
  %v3568 = vlaneseq
  %v3569 = vshrl.u32 %v3568, 7
  %v3570 = vsub.s32 %v3567, %v3569
  %v3571 = vrot.slane %v3543, %v3570
  %v3572 = vcombine.low %v3550, %v3557
  %v3573 = vcombine.high %v3550, %v3557
  %v3574 = vcombine.low %v3564, %v3571
  %v3575 = vcombine.high %v3564, %v3571
  %v3577 = vunpack.c.l.s4 1966171168
  %v3578 = vunpack.c.0.s8 %v3577
  %v3579 = vlaneseq
  %v3580 = vshrl.u32 %v3579, 7
  %v3581 = vsub.s32 %v3578, %v3580
  %v3582 = vrot.slane %v3572, %v3581
  %v3584 = vunpack.c.l.s4 1966171168
  %v3585 = vunpack.c.0.s8 %v3584
  %v3586 = vlaneseq
  %v3587 = vshrl.u32 %v3586, 7
  %v3588 = vsub.s32 %v3585, %v3587
  %v3589 = vrot.slane %v3573, %v3588
  %v3591 = vunpack.c.l.s4 1966171168
  %v3592 = vunpack.c.0.s8 %v3591
  %v3593 = vlaneseq
  %v3594 = vshrl.u32 %v3593, 7
  %v3595 = vsub.s32 %v3592, %v3594
  %v3596 = vrot.slane %v3574, %v3595
  %v3598 = vunpack.c.l.s4 1966171168
  %v3599 = vunpack.c.0.s8 %v3598
  %v3600 = vlaneseq
  %v3601 = vshrl.u32 %v3600, 7
  %v3602 = vsub.s32 %v3599, %v3601
  %v3603 = vrot.slane %v3575, %v3602
  %v3604 = vcombine.low %v3582, %v3596
  %v3605 = vcombine.low %v3589, %v3603
  %v3606 = vcombine.low %v3537, %v3538
  %v3608 = vunpack.c.l.s4 1966171168
  %v3609 = vunpack.c.0.s8 %v3608
  %v3610 = vlaneseq
  %v3611 = vshrl.u32 %v3610, 7
  %v3612 = vsub.s32 %v3609, %v3611
  %v3613 = vrot.slane %v3606, %v3612
  %v3615 = vunpack.c.l.s4 1966171168
  %v3616 = vunpack.c.0.s8 %v3615
  %v3617 = vlaneseq
  %v3618 = vshrl.u32 %v3617, 7
  %v3619 = vsub.s32 %v3616, %v3618
  %v3620 = vrot.slane %v3539, %v3619
  %v3621 = vcombine.low %v3613, %v3620
  %v3622 = vcombine.high %v3613, %v3620
  %v3624 = vunpack.c.l.s4 1966171168
  %v3625 = vunpack.c.0.s8 %v3624
  %v3626 = vlaneseq
  %v3627 = vshrl.u32 %v3626, 7
  %v3628 = vsub.s32 %v3625, %v3627
  %v3629 = vrot.slane %v3621, %v3628
  %v3631 = vunpack.c.l.s4 1966171168
  %v3632 = vunpack.c.0.s8 %v3631
  %v3633 = vlaneseq
  %v3634 = vshrl.u32 %v3633, 7
  %v3635 = vsub.s32 %v3632, %v3634
  %v3636 = vrot.slane %v3622, %v3635
  %v3667 = vunpack.c.l.b16 %v3162
  %v3668 = vunpack.c.h.b16 %v3162
  %v3669 = vunpack.c.l.b16 %v3163
  %v3670 = vunpack.c.h.b16 %v3163
  %v3671 = vunpack.c.l.b16 %v3164
  %v3672 = vunpack.c.h.b16 %v3164
  %v3673 = vunpack.c.l.b16 %v3165
  %v3674 = vunpack.c.h.b16 %v3165
  %v3675 = vunpack.c.l.b16 %v3166
  %v3676 = vunpack.c.h.b16 %v3166
  %v3677 = vunpack.c.l.b16 %v3167
  %v3678 = vunpack.c.h.b16 %v3167
  %v3679 = vunpack.c.l.b16 %v3168
  %v3680 = vunpack.c.h.b16 %v3168
  %v3681 = vunpack.c.l.b16 %v3169
  %v3682 = vunpack.c.h.b16 %v3169
  %v3683 = vunpack.c.l.b16 %v3170
  %v3684 = vunpack.c.h.b16 %v3170
  %v3685 = vunpack.c.l.b16 %v3171
  %v3686 = vunpack.c.h.b16 %v3171
  %v3687 = vunpack.c.l.b16 %v3172
  %v3688 = vunpack.c.h.b16 %v3172
  %v3689 = vunpack.c.l.b16 %v3173
  %v3690 = vunpack.c.h.b16 %v3173
  %v3691 = vunpack.c.l.b16 %v3174
  %v3692 = vunpack.c.h.b16 %v3174
  %v3693 = vunpack.c.l.b16 %v3175
  %v3694 = vunpack.c.h.b16 %v3175
  %v3695 = vunpack.c.l.b16 %v3176
  %v3696 = vunpack.c.h.b16 %v3176
  %v3697 = vunpack.c.l.b16 %v3177
  %v3698 = vunpack.c.h.b16 %v3177
  %v3699 = vunpack.c.l.b16 %v3178
  %v3700 = vunpack.c.h.b16 %v3178
  %v3701 = vunpack.c.l.b16 %v3179
  %v3702 = vunpack.c.h.b16 %v3179
  %v3703 = vunpack.c.l.b16 %v3180
  %v3704 = vunpack.c.h.b16 %v3180
  %v3705 = vunpack.c.l.b16 %v3181
  %v3706 = vunpack.c.h.b16 %v3181
  %v3707 = vunpack.c.l.b16 %v3182
  %v3708 = vunpack.c.h.b16 %v3182
  %v3709 = vunpack.c.l.b16 %v3183
  %v3710 = vunpack.c.h.b16 %v3183
  %v3711 = vunpack.c.l.b16 %v3184
  %v3712 = vunpack.c.h.b16 %v3184
  %v3713 = vunpack.c.l.b16 %v3185
  %v3714 = vunpack.c.h.b16 %v3185
  %v3715 = vunpack.c.l.b16 %v3186
  %v3716 = vunpack.c.h.b16 %v3186
  %v3717 = vunpack.c.l.b16 %v3187
  %v3718 = vunpack.c.h.b16 %v3187
  %v3719 = vunpack.c.l.b16 %v3188
  %v3720 = vunpack.c.h.b16 %v3188
  %v3721 = vunpack.c.l.b16 %v3189
  %v3722 = vunpack.c.h.b16 %v3189
  %v3723 = vpack.c.b16 %v3669, %v3667
  %v3724 = vpack.c.b16 %v3670, %v3668
  %v3725 = vpack.c.b16 %v3673, %v3671
  %v3726 = vpack.c.b16 %v3674, %v3672
  %v3727 = vpack.c.b16 %v3677, %v3675
  %v3728 = vpack.c.b16 %v3678, %v3676
  %v3729 = vpack.c.b16 %v3681, %v3679
  %v3730 = vpack.c.b16 %v3682, %v3680
  %v3731 = vpack.c.b16 %v3685, %v3683
  %v3732 = vpack.c.b16 %v3686, %v3684
  %v3733 = vpack.c.b16 %v3689, %v3687
  %v3734 = vpack.c.b16 %v3690, %v3688
  %v3735 = vpack.c.b16 %v3693, %v3691
  %v3736 = vpack.c.b16 %v3694, %v3692
  %v3737 = vpack.c.b16 %v3697, %v3695
  %v3738 = vpack.c.b16 %v3698, %v3696
  %v3739 = vpack.c.b16 %v3701, %v3699
  %v3740 = vpack.c.b16 %v3702, %v3700
  %v3741 = vpack.c.b16 %v3705, %v3703
  %v3742 = vpack.c.b16 %v3706, %v3704
  %v3743 = vpack.c.b16 %v3709, %v3707
  %v3744 = vpack.c.b16 %v3710, %v3708
  %v3745 = vpack.c.b16 %v3713, %v3711
  %v3746 = vpack.c.b16 %v3714, %v3712
  %v3747 = vpack.c.b16 %v3717, %v3715
  %v3748 = vpack.c.b16 %v3718, %v3716
  %v3749 = vpack.c.b16 %v3721, %v3719
  %v3750 = vpack.c.b16 %v3722, %v3720
  %v3780 = vsel %vm3471, %v3605, 0
  %v3783 = vsel %vm3471, %v3636, 0
  %3785 = vmatprep.subr.bf16.mxu0 %v3738
  %3786 = vmatpush1.bf16.msra.mxu0 %v3737
  %3787 = vmatprep.subr.bf16.mxu0 %v3736
  %3788 = vmatpush1.bf16.msra.mxu0 %v3735
  %3789 = vmatprep.subr.bf16.mxu0 %v3734
  %3790 = vmatpush1.bf16.msra.mxu0 %v3733
  %3791 = vmatprep.subr.bf16.mxu0 %v3732
  %3792 = vmatpush1.bf16.msra.mxu0 %v3731
  %3793 = vmatprep.subr.bf16.mxu0 %v3730
  %3794 = vmatpush1.bf16.msra.mxu0 %v3729
  %3795 = vmatprep.subr.bf16.mxu0 %v3728
  %3796 = vmatpush1.bf16.msra.mxu0 %v3727
  %3797 = vmatprep.subr.bf16.mxu0 %v3726
  %3798 = vmatpush1.bf16.msra.mxu0 %v3725
  %3799 = vmatprep.subr.bf16.mxu0 %v3724
  %3800 = vmatpush1.bf16.msra.mxu0 %v3723
  %3801 = vmatprep.subr.bf16.mxu0 0
  %3802 = vmatpush2.bf16.msra.mxu0 0
  %3803 = vmatprep.subr.bf16.mxu0 0
  %3804 = vmatpush2.bf16.msra.mxu0 0
  %3805 = vmatprep.subr.bf16.mxu0 %v3750
  %3806 = vmatpush2.bf16.msra.mxu0 %v3749
  %3807 = vmatprep.subr.bf16.mxu0 %v3748
  %3808 = vmatpush2.bf16.msra.mxu0 %v3747
  %3809 = vmatprep.subr.bf16.mxu0 %v3746
  %3810 = vmatpush2.bf16.msra.mxu0 %v3745
  %3811 = vmatprep.subr.bf16.mxu0 %v3744
  %3812 = vmatpush2.bf16.msra.mxu0 %v3743
  %3813 = vmatprep.subr.bf16.mxu0 %v3742
  %3814 = vmatpush2.bf16.msra.mxu0 %v3741
  %3815 = vmatprep.subr.bf16.mxu0 %v3740
  %3816 = vmatpush2.bf16.msra.mxu0 %v3739
  %3817 = vmatprep.mubr.bf16.mxu0 %v3780
  %3818 = vmatmul.mubr.bf16.gmra.mxu0 %v3604
  %v3819 = vpop.f32.mrf.mxu0
  %v3820 = vadd.f32 %v3513, %v3819
  %v3821 = vpop.f32.mrf.mxu0
  %v3822 = vadd.f32 %v3515, %v3821
  %v3823 = vpop.f32.mrf.mxu0
  %v3824 = vadd.f32 %v3517, %v3823
  %v3825 = vpop.f32.mrf.mxu0
  %v3826 = vadd.f32 %v3519, %v3825
  %3827 = vmatprep.mubr.bf16.mxu0 %v3783
  %3828 = vmatmul.mubr.bf16.gmra.mxu0 %v3629
  %v3829 = vpop.f32.mrf.mxu0
  %v3830 = vadd.f32 %v3523, %v3829
  %v3831 = vpop.f32.mrf.mxu0
  %v3832 = vadd.f32 %v3525, %v3831
  %v3833 = vpop.f32.mrf.mxu0
  %v3834 = vpop.f32.mrf.mxu0
  %3835 = vdwg.mxu0
  %v3836 = vld [vmem:[#allocation3] sm:$0xee]
  %v3837 = vld [vmem:[#allocation3 + $0x8] sm:$0x77]
  %v3838 = vld [vmem:[#allocation3 + $0x10] sm:$0xee]
  %v3839 = vld [vmem:[#allocation3 + $0x18] sm:$0x77]
  %v3845 = vunpack.c.l.s4 1966171168
  %v3846 = vunpack.c.0.s8 %v3845
  %v3847 = vlaneseq
  %v3848 = vshrl.u32 %v3847, 7
  %v3849 = vsub.s32 %v3846, %v3848
  %v3850 = vrot.slane %v3836, %v3849
  %v3851 = vcombine.high %v3850, %v3850
  %v3853 = vunpack.c.l.s4 1966171168
  %v3854 = vunpack.c.0.s8 %v3853
  %v3855 = vlaneseq
  %v3856 = vshrl.u32 %v3855, 7
  %v3857 = vsub.s32 %v3854, %v3856
  %v3858 = vrot.slane %v3850, %v3857
  %v3860 = vunpack.c.l.s4 1966171168
  %v3861 = vunpack.c.0.s8 %v3860
  %v3862 = vlaneseq
  %v3863 = vshrl.u32 %v3862, 7
  %v3864 = vsub.s32 %v3861, %v3863
  %v3865 = vrot.slane %v3851, %v3864
  %v3866 = vcombine.high %v3858, %v3858
  %v3867 = vcombine.high %v3865, %v3865
  %v3869 = vunpack.c.l.s4 1966171168
  %v3870 = vunpack.c.0.s8 %v3869
  %v3871 = vlaneseq
  %v3872 = vshrl.u32 %v3871, 7
  %v3873 = vsub.s32 %v3870, %v3872
  %v3874 = vrot.slane %v3837, %v3873
  %v3875 = vcombine.high %v3874, %v3874
  %v3877 = vunpack.c.l.s4 1966171168
  %v3878 = vunpack.c.0.s8 %v3877
  %v3879 = vlaneseq
  %v3880 = vshrl.u32 %v3879, 7
  %v3881 = vsub.s32 %v3878, %v3880
  %v3882 = vrot.slane %v3874, %v3881
  %v3884 = vunpack.c.l.s4 1966171168
  %v3885 = vunpack.c.0.s8 %v3884
  %v3886 = vlaneseq
  %v3887 = vshrl.u32 %v3886, 7
  %v3888 = vsub.s32 %v3885, %v3887
  %v3889 = vrot.slane %v3875, %v3888
  %v3890 = vcombine.high %v3882, %v3882
  %v3892 = vunpack.c.l.s4 1966171168
  %v3893 = vunpack.c.0.s8 %v3892
  %v3894 = vlaneseq
  %v3895 = vshrl.u32 %v3894, 7
  %v3896 = vsub.s32 %v3893, %v3895
  %v3897 = vrot.slane %v3838, %v3896
  %v3898 = vcombine.high %v3897, %v3897
  %v3900 = vunpack.c.l.s4 1966171168
  %v3901 = vunpack.c.0.s8 %v3900
  %v3902 = vlaneseq
  %v3903 = vshrl.u32 %v3902, 7
  %v3904 = vsub.s32 %v3901, %v3903
  %v3905 = vrot.slane %v3897, %v3904
  %v3907 = vunpack.c.l.s4 1966171168
  %v3908 = vunpack.c.0.s8 %v3907
  %v3909 = vlaneseq
  %v3910 = vshrl.u32 %v3909, 7
  %v3911 = vsub.s32 %v3908, %v3910
  %v3912 = vrot.slane %v3898, %v3911
  %v3913 = vcombine.high %v3905, %v3905
  %v3914 = vcombine.high %v3912, %v3912
  %v3916 = vunpack.c.l.s4 1966171168
  %v3917 = vunpack.c.0.s8 %v3916
  %v3918 = vlaneseq
  %v3919 = vshrl.u32 %v3918, 7
  %v3920 = vsub.s32 %v3917, %v3919
  %v3921 = vrot.slane %v3839, %v3920
  %v3922 = vcombine.high %v3921, %v3921
  %v3924 = vunpack.c.l.s4 1966171168
  %v3925 = vunpack.c.0.s8 %v3924
  %v3926 = vlaneseq
  %v3927 = vshrl.u32 %v3926, 7
  %v3928 = vsub.s32 %v3925, %v3927
  %v3929 = vrot.slane %v3921, %v3928
  %v3931 = vunpack.c.l.s4 1966171168
  %v3932 = vunpack.c.0.s8 %v3931
  %v3933 = vlaneseq
  %v3934 = vshrl.u32 %v3933, 7
  %v3935 = vsub.s32 %v3932, %v3934
  %v3936 = vrot.slane %v3922, %v3935
  %v3937 = vcombine.high %v3929, %v3929
  %v3938 = vunpack.i.l.s16 %v3865
  %v3939 = vunpack.i.h.s16 %v3865
  %v3940 = vunpack.i.l.s16 %v3866
  %v3941 = vunpack.i.h.s16 %v3866
  %v3942 = vunpack.i.l.s16 %v3867
  %v3943 = vunpack.i.h.s16 %v3867
  %v3944 = vunpack.i.l.s16 %v3882
  %v3945 = vunpack.i.h.s16 %v3882
  %v3946 = vunpack.i.l.s16 %v3889
  %v3947 = vunpack.i.h.s16 %v3889
  %v3948 = vunpack.i.l.s16 %v3890
  %v3949 = vunpack.i.l.s16 %v3912
  %v3950 = vunpack.i.h.s16 %v3912
  %v3951 = vunpack.i.l.s16 %v3913
  %v3952 = vunpack.i.h.s16 %v3913
  %v3953 = vunpack.i.l.s16 %v3914
  %v3954 = vunpack.i.h.s16 %v3914
  %v3955 = vunpack.i.l.s16 %v3929
  %v3956 = vunpack.i.h.s16 %v3929
  %v3957 = vunpack.i.l.s16 %v3936
  %v3958 = vunpack.i.h.s16 %v3936
  %v3959 = vunpack.i.l.s16 %v3937
  %s3960 = scalar_lea.vmem %s5, 448
  %v3961 = vld [vmem:[%s3960] sm:$0xff]
  %v3962 = vld [vmem:[%s3960 + $0x8] sm:$0xff]
  %v3963 = vld [vmem:[%s3960 + $0x10] sm:$0xff]
  %v3964 = vld [vmem:[%s3960 + $0x18] sm:$0xff]
  %v3965 = vld [vmem:[%s3960 + $0x20] sm:$0xff]
  %v3966 = vld [vmem:[%s3960 + $0x28] sm:$0xff]
  %v3967 = vld [vmem:[%s3960 + $0x30] sm:$0xff]
  %v3968 = vld [vmem:[%s3960 + $0x38] sm:$0xff]
  %v3969 = vld [vmem:[%s3960 + $0x40] sm:$0xff]
  %v3970 = vld [vmem:[%s3960 + $0x48] sm:$0xff]
  %v3971 = vld [vmem:[%s3960 + $0x50] sm:$0xff]
  %v3972 = vld [vmem:[%s3960 + $0x58] sm:$0xff]
  %v3973 = vld [vmem:[%s3960 + $0x60] sm:$0xff]
  %v3974 = vld [vmem:[%s3960 + $0x68] sm:$0xff]
  %v3975 = vld [vmem:[%s3960 + $0x70] sm:$0xff]
  %v3976 = vld [vmem:[%s3960 + $0x78] sm:$0xff]
  %v3977 = vld [vmem:[%s3960 + $0x80] sm:$0xff]
  %v3978 = vld [vmem:[%s3960 + $0x88] sm:$0xff]
  %v3979 = vld [vmem:[%s3960 + $0x90] sm:$0xff]
  %v3980 = vld [vmem:[%s3960 + $0x98] sm:$0xff]
  %v3981 = vld [vmem:[%s3960 + $0xa0] sm:$0xff]
  %v3982 = vld [vmem:[%s3960 + $0xa8] sm:$0xff]
  %v3983 = vld [vmem:[%s3960 + $0xb0] sm:$0xff]
  %v3984 = vld [vmem:[%s3960 + $0xb8] sm:$0xff]
  %v3985 = vld [vmem:[%s3960 + $0xc0] sm:$0xff]
  %v3986 = vld [vmem:[%s3960 + $0xc8] sm:$0xff]
  %v3987 = vld [vmem:[%s3960 + $0xd0] sm:$0xff]
  %v3988 = vld [vmem:[%s3960 + $0xd8] sm:$0xff]
  %v3989 = vpack.i.b16 %v3939, %v3938
  %v3990 = vpack.i.b16 %v3941, %v3940
  %v3991 = vpack.i.b16 %v3943, %v3942
  %v3992 = vpack.i.b16 %v3945, %v3944
  %v3993 = vpack.i.b16 %v3947, %v3946
  %v3994 = vpack.i.b16 %v3949, %v3948
  %v3995 = vpack.i.b16 %v3951, %v3950
  %v3996 = vpack.i.b16 %v3953, %v3952
  %v3997 = vpack.i.b16 %v3955, %v3954
  %v3998 = vpack.i.b16 %v3957, %v3956
  %v3999 = vpack.i.b16 %v3959, %v3958
  %v4000 = vcombine.low %v3989, %v3990
  %v4001 = vcombine.low %v3991, %v3992
  %v4002 = vcombine.low %v3993, %v3994
  %v4003 = vcombine.low %v3995, %v3996
  %v4005 = vunpack.c.l.s4 1966171168
  %v4006 = vunpack.c.0.s8 %v4005
  %v4007 = vlaneseq
  %v4008 = vshrl.u32 %v4007, 7
  %v4009 = vsub.s32 %v4006, %v4008
  %v4010 = vrot.slane %v4000, %v4009
  %v4012 = vunpack.c.l.s4 1966171168
  %v4013 = vunpack.c.0.s8 %v4012
  %v4014 = vlaneseq
  %v4015 = vshrl.u32 %v4014, 7
  %v4016 = vsub.s32 %v4013, %v4015
  %v4017 = vrot.slane %v4001, %v4016
  %v4019 = vunpack.c.l.s4 1966171168
  %v4020 = vunpack.c.0.s8 %v4019
  %v4021 = vlaneseq
  %v4022 = vshrl.u32 %v4021, 7
  %v4023 = vsub.s32 %v4020, %v4022
  %v4024 = vrot.slane %v4002, %v4023
  %v4026 = vunpack.c.l.s4 1966171168
  %v4027 = vunpack.c.0.s8 %v4026
  %v4028 = vlaneseq
  %v4029 = vshrl.u32 %v4028, 7
  %v4030 = vsub.s32 %v4027, %v4029
  %v4031 = vrot.slane %v4003, %v4030
  %v4032 = vcombine.low %v4010, %v4017
  %v4033 = vcombine.high %v4010, %v4017
  %v4034 = vcombine.low %v4024, %v4031
  %v4035 = vcombine.high %v4024, %v4031
  %v4037 = vunpack.c.l.s4 1966171168
  %v4038 = vunpack.c.0.s8 %v4037
  %v4039 = vlaneseq
  %v4040 = vshrl.u32 %v4039, 7
  %v4041 = vsub.s32 %v4038, %v4040
  %v4042 = vrot.slane %v4032, %v4041
  %v4044 = vunpack.c.l.s4 1966171168
  %v4045 = vunpack.c.0.s8 %v4044
  %v4046 = vlaneseq
  %v4047 = vshrl.u32 %v4046, 7
  %v4048 = vsub.s32 %v4045, %v4047
  %v4049 = vrot.slane %v4033, %v4048
  %v4051 = vunpack.c.l.s4 1966171168
  %v4052 = vunpack.c.0.s8 %v4051
  %v4053 = vlaneseq
  %v4054 = vshrl.u32 %v4053, 7
  %v4055 = vsub.s32 %v4052, %v4054
  %v4056 = vrot.slane %v4034, %v4055
  %v4058 = vunpack.c.l.s4 1966171168
  %v4059 = vunpack.c.0.s8 %v4058
  %v4060 = vlaneseq
  %v4061 = vshrl.u32 %v4060, 7
  %v4062 = vsub.s32 %v4059, %v4061
  %v4063 = vrot.slane %v4035, %v4062
  %v4064 = vcombine.low %v4042, %v4056
  %v4065 = vcombine.low %v4049, %v4063
  %v4066 = vcombine.low %v3997, %v3998
  %v4068 = vunpack.c.l.s4 1966171168
  %v4069 = vunpack.c.0.s8 %v4068
  %v4070 = vlaneseq
  %v4071 = vshrl.u32 %v4070, 7
  %v4072 = vsub.s32 %v4069, %v4071
  %v4073 = vrot.slane %v4066, %v4072
  %v4075 = vunpack.c.l.s4 1966171168
  %v4076 = vunpack.c.0.s8 %v4075
  %v4077 = vlaneseq
  %v4078 = vshrl.u32 %v4077, 7
  %v4079 = vsub.s32 %v4076, %v4078
  %v4080 = vrot.slane %v3999, %v4079
  %v4081 = vcombine.low %v4073, %v4080
  %v4082 = vcombine.high %v4073, %v4080
  %v4084 = vunpack.c.l.s4 1966171168
  %v4085 = vunpack.c.0.s8 %v4084
  %v4086 = vlaneseq
  %v4087 = vshrl.u32 %v4086, 7
  %v4088 = vsub.s32 %v4085, %v4087
  %v4089 = vrot.slane %v4081, %v4088
  %v4091 = vunpack.c.l.s4 1966171168
  %v4092 = vunpack.c.0.s8 %v4091
  %v4093 = vlaneseq
  %v4094 = vshrl.u32 %v4093, 7
  %v4095 = vsub.s32 %v4092, %v4094
  %v4096 = vrot.slane %v4082, %v4095
  %v4127 = vunpack.c.l.b16 %v3961
  %v4128 = vunpack.c.h.b16 %v3961
  %v4129 = vunpack.c.l.b16 %v3962
  %v4130 = vunpack.c.h.b16 %v3962
  %v4131 = vunpack.c.l.b16 %v3963
  %v4132 = vunpack.c.h.b16 %v3963
  %v4133 = vunpack.c.l.b16 %v3964
  %v4134 = vunpack.c.h.b16 %v3964
  %v4135 = vunpack.c.l.b16 %v3965
  %v4136 = vunpack.c.h.b16 %v3965
  %v4137 = vunpack.c.l.b16 %v3966
  %v4138 = vunpack.c.h.b16 %v3966
  %v4139 = vunpack.c.l.b16 %v3967
  %v4140 = vunpack.c.h.b16 %v3967
  %v4141 = vunpack.c.l.b16 %v3968
  %v4142 = vunpack.c.h.b16 %v3968
  %v4143 = vunpack.c.l.b16 %v3969
  %v4144 = vunpack.c.h.b16 %v3969
  %v4145 = vunpack.c.l.b16 %v3970
  %v4146 = vunpack.c.h.b16 %v3970
  %v4147 = vunpack.c.l.b16 %v3971
  %v4148 = vunpack.c.h.b16 %v3971
  %v4149 = vunpack.c.l.b16 %v3972
  %v4150 = vunpack.c.h.b16 %v3972
  %v4151 = vunpack.c.l.b16 %v3973
  %v4152 = vunpack.c.h.b16 %v3973
  %v4153 = vunpack.c.l.b16 %v3974
  %v4154 = vunpack.c.h.b16 %v3974
  %v4155 = vunpack.c.l.b16 %v3975
  %v4156 = vunpack.c.h.b16 %v3975
  %v4157 = vunpack.c.l.b16 %v3976
  %v4158 = vunpack.c.h.b16 %v3976
  %v4159 = vunpack.c.l.b16 %v3977
  %v4160 = vunpack.c.h.b16 %v3977
  %v4161 = vunpack.c.l.b16 %v3978
  %v4162 = vunpack.c.h.b16 %v3978
  %v4163 = vunpack.c.l.b16 %v3979
  %v4164 = vunpack.c.h.b16 %v3979
  %v4165 = vunpack.c.l.b16 %v3980
  %v4166 = vunpack.c.h.b16 %v3980
  %v4167 = vunpack.c.l.b16 %v3981
  %v4168 = vunpack.c.h.b16 %v3981
  %v4169 = vunpack.c.l.b16 %v3982
  %v4170 = vunpack.c.h.b16 %v3982
  %v4171 = vunpack.c.l.b16 %v3983
  %v4172 = vunpack.c.h.b16 %v3983
  %v4173 = vunpack.c.l.b16 %v3984
  %v4174 = vunpack.c.h.b16 %v3984
  %v4175 = vunpack.c.l.b16 %v3985
  %v4176 = vunpack.c.h.b16 %v3985
  %v4177 = vunpack.c.l.b16 %v3986
  %v4178 = vunpack.c.h.b16 %v3986
  %v4179 = vunpack.c.l.b16 %v3987
  %v4180 = vunpack.c.h.b16 %v3987
  %v4181 = vunpack.c.l.b16 %v3988
  %v4182 = vunpack.c.h.b16 %v3988
  %v4183 = vpack.c.b16 %v4129, %v4127
  %v4184 = vpack.c.b16 %v4130, %v4128
  %v4185 = vpack.c.b16 %v4133, %v4131
  %v4186 = vpack.c.b16 %v4134, %v4132
  %v4187 = vpack.c.b16 %v4137, %v4135
  %v4188 = vpack.c.b16 %v4138, %v4136
  %v4189 = vpack.c.b16 %v4141, %v4139
  %v4190 = vpack.c.b16 %v4142, %v4140
  %v4191 = vpack.c.b16 %v4145, %v4143
  %v4192 = vpack.c.b16 %v4146, %v4144
  %v4193 = vpack.c.b16 %v4149, %v4147
  %v4194 = vpack.c.b16 %v4150, %v4148
  %v4195 = vpack.c.b16 %v4153, %v4151
  %v4196 = vpack.c.b16 %v4154, %v4152
  %v4197 = vpack.c.b16 %v4157, %v4155
  %v4198 = vpack.c.b16 %v4158, %v4156
  %v4199 = vpack.c.b16 %v4161, %v4159
  %v4200 = vpack.c.b16 %v4162, %v4160
  %v4201 = vpack.c.b16 %v4165, %v4163
  %v4202 = vpack.c.b16 %v4166, %v4164
  %v4203 = vpack.c.b16 %v4169, %v4167
  %v4204 = vpack.c.b16 %v4170, %v4168
  %v4205 = vpack.c.b16 %v4173, %v4171
  %v4206 = vpack.c.b16 %v4174, %v4172
  %v4207 = vpack.c.b16 %v4177, %v4175
  %v4208 = vpack.c.b16 %v4178, %v4176
  %v4209 = vpack.c.b16 %v4181, %v4179
  %v4210 = vpack.c.b16 %v4182, %v4180
  %v4240 = vsel %vm3471, %v4065, 0
  %v4243 = vsel %vm3471, %v4096, 0
  %4245 = vmatprep.subr.bf16.mxu0 %v4198
  %4246 = vmatpush1.bf16.msra.mxu0 %v4197
  %4247 = vmatprep.subr.bf16.mxu0 %v4196
  %4248 = vmatpush1.bf16.msra.mxu0 %v4195
  %4249 = vmatprep.subr.bf16.mxu0 %v4194
  %4250 = vmatpush1.bf16.msra.mxu0 %v4193
  %4251 = vmatprep.subr.bf16.mxu0 %v4192
  %4252 = vmatpush1.bf16.msra.mxu0 %v4191
  %4253 = vmatprep.subr.bf16.mxu0 %v4190
  %4254 = vmatpush1.bf16.msra.mxu0 %v4189
  %4255 = vmatprep.subr.bf16.mxu0 %v4188
  %4256 = vmatpush1.bf16.msra.mxu0 %v4187
  %4257 = vmatprep.subr.bf16.mxu0 %v4186
  %4258 = vmatpush1.bf16.msra.mxu0 %v4185
  %4259 = vmatprep.subr.bf16.mxu0 %v4184
  %4260 = vmatpush1.bf16.msra.mxu0 %v4183
  %4261 = vmatprep.subr.bf16.mxu0 0
  %4262 = vmatpush2.bf16.msra.mxu0 0
  %4263 = vmatprep.subr.bf16.mxu0 0
  %4264 = vmatpush2.bf16.msra.mxu0 0
  %4265 = vmatprep.subr.bf16.mxu0 %v4210
  %4266 = vmatpush2.bf16.msra.mxu0 %v4209
  %4267 = vmatprep.subr.bf16.mxu0 %v4208
  %4268 = vmatpush2.bf16.msra.mxu0 %v4207
  %4269 = vmatprep.subr.bf16.mxu0 %v4206
  %4270 = vmatpush2.bf16.msra.mxu0 %v4205
  %4271 = vmatprep.subr.bf16.mxu0 %v4204
  %4272 = vmatpush2.bf16.msra.mxu0 %v4203
  %4273 = vmatprep.subr.bf16.mxu0 %v4202
  %4274 = vmatpush2.bf16.msra.mxu0 %v4201
  %4275 = vmatprep.subr.bf16.mxu0 %v4200
  %4276 = vmatpush2.bf16.msra.mxu0 %v4199
  %4277 = vmatprep.mubr.bf16.mxu0 %v4240
  %4278 = vmatmul.mubr.bf16.gmra.mxu0 %v4064
  %v4279 = vpop.f32.mrf.mxu0
  %v4280 = vadd.f32 0.0, %v4279
  %v4281 = vpop.f32.mrf.mxu0
  %v4282 = vadd.f32 0.0, %v4281
  %v4283 = vpop.f32.mrf.mxu0
  %v4284 = vadd.f32 0.0, %v4283
  %v4285 = vpop.f32.mrf.mxu0
  %v4286 = vadd.f32 0.0, %v4285
  %4287 = vmatprep.mubr.bf16.mxu0 %v4243
  %4288 = vmatmul.mubr.bf16.gmra.mxu0 %v4089
  %v4289 = vpop.f32.mrf.mxu0
  %v4290 = vadd.f32 0.0, %v4289
  %v4291 = vpop.f32.mrf.mxu0
  %v4292 = vadd.f32 0.0, %v4291
  %v4293 = vpop.f32.mrf.mxu0
  %v4294 = vpop.f32.mrf.mxu0
  %4295 = vdwg.mxu0
  %v4296 = vadd.f32 %v3820, %v4280
  %v4297 = vadd.f32 %v3822, %v4282
  %v4298 = vadd.f32 %v3824, %v4284
  %v4299 = vadd.f32 %v3826, %v4286
  %v4300 = vadd.f32 %v3830, %v4290
  %v4301 = vadd.f32 %v3832, %v4292
  %v4302 = vld [vmem:[#allocation3] sm:$0xee]
  %v4303 = vld [vmem:[#allocation3 + $0x8] sm:$0x77]
  %v4304 = vld [vmem:[#allocation3 + $0x10] sm:$0xee]
  %v4305 = vld [vmem:[#allocation3 + $0x18] sm:$0x77]
  %v4311 = vunpack.c.l.s4 1966171168
  %v4312 = vunpack.c.0.s8 %v4311
  %v4313 = vlaneseq
  %v4314 = vshrl.u32 %v4313, 7
  %v4315 = vsub.s32 %v4312, %v4314
  %v4316 = vrot.slane %v4302, %v4315
  %v4317 = vcombine.high %v4316, %v4316
  %v4319 = vunpack.c.l.s4 1966171168
  %v4320 = vunpack.c.0.s8 %v4319
  %v4321 = vlaneseq
  %v4322 = vshrl.u32 %v4321, 7
  %v4323 = vsub.s32 %v4320, %v4322
  %v4324 = vrot.slane %v4316, %v4323
  %v4326 = vunpack.c.l.s4 1966171168
  %v4327 = vunpack.c.0.s8 %v4326
  %v4328 = vlaneseq
  %v4329 = vshrl.u32 %v4328, 7
  %v4330 = vsub.s32 %v4327, %v4329
  %v4331 = vrot.slane %v4317, %v4330
  %v4332 = vcombine.high %v4324, %v4324
  %v4333 = vcombine.high %v4331, %v4331
  %v4335 = vunpack.c.l.s4 1966171168
  %v4336 = vunpack.c.0.s8 %v4335
  %v4337 = vlaneseq
  %v4338 = vshrl.u32 %v4337, 7
  %v4339 = vsub.s32 %v4336, %v4338
  %v4340 = vrot.slane %v4303, %v4339
  %v4341 = vcombine.high %v4340, %v4340
  %v4343 = vunpack.c.l.s4 1966171168
  %v4344 = vunpack.c.0.s8 %v4343
  %v4345 = vlaneseq
  %v4346 = vshrl.u32 %v4345, 7
  %v4347 = vsub.s32 %v4344, %v4346
  %v4348 = vrot.slane %v4340, %v4347
  %v4350 = vunpack.c.l.s4 1966171168
  %v4351 = vunpack.c.0.s8 %v4350
  %v4352 = vlaneseq
  %v4353 = vshrl.u32 %v4352, 7
  %v4354 = vsub.s32 %v4351, %v4353
  %v4355 = vrot.slane %v4341, %v4354
  %v4356 = vcombine.high %v4348, %v4348
  %v4358 = vunpack.c.l.s4 1966171168
  %v4359 = vunpack.c.0.s8 %v4358
  %v4360 = vlaneseq
  %v4361 = vshrl.u32 %v4360, 7
  %v4362 = vsub.s32 %v4359, %v4361
  %v4363 = vrot.slane %v4304, %v4362
  %v4364 = vcombine.high %v4363, %v4363
  %v4366 = vunpack.c.l.s4 1966171168
  %v4367 = vunpack.c.0.s8 %v4366
  %v4368 = vlaneseq
  %v4369 = vshrl.u32 %v4368, 7
  %v4370 = vsub.s32 %v4367, %v4369
  %v4371 = vrot.slane %v4363, %v4370
  %v4373 = vunpack.c.l.s4 1966171168
  %v4374 = vunpack.c.0.s8 %v4373
  %v4375 = vlaneseq
  %v4376 = vshrl.u32 %v4375, 7
  %v4377 = vsub.s32 %v4374, %v4376
  %v4378 = vrot.slane %v4364, %v4377
  %v4379 = vcombine.high %v4371, %v4371
  %v4380 = vcombine.high %v4378, %v4378
  %v4382 = vunpack.c.l.s4 1966171168
  %v4383 = vunpack.c.0.s8 %v4382
  %v4384 = vlaneseq
  %v4385 = vshrl.u32 %v4384, 7
  %v4386 = vsub.s32 %v4383, %v4385
  %v4387 = vrot.slane %v4305, %v4386
  %v4388 = vcombine.high %v4387, %v4387
  %v4390 = vunpack.c.l.s4 1966171168
  %v4391 = vunpack.c.0.s8 %v4390
  %v4392 = vlaneseq
  %v4393 = vshrl.u32 %v4392, 7
  %v4394 = vsub.s32 %v4391, %v4393
  %v4395 = vrot.slane %v4387, %v4394
  %v4397 = vunpack.c.l.s4 1966171168
  %v4398 = vunpack.c.0.s8 %v4397
  %v4399 = vlaneseq
  %v4400 = vshrl.u32 %v4399, 7
  %v4401 = vsub.s32 %v4398, %v4400
  %v4402 = vrot.slane %v4388, %v4401
  %v4403 = vcombine.high %v4395, %v4395
  %v4404 = vunpack.i.h.s16 %v4331
  %v4405 = vunpack.i.l.s16 %v4332
  %v4406 = vunpack.i.h.s16 %v4332
  %v4407 = vunpack.i.l.s16 %v4333
  %v4408 = vunpack.i.h.s16 %v4333
  %v4409 = vunpack.i.l.s16 %v4348
  %v4410 = vunpack.i.h.s16 %v4348
  %v4411 = vunpack.i.l.s16 %v4355
  %v4412 = vunpack.i.h.s16 %v4355
  %v4413 = vunpack.i.l.s16 %v4356
  %v4414 = vunpack.i.h.s16 %v4356
  %v4415 = vunpack.i.h.s16 %v4378
  %v4416 = vunpack.i.l.s16 %v4379
  %v4417 = vunpack.i.h.s16 %v4379
  %v4418 = vunpack.i.l.s16 %v4380
  %v4419 = vunpack.i.h.s16 %v4380
  %v4420 = vunpack.i.l.s16 %v4395
  %v4421 = vunpack.i.h.s16 %v4395
  %v4422 = vunpack.i.l.s16 %v4402
  %v4423 = vunpack.i.h.s16 %v4402
  %v4424 = vunpack.i.l.s16 %v4403
  %v4425 = vunpack.i.h.s16 %v4403
  %s4426 = scalar_lea.vmem %s5, 672
  %v4427 = vld [vmem:[%s4426] sm:$0xff]
  %v4428 = vld [vmem:[%s4426 + $0x8] sm:$0xff]
  %v4429 = vld [vmem:[%s4426 + $0x10] sm:$0xff]
  %v4430 = vld [vmem:[%s4426 + $0x18] sm:$0xff]
  %v4431 = vld [vmem:[%s4426 + $0x20] sm:$0xff]
  %v4432 = vld [vmem:[%s4426 + $0x28] sm:$0xff]
  %v4433 = vld [vmem:[%s4426 + $0x30] sm:$0xff]
  %v4434 = vld [vmem:[%s4426 + $0x38] sm:$0xff]
  %v4435 = vld [vmem:[%s4426 + $0x40] sm:$0xff]
  %v4436 = vld [vmem:[%s4426 + $0x48] sm:$0xff]
  %v4437 = vld [vmem:[%s4426 + $0x50] sm:$0xff]
  %v4438 = vld [vmem:[%s4426 + $0x58] sm:$0xff]
  %v4439 = vld [vmem:[%s4426 + $0x60] sm:$0xff]
  %v4440 = vld [vmem:[%s4426 + $0x68] sm:$0xff]
  %v4441 = vld [vmem:[%s4426 + $0x70] sm:$0xff]
  %v4442 = vld [vmem:[%s4426 + $0x78] sm:$0xff]
  %v4443 = vld [vmem:[%s4426 + $0x80] sm:$0xff]
  %v4444 = vld [vmem:[%s4426 + $0x88] sm:$0xff]
  %v4445 = vld [vmem:[%s4426 + $0x90] sm:$0xff]
  %v4446 = vld [vmem:[%s4426 + $0x98] sm:$0xff]
  %v4447 = vld [vmem:[%s4426 + $0xa0] sm:$0xff]
  %v4448 = vld [vmem:[%s4426 + $0xa8] sm:$0xff]
  %v4449 = vld [vmem:[%s4426 + $0xb0] sm:$0xff]
  %v4450 = vld [vmem:[%s4426 + $0xb8] sm:$0xff]
  %v4451 = vld [vmem:[%s4426 + $0xc0] sm:$0xff]
  %v4452 = vld [vmem:[%s4426 + $0xc8] sm:$0xff]
  %v4453 = vld [vmem:[%s4426 + $0xd0] sm:$0xff]
  %v4454 = vld [vmem:[%s4426 + $0xd8] sm:$0xff]
  %v4455 = vpack.i.b16 %v4405, %v4404
  %v4456 = vpack.i.b16 %v4407, %v4406
  %v4457 = vpack.i.b16 %v4409, %v4408
  %v4458 = vpack.i.b16 %v4411, %v4410
  %v4459 = vpack.i.b16 %v4413, %v4412
  %v4460 = vpack.i.b16 %v4415, %v4414
  %v4461 = vpack.i.b16 %v4417, %v4416
  %v4462 = vpack.i.b16 %v4419, %v4418
  %v4463 = vpack.i.b16 %v4421, %v4420
  %v4464 = vpack.i.b16 %v4423, %v4422
  %v4465 = vpack.i.b16 %v4425, %v4424
  %v4466 = vcombine.low %v4455, %v4456
  %v4467 = vcombine.low %v4457, %v4458
  %v4468 = vcombine.low %v4459, %v4460
  %v4469 = vcombine.low %v4461, %v4462
  %v4471 = vunpack.c.l.s4 1966171168
  %v4472 = vunpack.c.0.s8 %v4471
  %v4473 = vlaneseq
  %v4474 = vshrl.u32 %v4473, 7
  %v4475 = vsub.s32 %v4472, %v4474
  %v4476 = vrot.slane %v4466, %v4475
  %v4478 = vunpack.c.l.s4 1966171168
  %v4479 = vunpack.c.0.s8 %v4478
  %v4480 = vlaneseq
  %v4481 = vshrl.u32 %v4480, 7
  %v4482 = vsub.s32 %v4479, %v4481
  %v4483 = vrot.slane %v4467, %v4482
  %v4485 = vunpack.c.l.s4 1966171168
  %v4486 = vunpack.c.0.s8 %v4485
  %v4487 = vlaneseq
  %v4488 = vshrl.u32 %v4487, 7
  %v4489 = vsub.s32 %v4486, %v4488
  %v4490 = vrot.slane %v4468, %v4489
  %v4492 = vunpack.c.l.s4 1966171168
  %v4493 = vunpack.c.0.s8 %v4492
  %v4494 = vlaneseq
  %v4495 = vshrl.u32 %v4494, 7
  %v4496 = vsub.s32 %v4493, %v4495
  %v4497 = vrot.slane %v4469, %v4496
  %v4498 = vcombine.low %v4476, %v4483
  %v4499 = vcombine.high %v4476, %v4483
  %v4500 = vcombine.low %v4490, %v4497
  %v4501 = vcombine.high %v4490, %v4497
  %v4503 = vunpack.c.l.s4 1966171168
  %v4504 = vunpack.c.0.s8 %v4503
  %v4505 = vlaneseq
  %v4506 = vshrl.u32 %v4505, 7
  %v4507 = vsub.s32 %v4504, %v4506
  %v4508 = vrot.slane %v4498, %v4507
  %v4510 = vunpack.c.l.s4 1966171168
  %v4511 = vunpack.c.0.s8 %v4510
  %v4512 = vlaneseq
  %v4513 = vshrl.u32 %v4512, 7
  %v4514 = vsub.s32 %v4511, %v4513
  %v4515 = vrot.slane %v4499, %v4514
  %v4517 = vunpack.c.l.s4 1966171168
  %v4518 = vunpack.c.0.s8 %v4517
  %v4519 = vlaneseq
  %v4520 = vshrl.u32 %v4519, 7
  %v4521 = vsub.s32 %v4518, %v4520
  %v4522 = vrot.slane %v4500, %v4521
  %v4524 = vunpack.c.l.s4 1966171168
  %v4525 = vunpack.c.0.s8 %v4524
  %v4526 = vlaneseq
  %v4527 = vshrl.u32 %v4526, 7
  %v4528 = vsub.s32 %v4525, %v4527
  %v4529 = vrot.slane %v4501, %v4528
  %v4530 = vcombine.low %v4508, %v4522
  %v4531 = vcombine.low %v4515, %v4529
  %v4532 = vcombine.low %v4463, %v4464
  %v4534 = vunpack.c.l.s4 1966171168
  %v4535 = vunpack.c.0.s8 %v4534
  %v4536 = vlaneseq
  %v4537 = vshrl.u32 %v4536, 7
  %v4538 = vsub.s32 %v4535, %v4537
  %v4539 = vrot.slane %v4532, %v4538
  %v4541 = vunpack.c.l.s4 1966171168
  %v4542 = vunpack.c.0.s8 %v4541
  %v4543 = vlaneseq
  %v4544 = vshrl.u32 %v4543, 7
  %v4545 = vsub.s32 %v4542, %v4544
  %v4546 = vrot.slane %v4465, %v4545
  %v4547 = vcombine.low %v4539, %v4546
  %v4548 = vcombine.high %v4539, %v4546
  %v4550 = vunpack.c.l.s4 1966171168
  %v4551 = vunpack.c.0.s8 %v4550
  %v4552 = vlaneseq
  %v4553 = vshrl.u32 %v4552, 7
  %v4554 = vsub.s32 %v4551, %v4553
  %v4555 = vrot.slane %v4547, %v4554
  %v4557 = vunpack.c.l.s4 1966171168
  %v4558 = vunpack.c.0.s8 %v4557
  %v4559 = vlaneseq
  %v4560 = vshrl.u32 %v4559, 7
  %v4561 = vsub.s32 %v4558, %v4560
  %v4562 = vrot.slane %v4548, %v4561
  %v4593 = vunpack.c.l.b16 %v4427
  %v4594 = vunpack.c.h.b16 %v4427
  %v4595 = vunpack.c.l.b16 %v4428
  %v4596 = vunpack.c.h.b16 %v4428
  %v4597 = vunpack.c.l.b16 %v4429
  %v4598 = vunpack.c.h.b16 %v4429
  %v4599 = vunpack.c.l.b16 %v4430
  %v4600 = vunpack.c.h.b16 %v4430
  %v4601 = vunpack.c.l.b16 %v4431
  %v4602 = vunpack.c.h.b16 %v4431
  %v4603 = vunpack.c.l.b16 %v4432
  %v4604 = vunpack.c.h.b16 %v4432
  %v4605 = vunpack.c.l.b16 %v4433
  %v4606 = vunpack.c.h.b16 %v4433
  %v4607 = vunpack.c.l.b16 %v4434
  %v4608 = vunpack.c.h.b16 %v4434
  %v4609 = vunpack.c.l.b16 %v4435
  %v4610 = vunpack.c.h.b16 %v4435
  %v4611 = vunpack.c.l.b16 %v4436
  %v4612 = vunpack.c.h.b16 %v4436
  %v4613 = vunpack.c.l.b16 %v4437
  %v4614 = vunpack.c.h.b16 %v4437
  %v4615 = vunpack.c.l.b16 %v4438
  %v4616 = vunpack.c.h.b16 %v4438
  %v4617 = vunpack.c.l.b16 %v4439
  %v4618 = vunpack.c.h.b16 %v4439
  %v4619 = vunpack.c.l.b16 %v4440
  %v4620 = vunpack.c.h.b16 %v4440
  %v4621 = vunpack.c.l.b16 %v4441
  %v4622 = vunpack.c.h.b16 %v4441
  %v4623 = vunpack.c.l.b16 %v4442
  %v4624 = vunpack.c.h.b16 %v4442
  %v4625 = vunpack.c.l.b16 %v4443
  %v4626 = vunpack.c.h.b16 %v4443
  %v4627 = vunpack.c.l.b16 %v4444
  %v4628 = vunpack.c.h.b16 %v4444
  %v4629 = vunpack.c.l.b16 %v4445
  %v4630 = vunpack.c.h.b16 %v4445
  %v4631 = vunpack.c.l.b16 %v4446
  %v4632 = vunpack.c.h.b16 %v4446
  %v4633 = vunpack.c.l.b16 %v4447
  %v4634 = vunpack.c.h.b16 %v4447
  %v4635 = vunpack.c.l.b16 %v4448
  %v4636 = vunpack.c.h.b16 %v4448
  %v4637 = vunpack.c.l.b16 %v4449
  %v4638 = vunpack.c.h.b16 %v4449
  %v4639 = vunpack.c.l.b16 %v4450
  %v4640 = vunpack.c.h.b16 %v4450
  %v4641 = vunpack.c.l.b16 %v4451
  %v4642 = vunpack.c.h.b16 %v4451
  %v4643 = vunpack.c.l.b16 %v4452
  %v4644 = vunpack.c.h.b16 %v4452
  %v4645 = vunpack.c.l.b16 %v4453
  %v4646 = vunpack.c.h.b16 %v4453
  %v4647 = vunpack.c.l.b16 %v4454
  %v4648 = vunpack.c.h.b16 %v4454
  %v4649 = vpack.c.b16 %v4595, %v4593
  %v4650 = vpack.c.b16 %v4596, %v4594
  %v4651 = vpack.c.b16 %v4599, %v4597
  %v4652 = vpack.c.b16 %v4600, %v4598
  %v4653 = vpack.c.b16 %v4603, %v4601
  %v4654 = vpack.c.b16 %v4604, %v4602
  %v4655 = vpack.c.b16 %v4607, %v4605
  %v4656 = vpack.c.b16 %v4608, %v4606
  %v4657 = vpack.c.b16 %v4611, %v4609
  %v4658 = vpack.c.b16 %v4612, %v4610
  %v4659 = vpack.c.b16 %v4615, %v4613
  %v4660 = vpack.c.b16 %v4616, %v4614
  %v4661 = vpack.c.b16 %v4619, %v4617
  %v4662 = vpack.c.b16 %v4620, %v4618
  %v4663 = vpack.c.b16 %v4623, %v4621
  %v4664 = vpack.c.b16 %v4624, %v4622
  %v4665 = vpack.c.b16 %v4627, %v4625
  %v4666 = vpack.c.b16 %v4628, %v4626
  %v4667 = vpack.c.b16 %v4631, %v4629
  %v4668 = vpack.c.b16 %v4632, %v4630
  %v4669 = vpack.c.b16 %v4635, %v4633
  %v4670 = vpack.c.b16 %v4636, %v4634
  %v4671 = vpack.c.b16 %v4639, %v4637
  %v4672 = vpack.c.b16 %v4640, %v4638
  %v4673 = vpack.c.b16 %v4643, %v4641
  %v4674 = vpack.c.b16 %v4644, %v4642
  %v4675 = vpack.c.b16 %v4647, %v4645
  %v4676 = vpack.c.b16 %v4648, %v4646
  %v4706 = vsel %vm3471, %v4531, 0
  %v4709 = vsel %vm3471, %v4562, 0
  %4711 = vmatprep.subr.bf16.mxu0 %v4664
  %4712 = vmatpush1.bf16.msra.mxu0 %v4663
  %4713 = vmatprep.subr.bf16.mxu0 %v4662
  %4714 = vmatpush1.bf16.msra.mxu0 %v4661
  %4715 = vmatprep.subr.bf16.mxu0 %v4660
  %4716 = vmatpush1.bf16.msra.mxu0 %v4659
  %4717 = vmatprep.subr.bf16.mxu0 %v4658
  %4718 = vmatpush1.bf16.msra.mxu0 %v4657
  %4719 = vmatprep.subr.bf16.mxu0 %v4656
  %4720 = vmatpush1.bf16.msra.mxu0 %v4655
  %4721 = vmatprep.subr.bf16.mxu0 %v4654
  %4722 = vmatpush1.bf16.msra.mxu0 %v4653
  %4723 = vmatprep.subr.bf16.mxu0 %v4652
  %4724 = vmatpush1.bf16.msra.mxu0 %v4651
  %4725 = vmatprep.subr.bf16.mxu0 %v4650
  %4726 = vmatpush1.bf16.msra.mxu0 %v4649
  %4727 = vmatprep.subr.bf16.mxu0 0
  %4728 = vmatpush2.bf16.msra.mxu0 0
  %4729 = vmatprep.subr.bf16.mxu0 0
  %4730 = vmatpush2.bf16.msra.mxu0 0
  %4731 = vmatprep.subr.bf16.mxu0 %v4676
  %4732 = vmatpush2.bf16.msra.mxu0 %v4675
  %4733 = vmatprep.subr.bf16.mxu0 %v4674
  %4734 = vmatpush2.bf16.msra.mxu0 %v4673
  %4735 = vmatprep.subr.bf16.mxu0 %v4672
  %4736 = vmatpush2.bf16.msra.mxu0 %v4671
  %4737 = vmatprep.subr.bf16.mxu0 %v4670
  %4738 = vmatpush2.bf16.msra.mxu0 %v4669
  %4739 = vmatprep.subr.bf16.mxu0 %v4668
  %4740 = vmatpush2.bf16.msra.mxu0 %v4667
  %4741 = vmatprep.subr.bf16.mxu0 %v4666
  %4742 = vmatpush2.bf16.msra.mxu0 %v4665
  %4743 = vmatprep.mubr.bf16.mxu0 %v4706
  %4744 = vmatmul.mubr.bf16.gmra.mxu0 %v4530
  %v4745 = vpop.f32.mrf.mxu0
  %v4746 = vadd.f32 0.0, %v4745
  %v4747 = vpop.f32.mrf.mxu0
  %v4748 = vadd.f32 0.0, %v4747
  %v4749 = vpop.f32.mrf.mxu0
  %v4750 = vadd.f32 0.0, %v4749
  %v4751 = vpop.f32.mrf.mxu0
  %v4752 = vadd.f32 0.0, %v4751
  %4753 = vmatprep.mubr.bf16.mxu0 %v4709
  %4754 = vmatmul.mubr.bf16.gmra.mxu0 %v4555
  %v4755 = vpop.f32.mrf.mxu0
  %v4756 = vadd.f32 0.0, %v4755
  %v4757 = vpop.f32.mrf.mxu0
  %v4758 = vadd.f32 0.0, %v4757
  %v4759 = vpop.f32.mrf.mxu0
  %v4760 = vpop.f32.mrf.mxu0
  %4761 = vdwg.mxu0
  %v4762 = vadd.f32 %v4296, %v4746
  %v4763 = vadd.f32 %v4297, %v4748
  %v4764 = vadd.f32 %v4298, %v4750
  %v4765 = vadd.f32 %v4299, %v4752
  %v4766 = vadd.f32 %v4300, %v4756
  %v4767 = vadd.f32 %v4301, %v4758
  %v4768 = vld [vmem:[#allocation3] sm:$0xcc]
  %v4769 = vld [vmem:[#allocation3 + $0x8] sm:$0xff]
  %v4770 = vld [vmem:[#allocation3 + $0x10] sm:$0xcc]
  %v4771 = vld [vmem:[#allocation3 + $0x18] sm:$0xff]
  %v4777 = vunpack.c.l.s4 1966171168
  %v4778 = vunpack.c.0.s8 %v4777
  %v4779 = vlaneseq
  %v4780 = vshrl.u32 %v4779, 7
  %v4781 = vsub.s32 %v4778, %v4780
  %v4782 = vrot.slane %v4768, %v4781
  %v4783 = vcombine.high %v4782, %v4782
  %v4785 = vunpack.c.l.s4 1966171168
  %v4786 = vunpack.c.0.s8 %v4785
  %v4787 = vlaneseq
  %v4788 = vshrl.u32 %v4787, 7
  %v4789 = vsub.s32 %v4786, %v4788
  %v4790 = vrot.slane %v4782, %v4789
  %v4792 = vunpack.c.l.s4 1966171168
  %v4793 = vunpack.c.0.s8 %v4792
  %v4794 = vlaneseq
  %v4795 = vshrl.u32 %v4794, 7
  %v4796 = vsub.s32 %v4793, %v4795
  %v4797 = vrot.slane %v4783, %v4796
  %v4798 = vcombine.high %v4790, %v4790
  %v4799 = vcombine.high %v4797, %v4797
  %v4801 = vunpack.c.l.s4 1966171168
  %v4802 = vunpack.c.0.s8 %v4801
  %v4803 = vlaneseq
  %v4804 = vshrl.u32 %v4803, 7
  %v4805 = vsub.s32 %v4802, %v4804
  %v4806 = vrot.slane %v4769, %v4805
  %v4807 = vcombine.high %v4806, %v4806
  %v4809 = vunpack.c.l.s4 1966171168
  %v4810 = vunpack.c.0.s8 %v4809
  %v4811 = vlaneseq
  %v4812 = vshrl.u32 %v4811, 7
  %v4813 = vsub.s32 %v4810, %v4812
  %v4814 = vrot.slane %v4806, %v4813
  %v4816 = vunpack.c.l.s4 1966171168
  %v4817 = vunpack.c.0.s8 %v4816
  %v4818 = vlaneseq
  %v4819 = vshrl.u32 %v4818, 7
  %v4820 = vsub.s32 %v4817, %v4819
  %v4821 = vrot.slane %v4807, %v4820
  %v4822 = vcombine.high %v4814, %v4814
  %v4823 = vcombine.high %v4821, %v4821
  %v4825 = vunpack.c.l.s4 1966171168
  %v4826 = vunpack.c.0.s8 %v4825
  %v4827 = vlaneseq
  %v4828 = vshrl.u32 %v4827, 7
  %v4829 = vsub.s32 %v4826, %v4828
  %v4830 = vrot.slane %v4770, %v4829
  %v4831 = vcombine.high %v4830, %v4830
  %v4833 = vunpack.c.l.s4 1966171168
  %v4834 = vunpack.c.0.s8 %v4833
  %v4835 = vlaneseq
  %v4836 = vshrl.u32 %v4835, 7
  %v4837 = vsub.s32 %v4834, %v4836
  %v4838 = vrot.slane %v4830, %v4837
  %v4840 = vunpack.c.l.s4 1966171168
  %v4841 = vunpack.c.0.s8 %v4840
  %v4842 = vlaneseq
  %v4843 = vshrl.u32 %v4842, 7
  %v4844 = vsub.s32 %v4841, %v4843
  %v4845 = vrot.slane %v4831, %v4844
  %v4846 = vcombine.high %v4838, %v4838
  %v4847 = vcombine.high %v4845, %v4845
  %v4849 = vunpack.c.l.s4 1966171168
  %v4850 = vunpack.c.0.s8 %v4849
  %v4851 = vlaneseq
  %v4852 = vshrl.u32 %v4851, 7
  %v4853 = vsub.s32 %v4850, %v4852
  %v4854 = vrot.slane %v4771, %v4853
  %v4855 = vcombine.high %v4854, %v4854
  %v4857 = vunpack.c.l.s4 1966171168
  %v4858 = vunpack.c.0.s8 %v4857
  %v4859 = vlaneseq
  %v4860 = vshrl.u32 %v4859, 7
  %v4861 = vsub.s32 %v4858, %v4860
  %v4862 = vrot.slane %v4854, %v4861
  %v4864 = vunpack.c.l.s4 1966171168
  %v4865 = vunpack.c.0.s8 %v4864
  %v4866 = vlaneseq
  %v4867 = vshrl.u32 %v4866, 7
  %v4868 = vsub.s32 %v4865, %v4867
  %v4869 = vrot.slane %v4855, %v4868
  %v4870 = vcombine.high %v4862, %v4862
  %v4871 = vcombine.high %v4869, %v4869
  %v4872 = vunpack.i.l.s16 %v4798
  %v4873 = vunpack.i.h.s16 %v4798
  %v4874 = vunpack.i.l.s16 %v4799
  %v4875 = vunpack.i.h.s16 %v4799
  %v4876 = vunpack.i.l.s16 %v4814
  %v4877 = vunpack.i.h.s16 %v4814
  %v4878 = vunpack.i.l.s16 %v4821
  %v4879 = vunpack.i.h.s16 %v4821
  %v4880 = vunpack.i.l.s16 %v4822
  %v4881 = vunpack.i.h.s16 %v4822
  %v4882 = vunpack.i.l.s16 %v4823
  %v4883 = vunpack.i.l.s16 %v4846
  %v4884 = vunpack.i.h.s16 %v4846
  %v4885 = vunpack.i.l.s16 %v4847
  %v4886 = vunpack.i.h.s16 %v4847
  %v4887 = vunpack.i.l.s16 %v4862
  %v4888 = vunpack.i.h.s16 %v4862
  %v4889 = vunpack.i.l.s16 %v4869
  %v4890 = vunpack.i.h.s16 %v4869
  %v4891 = vunpack.i.l.s16 %v4870
  %v4892 = vunpack.i.h.s16 %v4870
  %v4893 = vunpack.i.l.s16 %v4871
  %s4894 = scalar_lea.vmem %s5, 896
  %v4895 = vld [vmem:[%s4894] sm:$0xff]
  %v4896 = vld [vmem:[%s4894 + $0x8] sm:$0xff]
  %v4897 = vld [vmem:[%s4894 + $0x10] sm:$0xff]
  %v4898 = vld [vmem:[%s4894 + $0x18] sm:$0xff]
  %v4899 = vld [vmem:[%s4894 + $0x20] sm:$0xff]
  %v4900 = vld [vmem:[%s4894 + $0x28] sm:$0xff]
  %v4901 = vld [vmem:[%s4894 + $0x30] sm:$0xff]
  %v4902 = vld [vmem:[%s4894 + $0x38] sm:$0xff]
  %v4903 = vld [vmem:[%s4894 + $0x40] sm:$0xff]
  %v4904 = vld [vmem:[%s4894 + $0x48] sm:$0xff]
  %v4905 = vld [vmem:[%s4894 + $0x50] sm:$0xff]
  %v4906 = vld [vmem:[%s4894 + $0x58] sm:$0xff]
  %v4907 = vld [vmem:[%s4894 + $0x60] sm:$0xff]
  %v4908 = vld [vmem:[%s4894 + $0x68] sm:$0xff]
  %v4909 = vld [vmem:[%s4894 + $0x70] sm:$0xff]
  %v4910 = vld [vmem:[%s4894 + $0x78] sm:$0xff]
  %v4911 = vld [vmem:[%s4894 + $0x80] sm:$0xff]
  %v4912 = vld [vmem:[%s4894 + $0x88] sm:$0xff]
  %v4913 = vld [vmem:[%s4894 + $0x90] sm:$0xff]
  %v4914 = vld [vmem:[%s4894 + $0x98] sm:$0xff]
  %v4915 = vld [vmem:[%s4894 + $0xa0] sm:$0xff]
  %v4916 = vld [vmem:[%s4894 + $0xa8] sm:$0xff]
  %v4917 = vld [vmem:[%s4894 + $0xb0] sm:$0xff]
  %v4918 = vld [vmem:[%s4894 + $0xb8] sm:$0xff]
  %v4919 = vld [vmem:[%s4894 + $0xc0] sm:$0xff]
  %v4920 = vld [vmem:[%s4894 + $0xc8] sm:$0xff]
  %v4921 = vld [vmem:[%s4894 + $0xd0] sm:$0xff]
  %v4922 = vld [vmem:[%s4894 + $0xd8] sm:$0xff]
  %v4923 = vpack.i.b16 %v4873, %v4872
  %v4924 = vpack.i.b16 %v4875, %v4874
  %v4925 = vpack.i.b16 %v4877, %v4876
  %v4926 = vpack.i.b16 %v4879, %v4878
  %v4927 = vpack.i.b16 %v4881, %v4880
  %v4928 = vpack.i.b16 %v4883, %v4882
  %v4929 = vpack.i.b16 %v4885, %v4884
  %v4930 = vpack.i.b16 %v4887, %v4886
  %v4931 = vpack.i.b16 %v4889, %v4888
  %v4932 = vpack.i.b16 %v4891, %v4890
  %v4933 = vpack.i.b16 %v4893, %v4892
  %v4934 = vcombine.low %v4923, %v4924
  %v4935 = vcombine.low %v4925, %v4926
  %v4936 = vcombine.low %v4927, %v4928
  %v4937 = vcombine.low %v4929, %v4930
  %v4939 = vunpack.c.l.s4 1966171168
  %v4940 = vunpack.c.0.s8 %v4939
  %v4941 = vlaneseq
  %v4942 = vshrl.u32 %v4941, 7
  %v4943 = vsub.s32 %v4940, %v4942
  %v4944 = vrot.slane %v4934, %v4943
  %v4946 = vunpack.c.l.s4 1966171168
  %v4947 = vunpack.c.0.s8 %v4946
  %v4948 = vlaneseq
  %v4949 = vshrl.u32 %v4948, 7
  %v4950 = vsub.s32 %v4947, %v4949
  %v4951 = vrot.slane %v4935, %v4950
  %v4953 = vunpack.c.l.s4 1966171168
  %v4954 = vunpack.c.0.s8 %v4953
  %v4955 = vlaneseq
  %v4956 = vshrl.u32 %v4955, 7
  %v4957 = vsub.s32 %v4954, %v4956
  %v4958 = vrot.slane %v4936, %v4957
  %v4960 = vunpack.c.l.s4 1966171168
  %v4961 = vunpack.c.0.s8 %v4960
  %v4962 = vlaneseq
  %v4963 = vshrl.u32 %v4962, 7
  %v4964 = vsub.s32 %v4961, %v4963
  %v4965 = vrot.slane %v4937, %v4964
  %v4966 = vcombine.low %v4944, %v4951
  %v4967 = vcombine.high %v4944, %v4951
  %v4968 = vcombine.low %v4958, %v4965
  %v4969 = vcombine.high %v4958, %v4965
  %v4971 = vunpack.c.l.s4 1966171168
  %v4972 = vunpack.c.0.s8 %v4971
  %v4973 = vlaneseq
  %v4974 = vshrl.u32 %v4973, 7
  %v4975 = vsub.s32 %v4972, %v4974
  %v4976 = vrot.slane %v4966, %v4975
  %v4978 = vunpack.c.l.s4 1966171168
  %v4979 = vunpack.c.0.s8 %v4978
  %v4980 = vlaneseq
  %v4981 = vshrl.u32 %v4980, 7
  %v4982 = vsub.s32 %v4979, %v4981
  %v4983 = vrot.slane %v4967, %v4982
  %v4985 = vunpack.c.l.s4 1966171168
  %v4986 = vunpack.c.0.s8 %v4985
  %v4987 = vlaneseq
  %v4988 = vshrl.u32 %v4987, 7
  %v4989 = vsub.s32 %v4986, %v4988
  %v4990 = vrot.slane %v4968, %v4989
  %v4992 = vunpack.c.l.s4 1966171168
  %v4993 = vunpack.c.0.s8 %v4992
  %v4994 = vlaneseq
  %v4995 = vshrl.u32 %v4994, 7
  %v4996 = vsub.s32 %v4993, %v4995
  %v4997 = vrot.slane %v4969, %v4996
  %v4998 = vcombine.low %v4976, %v4990
  %v4999 = vcombine.low %v4983, %v4997
  %v5000 = vcombine.low %v4931, %v4932
  %v5002 = vunpack.c.l.s4 1966171168
  %v5003 = vunpack.c.0.s8 %v5002
  %v5004 = vlaneseq
  %v5005 = vshrl.u32 %v5004, 7
  %v5006 = vsub.s32 %v5003, %v5005
  %v5007 = vrot.slane %v5000, %v5006
  %v5009 = vunpack.c.l.s4 1966171168
  %v5010 = vunpack.c.0.s8 %v5009
  %v5011 = vlaneseq
  %v5012 = vshrl.u32 %v5011, 7
  %v5013 = vsub.s32 %v5010, %v5012
  %v5014 = vrot.slane %v4933, %v5013
  %v5015 = vcombine.low %v5007, %v5014
  %v5016 = vcombine.high %v5007, %v5014
  %v5018 = vunpack.c.l.s4 1966171168
  %v5019 = vunpack.c.0.s8 %v5018
  %v5020 = vlaneseq
  %v5021 = vshrl.u32 %v5020, 7
  %v5022 = vsub.s32 %v5019, %v5021
  %v5023 = vrot.slane %v5015, %v5022
  %v5025 = vunpack.c.l.s4 1966171168
  %v5026 = vunpack.c.0.s8 %v5025
  %v5027 = vlaneseq
  %v5028 = vshrl.u32 %v5027, 7
  %v5029 = vsub.s32 %v5026, %v5028
  %v5030 = vrot.slane %v5016, %v5029
  %v5061 = vunpack.c.l.b16 %v4895
  %v5062 = vunpack.c.h.b16 %v4895
  %v5063 = vunpack.c.l.b16 %v4896
  %v5064 = vunpack.c.h.b16 %v4896
  %v5065 = vunpack.c.l.b16 %v4897
  %v5066 = vunpack.c.h.b16 %v4897
  %v5067 = vunpack.c.l.b16 %v4898
  %v5068 = vunpack.c.h.b16 %v4898
  %v5069 = vunpack.c.l.b16 %v4899
  %v5070 = vunpack.c.h.b16 %v4899
  %v5071 = vunpack.c.l.b16 %v4900
  %v5072 = vunpack.c.h.b16 %v4900
  %v5073 = vunpack.c.l.b16 %v4901
  %v5074 = vunpack.c.h.b16 %v4901
  %v5075 = vunpack.c.l.b16 %v4902
  %v5076 = vunpack.c.h.b16 %v4902
  %v5077 = vunpack.c.l.b16 %v4903
  %v5078 = vunpack.c.h.b16 %v4903
  %v5079 = vunpack.c.l.b16 %v4904
  %v5080 = vunpack.c.h.b16 %v4904
  %v5081 = vunpack.c.l.b16 %v4905
  %v5082 = vunpack.c.h.b16 %v4905
  %v5083 = vunpack.c.l.b16 %v4906
  %v5084 = vunpack.c.h.b16 %v4906
  %v5085 = vunpack.c.l.b16 %v4907
  %v5086 = vunpack.c.h.b16 %v4907
  %v5087 = vunpack.c.l.b16 %v4908
  %v5088 = vunpack.c.h.b16 %v4908
  %v5089 = vunpack.c.l.b16 %v4909
  %v5090 = vunpack.c.h.b16 %v4909
  %v5091 = vunpack.c.l.b16 %v4910
  %v5092 = vunpack.c.h.b16 %v4910
  %v5093 = vunpack.c.l.b16 %v4911
  %v5094 = vunpack.c.h.b16 %v4911
  %v5095 = vunpack.c.l.b16 %v4912
  %v5096 = vunpack.c.h.b16 %v4912
  %v5097 = vunpack.c.l.b16 %v4913
  %v5098 = vunpack.c.h.b16 %v4913
  %v5099 = vunpack.c.l.b16 %v4914
  %v5100 = vunpack.c.h.b16 %v4914
  %v5101 = vunpack.c.l.b16 %v4915
  %v5102 = vunpack.c.h.b16 %v4915
  %v5103 = vunpack.c.l.b16 %v4916
  %v5104 = vunpack.c.h.b16 %v4916
  %v5105 = vunpack.c.l.b16 %v4917
  %v5106 = vunpack.c.h.b16 %v4917
  %v5107 = vunpack.c.l.b16 %v4918
  %v5108 = vunpack.c.h.b16 %v4918
  %v5109 = vunpack.c.l.b16 %v4919
  %v5110 = vunpack.c.h.b16 %v4919
  %v5111 = vunpack.c.l.b16 %v4920
  %v5112 = vunpack.c.h.b16 %v4920
  %v5113 = vunpack.c.l.b16 %v4921
  %v5114 = vunpack.c.h.b16 %v4921
  %v5115 = vunpack.c.l.b16 %v4922
  %v5116 = vunpack.c.h.b16 %v4922
  %v5117 = vpack.c.b16 %v5063, %v5061
  %v5118 = vpack.c.b16 %v5064, %v5062
  %v5119 = vpack.c.b16 %v5067, %v5065
  %v5120 = vpack.c.b16 %v5068, %v5066
  %v5121 = vpack.c.b16 %v5071, %v5069
  %v5122 = vpack.c.b16 %v5072, %v5070
  %v5123 = vpack.c.b16 %v5075, %v5073
  %v5124 = vpack.c.b16 %v5076, %v5074
  %v5125 = vpack.c.b16 %v5079, %v5077
  %v5126 = vpack.c.b16 %v5080, %v5078
  %v5127 = vpack.c.b16 %v5083, %v5081
  %v5128 = vpack.c.b16 %v5084, %v5082
  %v5129 = vpack.c.b16 %v5087, %v5085
  %v5130 = vpack.c.b16 %v5088, %v5086
  %v5131 = vpack.c.b16 %v5091, %v5089
  %v5132 = vpack.c.b16 %v5092, %v5090
  %v5133 = vpack.c.b16 %v5095, %v5093
  %v5134 = vpack.c.b16 %v5096, %v5094
  %v5135 = vpack.c.b16 %v5099, %v5097
  %v5136 = vpack.c.b16 %v5100, %v5098
  %v5137 = vpack.c.b16 %v5103, %v5101
  %v5138 = vpack.c.b16 %v5104, %v5102
  %v5139 = vpack.c.b16 %v5107, %v5105
  %v5140 = vpack.c.b16 %v5108, %v5106
  %v5141 = vpack.c.b16 %v5111, %v5109
  %v5142 = vpack.c.b16 %v5112, %v5110
  %v5143 = vpack.c.b16 %v5115, %v5113
  %v5144 = vpack.c.b16 %v5116, %v5114
  %v5174 = vsel %vm3471, %v4999, 0
  %v5177 = vsel %vm3471, %v5030, 0
  %5179 = vmatprep.subr.bf16.mxu0 %v5132
  %5180 = vmatpush1.bf16.msra.mxu0 %v5131
  %5181 = vmatprep.subr.bf16.mxu0 %v5130
  %5182 = vmatpush1.bf16.msra.mxu0 %v5129
  %5183 = vmatprep.subr.bf16.mxu0 %v5128
  %5184 = vmatpush1.bf16.msra.mxu0 %v5127
  %5185 = vmatprep.subr.bf16.mxu0 %v5126
  %5186 = vmatpush1.bf16.msra.mxu0 %v5125
  %5187 = vmatprep.subr.bf16.mxu0 %v5124
  %5188 = vmatpush1.bf16.msra.mxu0 %v5123
  %5189 = vmatprep.subr.bf16.mxu0 %v5122
  %5190 = vmatpush1.bf16.msra.mxu0 %v5121
  %5191 = vmatprep.subr.bf16.mxu0 %v5120
  %5192 = vmatpush1.bf16.msra.mxu0 %v5119
  %5193 = vmatprep.subr.bf16.mxu0 %v5118
  %5194 = vmatpush1.bf16.msra.mxu0 %v5117
  %5195 = vmatprep.subr.bf16.mxu0 0
  %5196 = vmatpush2.bf16.msra.mxu0 0
  %5197 = vmatprep.subr.bf16.mxu0 0
  %5198 = vmatpush2.bf16.msra.mxu0 0
  %5199 = vmatprep.subr.bf16.mxu0 %v5144
  %5200 = vmatpush2.bf16.msra.mxu0 %v5143
  %5201 = vmatprep.subr.bf16.mxu0 %v5142
  %5202 = vmatpush2.bf16.msra.mxu0 %v5141
  %5203 = vmatprep.subr.bf16.mxu0 %v5140
  %5204 = vmatpush2.bf16.msra.mxu0 %v5139
  %5205 = vmatprep.subr.bf16.mxu0 %v5138
  %5206 = vmatpush2.bf16.msra.mxu0 %v5137
  %5207 = vmatprep.subr.bf16.mxu0 %v5136
  %5208 = vmatpush2.bf16.msra.mxu0 %v5135
  %5209 = vmatprep.subr.bf16.mxu0 %v5134
  %5210 = vmatpush2.bf16.msra.mxu0 %v5133
  %5211 = vmatprep.mubr.bf16.mxu0 %v5174
  %5212 = vmatmul.mubr.bf16.gmra.mxu0 %v4998
  %v5213 = vpop.f32.mrf.mxu0
  %v5214 = vadd.f32 0.0, %v5213
  %v5215 = vpop.f32.mrf.mxu0
  %v5216 = vadd.f32 0.0, %v5215
  %v5217 = vpop.f32.mrf.mxu0
  %v5218 = vadd.f32 0.0, %v5217
  %v5219 = vpop.f32.mrf.mxu0
  %v5220 = vadd.f32 0.0, %v5219
  %5221 = vmatprep.mubr.bf16.mxu0 %v5177
  %5222 = vmatmul.mubr.bf16.gmra.mxu0 %v5023
  %v5223 = vpop.f32.mrf.mxu0
  %v5224 = vadd.f32 0.0, %v5223
  %v5225 = vpop.f32.mrf.mxu0
  %v5226 = vadd.f32 0.0, %v5225
  %v5227 = vpop.f32.mrf.mxu0
  %v5228 = vpop.f32.mrf.mxu0
  %5229 = vdwg.mxu0
  %v5230 = vadd.f32 %v4762, %v5214
  %v5231 = vadd.f32 %v4763, %v5216
  %v5232 = vadd.f32 %v4764, %v5218
  %v5233 = vadd.f32 %v4765, %v5220
  %v5234 = vadd.f32 %v4766, %v5224
  %v5235 = vadd.f32 %v4767, %v5226
  %v5236 = vld [vmem:[%s6] sm:$0x3]
  %v5238 = vlaneseq
  %v5239 = vshrl.u32 %v5238, 7
  %v5240 = vsub.s32 0, %v5239
  %v5241 = vrot.slane %v5236, %v5240
  %v5242 = vlaneseq
  %v5243 = vshrl.u32 %v5242, 7
  %v5244 = vsub.s32 1, %v5243
  %v5245 = vrot.slane %v5236, %v5244
  %v5248 = vadd.f32 %v5230, %v5241
  %v5249 = vadd.f32 %v5231, %v5245
  %v5250 = vadd.f32 %v5232, %v5241
  %v5251 = vadd.f32 %v5233, %v5245
  %v5252 = vadd.f32 %v5234, %v5241
  %v5253 = vadd.f32 %v5235, %v5245
  %v5254 = vmax.f32 %v5248, 0.0
  %v5255 = vmax.f32 %v5249, 0.0
  %v5256 = vmax.f32 %v5250, 0.0
  %v5257 = vmax.f32 %v5251, 0.0
  %v5258 = vmax.f32 %v5252, 0.0
  %v5259 = vmax.f32 %v5253, 0.0
  %v5260 = vpack.c.bf16 %v5256, %v5254
  %v5261 = vpack.c.bf16 %v5257, %v5255
  %v5262 = vpack.c.bf16 %v5258, %v5258
  %v5263 = vpack.c.bf16 %v5259, %v5259
  %v5268 = vcombine.low %v5260, %v5261
  %v5269 = vcombine.high %v5260, %v5261
  %v5271 = vunpack.c.l.s4 1966171168
  %v5272 = vunpack.c.0.s8 %v5271
  %v5273 = vlaneseq
  %v5274 = vshrl.u32 %v5273, 7
  %v5275 = vsub.s32 %v5272, %v5274
  %v5276 = vrot.slane %v5268, %v5275
  %v5278 = vunpack.c.l.s4 1966171168
  %v5279 = vunpack.c.0.s8 %v5278
  %v5280 = vlaneseq
  %v5281 = vshrl.u32 %v5280, 7
  %v5282 = vsub.s32 %v5279, %v5281
  %v5283 = vrot.slane %v5269, %v5282
  %v5284 = vcombine.high %v5276, %v5276
  %v5285 = vcombine.high %v5283, %v5283
  %v5287 = vunpack.c.l.s4 1966171168
  %v5288 = vunpack.c.0.s8 %v5287
  %v5289 = vlaneseq
  %v5290 = vshrl.u32 %v5289, 7
  %v5291 = vsub.s32 %v5288, %v5290
  %v5292 = vrot.slane %v5276, %v5291
  %v5294 = vunpack.c.l.s4 1966171168
  %v5295 = vunpack.c.0.s8 %v5294
  %v5296 = vlaneseq
  %v5297 = vshrl.u32 %v5296, 7
  %v5298 = vsub.s32 %v5295, %v5297
  %v5299 = vrot.slane %v5283, %v5298
  %v5301 = vunpack.c.l.s4 1966171168
  %v5302 = vunpack.c.0.s8 %v5301
  %v5303 = vlaneseq
  %v5304 = vshrl.u32 %v5303, 7
  %v5305 = vsub.s32 %v5302, %v5304
  %v5306 = vrot.slane %v5284, %v5305
  %v5308 = vunpack.c.l.s4 1966171168
  %v5309 = vunpack.c.0.s8 %v5308
  %v5310 = vlaneseq
  %v5311 = vshrl.u32 %v5310, 7
  %v5312 = vsub.s32 %v5309, %v5311
  %v5313 = vrot.slane %v5285, %v5312
  %v5314 = vcombine.high %v5292, %v5292
  %v5315 = vcombine.high %v5299, %v5299
  %v5316 = vcombine.high %v5306, %v5306
  %v5317 = vcombine.high %v5313, %v5313
  %v5318 = vcombine.low %v5262, %v5263
  %v5320 = vunpack.c.l.s4 1966171168
  %v5321 = vunpack.c.0.s8 %v5320
  %v5322 = vlaneseq
  %v5323 = vshrl.u32 %v5322, 7
  %v5324 = vsub.s32 %v5321, %v5323
  %v5325 = vrot.slane %v5318, %v5324
  %v5326 = vcombine.high %v5325, %v5325
  %v5328 = vunpack.c.l.s4 1966171168
  %v5329 = vunpack.c.0.s8 %v5328
  %v5330 = vlaneseq
  %v5331 = vshrl.u32 %v5330, 7
  %v5332 = vsub.s32 %v5329, %v5331
  %v5333 = vrot.slane %v5325, %v5332
  %v5335 = vunpack.c.l.s4 1966171168
  %v5336 = vunpack.c.0.s8 %v5335
  %v5337 = vlaneseq
  %v5338 = vshrl.u32 %v5337, 7
  %v5339 = vsub.s32 %v5336, %v5338
  %v5340 = vrot.slane %v5326, %v5339
  %v5341 = vcombine.high %v5333, %v5333
  %v5342 = vunpack.i.l.s16 %v5292
  %v5343 = vunpack.i.h.s16 %v5292
  %v5344 = vunpack.i.l.s16 %v5306
  %v5345 = vunpack.i.h.s16 %v5306
  %v5346 = vunpack.i.l.s16 %v5314
  %v5347 = vunpack.i.h.s16 %v5314
  %v5348 = vunpack.i.l.s16 %v5316
  %v5349 = vunpack.i.h.s16 %v5316
  %v5350 = vunpack.i.l.s16 %v5299
  %v5351 = vunpack.i.h.s16 %v5299
  %v5352 = vunpack.i.l.s16 %v5313
  %v5353 = vunpack.i.h.s16 %v5313
  %v5354 = vunpack.i.l.s16 %v5315
  %v5355 = vunpack.i.h.s16 %v5315
  %v5356 = vunpack.i.l.s16 %v5317
  %v5357 = vunpack.i.h.s16 %v5317
  %v5358 = vunpack.i.l.s16 %v5333
  %v5359 = vunpack.i.h.s16 %v5333
  %v5360 = vunpack.i.l.s16 %v5340
  %v5361 = vunpack.i.h.s16 %v5340
  %v5362 = vunpack.i.l.s16 %v5341
  %v5363 = vunpack.i.h.s16 %v5341
  %v5364 = vpack.i.b16 %v5342, %v5342
  %v5365 = vpack.i.b16 %v5344, %v5343
  %v5366 = vpack.i.b16 %v5346, %v5345
  %v5367 = vpack.i.b16 %v5348, %v5347
  %v5368 = vpack.i.b16 %v5350, %v5349
  %v5369 = vpack.i.b16 %v5352, %v5351
  %v5370 = vpack.i.b16 %v5353, %v5353
  %v5371 = vpack.i.b16 %v5355, %v5354
  %v5372 = vpack.i.b16 %v5357, %v5356
  %v5373 = vpack.i.b16 %v5359, %v5358
  %v5374 = vpack.i.b16 %v5361, %v5360
  %v5375 = vpack.i.b16 %v5363, %v5362
  %v5376 = vcombine.low %v5365, %v5365
  %v5377 = vcombine.low %v5364, %v5366
  %v5379 = vunpack.c.l.s4 1935823168
  %v5380 = vunpack.c.0.s8 %v5379
  %v5381 = vlaneseq
  %v5382 = vshrl.u32 %v5381, 7
  %v5383 = vsub.s32 %v5380, %v5382
  %v5384 = vrot.slane %v5376, %v5383
  %v5386 = vunpack.c.l.s4 1935823168
  %v5387 = vunpack.c.0.s8 %v5386
  %v5388 = vlaneseq
  %v5389 = vshrl.u32 %v5388, 7
  %v5390 = vsub.s32 %v5387, %v5389
  %v5391 = vrot.slane %v5377, %v5390
  %v5392 = vcombine.low %v5384, %v5391
  %v5394 = vunpack.c.l.s4 1935823168
  %v5395 = vunpack.c.0.s8 %v5394
  %v5396 = vlaneseq
  %v5397 = vshrl.u32 %v5396, 7
  %v5398 = vsub.s32 %v5395, %v5397
  %v5399 = vrot.slane %v5392, %v5398
  %v5400 = vcombine.low %v5367, %v5369
  %v5402 = vunpack.c.l.s4 1935823168
  %v5403 = vunpack.c.0.s8 %v5402
  %v5404 = vlaneseq
  %v5405 = vshrl.u32 %v5404, 7
  %v5406 = vsub.s32 %v5403, %v5405
  %v5407 = vrot.slane %v5400, %v5406
  %v5409 = vunpack.c.l.s4 1935823168
  %v5410 = vunpack.c.0.s8 %v5409
  %v5411 = vlaneseq
  %v5412 = vshrl.u32 %v5411, 7
  %v5413 = vsub.s32 %v5410, %v5412
  %v5414 = vrot.slane %v5368, %v5413
  %v5415 = vcombine.low %v5407, %v5414
  %v5417 = vunpack.c.l.s4 1935823168
  %v5418 = vunpack.c.0.s8 %v5417
  %v5419 = vlaneseq
  %v5420 = vshrl.u32 %v5419, 7
  %v5421 = vsub.s32 %v5418, %v5420
  %v5422 = vrot.slane %v5415, %v5421
  %v5423 = vcombine.low %v5371, %v5371
  %v5424 = vcombine.low %v5370, %v5372
  %v5426 = vunpack.c.l.s4 1935823168
  %v5427 = vunpack.c.0.s8 %v5426
  %v5428 = vlaneseq
  %v5429 = vshrl.u32 %v5428, 7
  %v5430 = vsub.s32 %v5427, %v5429
  %v5431 = vrot.slane %v5423, %v5430
  %v5433 = vunpack.c.l.s4 1935823168
  %v5434 = vunpack.c.0.s8 %v5433
  %v5435 = vlaneseq
  %v5436 = vshrl.u32 %v5435, 7
  %v5437 = vsub.s32 %v5434, %v5436
  %v5438 = vrot.slane %v5424, %v5437
  %v5439 = vcombine.low %v5431, %v5438
  %v5441 = vunpack.c.l.s4 1935823168
  %v5442 = vunpack.c.0.s8 %v5441
  %v5443 = vlaneseq
  %v5444 = vshrl.u32 %v5443, 7
  %v5445 = vsub.s32 %v5442, %v5444
  %v5446 = vrot.slane %v5439, %v5445
  %v5447 = vcombine.low %v5373, %v5375
  %v5449 = vunpack.c.l.s4 1935823168
  %v5450 = vunpack.c.0.s8 %v5449
  %v5451 = vlaneseq
  %v5452 = vshrl.u32 %v5451, 7
  %v5453 = vsub.s32 %v5450, %v5452
  %v5454 = vrot.slane %v5447, %v5453
  %v5456 = vunpack.c.l.s4 1935823168
  %v5457 = vunpack.c.0.s8 %v5456
  %v5458 = vlaneseq
  %v5459 = vshrl.u32 %v5458, 7
  %v5460 = vsub.s32 %v5457, %v5459
  %v5461 = vrot.slane %v5374, %v5460
  %v5462 = vcombine.low %v5454, %v5461
  %v5464 = vunpack.c.l.s4 1935823168
  %v5465 = vunpack.c.0.s8 %v5464
  %v5466 = vlaneseq
  %v5467 = vshrl.u32 %v5466, 7
  %v5468 = vsub.s32 %v5465, %v5467
  %v5469 = vrot.slane %v5462, %v5468
  %vm5474 = vsmask.f32 7942
  %vm5475 = vmand %vm53, %vm5474
  %vm5476 = vcmask 392197
  %vm5477 = vsmask.f32 7958
  %vm5478 = vmand %vm5476, %vm5477
  %vm5479 = vmor %vm5478, %vm5475
  %v5480 = vld [vmem:[#allocation4] sm:$0xee]
  %v5481 = vsel %vm5479, %v5399, %v5480
  %5482 = vst [vmem:[#allocation4] sm:$0xee] %v5481
  %vm5483 = vcmask 1042432
  %vm5484 = vcmask 391172
  %vm5485 = vmor %vm5484, %vm5483
  %5486 = vst.msk [vmem:[#allocation4 + $0x8] sm:$0x77] %vm5485, %v5422
  %v5487 = vld [vmem:[#allocation4 + $0x18] sm:$0xee]
  %v5488 = vsel %vm5479, %v5446, %v5487
  %5489 = vst [vmem:[#allocation4 + $0x18] sm:$0xee] %v5488
  %5490 = vst.msk [vmem:[#allocation4 + $0x20] sm:$0x77] %vm5485, %v5469
  %v5491 = vld [vmem:[#allocation4] sm:$0xff]
  %v5492 = vld [vmem:[#allocation4 + $0x8] sm:$0x77]
  %v5493 = vld [vmem:[#allocation4 + $0x18] sm:$0xff]
  %v5494 = vld [vmem:[#allocation4 + $0x20] sm:$0x77]
  %v5500 = vunpack.c.l.s4 1966171168
  %v5501 = vunpack.c.0.s8 %v5500
  %v5502 = vlaneseq
  %v5503 = vshrl.u32 %v5502, 7
  %v5504 = vsub.s32 %v5501, %v5503
  %v5505 = vrot.slane %v5491, %v5504
  %v5506 = vcombine.high %v5505, %v5505
  %v5508 = vunpack.c.l.s4 1966171168
  %v5509 = vunpack.c.0.s8 %v5508
  %v5510 = vlaneseq
  %v5511 = vshrl.u32 %v5510, 7
  %v5512 = vsub.s32 %v5509, %v5511
  %v5513 = vrot.slane %v5505, %v5512
  %v5515 = vunpack.c.l.s4 1966171168
  %v5516 = vunpack.c.0.s8 %v5515
  %v5517 = vlaneseq
  %v5518 = vshrl.u32 %v5517, 7
  %v5519 = vsub.s32 %v5516, %v5518
  %v5520 = vrot.slane %v5506, %v5519
  %v5521 = vcombine.high %v5513, %v5513
  %v5522 = vcombine.high %v5520, %v5520
  %v5524 = vunpack.c.l.s4 1966171168
  %v5525 = vunpack.c.0.s8 %v5524
  %v5526 = vlaneseq
  %v5527 = vshrl.u32 %v5526, 7
  %v5528 = vsub.s32 %v5525, %v5527
  %v5529 = vrot.slane %v5492, %v5528
  %v5530 = vcombine.high %v5529, %v5529
  %v5532 = vunpack.c.l.s4 1966171168
  %v5533 = vunpack.c.0.s8 %v5532
  %v5534 = vlaneseq
  %v5535 = vshrl.u32 %v5534, 7
  %v5536 = vsub.s32 %v5533, %v5535
  %v5537 = vrot.slane %v5529, %v5536
  %v5539 = vunpack.c.l.s4 1966171168
  %v5540 = vunpack.c.0.s8 %v5539
  %v5541 = vlaneseq
  %v5542 = vshrl.u32 %v5541, 7
  %v5543 = vsub.s32 %v5540, %v5542
  %v5544 = vrot.slane %v5530, %v5543
  %v5545 = vcombine.high %v5537, %v5537
  %v5547 = vunpack.c.l.s4 1966171168
  %v5548 = vunpack.c.0.s8 %v5547
  %v5549 = vlaneseq
  %v5550 = vshrl.u32 %v5549, 7
  %v5551 = vsub.s32 %v5548, %v5550
  %v5552 = vrot.slane %v5493, %v5551
  %v5553 = vcombine.high %v5552, %v5552
  %v5555 = vunpack.c.l.s4 1966171168
  %v5556 = vunpack.c.0.s8 %v5555
  %v5557 = vlaneseq
  %v5558 = vshrl.u32 %v5557, 7
  %v5559 = vsub.s32 %v5556, %v5558
  %v5560 = vrot.slane %v5552, %v5559
  %v5562 = vunpack.c.l.s4 1966171168
  %v5563 = vunpack.c.0.s8 %v5562
  %v5564 = vlaneseq
  %v5565 = vshrl.u32 %v5564, 7
  %v5566 = vsub.s32 %v5563, %v5565
  %v5567 = vrot.slane %v5553, %v5566
  %v5568 = vcombine.high %v5560, %v5560
  %v5569 = vcombine.high %v5567, %v5567
  %v5571 = vunpack.c.l.s4 1966171168
  %v5572 = vunpack.c.0.s8 %v5571
  %v5573 = vlaneseq
  %v5574 = vshrl.u32 %v5573, 7
  %v5575 = vsub.s32 %v5572, %v5574
  %v5576 = vrot.slane %v5494, %v5575
  %v5577 = vcombine.high %v5576, %v5576
  %v5579 = vunpack.c.l.s4 1966171168
  %v5580 = vunpack.c.0.s8 %v5579
  %v5581 = vlaneseq
  %v5582 = vshrl.u32 %v5581, 7
  %v5583 = vsub.s32 %v5580, %v5582
  %v5584 = vrot.slane %v5576, %v5583
  %v5586 = vunpack.c.l.s4 1966171168
  %v5587 = vunpack.c.0.s8 %v5586
  %v5588 = vlaneseq
  %v5589 = vshrl.u32 %v5588, 7
  %v5590 = vsub.s32 %v5587, %v5589
  %v5591 = vrot.slane %v5577, %v5590
  %v5592 = vcombine.high %v5584, %v5584
  %v5593 = vld [vmem:[%s7] sm:$0xf]
  %v5594 = vld [vmem:[%s7 + $0x4] sm:$0xf]
  %v5595 = vld [vmem:[%s7 + $0x8] sm:$0xf]
  %v5596 = vld [vmem:[%s7 + $0xc] sm:$0xf]
  %v5597 = vld [vmem:[%s7 + $0x10] sm:$0xf]
  %v5598 = vld [vmem:[%s7 + $0x14] sm:$0xf]
  %v5599 = vld [vmem:[%s7 + $0x18] sm:$0xf]
  %v5600 = vld [vmem:[%s7 + $0x1c] sm:$0xf]
  %v5601 = vld [vmem:[%s7 + $0x20] sm:$0xf]
  %v5602 = vld [vmem:[%s7 + $0x24] sm:$0xf]
  %v5603 = vld [vmem:[%s7 + $0x28] sm:$0xf]
  %v5604 = vld [vmem:[%s7 + $0x2c] sm:$0xf]
  %v5605 = vld [vmem:[%s7 + $0x30] sm:$0xf]
  %v5606 = vld [vmem:[%s7 + $0x34] sm:$0xf]
  %v5607 = vld [vmem:[%s7 + $0x38] sm:$0xf]
  %v5608 = vld [vmem:[%s7 + $0x3c] sm:$0xf]
  %v5609 = vld [vmem:[%s7 + $0x40] sm:$0xf]
  %v5610 = vld [vmem:[%s7 + $0x44] sm:$0xf]
  %v5611 = vld [vmem:[%s7 + $0x48] sm:$0xf]
  %v5612 = vld [vmem:[%s7 + $0x4c] sm:$0xf]
  %v5613 = vld [vmem:[%s7 + $0x50] sm:$0xf]
  %v5614 = vld [vmem:[%s7 + $0x54] sm:$0xf]
  %v5615 = vld [vmem:[#allocation4 + $0x8] sm:$0xff]
  %v5616 = vld [vmem:[#allocation4 + $0x20] sm:$0xff]
  %v5620 = vunpack.c.l.s4 1966171168
  %v5621 = vunpack.c.0.s8 %v5620
  %v5622 = vlaneseq
  %v5623 = vshrl.u32 %v5622, 7
  %v5624 = vsub.s32 %v5621, %v5623
  %v5625 = vrot.slane %v5615, %v5624
  %v5626 = vcombine.high %v5625, %v5625
  %v5628 = vunpack.c.l.s4 1966171168
  %v5629 = vunpack.c.0.s8 %v5628
  %v5630 = vlaneseq
  %v5631 = vshrl.u32 %v5630, 7
  %v5632 = vsub.s32 %v5629, %v5631
  %v5633 = vrot.slane %v5625, %v5632
  %v5635 = vunpack.c.l.s4 1966171168
  %v5636 = vunpack.c.0.s8 %v5635
  %v5637 = vlaneseq
  %v5638 = vshrl.u32 %v5637, 7
  %v5639 = vsub.s32 %v5636, %v5638
  %v5640 = vrot.slane %v5626, %v5639
  %v5641 = vcombine.high %v5633, %v5633
  %v5642 = vcombine.high %v5640, %v5640
  %v5644 = vunpack.c.l.s4 1966171168
  %v5645 = vunpack.c.0.s8 %v5644
  %v5646 = vlaneseq
  %v5647 = vshrl.u32 %v5646, 7
  %v5648 = vsub.s32 %v5645, %v5647
  %v5649 = vrot.slane %v5616, %v5648
  %v5650 = vcombine.high %v5649, %v5649
  %v5652 = vunpack.c.l.s4 1966171168
  %v5653 = vunpack.c.0.s8 %v5652
  %v5654 = vlaneseq
  %v5655 = vshrl.u32 %v5654, 7
  %v5656 = vsub.s32 %v5653, %v5655
  %v5657 = vrot.slane %v5649, %v5656
  %v5659 = vunpack.c.l.s4 1966171168
  %v5660 = vunpack.c.0.s8 %v5659
  %v5661 = vlaneseq
  %v5662 = vshrl.u32 %v5661, 7
  %v5663 = vsub.s32 %v5660, %v5662
  %v5664 = vrot.slane %v5650, %v5663
  %v5665 = vcombine.high %v5657, %v5657
  %v5666 = vcombine.high %v5664, %v5664
  %vm5667 = vsmask.f32 1284
  %vm5668 = vmor %vm80, %vm5667
  %vm5669 = vsmask.f32 2312
  %vm5670 = vmor %vm5668, %vm5669
  %vm5671 = vsmask.f32 3340
  %vm5672 = vmor %vm5670, %vm5671
  %vm5673 = vsmask.f32 4368
  %vm5674 = vmor %vm5672, %vm5673
  %vm5675 = vsmask.f32 5396
  %vm5676 = vmor %vm5674, %vm5675
  %vm5677 = vsmask.f32 6424
  %vm5678 = vmor %vm5676, %vm5677
  %vm5679 = vsmask.f32 7452
  %vm5680 = vmor %vm5678, %vm5679
  %v5682 = vshrl.u32 %v5513, 16
  %v5684 = vrot.slane %v5682, 7
  %v5685 = vrot.slane %v5684, 1
  %v5687 = vshll.u32 %v5520, 16
  %v5689 = vsel %vm5680, %v5685, %v5687
  %v5690 = vshrl.u32 %v5520, 16
  %v5692 = vrot.slane %v5690, 7
  %v5693 = vrot.slane %v5692, 1
  %v5695 = vshll.u32 %v5521, 16
  %v5697 = vsel %vm5680, %v5693, %v5695
  %v5698 = vshrl.u32 %v5521, 16
  %v5700 = vrot.slane %v5698, 7
  %v5701 = vrot.slane %v5700, 1
  %v5703 = vshll.u32 %v5522, 16
  %v5705 = vsel %vm5680, %v5701, %v5703
  %v5706 = vshrl.u32 %v5522, 16
  %v5708 = vrot.slane %v5706, 7
  %v5709 = vrot.slane %v5708, 1
  %v5711 = vshll.u32 %v5633, 16
  %v5713 = vsel %vm5680, %v5709, %v5711
  %v5714 = vshrl.u32 %v5633, 16
  %v5716 = vrot.slane %v5714, 7
  %v5717 = vrot.slane %v5716, 1
  %v5719 = vshll.u32 %v5640, 16
  %v5721 = vsel %vm5680, %v5717, %v5719
  %v5722 = vshrl.u32 %v5640, 16
  %v5724 = vrot.slane %v5722, 7
  %v5725 = vrot.slane %v5724, 1
  %v5727 = vshll.u32 %v5641, 16
  %v5729 = vsel %vm5680, %v5725, %v5727
  %v5730 = vshrl.u32 %v5641, 16
  %v5732 = vrot.slane %v5730, 7
  %v5733 = vrot.slane %v5732, 1
  %v5735 = vshll.u32 %v5642, 16
  %v5737 = vsel %vm5680, %v5733, %v5735
  %v5739 = vshrl.u32 %v5560, 16
  %v5741 = vrot.slane %v5739, 7
  %v5742 = vrot.slane %v5741, 1
  %v5744 = vshll.u32 %v5567, 16
  %v5746 = vsel %vm5680, %v5742, %v5744
  %v5747 = vshrl.u32 %v5567, 16
  %v5749 = vrot.slane %v5747, 7
  %v5750 = vrot.slane %v5749, 1
  %v5752 = vshll.u32 %v5568, 16
  %v5754 = vsel %vm5680, %v5750, %v5752
  %v5755 = vshrl.u32 %v5568, 16
  %v5757 = vrot.slane %v5755, 7
  %v5758 = vrot.slane %v5757, 1
  %v5760 = vshll.u32 %v5569, 16
  %v5762 = vsel %vm5680, %v5758, %v5760
  %v5763 = vshrl.u32 %v5569, 16
  %v5765 = vrot.slane %v5763, 7
  %v5766 = vrot.slane %v5765, 1
  %v5768 = vshll.u32 %v5657, 16
  %v5770 = vsel %vm5680, %v5766, %v5768
  %v5771 = vshrl.u32 %v5657, 16
  %v5773 = vrot.slane %v5771, 7
  %v5774 = vrot.slane %v5773, 1
  %v5776 = vshll.u32 %v5664, 16
  %v5778 = vsel %vm5680, %v5774, %v5776
  %v5779 = vshrl.u32 %v5664, 16
  %v5781 = vrot.slane %v5779, 7
  %v5782 = vrot.slane %v5781, 1
  %v5784 = vshll.u32 %v5665, 16
  %v5786 = vsel %vm5680, %v5782, %v5784
  %v5787 = vshrl.u32 %v5665, 16
  %v5789 = vrot.slane %v5787, 7
  %v5790 = vrot.slane %v5789, 1
  %v5792 = vshll.u32 %v5666, 16
  %v5794 = vsel %vm5680, %v5790, %v5792
  %s5795 = scalar_lea.vmem %s7, 88
  %v5796 = vld [vmem:[%s5795] sm:$0xf]
  %v5797 = vld [vmem:[%s5795 + $0x4] sm:$0xf]
  %v5798 = vld [vmem:[%s5795 + $0x8] sm:$0xf]
  %v5799 = vld [vmem:[%s5795 + $0xc] sm:$0xf]
  %v5800 = vld [vmem:[%s5795 + $0x10] sm:$0xf]
  %v5801 = vld [vmem:[%s5795 + $0x14] sm:$0xf]
  %v5802 = vld [vmem:[%s5795 + $0x18] sm:$0xf]
  %v5803 = vld [vmem:[%s5795 + $0x1c] sm:$0xf]
  %v5804 = vld [vmem:[%s5795 + $0x20] sm:$0xf]
  %v5805 = vld [vmem:[%s5795 + $0x24] sm:$0xf]
  %v5806 = vld [vmem:[%s5795 + $0x28] sm:$0xf]
  %v5807 = vld [vmem:[%s5795 + $0x2c] sm:$0xf]
  %v5808 = vld [vmem:[%s5795 + $0x30] sm:$0xf]
  %v5809 = vld [vmem:[%s5795 + $0x34] sm:$0xf]
  %v5810 = vld [vmem:[%s5795 + $0x38] sm:$0xf]
  %v5811 = vld [vmem:[%s5795 + $0x3c] sm:$0xf]
  %v5812 = vld [vmem:[%s5795 + $0x40] sm:$0xf]
  %v5813 = vld [vmem:[%s5795 + $0x44] sm:$0xf]
  %v5814 = vld [vmem:[%s5795 + $0x48] sm:$0xf]
  %v5815 = vld [vmem:[%s5795 + $0x4c] sm:$0xf]
  %v5816 = vld [vmem:[%s5795 + $0x50] sm:$0xf]
  %v5817 = vld [vmem:[%s5795 + $0x54] sm:$0xf]
  %v5818 = vcombine.low %v5689, %v5697
  %v5819 = vcombine.low %v5705, %v5713
  %v5820 = vcombine.low %v5721, %v5729
  %v5821 = vcombine.low %v5737, %v5746
  %v5823 = vunpack.c.l.s4 1966171168
  %v5824 = vunpack.c.0.s8 %v5823
  %v5825 = vlaneseq
  %v5826 = vshrl.u32 %v5825, 7
  %v5827 = vsub.s32 %v5824, %v5826
  %v5828 = vrot.slane %v5818, %v5827
  %v5830 = vunpack.c.l.s4 1966171168
  %v5831 = vunpack.c.0.s8 %v5830
  %v5832 = vlaneseq
  %v5833 = vshrl.u32 %v5832, 7
  %v5834 = vsub.s32 %v5831, %v5833
  %v5835 = vrot.slane %v5819, %v5834
  %v5837 = vunpack.c.l.s4 1966171168
  %v5838 = vunpack.c.0.s8 %v5837
  %v5839 = vlaneseq
  %v5840 = vshrl.u32 %v5839, 7
  %v5841 = vsub.s32 %v5838, %v5840
  %v5842 = vrot.slane %v5820, %v5841
  %v5844 = vunpack.c.l.s4 1966171168
  %v5845 = vunpack.c.0.s8 %v5844
  %v5846 = vlaneseq
  %v5847 = vshrl.u32 %v5846, 7
  %v5848 = vsub.s32 %v5845, %v5847
  %v5849 = vrot.slane %v5821, %v5848
  %v5850 = vcombine.low %v5828, %v5835
  %v5851 = vcombine.high %v5828, %v5835
  %v5852 = vcombine.low %v5842, %v5849
  %v5853 = vcombine.high %v5842, %v5849
  %v5855 = vunpack.c.l.s4 1966171168
  %v5856 = vunpack.c.0.s8 %v5855
  %v5857 = vlaneseq
  %v5858 = vshrl.u32 %v5857, 7
  %v5859 = vsub.s32 %v5856, %v5858
  %v5860 = vrot.slane %v5850, %v5859
  %v5862 = vunpack.c.l.s4 1966171168
  %v5863 = vunpack.c.0.s8 %v5862
  %v5864 = vlaneseq
  %v5865 = vshrl.u32 %v5864, 7
  %v5866 = vsub.s32 %v5863, %v5865
  %v5867 = vrot.slane %v5851, %v5866
  %v5869 = vunpack.c.l.s4 1966171168
  %v5870 = vunpack.c.0.s8 %v5869
  %v5871 = vlaneseq
  %v5872 = vshrl.u32 %v5871, 7
  %v5873 = vsub.s32 %v5870, %v5872
  %v5874 = vrot.slane %v5852, %v5873
  %v5876 = vunpack.c.l.s4 1966171168
  %v5877 = vunpack.c.0.s8 %v5876
  %v5878 = vlaneseq
  %v5879 = vshrl.u32 %v5878, 7
  %v5880 = vsub.s32 %v5877, %v5879
  %v5881 = vrot.slane %v5853, %v5880
  %v5882 = vcombine.low %v5860, %v5874
  %v5883 = vcombine.low %v5867, %v5881
  %v5884 = vcombine.low %v5754, %v5762
  %v5885 = vcombine.low %v5770, %v5778
  %v5886 = vcombine.low %v5786, %v5794
  %v5888 = vunpack.c.l.s4 1966171168
  %v5889 = vunpack.c.0.s8 %v5888
  %v5890 = vlaneseq
  %v5891 = vshrl.u32 %v5890, 7
  %v5892 = vsub.s32 %v5889, %v5891
  %v5893 = vrot.slane %v5884, %v5892
  %v5895 = vunpack.c.l.s4 1966171168
  %v5896 = vunpack.c.0.s8 %v5895
  %v5897 = vlaneseq
  %v5898 = vshrl.u32 %v5897, 7
  %v5899 = vsub.s32 %v5896, %v5898
  %v5900 = vrot.slane %v5885, %v5899
  %v5902 = vunpack.c.l.s4 1966171168
  %v5903 = vunpack.c.0.s8 %v5902
  %v5904 = vlaneseq
  %v5905 = vshrl.u32 %v5904, 7
  %v5906 = vsub.s32 %v5903, %v5905
  %v5907 = vrot.slane %v5886, %v5906
  %v5908 = vcombine.low %v5893, %v5900
  %v5909 = vcombine.high %v5893, %v5900
  %v5910 = vcombine.high %v5907, %v5907
  %v5912 = vunpack.c.l.s4 1966171168
  %v5913 = vunpack.c.0.s8 %v5912
  %v5914 = vlaneseq
  %v5915 = vshrl.u32 %v5914, 7
  %v5916 = vsub.s32 %v5913, %v5915
  %v5917 = vrot.slane %v5908, %v5916
  %v5919 = vunpack.c.l.s4 1966171168
  %v5920 = vunpack.c.0.s8 %v5919
  %v5921 = vlaneseq
  %v5922 = vshrl.u32 %v5921, 7
  %v5923 = vsub.s32 %v5920, %v5922
  %v5924 = vrot.slane %v5909, %v5923
  %v5926 = vunpack.c.l.s4 1966171168
  %v5927 = vunpack.c.0.s8 %v5926
  %v5928 = vlaneseq
  %v5929 = vshrl.u32 %v5928, 7
  %v5930 = vsub.s32 %v5927, %v5929
  %v5931 = vrot.slane %v5907, %v5930
  %v5933 = vunpack.c.l.s4 1966171168
  %v5934 = vunpack.c.0.s8 %v5933
  %v5935 = vlaneseq
  %v5936 = vshrl.u32 %v5935, 7
  %v5937 = vsub.s32 %v5934, %v5936
  %v5938 = vrot.slane %v5910, %v5937
  %v5939 = vcombine.low %v5917, %v5931
  %v5940 = vcombine.low %v5924, %v5938
  %v5965 = vunpack.c.l.b16 %v5796
  %v5966 = vunpack.c.l.b16 %v5797
  %v5967 = vunpack.c.l.b16 %v5798
  %v5968 = vunpack.c.l.b16 %v5799
  %v5969 = vunpack.c.l.b16 %v5800
  %v5970 = vunpack.c.l.b16 %v5801
  %v5971 = vunpack.c.l.b16 %v5802
  %v5972 = vunpack.c.l.b16 %v5803
  %v5973 = vunpack.c.l.b16 %v5804
  %v5974 = vunpack.c.l.b16 %v5805
  %v5975 = vunpack.c.l.b16 %v5806
  %v5976 = vunpack.c.l.b16 %v5807
  %v5977 = vunpack.c.l.b16 %v5808
  %v5978 = vunpack.c.l.b16 %v5809
  %v5979 = vunpack.c.l.b16 %v5810
  %v5980 = vunpack.c.l.b16 %v5811
  %v5981 = vunpack.c.l.b16 %v5812
  %v5982 = vunpack.c.l.b16 %v5813
  %v5983 = vunpack.c.l.b16 %v5814
  %v5984 = vunpack.c.l.b16 %v5815
  %v5985 = vunpack.c.l.b16 %v5816
  %v5986 = vunpack.c.l.b16 %v5817
  %v5987 = vpack.c.b16 %v5966, %v5965
  %v5988 = vpack.c.b16 %v5968, %v5967
  %v5989 = vpack.c.b16 %v5970, %v5969
  %v5990 = vpack.c.b16 %v5972, %v5971
  %v5991 = vpack.c.b16 %v5974, %v5973
  %v5992 = vpack.c.b16 %v5976, %v5975
  %v5993 = vpack.c.b16 %v5978, %v5977
  %v5994 = vpack.c.b16 %v5980, %v5979
  %v5995 = vpack.c.b16 %v5982, %v5981
  %v5996 = vpack.c.b16 %v5984, %v5983
  %v5997 = vpack.c.b16 %v5986, %v5985
  %vm6009 = vcmask 392192
  %v6011 = vsel %vm6009, %v5883, 0
  %v6014 = vsel %vm6009, %v5940, 0
  %6016 = vmatprep.subr.bf16.mxu0 0
  %6017 = vmatpush1.bf16.msra.mxu0 %v5994
  %6018 = vmatprep.subr.bf16.mxu0 0
  %6019 = vmatpush1.bf16.msra.mxu0 %v5993
  %6020 = vmatprep.subr.bf16.mxu0 0
  %6021 = vmatpush1.bf16.msra.mxu0 %v5992
  %6022 = vmatprep.subr.bf16.mxu0 0
  %6023 = vmatpush1.bf16.msra.mxu0 %v5991
  %6024 = vmatprep.subr.bf16.mxu0 0
  %6025 = vmatpush1.bf16.msra.mxu0 %v5990
  %6026 = vmatprep.subr.bf16.mxu0 0
  %6027 = vmatpush1.bf16.msra.mxu0 %v5989
  %6028 = vmatprep.subr.bf16.mxu0 0
  %6029 = vmatpush1.bf16.msra.mxu0 %v5988
  %6030 = vmatprep.subr.bf16.mxu0 0
  %6031 = vmatpush1.bf16.msra.mxu0 %v5987
  %6032 = vmatprep.subr.bf16.mxu0 0
  %6033 = vmatpush2.bf16.msra.mxu0 0
  %6034 = vmatprep.subr.bf16.mxu0 0
  %6035 = vmatpush2.bf16.msra.mxu0 0
  %6036 = vmatprep.subr.bf16.mxu0 0
  %6037 = vmatpush2.bf16.msra.mxu0 0
  %6038 = vmatprep.subr.bf16.mxu0 0
  %6039 = vmatpush2.bf16.msra.mxu0 0
  %6040 = vmatprep.subr.bf16.mxu0 0
  %6041 = vmatpush2.bf16.msra.mxu0 0
  %6042 = vmatprep.subr.bf16.mxu0 0
  %6043 = vmatpush2.bf16.msra.mxu0 %v5997
  %6044 = vmatprep.subr.bf16.mxu0 0
  %6045 = vmatpush2.bf16.msra.mxu0 %v5996
  %6046 = vmatprep.subr.bf16.mxu0 0
  %6047 = vmatpush2.bf16.msra.mxu0 %v5995
  %6048 = vmatprep.mubr.bf16.mxu0 %v6011
  %6049 = vmatmul.mubr.bf16.gmra.mxu0 %v5882
  %v6050 = vpop.f32.mrf.mxu0
  %v6051 = vadd.f32 0.0, %v6050
  %v6052 = vpop.f32.mrf.mxu0
  %v6053 = vpop.f32.mrf.mxu0
  %v6054 = vadd.f32 0.0, %v6053
  %v6055 = vpop.f32.mrf.mxu0
  %6056 = vmatprep.mubr.bf16.mxu0 %v6014
  %6057 = vmatmul.mubr.bf16.gmra.mxu0 %v5939
  %v6058 = vpop.f32.mrf.mxu0
  %v6059 = vadd.f32 0.0, %v6058
  %v6060 = vpop.f32.mrf.mxu0
  %v6061 = vpop.f32.mrf.mxu0
  %v6062 = vadd.f32 0.0, %v6061
  %v6063 = vpop.f32.mrf.mxu0
  %6064 = vdwg.mxu0
  %v6065 = vcombine.low %v5513, %v5520
  %v6066 = vcombine.low %v5521, %v5522
  %v6067 = vcombine.low %v5537, %v5544
  %v6068 = vcombine.low %v5545, %v5560
  %v6070 = vunpack.c.l.s4 1966171168
  %v6071 = vunpack.c.0.s8 %v6070
  %v6072 = vlaneseq
  %v6073 = vshrl.u32 %v6072, 7
  %v6074 = vsub.s32 %v6071, %v6073
  %v6075 = vrot.slane %v6065, %v6074
  %v6077 = vunpack.c.l.s4 1966171168
  %v6078 = vunpack.c.0.s8 %v6077
  %v6079 = vlaneseq
  %v6080 = vshrl.u32 %v6079, 7
  %v6081 = vsub.s32 %v6078, %v6080
  %v6082 = vrot.slane %v6066, %v6081
  %v6084 = vunpack.c.l.s4 1966171168
  %v6085 = vunpack.c.0.s8 %v6084
  %v6086 = vlaneseq
  %v6087 = vshrl.u32 %v6086, 7
  %v6088 = vsub.s32 %v6085, %v6087
  %v6089 = vrot.slane %v6067, %v6088
  %v6091 = vunpack.c.l.s4 1966171168
  %v6092 = vunpack.c.0.s8 %v6091
  %v6093 = vlaneseq
  %v6094 = vshrl.u32 %v6093, 7
  %v6095 = vsub.s32 %v6092, %v6094
  %v6096 = vrot.slane %v6068, %v6095
  %v6097 = vcombine.low %v6075, %v6082
  %v6098 = vcombine.high %v6075, %v6082
  %v6099 = vcombine.low %v6089, %v6096
  %v6100 = vcombine.high %v6089, %v6096
  %v6102 = vunpack.c.l.s4 1966171168
  %v6103 = vunpack.c.0.s8 %v6102
  %v6104 = vlaneseq
  %v6105 = vshrl.u32 %v6104, 7
  %v6106 = vsub.s32 %v6103, %v6105
  %v6107 = vrot.slane %v6097, %v6106
  %v6109 = vunpack.c.l.s4 1966171168
  %v6110 = vunpack.c.0.s8 %v6109
  %v6111 = vlaneseq
  %v6112 = vshrl.u32 %v6111, 7
  %v6113 = vsub.s32 %v6110, %v6112
  %v6114 = vrot.slane %v6098, %v6113
  %v6116 = vunpack.c.l.s4 1966171168
  %v6117 = vunpack.c.0.s8 %v6116
  %v6118 = vlaneseq
  %v6119 = vshrl.u32 %v6118, 7
  %v6120 = vsub.s32 %v6117, %v6119
  %v6121 = vrot.slane %v6099, %v6120
  %v6123 = vunpack.c.l.s4 1966171168
  %v6124 = vunpack.c.0.s8 %v6123
  %v6125 = vlaneseq
  %v6126 = vshrl.u32 %v6125, 7
  %v6127 = vsub.s32 %v6124, %v6126
  %v6128 = vrot.slane %v6100, %v6127
  %v6129 = vcombine.low %v6107, %v6121
  %v6130 = vcombine.low %v6114, %v6128
  %v6131 = vcombine.low %v5567, %v5568
  %v6132 = vcombine.low %v5569, %v5584
  %v6133 = vcombine.low %v5591, %v5592
  %v6135 = vunpack.c.l.s4 1966171168
  %v6136 = vunpack.c.0.s8 %v6135
  %v6137 = vlaneseq
  %v6138 = vshrl.u32 %v6137, 7
  %v6139 = vsub.s32 %v6136, %v6138
  %v6140 = vrot.slane %v6131, %v6139
  %v6142 = vunpack.c.l.s4 1966171168
  %v6143 = vunpack.c.0.s8 %v6142
  %v6144 = vlaneseq
  %v6145 = vshrl.u32 %v6144, 7
  %v6146 = vsub.s32 %v6143, %v6145
  %v6147 = vrot.slane %v6132, %v6146
  %v6149 = vunpack.c.l.s4 1966171168
  %v6150 = vunpack.c.0.s8 %v6149
  %v6151 = vlaneseq
  %v6152 = vshrl.u32 %v6151, 7
  %v6153 = vsub.s32 %v6150, %v6152
  %v6154 = vrot.slane %v6133, %v6153
  %v6155 = vcombine.low %v6140, %v6147
  %v6156 = vcombine.high %v6140, %v6147
  %v6157 = vcombine.high %v6154, %v6154
  %v6159 = vunpack.c.l.s4 1966171168
  %v6160 = vunpack.c.0.s8 %v6159
  %v6161 = vlaneseq
  %v6162 = vshrl.u32 %v6161, 7
  %v6163 = vsub.s32 %v6160, %v6162
  %v6164 = vrot.slane %v6155, %v6163
  %v6166 = vunpack.c.l.s4 1966171168
  %v6167 = vunpack.c.0.s8 %v6166
  %v6168 = vlaneseq
  %v6169 = vshrl.u32 %v6168, 7
  %v6170 = vsub.s32 %v6167, %v6169
  %v6171 = vrot.slane %v6156, %v6170
  %v6173 = vunpack.c.l.s4 1966171168
  %v6174 = vunpack.c.0.s8 %v6173
  %v6175 = vlaneseq
  %v6176 = vshrl.u32 %v6175, 7
  %v6177 = vsub.s32 %v6174, %v6176
  %v6178 = vrot.slane %v6154, %v6177
  %v6180 = vunpack.c.l.s4 1966171168
  %v6181 = vunpack.c.0.s8 %v6180
  %v6182 = vlaneseq
  %v6183 = vshrl.u32 %v6182, 7
  %v6184 = vsub.s32 %v6181, %v6183
  %v6185 = vrot.slane %v6157, %v6184
  %v6186 = vcombine.low %v6164, %v6178
  %v6187 = vcombine.low %v6171, %v6185
  %v6212 = vunpack.c.l.b16 %v5593
  %v6213 = vunpack.c.l.b16 %v5594
  %v6214 = vunpack.c.l.b16 %v5595
  %v6215 = vunpack.c.l.b16 %v5596
  %v6216 = vunpack.c.l.b16 %v5597
  %v6217 = vunpack.c.l.b16 %v5598
  %v6218 = vunpack.c.l.b16 %v5599
  %v6219 = vunpack.c.l.b16 %v5600
  %v6220 = vunpack.c.l.b16 %v5601
  %v6221 = vunpack.c.l.b16 %v5602
  %v6222 = vunpack.c.l.b16 %v5603
  %v6223 = vunpack.c.l.b16 %v5604
  %v6224 = vunpack.c.l.b16 %v5605
  %v6225 = vunpack.c.l.b16 %v5606
  %v6226 = vunpack.c.l.b16 %v5607
  %v6227 = vunpack.c.l.b16 %v5608
  %v6228 = vunpack.c.l.b16 %v5609
  %v6229 = vunpack.c.l.b16 %v5610
  %v6230 = vunpack.c.l.b16 %v5611
  %v6231 = vunpack.c.l.b16 %v5612
  %v6232 = vunpack.c.l.b16 %v5613
  %v6233 = vunpack.c.l.b16 %v5614
  %v6234 = vpack.c.b16 %v6213, %v6212
  %v6235 = vpack.c.b16 %v6215, %v6214
  %v6236 = vpack.c.b16 %v6217, %v6216
  %v6237 = vpack.c.b16 %v6219, %v6218
  %v6238 = vpack.c.b16 %v6221, %v6220
  %v6239 = vpack.c.b16 %v6223, %v6222
  %v6240 = vpack.c.b16 %v6225, %v6224
  %v6241 = vpack.c.b16 %v6227, %v6226
  %v6242 = vpack.c.b16 %v6229, %v6228
  %v6243 = vpack.c.b16 %v6231, %v6230
  %v6244 = vpack.c.b16 %v6233, %v6232
  %v6257 = vsel %vm6009, %v6130, 0
  %v6260 = vsel %vm6009, %v6187, 0
  %6262 = vmatprep.subr.bf16.mxu0 0
  %6263 = vmatpush1.bf16.msra.mxu0 %v6241
  %6264 = vmatprep.subr.bf16.mxu0 0
  %6265 = vmatpush1.bf16.msra.mxu0 %v6240
  %6266 = vmatprep.subr.bf16.mxu0 0
  %6267 = vmatpush1.bf16.msra.mxu0 %v6239
  %6268 = vmatprep.subr.bf16.mxu0 0
  %6269 = vmatpush1.bf16.msra.mxu0 %v6238
  %6270 = vmatprep.subr.bf16.mxu0 0
  %6271 = vmatpush1.bf16.msra.mxu0 %v6237
  %6272 = vmatprep.subr.bf16.mxu0 0
  %6273 = vmatpush1.bf16.msra.mxu0 %v6236
  %6274 = vmatprep.subr.bf16.mxu0 0
  %6275 = vmatpush1.bf16.msra.mxu0 %v6235
  %6276 = vmatprep.subr.bf16.mxu0 0
  %6277 = vmatpush1.bf16.msra.mxu0 %v6234
  %6278 = vmatprep.subr.bf16.mxu0 0
  %6279 = vmatpush2.bf16.msra.mxu0 0
  %6280 = vmatprep.subr.bf16.mxu0 0
  %6281 = vmatpush2.bf16.msra.mxu0 0
  %6282 = vmatprep.subr.bf16.mxu0 0
  %6283 = vmatpush2.bf16.msra.mxu0 0
  %6284 = vmatprep.subr.bf16.mxu0 0
  %6285 = vmatpush2.bf16.msra.mxu0 0
  %6286 = vmatprep.subr.bf16.mxu0 0
  %6287 = vmatpush2.bf16.msra.mxu0 0
  %6288 = vmatprep.subr.bf16.mxu0 0
  %6289 = vmatpush2.bf16.msra.mxu0 %v6244
  %6290 = vmatprep.subr.bf16.mxu0 0
  %6291 = vmatpush2.bf16.msra.mxu0 %v6243
  %6292 = vmatprep.subr.bf16.mxu0 0
  %6293 = vmatpush2.bf16.msra.mxu0 %v6242
  %6294 = vmatprep.mubr.bf16.mxu0 %v6257
  %6295 = vmatmul.mubr.bf16.gmra.mxu0 %v6129
  %v6296 = vpop.f32.mrf.mxu0
  %v6297 = vadd.f32 %v6051, %v6296
  %v6298 = vpop.f32.mrf.mxu0
  %v6299 = vpop.f32.mrf.mxu0
  %v6300 = vadd.f32 %v6054, %v6299
  %v6301 = vpop.f32.mrf.mxu0
  %6302 = vmatprep.mubr.bf16.mxu0 %v6260
  %6303 = vmatmul.mubr.bf16.gmra.mxu0 %v6186
  %v6304 = vpop.f32.mrf.mxu0
  %v6305 = vadd.f32 %v6059, %v6304
  %v6306 = vpop.f32.mrf.mxu0
  %v6307 = vpop.f32.mrf.mxu0
  %v6308 = vadd.f32 %v6062, %v6307
  %v6309 = vpop.f32.mrf.mxu0
  %6310 = vdwg.mxu0
  %v6311 = vld [vmem:[#allocation4] sm:$0xee]
  %v6312 = vld [vmem:[#allocation4 + $0x8] sm:$0xff]
  %v6313 = vld [vmem:[#allocation4 + $0x18] sm:$0xee]
  %v6314 = vld [vmem:[#allocation4 + $0x20] sm:$0xff]
  %v6320 = vunpack.c.l.s4 1966171168
  %v6321 = vunpack.c.0.s8 %v6320
  %v6322 = vlaneseq
  %v6323 = vshrl.u32 %v6322, 7
  %v6324 = vsub.s32 %v6321, %v6323
  %v6325 = vrot.slane %v6311, %v6324
  %v6326 = vcombine.high %v6325, %v6325
  %v6328 = vunpack.c.l.s4 1966171168
  %v6329 = vunpack.c.0.s8 %v6328
  %v6330 = vlaneseq
  %v6331 = vshrl.u32 %v6330, 7
  %v6332 = vsub.s32 %v6329, %v6331
  %v6333 = vrot.slane %v6325, %v6332
  %v6335 = vunpack.c.l.s4 1966171168
  %v6336 = vunpack.c.0.s8 %v6335
  %v6337 = vlaneseq
  %v6338 = vshrl.u32 %v6337, 7
  %v6339 = vsub.s32 %v6336, %v6338
  %v6340 = vrot.slane %v6326, %v6339
  %v6341 = vcombine.high %v6333, %v6333
  %v6342 = vcombine.high %v6340, %v6340
  %v6344 = vunpack.c.l.s4 1966171168
  %v6345 = vunpack.c.0.s8 %v6344
  %v6346 = vlaneseq
  %v6347 = vshrl.u32 %v6346, 7
  %v6348 = vsub.s32 %v6345, %v6347
  %v6349 = vrot.slane %v6312, %v6348
  %v6350 = vcombine.high %v6349, %v6349
  %v6352 = vunpack.c.l.s4 1966171168
  %v6353 = vunpack.c.0.s8 %v6352
  %v6354 = vlaneseq
  %v6355 = vshrl.u32 %v6354, 7
  %v6356 = vsub.s32 %v6353, %v6355
  %v6357 = vrot.slane %v6349, %v6356
  %v6359 = vunpack.c.l.s4 1966171168
  %v6360 = vunpack.c.0.s8 %v6359
  %v6361 = vlaneseq
  %v6362 = vshrl.u32 %v6361, 7
  %v6363 = vsub.s32 %v6360, %v6362
  %v6364 = vrot.slane %v6350, %v6363
  %v6365 = vcombine.high %v6357, %v6357
  %v6366 = vcombine.high %v6364, %v6364
  %v6368 = vunpack.c.l.s4 1966171168
  %v6369 = vunpack.c.0.s8 %v6368
  %v6370 = vlaneseq
  %v6371 = vshrl.u32 %v6370, 7
  %v6372 = vsub.s32 %v6369, %v6371
  %v6373 = vrot.slane %v6313, %v6372
  %v6374 = vcombine.high %v6373, %v6373
  %v6376 = vunpack.c.l.s4 1966171168
  %v6377 = vunpack.c.0.s8 %v6376
  %v6378 = vlaneseq
  %v6379 = vshrl.u32 %v6378, 7
  %v6380 = vsub.s32 %v6377, %v6379
  %v6381 = vrot.slane %v6373, %v6380
  %v6383 = vunpack.c.l.s4 1966171168
  %v6384 = vunpack.c.0.s8 %v6383
  %v6385 = vlaneseq
  %v6386 = vshrl.u32 %v6385, 7
  %v6387 = vsub.s32 %v6384, %v6386
  %v6388 = vrot.slane %v6374, %v6387
  %v6389 = vcombine.high %v6381, %v6381
  %v6390 = vcombine.high %v6388, %v6388
  %v6392 = vunpack.c.l.s4 1966171168
  %v6393 = vunpack.c.0.s8 %v6392
  %v6394 = vlaneseq
  %v6395 = vshrl.u32 %v6394, 7
  %v6396 = vsub.s32 %v6393, %v6395
  %v6397 = vrot.slane %v6314, %v6396
  %v6398 = vcombine.high %v6397, %v6397
  %v6400 = vunpack.c.l.s4 1966171168
  %v6401 = vunpack.c.0.s8 %v6400
  %v6402 = vlaneseq
  %v6403 = vshrl.u32 %v6402, 7
  %v6404 = vsub.s32 %v6401, %v6403
  %v6405 = vrot.slane %v6397, %v6404
  %v6407 = vunpack.c.l.s4 1966171168
  %v6408 = vunpack.c.0.s8 %v6407
  %v6409 = vlaneseq
  %v6410 = vshrl.u32 %v6409, 7
  %v6411 = vsub.s32 %v6408, %v6410
  %v6412 = vrot.slane %v6398, %v6411
  %v6413 = vcombine.high %v6405, %v6405
  %v6414 = vcombine.high %v6412, %v6412
  %s6415 = scalar_lea.vmem %s7, 176
  %v6416 = vld [vmem:[%s6415] sm:$0xf]
  %v6417 = vld [vmem:[%s6415 + $0x4] sm:$0xf]
  %v6418 = vld [vmem:[%s6415 + $0x8] sm:$0xf]
  %v6419 = vld [vmem:[%s6415 + $0xc] sm:$0xf]
  %v6420 = vld [vmem:[%s6415 + $0x10] sm:$0xf]
  %v6421 = vld [vmem:[%s6415 + $0x14] sm:$0xf]
  %v6422 = vld [vmem:[%s6415 + $0x18] sm:$0xf]
  %v6423 = vld [vmem:[%s6415 + $0x1c] sm:$0xf]
  %v6424 = vld [vmem:[%s6415 + $0x20] sm:$0xf]
  %v6425 = vld [vmem:[%s6415 + $0x24] sm:$0xf]
  %v6426 = vld [vmem:[%s6415 + $0x28] sm:$0xf]
  %v6427 = vld [vmem:[%s6415 + $0x2c] sm:$0xf]
  %v6428 = vld [vmem:[%s6415 + $0x30] sm:$0xf]
  %v6429 = vld [vmem:[%s6415 + $0x34] sm:$0xf]
  %v6430 = vld [vmem:[%s6415 + $0x38] sm:$0xf]
  %v6431 = vld [vmem:[%s6415 + $0x3c] sm:$0xf]
  %v6432 = vld [vmem:[%s6415 + $0x40] sm:$0xf]
  %v6433 = vld [vmem:[%s6415 + $0x44] sm:$0xf]
  %v6434 = vld [vmem:[%s6415 + $0x48] sm:$0xf]
  %v6435 = vld [vmem:[%s6415 + $0x4c] sm:$0xf]
  %v6436 = vld [vmem:[%s6415 + $0x50] sm:$0xf]
  %v6437 = vld [vmem:[%s6415 + $0x54] sm:$0xf]
  %v6438 = vcombine.low %v6340, %v6341
  %v6439 = vcombine.low %v6342, %v6357
  %v6440 = vcombine.low %v6364, %v6365
  %v6441 = vcombine.low %v6366, %v6388
  %v6443 = vunpack.c.l.s4 1966171168
  %v6444 = vunpack.c.0.s8 %v6443
  %v6445 = vlaneseq
  %v6446 = vshrl.u32 %v6445, 7
  %v6447 = vsub.s32 %v6444, %v6446
  %v6448 = vrot.slane %v6438, %v6447
  %v6450 = vunpack.c.l.s4 1966171168
  %v6451 = vunpack.c.0.s8 %v6450
  %v6452 = vlaneseq
  %v6453 = vshrl.u32 %v6452, 7
  %v6454 = vsub.s32 %v6451, %v6453
  %v6455 = vrot.slane %v6439, %v6454
  %v6457 = vunpack.c.l.s4 1966171168
  %v6458 = vunpack.c.0.s8 %v6457
  %v6459 = vlaneseq
  %v6460 = vshrl.u32 %v6459, 7
  %v6461 = vsub.s32 %v6458, %v6460
  %v6462 = vrot.slane %v6440, %v6461
  %v6464 = vunpack.c.l.s4 1966171168
  %v6465 = vunpack.c.0.s8 %v6464
  %v6466 = vlaneseq
  %v6467 = vshrl.u32 %v6466, 7
  %v6468 = vsub.s32 %v6465, %v6467
  %v6469 = vrot.slane %v6441, %v6468
  %v6470 = vcombine.low %v6448, %v6455
  %v6471 = vcombine.high %v6448, %v6455
  %v6472 = vcombine.low %v6462, %v6469
  %v6473 = vcombine.high %v6462, %v6469
  %v6475 = vunpack.c.l.s4 1966171168
  %v6476 = vunpack.c.0.s8 %v6475
  %v6477 = vlaneseq
  %v6478 = vshrl.u32 %v6477, 7
  %v6479 = vsub.s32 %v6476, %v6478
  %v6480 = vrot.slane %v6470, %v6479
  %v6482 = vunpack.c.l.s4 1966171168
  %v6483 = vunpack.c.0.s8 %v6482
  %v6484 = vlaneseq
  %v6485 = vshrl.u32 %v6484, 7
  %v6486 = vsub.s32 %v6483, %v6485
  %v6487 = vrot.slane %v6471, %v6486
  %v6489 = vunpack.c.l.s4 1966171168
  %v6490 = vunpack.c.0.s8 %v6489
  %v6491 = vlaneseq
  %v6492 = vshrl.u32 %v6491, 7
  %v6493 = vsub.s32 %v6490, %v6492
  %v6494 = vrot.slane %v6472, %v6493
  %v6496 = vunpack.c.l.s4 1966171168
  %v6497 = vunpack.c.0.s8 %v6496
  %v6498 = vlaneseq
  %v6499 = vshrl.u32 %v6498, 7
  %v6500 = vsub.s32 %v6497, %v6499
  %v6501 = vrot.slane %v6473, %v6500
  %v6502 = vcombine.low %v6480, %v6494
  %v6503 = vcombine.low %v6487, %v6501
  %v6504 = vcombine.low %v6389, %v6390
  %v6505 = vcombine.low %v6405, %v6412
  %v6506 = vcombine.low %v6413, %v6414
  %v6508 = vunpack.c.l.s4 1966171168
  %v6509 = vunpack.c.0.s8 %v6508
  %v6510 = vlaneseq
  %v6511 = vshrl.u32 %v6510, 7
  %v6512 = vsub.s32 %v6509, %v6511
  %v6513 = vrot.slane %v6504, %v6512
  %v6515 = vunpack.c.l.s4 1966171168
  %v6516 = vunpack.c.0.s8 %v6515
  %v6517 = vlaneseq
  %v6518 = vshrl.u32 %v6517, 7
  %v6519 = vsub.s32 %v6516, %v6518
  %v6520 = vrot.slane %v6505, %v6519
  %v6522 = vunpack.c.l.s4 1966171168
  %v6523 = vunpack.c.0.s8 %v6522
  %v6524 = vlaneseq
  %v6525 = vshrl.u32 %v6524, 7
  %v6526 = vsub.s32 %v6523, %v6525
  %v6527 = vrot.slane %v6506, %v6526
  %v6528 = vcombine.low %v6513, %v6520
  %v6529 = vcombine.high %v6513, %v6520
  %v6530 = vcombine.high %v6527, %v6527
  %v6532 = vunpack.c.l.s4 1966171168
  %v6533 = vunpack.c.0.s8 %v6532
  %v6534 = vlaneseq
  %v6535 = vshrl.u32 %v6534, 7
  %v6536 = vsub.s32 %v6533, %v6535
  %v6537 = vrot.slane %v6528, %v6536
  %v6539 = vunpack.c.l.s4 1966171168
  %v6540 = vunpack.c.0.s8 %v6539
  %v6541 = vlaneseq
  %v6542 = vshrl.u32 %v6541, 7
  %v6543 = vsub.s32 %v6540, %v6542
  %v6544 = vrot.slane %v6529, %v6543
  %v6546 = vunpack.c.l.s4 1966171168
  %v6547 = vunpack.c.0.s8 %v6546
  %v6548 = vlaneseq
  %v6549 = vshrl.u32 %v6548, 7
  %v6550 = vsub.s32 %v6547, %v6549
  %v6551 = vrot.slane %v6527, %v6550
  %v6553 = vunpack.c.l.s4 1966171168
  %v6554 = vunpack.c.0.s8 %v6553
  %v6555 = vlaneseq
  %v6556 = vshrl.u32 %v6555, 7
  %v6557 = vsub.s32 %v6554, %v6556
  %v6558 = vrot.slane %v6530, %v6557
  %v6559 = vcombine.low %v6537, %v6551
  %v6560 = vcombine.low %v6544, %v6558
  %v6585 = vunpack.c.l.b16 %v6416
  %v6586 = vunpack.c.l.b16 %v6417
  %v6587 = vunpack.c.l.b16 %v6418
  %v6588 = vunpack.c.l.b16 %v6419
  %v6589 = vunpack.c.l.b16 %v6420
  %v6590 = vunpack.c.l.b16 %v6421
  %v6591 = vunpack.c.l.b16 %v6422
  %v6592 = vunpack.c.l.b16 %v6423
  %v6593 = vunpack.c.l.b16 %v6424
  %v6594 = vunpack.c.l.b16 %v6425
  %v6595 = vunpack.c.l.b16 %v6426
  %v6596 = vunpack.c.l.b16 %v6427
  %v6597 = vunpack.c.l.b16 %v6428
  %v6598 = vunpack.c.l.b16 %v6429
  %v6599 = vunpack.c.l.b16 %v6430
  %v6600 = vunpack.c.l.b16 %v6431
  %v6601 = vunpack.c.l.b16 %v6432
  %v6602 = vunpack.c.l.b16 %v6433
  %v6603 = vunpack.c.l.b16 %v6434
  %v6604 = vunpack.c.l.b16 %v6435
  %v6605 = vunpack.c.l.b16 %v6436
  %v6606 = vunpack.c.l.b16 %v6437
  %v6607 = vpack.c.b16 %v6586, %v6585
  %v6608 = vpack.c.b16 %v6588, %v6587
  %v6609 = vpack.c.b16 %v6590, %v6589
  %v6610 = vpack.c.b16 %v6592, %v6591
  %v6611 = vpack.c.b16 %v6594, %v6593
  %v6612 = vpack.c.b16 %v6596, %v6595
  %v6613 = vpack.c.b16 %v6598, %v6597
  %v6614 = vpack.c.b16 %v6600, %v6599
  %v6615 = vpack.c.b16 %v6602, %v6601
  %v6616 = vpack.c.b16 %v6604, %v6603
  %v6617 = vpack.c.b16 %v6606, %v6605
  %v6630 = vsel %vm6009, %v6503, 0
  %v6633 = vsel %vm6009, %v6560, 0
  %6635 = vmatprep.subr.bf16.mxu0 0
  %6636 = vmatpush1.bf16.msra.mxu0 %v6614
  %6637 = vmatprep.subr.bf16.mxu0 0
  %6638 = vmatpush1.bf16.msra.mxu0 %v6613
  %6639 = vmatprep.subr.bf16.mxu0 0
  %6640 = vmatpush1.bf16.msra.mxu0 %v6612
  %6641 = vmatprep.subr.bf16.mxu0 0
  %6642 = vmatpush1.bf16.msra.mxu0 %v6611
  %6643 = vmatprep.subr.bf16.mxu0 0
  %6644 = vmatpush1.bf16.msra.mxu0 %v6610
  %6645 = vmatprep.subr.bf16.mxu0 0
  %6646 = vmatpush1.bf16.msra.mxu0 %v6609
  %6647 = vmatprep.subr.bf16.mxu0 0
  %6648 = vmatpush1.bf16.msra.mxu0 %v6608
  %6649 = vmatprep.subr.bf16.mxu0 0
  %6650 = vmatpush1.bf16.msra.mxu0 %v6607
  %6651 = vmatprep.subr.bf16.mxu0 0
  %6652 = vmatpush2.bf16.msra.mxu0 0
  %6653 = vmatprep.subr.bf16.mxu0 0
  %6654 = vmatpush2.bf16.msra.mxu0 0
  %6655 = vmatprep.subr.bf16.mxu0 0
  %6656 = vmatpush2.bf16.msra.mxu0 0
  %6657 = vmatprep.subr.bf16.mxu0 0
  %6658 = vmatpush2.bf16.msra.mxu0 0
  %6659 = vmatprep.subr.bf16.mxu0 0
  %6660 = vmatpush2.bf16.msra.mxu0 0
  %6661 = vmatprep.subr.bf16.mxu0 0
  %6662 = vmatpush2.bf16.msra.mxu0 %v6617
  %6663 = vmatprep.subr.bf16.mxu0 0
  %6664 = vmatpush2.bf16.msra.mxu0 %v6616
  %6665 = vmatprep.subr.bf16.mxu0 0
  %6666 = vmatpush2.bf16.msra.mxu0 %v6615
  %6667 = vmatprep.mubr.bf16.mxu0 %v6630
  %6668 = vmatmul.mubr.bf16.gmra.mxu0 %v6502
  %v6669 = vpop.f32.mrf.mxu0
  %v6670 = vadd.f32 0.0, %v6669
  %v6671 = vpop.f32.mrf.mxu0
  %v6672 = vpop.f32.mrf.mxu0
  %v6673 = vadd.f32 0.0, %v6672
  %v6674 = vpop.f32.mrf.mxu0
  %6675 = vmatprep.mubr.bf16.mxu0 %v6633
  %6676 = vmatmul.mubr.bf16.gmra.mxu0 %v6559
  %v6677 = vpop.f32.mrf.mxu0
  %v6678 = vadd.f32 0.0, %v6677
  %v6679 = vpop.f32.mrf.mxu0
  %v6680 = vpop.f32.mrf.mxu0
  %v6681 = vadd.f32 0.0, %v6680
  %v6682 = vpop.f32.mrf.mxu0
  %6683 = vdwg.mxu0
  %v6684 = vadd.f32 %v6297, %v6670
  %v6685 = vadd.f32 %v6300, %v6673
  %v6686 = vadd.f32 %v6305, %v6678
  %v6687 = vadd.f32 %v6308, %v6681
  %v6688 = vld [vmem:[#allocation4] sm:$0xee]
  %v6689 = vld [vmem:[#allocation4 + $0x8] sm:$0xff]
  %v6690 = vld [vmem:[#allocation4 + $0x10] sm:$0x11]
  %v6691 = vld [vmem:[#allocation4 + $0x18] sm:$0xee]
  %v6692 = vld [vmem:[#allocation4 + $0x20] sm:$0xff]
  %v6693 = vld [vmem:[#allocation4 + $0x28] sm:$0x11]
  %v6701 = vunpack.c.l.s4 1966171168
  %v6702 = vunpack.c.0.s8 %v6701
  %v6703 = vlaneseq
  %v6704 = vshrl.u32 %v6703, 7
  %v6705 = vsub.s32 %v6702, %v6704
  %v6706 = vrot.slane %v6688, %v6705
  %v6707 = vcombine.high %v6706, %v6706
  %v6709 = vunpack.c.l.s4 1966171168
  %v6710 = vunpack.c.0.s8 %v6709
  %v6711 = vlaneseq
  %v6712 = vshrl.u32 %v6711, 7
  %v6713 = vsub.s32 %v6710, %v6712
  %v6714 = vrot.slane %v6706, %v6713
  %v6716 = vunpack.c.l.s4 1966171168
  %v6717 = vunpack.c.0.s8 %v6716
  %v6718 = vlaneseq
  %v6719 = vshrl.u32 %v6718, 7
  %v6720 = vsub.s32 %v6717, %v6719
  %v6721 = vrot.slane %v6707, %v6720
  %v6722 = vcombine.high %v6714, %v6714
  %v6723 = vcombine.high %v6721, %v6721
  %v6725 = vunpack.c.l.s4 1966171168
  %v6726 = vunpack.c.0.s8 %v6725
  %v6727 = vlaneseq
  %v6728 = vshrl.u32 %v6727, 7
  %v6729 = vsub.s32 %v6726, %v6728
  %v6730 = vrot.slane %v6689, %v6729
  %v6731 = vcombine.high %v6730, %v6730
  %v6733 = vunpack.c.l.s4 1966171168
  %v6734 = vunpack.c.0.s8 %v6733
  %v6735 = vlaneseq
  %v6736 = vshrl.u32 %v6735, 7
  %v6737 = vsub.s32 %v6734, %v6736
  %v6738 = vrot.slane %v6730, %v6737
  %v6740 = vunpack.c.l.s4 1966171168
  %v6741 = vunpack.c.0.s8 %v6740
  %v6742 = vlaneseq
  %v6743 = vshrl.u32 %v6742, 7
  %v6744 = vsub.s32 %v6741, %v6743
  %v6745 = vrot.slane %v6731, %v6744
  %v6746 = vcombine.high %v6738, %v6738
  %v6747 = vcombine.high %v6745, %v6745
  %v6749 = vunpack.c.l.s4 1966171168
  %v6750 = vunpack.c.0.s8 %v6749
  %v6751 = vlaneseq
  %v6752 = vshrl.u32 %v6751, 7
  %v6753 = vsub.s32 %v6750, %v6752
  %v6754 = vrot.slane %v6690, %v6753
  %v6756 = vunpack.c.l.s4 1966171168
  %v6757 = vunpack.c.0.s8 %v6756
  %v6758 = vlaneseq
  %v6759 = vshrl.u32 %v6758, 7
  %v6760 = vsub.s32 %v6757, %v6759
  %v6761 = vrot.slane %v6754, %v6760
  %v6763 = vunpack.c.l.s4 1966171168
  %v6764 = vunpack.c.0.s8 %v6763
  %v6765 = vlaneseq
  %v6766 = vshrl.u32 %v6765, 7
  %v6767 = vsub.s32 %v6764, %v6766
  %v6768 = vrot.slane %v6691, %v6767
  %v6769 = vcombine.high %v6768, %v6768
  %v6771 = vunpack.c.l.s4 1966171168
  %v6772 = vunpack.c.0.s8 %v6771
  %v6773 = vlaneseq
  %v6774 = vshrl.u32 %v6773, 7
  %v6775 = vsub.s32 %v6772, %v6774
  %v6776 = vrot.slane %v6768, %v6775
  %v6778 = vunpack.c.l.s4 1966171168
  %v6779 = vunpack.c.0.s8 %v6778
  %v6780 = vlaneseq
  %v6781 = vshrl.u32 %v6780, 7
  %v6782 = vsub.s32 %v6779, %v6781
  %v6783 = vrot.slane %v6769, %v6782
  %v6784 = vcombine.high %v6776, %v6776
  %v6785 = vcombine.high %v6783, %v6783
  %v6787 = vunpack.c.l.s4 1966171168
  %v6788 = vunpack.c.0.s8 %v6787
  %v6789 = vlaneseq
  %v6790 = vshrl.u32 %v6789, 7
  %v6791 = vsub.s32 %v6788, %v6790
  %v6792 = vrot.slane %v6692, %v6791
  %v6793 = vcombine.high %v6792, %v6792
  %v6795 = vunpack.c.l.s4 1966171168
  %v6796 = vunpack.c.0.s8 %v6795
  %v6797 = vlaneseq
  %v6798 = vshrl.u32 %v6797, 7
  %v6799 = vsub.s32 %v6796, %v6798
  %v6800 = vrot.slane %v6792, %v6799
  %v6802 = vunpack.c.l.s4 1966171168
  %v6803 = vunpack.c.0.s8 %v6802
  %v6804 = vlaneseq
  %v6805 = vshrl.u32 %v6804, 7
  %v6806 = vsub.s32 %v6803, %v6805
  %v6807 = vrot.slane %v6793, %v6806
  %v6808 = vcombine.high %v6800, %v6800
  %v6809 = vcombine.high %v6807, %v6807
  %v6811 = vunpack.c.l.s4 1966171168
  %v6812 = vunpack.c.0.s8 %v6811
  %v6813 = vlaneseq
  %v6814 = vshrl.u32 %v6813, 7
  %v6815 = vsub.s32 %v6812, %v6814
  %v6816 = vrot.slane %v6693, %v6815
  %v6818 = vunpack.c.l.s4 1966171168
  %v6819 = vunpack.c.0.s8 %v6818
  %v6820 = vlaneseq
  %v6821 = vshrl.u32 %v6820, 7
  %v6822 = vsub.s32 %v6819, %v6821
  %v6823 = vrot.slane %v6816, %v6822
  %v6825 = vshrl.u32 %v6721, 16
  %v6827 = vrot.slane %v6825, 7
  %v6828 = vrot.slane %v6827, 1
  %v6830 = vshll.u32 %v6722, 16
  %v6832 = vsel %vm5680, %v6828, %v6830
  %v6833 = vshrl.u32 %v6722, 16
  %v6835 = vrot.slane %v6833, 7
  %v6836 = vrot.slane %v6835, 1
  %v6838 = vshll.u32 %v6723, 16
  %v6840 = vsel %vm5680, %v6836, %v6838
  %v6841 = vshrl.u32 %v6723, 16
  %v6843 = vrot.slane %v6841, 7
  %v6844 = vrot.slane %v6843, 1
  %v6846 = vshll.u32 %v6738, 16
  %v6848 = vsel %vm5680, %v6844, %v6846
  %v6849 = vshrl.u32 %v6738, 16
  %v6851 = vrot.slane %v6849, 7
  %v6852 = vrot.slane %v6851, 1
  %v6854 = vshll.u32 %v6745, 16
  %v6856 = vsel %vm5680, %v6852, %v6854
  %v6857 = vshrl.u32 %v6745, 16
  %v6859 = vrot.slane %v6857, 7
  %v6860 = vrot.slane %v6859, 1
  %v6862 = vshll.u32 %v6746, 16
  %v6864 = vsel %vm5680, %v6860, %v6862
  %v6865 = vshrl.u32 %v6746, 16
  %v6867 = vrot.slane %v6865, 7
  %v6868 = vrot.slane %v6867, 1
  %v6870 = vshll.u32 %v6747, 16
  %v6872 = vsel %vm5680, %v6868, %v6870
  %v6873 = vshrl.u32 %v6747, 16
  %v6875 = vrot.slane %v6873, 7
  %v6876 = vrot.slane %v6875, 1
  %v6878 = vshll.u32 %v6761, 16
  %v6880 = vsel %vm5680, %v6876, %v6878
  %v6882 = vshrl.u32 %v6783, 16
  %v6884 = vrot.slane %v6882, 7
  %v6885 = vrot.slane %v6884, 1
  %v6887 = vshll.u32 %v6784, 16
  %v6889 = vsel %vm5680, %v6885, %v6887
  %v6890 = vshrl.u32 %v6784, 16
  %v6892 = vrot.slane %v6890, 7
  %v6893 = vrot.slane %v6892, 1
  %v6895 = vshll.u32 %v6785, 16
  %v6897 = vsel %vm5680, %v6893, %v6895
  %v6898 = vshrl.u32 %v6785, 16
  %v6900 = vrot.slane %v6898, 7
  %v6901 = vrot.slane %v6900, 1
  %v6903 = vshll.u32 %v6800, 16
  %v6905 = vsel %vm5680, %v6901, %v6903
  %v6906 = vshrl.u32 %v6800, 16
  %v6908 = vrot.slane %v6906, 7
  %v6909 = vrot.slane %v6908, 1
  %v6911 = vshll.u32 %v6807, 16
  %v6913 = vsel %vm5680, %v6909, %v6911
  %v6914 = vshrl.u32 %v6807, 16
  %v6916 = vrot.slane %v6914, 7
  %v6917 = vrot.slane %v6916, 1
  %v6919 = vshll.u32 %v6808, 16
  %v6921 = vsel %vm5680, %v6917, %v6919
  %v6922 = vshrl.u32 %v6808, 16
  %v6924 = vrot.slane %v6922, 7
  %v6925 = vrot.slane %v6924, 1
  %v6927 = vshll.u32 %v6809, 16
  %v6929 = vsel %vm5680, %v6925, %v6927
  %v6930 = vshrl.u32 %v6809, 16
  %v6932 = vrot.slane %v6930, 7
  %v6933 = vrot.slane %v6932, 1
  %v6935 = vshll.u32 %v6823, 16
  %v6937 = vsel %vm5680, %v6933, %v6935
  %s6938 = scalar_lea.vmem %s7, 264
  %v6939 = vld [vmem:[%s6938] sm:$0xf]
  %v6940 = vld [vmem:[%s6938 + $0x4] sm:$0xf]
  %v6941 = vld [vmem:[%s6938 + $0x8] sm:$0xf]
  %v6942 = vld [vmem:[%s6938 + $0xc] sm:$0xf]
  %v6943 = vld [vmem:[%s6938 + $0x10] sm:$0xf]
  %v6944 = vld [vmem:[%s6938 + $0x14] sm:$0xf]
  %v6945 = vld [vmem:[%s6938 + $0x18] sm:$0xf]
  %v6946 = vld [vmem:[%s6938 + $0x1c] sm:$0xf]
  %v6947 = vld [vmem:[%s6938 + $0x20] sm:$0xf]
  %v6948 = vld [vmem:[%s6938 + $0x24] sm:$0xf]
  %v6949 = vld [vmem:[%s6938 + $0x28] sm:$0xf]
  %v6950 = vld [vmem:[%s6938 + $0x2c] sm:$0xf]
  %v6951 = vld [vmem:[%s6938 + $0x30] sm:$0xf]
  %v6952 = vld [vmem:[%s6938 + $0x34] sm:$0xf]
  %v6953 = vld [vmem:[%s6938 + $0x38] sm:$0xf]
  %v6954 = vld [vmem:[%s6938 + $0x3c] sm:$0xf]
  %v6955 = vld [vmem:[%s6938 + $0x40] sm:$0xf]
  %v6956 = vld [vmem:[%s6938 + $0x44] sm:$0xf]
  %v6957 = vld [vmem:[%s6938 + $0x48] sm:$0xf]
  %v6958 = vld [vmem:[%s6938 + $0x4c] sm:$0xf]
  %v6959 = vld [vmem:[%s6938 + $0x50] sm:$0xf]
  %v6960 = vld [vmem:[%s6938 + $0x54] sm:$0xf]
  %v6961 = vcombine.low %v6832, %v6840
  %v6962 = vcombine.low %v6848, %v6856
  %v6963 = vcombine.low %v6864, %v6872
  %v6964 = vcombine.low %v6880, %v6889
  %v6966 = vunpack.c.l.s4 1966171168
  %v6967 = vunpack.c.0.s8 %v6966
  %v6968 = vlaneseq
  %v6969 = vshrl.u32 %v6968, 7
  %v6970 = vsub.s32 %v6967, %v6969
  %v6971 = vrot.slane %v6961, %v6970
  %v6973 = vunpack.c.l.s4 1966171168
  %v6974 = vunpack.c.0.s8 %v6973
  %v6975 = vlaneseq
  %v6976 = vshrl.u32 %v6975, 7
  %v6977 = vsub.s32 %v6974, %v6976
  %v6978 = vrot.slane %v6962, %v6977
  %v6980 = vunpack.c.l.s4 1966171168
  %v6981 = vunpack.c.0.s8 %v6980
  %v6982 = vlaneseq
  %v6983 = vshrl.u32 %v6982, 7
  %v6984 = vsub.s32 %v6981, %v6983
  %v6985 = vrot.slane %v6963, %v6984
  %v6987 = vunpack.c.l.s4 1966171168
  %v6988 = vunpack.c.0.s8 %v6987
  %v6989 = vlaneseq
  %v6990 = vshrl.u32 %v6989, 7
  %v6991 = vsub.s32 %v6988, %v6990
  %v6992 = vrot.slane %v6964, %v6991
  %v6993 = vcombine.low %v6971, %v6978
  %v6994 = vcombine.high %v6971, %v6978
  %v6995 = vcombine.low %v6985, %v6992
  %v6996 = vcombine.high %v6985, %v6992
  %v6998 = vunpack.c.l.s4 1966171168
  %v6999 = vunpack.c.0.s8 %v6998
  %v7000 = vlaneseq
  %v7001 = vshrl.u32 %v7000, 7
  %v7002 = vsub.s32 %v6999, %v7001
  %v7003 = vrot.slane %v6993, %v7002
  %v7005 = vunpack.c.l.s4 1966171168
  %v7006 = vunpack.c.0.s8 %v7005
  %v7007 = vlaneseq
  %v7008 = vshrl.u32 %v7007, 7
  %v7009 = vsub.s32 %v7006, %v7008
  %v7010 = vrot.slane %v6994, %v7009
  %v7012 = vunpack.c.l.s4 1966171168
  %v7013 = vunpack.c.0.s8 %v7012
  %v7014 = vlaneseq
  %v7015 = vshrl.u32 %v7014, 7
  %v7016 = vsub.s32 %v7013, %v7015
  %v7017 = vrot.slane %v6995, %v7016
  %v7019 = vunpack.c.l.s4 1966171168
  %v7020 = vunpack.c.0.s8 %v7019
  %v7021 = vlaneseq
  %v7022 = vshrl.u32 %v7021, 7
  %v7023 = vsub.s32 %v7020, %v7022
  %v7024 = vrot.slane %v6996, %v7023
  %v7025 = vcombine.low %v7003, %v7017
  %v7026 = vcombine.low %v7010, %v7024
  %v7027 = vcombine.low %v6897, %v6905
  %v7028 = vcombine.low %v6913, %v6921
  %v7029 = vcombine.low %v6929, %v6937
  %v7031 = vunpack.c.l.s4 1966171168
  %v7032 = vunpack.c.0.s8 %v7031
  %v7033 = vlaneseq
  %v7034 = vshrl.u32 %v7033, 7
  %v7035 = vsub.s32 %v7032, %v7034
  %v7036 = vrot.slane %v7027, %v7035
  %v7038 = vunpack.c.l.s4 1966171168
  %v7039 = vunpack.c.0.s8 %v7038
  %v7040 = vlaneseq
  %v7041 = vshrl.u32 %v7040, 7
  %v7042 = vsub.s32 %v7039, %v7041
  %v7043 = vrot.slane %v7028, %v7042
  %v7045 = vunpack.c.l.s4 1966171168
  %v7046 = vunpack.c.0.s8 %v7045
  %v7047 = vlaneseq
  %v7048 = vshrl.u32 %v7047, 7
  %v7049 = vsub.s32 %v7046, %v7048
  %v7050 = vrot.slane %v7029, %v7049
  %v7051 = vcombine.low %v7036, %v7043
  %v7052 = vcombine.high %v7036, %v7043
  %v7053 = vcombine.high %v7050, %v7050
  %v7055 = vunpack.c.l.s4 1966171168
  %v7056 = vunpack.c.0.s8 %v7055
  %v7057 = vlaneseq
  %v7058 = vshrl.u32 %v7057, 7
  %v7059 = vsub.s32 %v7056, %v7058
  %v7060 = vrot.slane %v7051, %v7059
  %v7062 = vunpack.c.l.s4 1966171168
  %v7063 = vunpack.c.0.s8 %v7062
  %v7064 = vlaneseq
  %v7065 = vshrl.u32 %v7064, 7
  %v7066 = vsub.s32 %v7063, %v7065
  %v7067 = vrot.slane %v7052, %v7066
  %v7069 = vunpack.c.l.s4 1966171168
  %v7070 = vunpack.c.0.s8 %v7069
  %v7071 = vlaneseq
  %v7072 = vshrl.u32 %v7071, 7
  %v7073 = vsub.s32 %v7070, %v7072
  %v7074 = vrot.slane %v7050, %v7073
  %v7076 = vunpack.c.l.s4 1966171168
  %v7077 = vunpack.c.0.s8 %v7076
  %v7078 = vlaneseq
  %v7079 = vshrl.u32 %v7078, 7
  %v7080 = vsub.s32 %v7077, %v7079
  %v7081 = vrot.slane %v7053, %v7080
  %v7082 = vcombine.low %v7060, %v7074
  %v7083 = vcombine.low %v7067, %v7081
  %v7108 = vunpack.c.l.b16 %v6939
  %v7109 = vunpack.c.l.b16 %v6940
  %v7110 = vunpack.c.l.b16 %v6941
  %v7111 = vunpack.c.l.b16 %v6942
  %v7112 = vunpack.c.l.b16 %v6943
  %v7113 = vunpack.c.l.b16 %v6944
  %v7114 = vunpack.c.l.b16 %v6945
  %v7115 = vunpack.c.l.b16 %v6946
  %v7116 = vunpack.c.l.b16 %v6947
  %v7117 = vunpack.c.l.b16 %v6948
  %v7118 = vunpack.c.l.b16 %v6949
  %v7119 = vunpack.c.l.b16 %v6950
  %v7120 = vunpack.c.l.b16 %v6951
  %v7121 = vunpack.c.l.b16 %v6952
  %v7122 = vunpack.c.l.b16 %v6953
  %v7123 = vunpack.c.l.b16 %v6954
  %v7124 = vunpack.c.l.b16 %v6955
  %v7125 = vunpack.c.l.b16 %v6956
  %v7126 = vunpack.c.l.b16 %v6957
  %v7127 = vunpack.c.l.b16 %v6958
  %v7128 = vunpack.c.l.b16 %v6959
  %v7129 = vunpack.c.l.b16 %v6960
  %v7130 = vpack.c.b16 %v7109, %v7108
  %v7131 = vpack.c.b16 %v7111, %v7110
  %v7132 = vpack.c.b16 %v7113, %v7112
  %v7133 = vpack.c.b16 %v7115, %v7114
  %v7134 = vpack.c.b16 %v7117, %v7116
  %v7135 = vpack.c.b16 %v7119, %v7118
  %v7136 = vpack.c.b16 %v7121, %v7120
  %v7137 = vpack.c.b16 %v7123, %v7122
  %v7138 = vpack.c.b16 %v7125, %v7124
  %v7139 = vpack.c.b16 %v7127, %v7126
  %v7140 = vpack.c.b16 %v7129, %v7128
  %v7153 = vsel %vm6009, %v7026, 0
  %v7156 = vsel %vm6009, %v7083, 0
  %7158 = vmatprep.subr.bf16.mxu0 0
  %7159 = vmatpush1.bf16.msra.mxu0 %v7137
  %7160 = vmatprep.subr.bf16.mxu0 0
  %7161 = vmatpush1.bf16.msra.mxu0 %v7136
  %7162 = vmatprep.subr.bf16.mxu0 0
  %7163 = vmatpush1.bf16.msra.mxu0 %v7135
  %7164 = vmatprep.subr.bf16.mxu0 0
  %7165 = vmatpush1.bf16.msra.mxu0 %v7134
  %7166 = vmatprep.subr.bf16.mxu0 0
  %7167 = vmatpush1.bf16.msra.mxu0 %v7133
  %7168 = vmatprep.subr.bf16.mxu0 0
  %7169 = vmatpush1.bf16.msra.mxu0 %v7132
  %7170 = vmatprep.subr.bf16.mxu0 0
  %7171 = vmatpush1.bf16.msra.mxu0 %v7131
  %7172 = vmatprep.subr.bf16.mxu0 0
  %7173 = vmatpush1.bf16.msra.mxu0 %v7130
  %7174 = vmatprep.subr.bf16.mxu0 0
  %7175 = vmatpush2.bf16.msra.mxu0 0
  %7176 = vmatprep.subr.bf16.mxu0 0
  %7177 = vmatpush2.bf16.msra.mxu0 0
  %7178 = vmatprep.subr.bf16.mxu0 0
  %7179 = vmatpush2.bf16.msra.mxu0 0
  %7180 = vmatprep.subr.bf16.mxu0 0
  %7181 = vmatpush2.bf16.msra.mxu0 0
  %7182 = vmatprep.subr.bf16.mxu0 0
  %7183 = vmatpush2.bf16.msra.mxu0 0
  %7184 = vmatprep.subr.bf16.mxu0 0
  %7185 = vmatpush2.bf16.msra.mxu0 %v7140
  %7186 = vmatprep.subr.bf16.mxu0 0
  %7187 = vmatpush2.bf16.msra.mxu0 %v7139
  %7188 = vmatprep.subr.bf16.mxu0 0
  %7189 = vmatpush2.bf16.msra.mxu0 %v7138
  %7190 = vmatprep.mubr.bf16.mxu0 %v7153
  %7191 = vmatmul.mubr.bf16.gmra.mxu0 %v7025
  %v7192 = vpop.f32.mrf.mxu0
  %v7193 = vadd.f32 0.0, %v7192
  %v7194 = vpop.f32.mrf.mxu0
  %v7195 = vpop.f32.mrf.mxu0
  %v7196 = vadd.f32 0.0, %v7195
  %v7197 = vpop.f32.mrf.mxu0
  %7198 = vmatprep.mubr.bf16.mxu0 %v7156
  %7199 = vmatmul.mubr.bf16.gmra.mxu0 %v7082
  %v7200 = vpop.f32.mrf.mxu0
  %v7201 = vadd.f32 0.0, %v7200
  %v7202 = vpop.f32.mrf.mxu0
  %v7203 = vpop.f32.mrf.mxu0
  %v7204 = vadd.f32 0.0, %v7203
  %v7205 = vpop.f32.mrf.mxu0
  %7206 = vdwg.mxu0
  %v7207 = vadd.f32 %v6684, %v7193
  %v7208 = vadd.f32 %v6685, %v7196
  %v7209 = vadd.f32 %v6686, %v7201
  %v7210 = vadd.f32 %v6687, %v7204
  %v7211 = vld [vmem:[%s8] sm:$0x1]
  %v7213 = vlaneseq
  %v7214 = vshrl.u32 %v7213, 7
  %v7215 = vsub.s32 0, %v7214
  %v7216 = vrot.slane %v7211, %v7215
  %v7218 = vadd.f32 %v7207, %v7216
  %v7219 = vadd.f32 %v7208, %v7216
  %v7220 = vadd.f32 %v7209, %v7216
  %v7221 = vadd.f32 %v7210, %v7216
  %v7222 = vxor.u32 %v7218, 2147483648
  %v7223 = vxor.u32 %v7219, 2147483648
  %v7224 = vxor.u32 %v7220, 2147483648
  %v7225 = vxor.u32 %v7221, 2147483648
  %v7226 = vmul.f32 %v7222, 1.442695
  %v7227 = vpow.pop %v7226
  %v7228 = vmul.f32 %v7223, 1.442695
  %v7229 = vpow.pop %v7228
  %v7230 = vmul.f32 %v7224, 1.442695
  %v7231 = vpow.pop %v7230
  %v7232 = vmul.f32 %v7225, 1.442695
  %v7233 = vpow.pop %v7232
  %v7234 = vadd.f32 %v7227, 1.0
  %v7235 = vadd.f32 %v7229, 1.0
  %v7236 = vadd.f32 %v7231, 1.0
  %v7237 = vadd.f32 %v7233, 1.0
  %v7238 = vrcp.pop %v7234
  %v7239 = vmul.f32 1.0, %v7238
  %v7240 = vrcp.pop %v7235
  %v7241 = vmul.f32 1.0, %v7240
  %v7242 = vrcp.pop %v7236
  %v7243 = vmul.f32 1.0, %v7242
  %v7244 = vrcp.pop %v7237
  %v7245 = vmul.f32 1.0, %v7244
  %v7250 = vcombine.high %v7239, %v7239
  %v7252 = vunpack.c.l.s4 1983009808
  %v7253 = vunpack.c.0.s8 %v7252
  %v7254 = vlaneseq
  %v7255 = vshrl.u32 %v7254, 7
  %v7256 = vsub.s32 %v7253, %v7255
  %v7257 = vrot.slane %v7239, %v7256
  %v7259 = vunpack.c.l.s4 1983009808
  %v7260 = vunpack.c.0.s8 %v7259
  %v7261 = vlaneseq
  %v7262 = vshrl.u32 %v7261, 7
  %v7263 = vsub.s32 %v7260, %v7262
  %v7264 = vrot.slane %v7250, %v7263
  %v7265 = vcombine.high %v7257, %v7257
  %v7266 = vcombine.high %v7264, %v7264
  %v7267 = vcombine.high %v7241, %v7241
  %v7269 = vunpack.c.l.s4 1983009808
  %v7270 = vunpack.c.0.s8 %v7269
  %v7271 = vlaneseq
  %v7272 = vshrl.u32 %v7271, 7
  %v7273 = vsub.s32 %v7270, %v7272
  %v7274 = vrot.slane %v7241, %v7273
  %v7276 = vunpack.c.l.s4 1983009808
  %v7277 = vunpack.c.0.s8 %v7276
  %v7278 = vlaneseq
  %v7279 = vshrl.u32 %v7278, 7
  %v7280 = vsub.s32 %v7277, %v7279
  %v7281 = vrot.slane %v7267, %v7280
  %v7282 = vcombine.high %v7274, %v7274
  %v7283 = vcombine.high %v7281, %v7281
  %v7284 = vcombine.high %v7243, %v7243
  %v7286 = vunpack.c.l.s4 1983009808
  %v7287 = vunpack.c.0.s8 %v7286
  %v7288 = vlaneseq
  %v7289 = vshrl.u32 %v7288, 7
  %v7290 = vsub.s32 %v7287, %v7289
  %v7291 = vrot.slane %v7243, %v7290
  %v7293 = vunpack.c.l.s4 1983009808
  %v7294 = vunpack.c.0.s8 %v7293
  %v7295 = vlaneseq
  %v7296 = vshrl.u32 %v7295, 7
  %v7297 = vsub.s32 %v7294, %v7296
  %v7298 = vrot.slane %v7284, %v7297
  %v7299 = vcombine.high %v7291, %v7291
  %v7300 = vcombine.high %v7298, %v7298
  %v7302 = vunpack.c.l.s4 1983009808
  %v7303 = vunpack.c.0.s8 %v7302
  %v7304 = vlaneseq
  %v7305 = vshrl.u32 %v7304, 7
  %v7306 = vsub.s32 %v7303, %v7305
  %v7307 = vrot.slane %v7245, %v7306
  %v7308 = vcombine.high %v7307, %v7307
  %v7309 = vcombine.low %v7257, %v7265
  %v7310 = vcombine.low %v7264, %v7266
  %v7312 = vunpack.c.l.s4 1983009808
  %v7313 = vunpack.c.0.s8 %v7312
  %v7314 = vlaneseq
  %v7315 = vshrl.u32 %v7314, 7
  %v7316 = vsub.s32 %v7313, %v7315
  %v7317 = vrot.slane %v7309, %v7316
  %v7319 = vunpack.c.l.s4 1983009808
  %v7320 = vunpack.c.0.s8 %v7319
  %v7321 = vlaneseq
  %v7322 = vshrl.u32 %v7321, 7
  %v7323 = vsub.s32 %v7320, %v7322
  %v7324 = vrot.slane %v7310, %v7323
  %v7325 = vcombine.low %v7317, %v7324
  %v7326 = vcombine.low %v7274, %v7282
  %v7328 = vunpack.c.l.s4 1983009808
  %v7329 = vunpack.c.0.s8 %v7328
  %v7330 = vlaneseq
  %v7331 = vshrl.u32 %v7330, 7
  %v7332 = vsub.s32 %v7329, %v7331
  %v7333 = vrot.slane %v7326, %v7332
  %v7335 = vunpack.c.l.s4 1983009808
  %v7336 = vunpack.c.0.s8 %v7335
  %v7337 = vlaneseq
  %v7338 = vshrl.u32 %v7337, 7
  %v7339 = vsub.s32 %v7336, %v7338
  %v7340 = vrot.slane %v7281, %v7339
  %v7341 = vcombine.low %v7333, %v7340
  %v7342 = vcombine.low %v7283, %v7291
  %v7343 = vcombine.low %v7299, %v7298
  %v7345 = vunpack.c.l.s4 1983009808
  %v7346 = vunpack.c.0.s8 %v7345
  %v7347 = vlaneseq
  %v7348 = vshrl.u32 %v7347, 7
  %v7349 = vsub.s32 %v7346, %v7348
  %v7350 = vrot.slane %v7342, %v7349
  %v7352 = vunpack.c.l.s4 1983009808
  %v7353 = vunpack.c.0.s8 %v7352
  %v7354 = vlaneseq
  %v7355 = vshrl.u32 %v7354, 7
  %v7356 = vsub.s32 %v7353, %v7355
  %v7357 = vrot.slane %v7343, %v7356
  %v7358 = vcombine.low %v7350, %v7357
  %v7359 = vcombine.low %v7300, %v7307
  %v7361 = vunpack.c.l.s4 1983009808
  %v7362 = vunpack.c.0.s8 %v7361
  %v7363 = vlaneseq
  %v7364 = vshrl.u32 %v7363, 7
  %v7365 = vsub.s32 %v7362, %v7364
  %v7366 = vrot.slane %v7359, %v7365
  %v7368 = vunpack.c.l.s4 1983009808
  %v7369 = vunpack.c.0.s8 %v7368
  %v7370 = vlaneseq
  %v7371 = vshrl.u32 %v7370, 7
  %v7372 = vsub.s32 %v7369, %v7371
  %v7373 = vrot.slane %v7308, %v7372
  %v7374 = vcombine.low %v7366, %v7373
  %vm7379 = vcmask 457728
  %7380 = vst.msk [vmem:[%s9] sm:$0xff] %vm7379, %v7325
  %vm7381 = vcmask 455680
  %7382 = vst.msk [vmem:[%s9 + $0x8] sm:$0x3f] %vm7381, %v7341
  %7383 = vst.msk [vmem:[%s9 + $0x10] sm:$0xff] %vm7379, %v7358
  %7384 = vst.msk [vmem:[%s9 + $0x18] sm:$0x3f] %vm7381, %v7374
  // Predicated region
  $region38: #{tpu_custom_call.1} parent=0 // pred_check
    _
  $region39: #{tpu_custom_call.1} parent=0 // pred_check_branch
    %7386 = sbr.rel (0) target = $region41
  $region40: #{tpu_custom_call.1} parent=0 // pred_region
    _
  $region41: #{tpu_custom_call.1} parent=0 // pred_fallthru
    _
  // Predicated region
  $region42: #{tpu_custom_call.1} parent=0 // pred_check
    _
  $region43: #{tpu_custom_call.1} parent=0 // pred_check_branch
    %7388 = sbr.rel (0) target = $region45
  $region44: #{tpu_custom_call.1} parent=0 // pred_region
    _
  $region45: #{tpu_custom_call.1} parent=0 // pred_fallthru
    _

</llo_original>
